<compile_context>
chip_gen: v7x
topology: tpu7x:2x2x1
jax: 0.10.0
libtpu: 0.0.40
codegen_flags: <defaults>
</compile_context>

<pallas_src>
import functools

import jax
import jax.numpy as jnp
from jax.experimental import pallas as pl
from jax.experimental.pallas import tpu as pltpu


_VMEM_BUDGET = 8 * 1024 * 1024     # target bytes of blocks + scratch per grid step
_VMEM_LIMIT = 32 * 1024 * 1024     # scoped-VMEM limit (safe on v5e/v6e/v7x)


def _divisors_desc(n):
    return [d for d in range(n, 0, -1) if n % d == 0]


# ----------------------- stage 1: fused AS2 + BS2 spatial convs -----------------------

def _spatial_ab_kernel(x_ref, wa_ref, wb_ref, ba_ref, bb_ref, a_ref, b2_ref, xpad_ref, *,
                       H, W, K, rate, p, cin, cout, T):
    """Fused AS2 + BS2: two Conv3d (1,K,K) convs (dilation=rate, 'same' H,W padding).

    x_ref       : (T, H, W, cin)            T batched (n,d) slices, unpadded
    wa_ref/wb_ref: (K*K, cin, cout)         AS2 / BS2 weights, tap-major
    ba_ref/bb_ref: (1, cout)
    a_ref/b2_ref : (T, H*W, cout)           ax2 / bx2 outputs
    xpad_ref    : (T, H+2p, W+2p, cin)      VMEM scratch (spatial halo)
    """
    zdt = xpad_ref.dtype
    # Zero the halo and copy the tile into the padded scratch (avoids a wrapper-side
    # jnp.pad -> full extra HBM read+write of x).
    if p > 0:
        xpad_ref[:, :p, :, :] = jnp.zeros((T, p, W + 2 * p, cin), zdt)
        xpad_ref[:, H + p:, :, :] = jnp.zeros((T, p, W + 2 * p, cin), zdt)
        xpad_ref[:, :, :p, :] = jnp.zeros((T, H + 2 * p, p, cin), zdt)
        xpad_ref[:, :, W + p:, :] = jnp.zeros((T, H + 2 * p, p, cin), zdt)
    xpad_ref[:, p:p + H, p:p + W, :] = x_ref[...].astype(zdt)

    xall = xpad_ref[...]                              # (T, H+2p, W+2p, cin)
    M = T * H * W
    acc_a = jnp.zeros((M, cout), jnp.float32)
    acc_b = jnp.zeros((M, cout), jnp.float32)
    for kh in range(K):
        for kw in range(K):
            xs = xall[:, kh * rate:kh * rate + H, kw * rate:kw * rate + W, :]
            xs = xs.reshape(M, cin)                   # shared between the two convs
            acc_a = acc_a + jnp.dot(xs, wa_ref[kh * K + kw],
                                    preferred_element_type=jnp.float32)
            acc_b = acc_b + jnp.dot(xs, wb_ref[kh * K + kw],
                                    preferred_element_type=jnp.float32)
    a_ref[...] = (acc_a + ba_ref[...]).astype(a_ref.dtype).reshape(T, H * W, cout)
    b2_ref[...] = (acc_b + bb_ref[...]).astype(b2_ref.dtype).reshape(T, H * W, cout)


def _spatial_ab(x_nd, w_a, w_b, b_a, b_b, K, rate, out_dtype):
    ND, H, W, Cin = x_nd.shape
    Cout = w_a.shape[-1]
    p = (K - 1) // 2 * rate

    def step_bytes(t):                        # rough f32-equivalent VMEM estimate
        return 4 * t * (2 * H * W * Cin                        # input block (dbl-buffered)
                        + (H + 2 * p) * (W + 2 * p) * Cin      # padded scratch
                        + 2 * 2 * H * W * Cout                 # 2 output blocks (dbl-buf)
                        + 2 * H * W * Cout)                    # f32 accumulators

    T = 1
    for t in _divisors_desc(ND):
        if ND >= 2 and t == ND:
            continue                           # keep >=2 grid steps for megacore
        if step_bytes(t) <= _VMEM_BUDGET:
            T = t
            break

    kern = functools.partial(_spatial_ab_kernel, H=H, W=W, K=K, rate=rate, p=p,
                             cin=Cin, cout=Cout, T=T)
    ax2, bx2 = pl.pallas_call(
        kern,
        out_shape=(jax.ShapeDtypeStruct((ND, H * W, Cout), out_dtype),
                   jax.ShapeDtypeStruct((ND, H * W, Cout), out_dtype)),
        grid=(ND // T,),
        in_specs=[
            pl.BlockSpec((T, H, W, Cin), lambda i: (i, 0, 0, 0)),
            pl.BlockSpec((K * K, Cin, Cout), lambda i: (0, 0, 0)),
            pl.BlockSpec((K * K, Cin, Cout), lambda i: (0, 0, 0)),
            pl.BlockSpec((1, Cout), lambda i: (0, 0)),
            pl.BlockSpec((1, Cout), lambda i: (0, 0)),
        ],
        out_specs=(
            pl.BlockSpec((T, H * W, Cout), lambda i: (i, 0, 0)),
            pl.BlockSpec((T, H * W, Cout), lambda i: (i, 0, 0)),
        ),
        scratch_shapes=[pltpu.VMEM((T, H + 2 * p, W + 2 * p, Cin), w_a.dtype)],
        compiler_params=pltpu.CompilerParams(
            dimension_semantics=("parallel",),
            vmem_limit_bytes=_VMEM_LIMIT),
    )(x_nd, w_a, w_b, b_a, b_b)
    return ax2, bx2


# -------------- stage 2: fused AS1 depth conv + SC + LeakyReLU + residual --------------

def _depth_fuse_kernel(ax2_ref, bx2_ref, x_ref, wd_ref, bd_ref, w1_ref, w2_ref,
                       bsc_ref, o_ref, dpad_ref, *, D, K, rate, p, thw, cout, res):
    """ax1 = Conv3d (K,1,1)(ax2); out = LeakyReLU(ax1@W1 + bx2@W2 + b) [+ x].

    ax2_ref/bx2_ref : (1, D, thw, cout)
    x_ref           : (1, D, thw, cin_x)    residual input tile (cin_x == cout when res)
    wd_ref          : (K, cout, cout)       AS1 weights, tap-major
    bd_ref/bsc_ref  : (1, cout)
    w1_ref/w2_ref   : (cout, cout)          SC weight split for the channel concat
    o_ref           : (1, D, thw, cout)
    dpad_ref        : (D+2p, thw, cout)     VMEM scratch (depth halo)
    """
    zdt = dpad_ref.dtype
    if p > 0:
        dpad_ref[:p] = jnp.zeros((p, thw, cout), zdt)
        dpad_ref[D + p:] = jnp.zeros((p, thw, cout), zdt)
    dpad_ref[p:p + D] = ax2_ref[0].astype(zdt)

    dall = dpad_ref[...]                              # (D+2p, thw, cout)
    M = D * thw
    acc = jnp.zeros((M, cout), jnp.float32)
    for kd in range(K):
        xs = dall[kd * rate:kd * rate + D].reshape(M, cout)
        acc = acc + jnp.dot(xs, wd_ref[kd], preferred_element_type=jnp.float32)
    ax1 = acc + bd_ref[...]                           # (M, cout), f32, stays in VMEM

    y = jnp.dot(ax1.astype(w1_ref.dtype), w1_ref[...],
                preferred_element_type=jnp.float32)
    y = y + jnp.dot(bx2_ref[0].reshape(M, cout).astype(w2_ref.dtype), w2_ref[...],
                    preferred_element_type=jnp.float32)
    y = y + bsc_ref[...]
    y = jnp.where(y > 0, y, 0.2 * y)                  # LeakyReLU(negative_slope=0.2)
    if res:
        y = y + x_ref[0].reshape(M, cout).astype(jnp.float32)
    o_ref[...] = y.reshape(1, D, thw, cout).astype(o_ref.dtype)


def _depth_fuse(ax2, bx2, x_res, w_d, b_d, w1, w2, b_sc, K, rate, res, out_dtype):
    N, D, HW, Cout = ax2.shape
    Cx = x_res.shape[-1]
    p = (K - 1) // 2 * rate

    def step_bytes(t):                        # rough f32-equivalent VMEM estimate
        return 4 * D * t * (2 * 2 * Cout      # ax2 + bx2 blocks (dbl-buffered)
                            + 2 * Cx          # residual block (dbl-buffered)
                            + 2 * Cout        # output block (dbl-buffered)
                            + Cout            # depth-padded scratch (~)
                            + 2 * Cout)       # f32 temporaries

    thw = None
    for t in _divisors_desc(HW):
        if t != HW and t % 8 != 0:
            continue                          # block sublane constraint
        if N == 1 and t == HW and HW > 8:
            continue                          # keep >=2 grid steps for megacore
        if step_bytes(t) <= _VMEM_BUDGET:
            thw = t
            break
    if thw is None:
        thw = HW

    kern = functools.partial(_depth_fuse_kernel, D=D, K=K, rate=rate, p=p,
                             thw=thw, cout=Cout, res=res)
    out = pl.pallas_call(
        kern,
        out_shape=jax.ShapeDtypeStruct((N, D, HW, Cout), out_dtype),
        grid=(N, HW // thw),
        in_specs=[
            pl.BlockSpec((1, D, thw, Cout), lambda n, j: (n, 0, j, 0)),
            pl.BlockSpec((1, D, thw, Cout), lambda n, j: (n, 0, j, 0)),
            pl.BlockSpec((1, D, thw, Cx), lambda n, j: (n, 0, j, 0)),
            pl.BlockSpec((K, Cout, Cout), lambda n, j: (0, 0, 0)),
            pl.BlockSpec((1, Cout), lambda n, j: (0, 0)),
            pl.BlockSpec((Cout, Cout), lambda n, j: (0, 0)),
            pl.BlockSpec((Cout, Cout), lambda n, j: (0, 0)),
            pl.BlockSpec((1, Cout), lambda n, j: (0, 0)),
        ],
        out_specs=pl.BlockSpec((1, D, thw, Cout), lambda n, j: (n, 0, j, 0)),
        scratch_shapes=[pltpu.VMEM((D + 2 * p, thw, Cout), ax2.dtype)],
        compiler_params=pltpu.CompilerParams(
            dimension_semantics=("parallel", "parallel"),
            vmem_limit_bytes=_VMEM_LIMIT),
    )(ax2, bx2, x_res, w_d, b_d, w1, w2, b_sc)
    return out


# ----------------------------------- forward pass -----------------------------------

def sa3d_forward(x_ncdhw, params, K=3, rate=1, res=True, mxu_dtype=jnp.float32):
    N, C, D, H, W = x_ncdhw.shape
    Cout = params["AS2_w"].shape[0]
    inter_dtype = jnp.float32 if mxu_dtype == jnp.float32 else mxu_dtype

    x = jnp.transpose(x_ncdhw, (0, 2, 3, 4, 1))                # NCDHW -> NDHWC

    # Stage 1: fused AS2 + BS2. Torch weight (O, I, 1, K, K) -> (K*K, I, O), tap-major.
    def _wspatial(w):
        return jnp.transpose(w[:, :, 0], (2, 3, 1, 0)).reshape(K * K, C, Cout)
    w_a = _wspatial(params["AS2_w"]).astype(mxu_dtype)
    w_b = _wspatial(params["BS2_w"]).astype(mxu_dtype)
    b_a = params["AS2_b"].reshape(1, Cout)
    b_b = params["BS2_b"].reshape(1, Cout)

    ax2, bx2 = _spatial_ab(x.reshape(N * D, H, W, C), w_a, w_b, b_a, b_b, K, rate,
                           out_dtype=inter_dtype)
    ax2 = ax2.reshape(N, D, H * W, Cout)
    bx2 = bx2.reshape(N, D, H * W, Cout)

    # Stage 2: fused AS1 depth conv + SC 1x1x1 + LeakyReLU + residual (ax1 stays in VMEM).
    w_d = jnp.transpose(params["AS1_w"][:, :, :, 0, 0], (2, 1, 0)).astype(mxu_dtype)
    b_d = params["AS1_b"].reshape(1, Cout)
    w_sc = params["SC_w"][:, :, 0, 0, 0].T                     # (2*Cout, Cout)
    w1 = w_sc[:Cout].astype(mxu_dtype)                         # applied to ax1
    w2 = w_sc[Cout:].astype(mxu_dtype)                         # applied to bx2
    b_sc = params["SC_b"].reshape(1, Cout)

    out = _depth_fuse(ax2, bx2, x.reshape(N, D, H * W, C), w_d, b_d, w1, w2, b_sc,
                      K, rate, res, out_dtype=x.dtype)
    out = out.reshape(N, D, H, W, Cout)
    return jnp.transpose(out, (0, 4, 1, 2, 3))                 # NDHWC -> NCDHW


# ----------------------------- params & pure-JAX reference -----------------------------

def init_params(key, in_ch, out_ch, K):
    ks = jax.random.split(key, 8)
    r = lambda k, s: jax.random.normal(k, s, jnp.float32) * 0.1
    return {
        "AS2_w": r(ks[0], (out_ch, in_ch, 1, K, K)),
        "AS2_b": r(ks[1], (out_ch,)),
        "AS1_w": r(ks[2], (out_ch, out_ch, K, 1, 1)),
        "AS1_b": r(ks[3], (out_ch,)),
        "BS2_w": r(ks[4], (out_ch, in_ch, 1, K, K)),
        "BS2_b": r(ks[5], (out_ch,)),
        "SC_w":  r(ks[6], (out_ch, 2 * out_ch, 1, 1, 1)),
        "SC_b":  r(ks[7], (out_ch,)),
    }


def _conv3d_ref(x, w, b, padding, rate):
    out = jax.lax.conv_general_dilated(
        x, w, window_strides=(1, 1, 1),
        padding=[(padding[0],) * 2, (padding[1],) * 2, (padding[2],) * 2],
        rhs_dilation=(rate, rate, rate),
        dimension_numbers=("NCDHW", "OIDHW", "NCDHW"))
    return out + b.reshape(1, -1, 1, 1, 1)


def sa3d_reference(x, params, K=3, rate=1, res=True):
    p = (K - 1) // 2 * rate
    ax2 = _conv3d_ref(x, params["AS2_w"], params["AS2_b"], (0, p, p), rate)
    ax1 = _conv3d_ref(ax2, params["AS1_w"], params["AS1_b"], (p, 0, 0), rate)
    bx2 = _conv3d_ref(x, params["BS2_w"], params["BS2_b"], (0, p, p), rate)
    cat = jnp.concatenate([ax1, bx2], axis=1)
    y = _conv3d_ref(cat, params["SC_w"], params["SC_b"], (0, 0, 0), rate)
    y = jnp.where(y > 0, y, 0.2 * y)
    if res:
        y = y + x
    return y


if __name__ == "__main__":
    key = jax.random.PRNGKey(0)
    kx, kp = jax.random.split(key)
    N, C, D, H, W = 2, 4, 4, 8, 8          # small shapes; in_ch == out_ch (residual)
    x = jax.random.normal(kx, (N, C, D, H, W), jnp.float32)
    params = init_params(kp, in_ch=C, out_ch=C, K=3)

    out = jax.block_until_ready(sa3d_forward(x, params, K=3, rate=1, res=True))

    ref = sa3d_reference(x, params, K=3, rate=1, res=True)
    assert out.shape == ref.shape == (N, C, D, H, W)
    assert jnp.allclose(out, ref, atol=1e-4, rtol=1e-4), \
        float(jnp.max(jnp.abs(out - ref)))
    print("KERNEL_OK")
</pallas_src>

<mosaic_0001>
module attributes {stable_mosaic.version = 11 : i64} {
  func.func @_spatial_ab_kernel(%arg0: i32, %arg1: memref<4x8x8x4xf32, #tpu.memory_space<vmem>>, %arg2: memref<9x4x4xf32, #tpu.memory_space<vmem>>, %arg3: memref<9x4x4xf32, #tpu.memory_space<vmem>>, %arg4: memref<1x4xf32, #tpu.memory_space<vmem>>, %arg5: memref<1x4xf32, #tpu.memory_space<vmem>>, %arg6: memref<4x64x4xf32, #tpu.memory_space<vmem>>, %arg7: memref<4x64x4xf32, #tpu.memory_space<vmem>>, %arg8: memref<4x10x10x4xf32, #tpu.memory_space<vmem>>) attributes {dimension_semantics = [#tpu.dimension_semantics<parallel>], iteration_bounds = array<i64: 2>, scalar_prefetch = 0 : i64, scratch_operands = 1 : i64, tpu.core_type = #tpu.core_type<tc>, window_params = [{transform_indices = @transform_0, window_bounds = array<i64: 4, 8, 8, 4>}, {pipeline_mode = #tpu.pipeline_mode<synchronous>, transform_indices = @transform_1, window_bounds = array<i64: 9, 4, 4>}, {pipeline_mode = #tpu.pipeline_mode<synchronous>, transform_indices = @transform_2, window_bounds = array<i64: 9, 4, 4>}, {pipeline_mode = #tpu.pipeline_mode<synchronous>, transform_indices = @transform_3, window_bounds = array<i64: 1, 4>}, {pipeline_mode = #tpu.pipeline_mode<synchronous>, transform_indices = @transform_4, window_bounds = array<i64: 1, 4>}, {transform_indices = @transform_5, window_bounds = array<i64: 4, 64, 4>}, {transform_indices = @transform_6, window_bounds = array<i64: 4, 64, 4>}]} {
    %cst = arith.constant 0.000000e+00 : f32
    %0 = vector.broadcast %cst : f32 to vector<4x1x10x4xf32>
    %c0 = arith.constant 0 : index
    %c0_0 = arith.constant 0 : index
    %c0_1 = arith.constant 0 : index
    %c0_2 = arith.constant 0 : index
    %1 = vector.load %arg8[%c0, %c0_0, %c0_1, %c0_2] : memref<4x10x10x4xf32, #tpu.memory_space<vmem>>, vector<4x1x10x4xf32>
    tpu.vector_store %arg8[%c0, %c0_0, %c0_1, %c0_2], %0 {strides = array<i32>} : memref<4x10x10x4xf32, #tpu.memory_space<vmem>>, vector<4x1x10x4xf32>,
    %cst_3 = arith.constant 0.000000e+00 : f32
    %2 = vector.broadcast %cst_3 : f32 to vector<4x1x10x4xf32>
    %c0_4 = arith.constant 0 : index
    %c9 = arith.constant 9 : index
    %c0_5 = arith.constant 0 : index
    %c0_6 = arith.constant 0 : index
    %3 = vector.load %arg8[%c0_4, %c9, %c0_5, %c0_6] : memref<4x10x10x4xf32, #tpu.memory_space<vmem>>, vector<4x1x10x4xf32>
    tpu.vector_store %arg8[%c0_4, %c9, %c0_5, %c0_6], %2 {strides = array<i32>} : memref<4x10x10x4xf32, #tpu.memory_space<vmem>>, vector<4x1x10x4xf32>,
    %cst_7 = arith.constant 0.000000e+00 : f32
    %4 = vector.broadcast %cst_7 : f32 to vector<4x10x1x4xf32>
    %c0_8 = arith.constant 0 : index
    %c0_9 = arith.constant 0 : index
    %c0_10 = arith.constant 0 : index
    %c0_11 = arith.constant 0 : index
    %5 = vector.load %arg8[%c0_8, %c0_9, %c0_10, %c0_11] : memref<4x10x10x4xf32, #tpu.memory_space<vmem>>, vector<4x10x1x4xf32>
    tpu.vector_store %arg8[%c0_8, %c0_9, %c0_10, %c0_11], %4 {strides = array<i32>} : memref<4x10x10x4xf32, #tpu.memory_space<vmem>>, vector<4x10x1x4xf32>,
    %cst_12 = arith.constant 0.000000e+00 : f32
    %6 = vector.broadcast %cst_12 : f32 to vector<4x10x1x4xf32>
    %c0_13 = arith.constant 0 : index
    %c0_14 = arith.constant 0 : index
    %c9_15 = arith.constant 9 : index
    %c0_16 = arith.constant 0 : index
    %7 = vector.load %arg8[%c0_13, %c0_14, %c9_15, %c0_16] : memref<4x10x10x4xf32, #tpu.memory_space<vmem>>, vector<4x10x1x4xf32>
    tpu.vector_store %arg8[%c0_13, %c0_14, %c9_15, %c0_16], %6 {strides = array<i32>} : memref<4x10x10x4xf32, #tpu.memory_space<vmem>>, vector<4x10x1x4xf32>,
    %c0_17 = arith.constant 0 : index
    %c0_18 = arith.constant 0 : index
    %c0_19 = arith.constant 0 : index
    %c0_20 = arith.constant 0 : index
    %8 = vector.load %arg1[%c0_17, %c0_18, %c0_19, %c0_20] : memref<4x8x8x4xf32, #tpu.memory_space<vmem>>, vector<4x8x8x4xf32>
    %c0_21 = arith.constant 0 : index
    %c1 = arith.constant 1 : index
    %c1_22 = arith.constant 1 : index
    %c0_23 = arith.constant 0 : index
    %9 = vector.load %arg8[%c0_21, %c1, %c1_22, %c0_23] : memref<4x10x10x4xf32, #tpu.memory_space<vmem>>, vector<4x8x8x4xf32>
    tpu.vector_store %arg8[%c0_21, %c1, %c1_22, %c0_23], %8 {strides = array<i32>} : memref<4x10x10x4xf32, #tpu.memory_space<vmem>>, vector<4x8x8x4xf32>,
    %c0_24 = arith.constant 0 : index
    %c0_25 = arith.constant 0 : index
    %c0_26 = arith.constant 0 : index
    %c0_27 = arith.constant 0 : index
    %10 = vector.load %arg8[%c0_24, %c0_25, %c0_26, %c0_27] : memref<4x10x10x4xf32, #tpu.memory_space<vmem>>, vector<4x10x10x4xf32>
    %cst_28 = arith.constant 0.000000e+00 : f32
    %11 = vector.broadcast %cst_28 : f32 to vector<256x4xf32>
    %cst_29 = arith.constant 0.000000e+00 : f32
    %12 = vector.broadcast %cst_29 : f32 to vector<256x4xf32>
    %13 = vector.extract_strided_slice %10 {offsets = [0, 0, 0, 0], sizes = [4, 8, 8, 4], strides = [1, 1, 1, 1]} : vector<4x10x10x4xf32> to vector<4x8x8x4xf32>
    %14 = vector.shape_cast %13 : vector<4x8x8x4xf32> to vector<256x4xf32>
    %c0_30 = arith.constant 0 : index
    %c0_31 = arith.constant 0 : index
    %c0_32 = arith.constant 0 : index
    %15 = vector.load %arg2[%c0_30, %c0_31, %c0_32] : memref<9x4x4xf32, #tpu.memory_space<vmem>>, vector<1x4x4xf32>
    %16 = vector.shape_cast %15 : vector<1x4x4xf32> to vector<4x4xf32>
    %cst_33 = arith.constant dense<0.000000e+00> : vector<256x4xf32>
    %17 = tpu.matmul %14, %16, %cst_33 {dimension_numbers = #tpu.dot_dimension_numbers<[1], [0], [0], [1], [0, 0, 1, 1], [], []>} : vector<256x4xf32>, vector<4x4xf32>, vector<256x4xf32> -> vector<256x4xf32>
    %18 = arith.addf %11, %17 : vector<256x4xf32>
    %c0_34 = arith.constant 0 : index
    %c0_35 = arith.constant 0 : index
    %c0_36 = arith.constant 0 : index
    %19 = vector.load %arg3[%c0_34, %c0_35, %c0_36] : memref<9x4x4xf32, #tpu.memory_space<vmem>>, vector<1x4x4xf32>
    %20 = vector.shape_cast %19 : vector<1x4x4xf32> to vector<4x4xf32>
    %cst_37 = arith.constant dense<0.000000e+00> : vector<256x4xf32>
    %21 = tpu.matmul %14, %20, %cst_37 {dimension_numbers = #tpu.dot_dimension_numbers<[1], [0], [0], [1], [0, 0, 1, 1], [], []>} : vector<256x4xf32>, vector<4x4xf32>, vector<256x4xf32> -> vector<256x4xf32>
    %22 = arith.addf %12, %21 : vector<256x4xf32>
    %23 = vector.extract_strided_slice %10 {offsets = [0, 0, 1, 0], sizes = [4, 8, 8, 4], strides = [1, 1, 1, 1]} : vector<4x10x10x4xf32> to vector<4x8x8x4xf32>
    %24 = vector.shape_cast %23 : vector<4x8x8x4xf32> to vector<256x4xf32>
    %c1_38 = arith.constant 1 : index
    %c0_39 = arith.constant 0 : index
    %c0_40 = arith.constant 0 : index
    %25 = vector.load %arg2[%c1_38, %c0_39, %c0_40] : memref<9x4x4xf32, #tpu.memory_space<vmem>>, vector<1x4x4xf32>
    %26 = vector.shape_cast %25 : vector<1x4x4xf32> to vector<4x4xf32>
    %cst_41 = arith.constant dense<0.000000e+00> : vector<256x4xf32>
    %27 = tpu.matmul %24, %26, %cst_41 {dimension_numbers = #tpu.dot_dimension_numbers<[1], [0], [0], [1], [0, 0, 1, 1], [], []>} : vector<256x4xf32>, vector<4x4xf32>, vector<256x4xf32> -> vector<256x4xf32>
    %28 = arith.addf %18, %27 : vector<256x4xf32>
    %c1_42 = arith.constant 1 : index
    %c0_43 = arith.constant 0 : index
    %c0_44 = arith.constant 0 : index
    %29 = vector.load %arg3[%c1_42, %c0_43, %c0_44] : memref<9x4x4xf32, #tpu.memory_space<vmem>>, vector<1x4x4xf32>
    %30 = vector.shape_cast %29 : vector<1x4x4xf32> to vector<4x4xf32>
    %cst_45 = arith.constant dense<0.000000e+00> : vector<256x4xf32>
    %31 = tpu.matmul %24, %30, %cst_45 {dimension_numbers = #tpu.dot_dimension_numbers<[1], [0], [0], [1], [0, 0, 1, 1], [], []>} : vector<256x4xf32>, vector<4x4xf32>, vector<256x4xf32> -> vector<256x4xf32>
    %32 = arith.addf %22, %31 : vector<256x4xf32>
    %33 = vector.extract_strided_slice %10 {offsets = [0, 0, 2, 0], sizes = [4, 8, 8, 4], strides = [1, 1, 1, 1]} : vector<4x10x10x4xf32> to vector<4x8x8x4xf32>
    %34 = vector.shape_cast %33 : vector<4x8x8x4xf32> to vector<256x4xf32>
    %c2 = arith.constant 2 : index
    %c0_46 = arith.constant 0 : index
    %c0_47 = arith.constant 0 : index
    %35 = vector.load %arg2[%c2, %c0_46, %c0_47] : memref<9x4x4xf32, #tpu.memory_space<vmem>>, vector<1x4x4xf32>
    %36 = vector.shape_cast %35 : vector<1x4x4xf32> to vector<4x4xf32>
    %cst_48 = arith.constant dense<0.000000e+00> : vector<256x4xf32>
    %37 = tpu.matmul %34, %36, %cst_48 {dimension_numbers = #tpu.dot_dimension_numbers<[1], [0], [0], [1], [0, 0, 1, 1], [], []>} : vector<256x4xf32>, vector<4x4xf32>, vector<256x4xf32> -> vector<256x4xf32>
    %38 = arith.addf %28, %37 : vector<256x4xf32>
    %c2_49 = arith.constant 2 : index
    %c0_50 = arith.constant 0 : index
    %c0_51 = arith.constant 0 : index
    %39 = vector.load %arg3[%c2_49, %c0_50, %c0_51] : memref<9x4x4xf32, #tpu.memory_space<vmem>>, vector<1x4x4xf32>
    %40 = vector.shape_cast %39 : vector<1x4x4xf32> to vector<4x4xf32>
    %cst_52 = arith.constant dense<0.000000e+00> : vector<256x4xf32>
    %41 = tpu.matmul %34, %40, %cst_52 {dimension_numbers = #tpu.dot_dimension_numbers<[1], [0], [0], [1], [0, 0, 1, 1], [], []>} : vector<256x4xf32>, vector<4x4xf32>, vector<256x4xf32> -> vector<256x4xf32>
    %42 = arith.addf %32, %41 : vector<256x4xf32>
    %43 = vector.extract_strided_slice %10 {offsets = [0, 1, 0, 0], sizes = [4, 8, 8, 4], strides = [1, 1, 1, 1]} : vector<4x10x10x4xf32> to vector<4x8x8x4xf32>
    %44 = vector.shape_cast %43 : vector<4x8x8x4xf32> to vector<256x4xf32>
    %c3 = arith.constant 3 : index
    %c0_53 = arith.constant 0 : index
    %c0_54 = arith.constant 0 : index
    %45 = vector.load %arg2[%c3, %c0_53, %c0_54] : memref<9x4x4xf32, #tpu.memory_space<vmem>>, vector<1x4x4xf32>
    %46 = vector.shape_cast %45 : vector<1x4x4xf32> to vector<4x4xf32>
    %cst_55 = arith.constant dense<0.000000e+00> : vector<256x4xf32>
    %47 = tpu.matmul %44, %46, %cst_55 {dimension_numbers = #tpu.dot_dimension_numbers<[1], [0], [0], [1], [0, 0, 1, 1], [], []>} : vector<256x4xf32>, vector<4x4xf32>, vector<256x4xf32> -> vector<256x4xf32>
    %48 = arith.addf %38, %47 : vector<256x4xf32>
    %c3_56 = arith.constant 3 : index
    %c0_57 = arith.constant 0 : index
    %c0_58 = arith.constant 0 : index
    %49 = vector.load %arg3[%c3_56, %c0_57, %c0_58] : memref<9x4x4xf32, #tpu.memory_space<vmem>>, vector<1x4x4xf32>
    %50 = vector.shape_cast %49 : vector<1x4x4xf32> to vector<4x4xf32>
    %cst_59 = arith.constant dense<0.000000e+00> : vector<256x4xf32>
    %51 = tpu.matmul %44, %50, %cst_59 {dimension_numbers = #tpu.dot_dimension_numbers<[1], [0], [0], [1], [0, 0, 1, 1], [], []>} : vector<256x4xf32>, vector<4x4xf32>, vector<256x4xf32> -> vector<256x4xf32>
    %52 = arith.addf %42, %51 : vector<256x4xf32>
    %53 = vector.extract_strided_slice %10 {offsets = [0, 1, 1, 0], sizes = [4, 8, 8, 4], strides = [1, 1, 1, 1]} : vector<4x10x10x4xf32> to vector<4x8x8x4xf32>
    %54 = vector.shape_cast %53 : vector<4x8x8x4xf32> to vector<256x4xf32>
    %c4 = arith.constant 4 : index
    %c0_60 = arith.constant 0 : index
    %c0_61 = arith.constant 0 : index
    %55 = vector.load %arg2[%c4, %c0_60, %c0_61] : memref<9x4x4xf32, #tpu.memory_space<vmem>>, vector<1x4x4xf32>
    %56 = vector.shape_cast %55 : vector<1x4x4xf32> to vector<4x4xf32>
    %cst_62 = arith.constant dense<0.000000e+00> : vector<256x4xf32>
    %57 = tpu.matmul %54, %56, %cst_62 {dimension_numbers = #tpu.dot_dimension_numbers<[1], [0], [0], [1], [0, 0, 1, 1], [], []>} : vector<256x4xf32>, vector<4x4xf32>, vector<256x4xf32> -> vector<256x4xf32>
    %58 = arith.addf %48, %57 : vector<256x4xf32>
    %c4_63 = arith.constant 4 : index
    %c0_64 = arith.constant 0 : index
    %c0_65 = arith.constant 0 : index
    %59 = vector.load %arg3[%c4_63, %c0_64, %c0_65] : memref<9x4x4xf32, #tpu.memory_space<vmem>>, vector<1x4x4xf32>
    %60 = vector.shape_cast %59 : vector<1x4x4xf32> to vector<4x4xf32>
    %cst_66 = arith.constant dense<0.000000e+00> : vector<256x4xf32>
    %61 = tpu.matmul %54, %60, %cst_66 {dimension_numbers = #tpu.dot_dimension_numbers<[1], [0], [0], [1], [0, 0, 1, 1], [], []>} : vector<256x4xf32>, vector<4x4xf32>, vector<256x4xf32> -> vector<256x4xf32>
    %62 = arith.addf %52, %61 : vector<256x4xf32>
    %63 = vector.extract_strided_slice %10 {offsets = [0, 1, 2, 0], sizes = [4, 8, 8, 4], strides = [1, 1, 1, 1]} : vector<4x10x10x4xf32> to vector<4x8x8x4xf32>
    %64 = vector.shape_cast %63 : vector<4x8x8x4xf32> to vector<256x4xf32>
    %c5 = arith.constant 5 : index
    %c0_67 = arith.constant 0 : index
    %c0_68 = arith.constant 0 : index
    %65 = vector.load %arg2[%c5, %c0_67, %c0_68] : memref<9x4x4xf32, #tpu.memory_space<vmem>>, vector<1x4x4xf32>
    %66 = vector.shape_cast %65 : vector<1x4x4xf32> to vector<4x4xf32>
    %cst_69 = arith.constant dense<0.000000e+00> : vector<256x4xf32>
    %67 = tpu.matmul %64, %66, %cst_69 {dimension_numbers = #tpu.dot_dimension_numbers<[1], [0], [0], [1], [0, 0, 1, 1], [], []>} : vector<256x4xf32>, vector<4x4xf32>, vector<256x4xf32> -> vector<256x4xf32>
    %68 = arith.addf %58, %67 : vector<256x4xf32>
    %c5_70 = arith.constant 5 : index
    %c0_71 = arith.constant 0 : index
    %c0_72 = arith.constant 0 : index
    %69 = vector.load %arg3[%c5_70, %c0_71, %c0_72] : memref<9x4x4xf32, #tpu.memory_space<vmem>>, vector<1x4x4xf32>
    %70 = vector.shape_cast %69 : vector<1x4x4xf32> to vector<4x4xf32>
    %cst_73 = arith.constant dense<0.000000e+00> : vector<256x4xf32>
    %71 = tpu.matmul %64, %70, %cst_73 {dimension_numbers = #tpu.dot_dimension_numbers<[1], [0], [0], [1], [0, 0, 1, 1], [], []>} : vector<256x4xf32>, vector<4x4xf32>, vector<256x4xf32> -> vector<256x4xf32>
    %72 = arith.addf %62, %71 : vector<256x4xf32>
    %73 = vector.extract_strided_slice %10 {offsets = [0, 2, 0, 0], sizes = [4, 8, 8, 4], strides = [1, 1, 1, 1]} : vector<4x10x10x4xf32> to vector<4x8x8x4xf32>
    %74 = vector.shape_cast %73 : vector<4x8x8x4xf32> to vector<256x4xf32>
    %c6 = arith.constant 6 : index
    %c0_74 = arith.constant 0 : index
    %c0_75 = arith.constant 0 : index
    %75 = vector.load %arg2[%c6, %c0_74, %c0_75] : memref<9x4x4xf32, #tpu.memory_space<vmem>>, vector<1x4x4xf32>
    %76 = vector.shape_cast %75 : vector<1x4x4xf32> to vector<4x4xf32>
    %cst_76 = arith.constant dense<0.000000e+00> : vector<256x4xf32>
    %77 = tpu.matmul %74, %76, %cst_76 {dimension_numbers = #tpu.dot_dimension_numbers<[1], [0], [0], [1], [0, 0, 1, 1], [], []>} : vector<256x4xf32>, vector<4x4xf32>, vector<256x4xf32> -> vector<256x4xf32>
    %78 = arith.addf %68, %77 : vector<256x4xf32>
    %c6_77 = arith.constant 6 : index
    %c0_78 = arith.constant 0 : index
    %c0_79 = arith.constant 0 : index
    %79 = vector.load %arg3[%c6_77, %c0_78, %c0_79] : memref<9x4x4xf32, #tpu.memory_space<vmem>>, vector<1x4x4xf32>
    %80 = vector.shape_cast %79 : vector<1x4x4xf32> to vector<4x4xf32>
    %cst_80 = arith.constant dense<0.000000e+00> : vector<256x4xf32>
    %81 = tpu.matmul %74, %80, %cst_80 {dimension_numbers = #tpu.dot_dimension_numbers<[1], [0], [0], [1], [0, 0, 1, 1], [], []>} : vector<256x4xf32>, vector<4x4xf32>, vector<256x4xf32> -> vector<256x4xf32>
    %82 = arith.addf %72, %81 : vector<256x4xf32>
    %83 = vector.extract_strided_slice %10 {offsets = [0, 2, 1, 0], sizes = [4, 8, 8, 4], strides = [1, 1, 1, 1]} : vector<4x10x10x4xf32> to vector<4x8x8x4xf32>
    %84 = vector.shape_cast %83 : vector<4x8x8x4xf32> to vector<256x4xf32>
    %c7 = arith.constant 7 : index
    %c0_81 = arith.constant 0 : index
    %c0_82 = arith.constant 0 : index
    %85 = vector.load %arg2[%c7, %c0_81, %c0_82] : memref<9x4x4xf32, #tpu.memory_space<vmem>>, vector<1x4x4xf32>
    %86 = vector.shape_cast %85 : vector<1x4x4xf32> to vector<4x4xf32>
    %cst_83 = arith.constant dense<0.000000e+00> : vector<256x4xf32>
    %87 = tpu.matmul %84, %86, %cst_83 {dimension_numbers = #tpu.dot_dimension_numbers<[1], [0], [0], [1], [0, 0, 1, 1], [], []>} : vector<256x4xf32>, vector<4x4xf32>, vector<256x4xf32> -> vector<256x4xf32>
    %88 = arith.addf %78, %87 : vector<256x4xf32>
    %c7_84 = arith.constant 7 : index
    %c0_85 = arith.constant 0 : index
    %c0_86 = arith.constant 0 : index
    %89 = vector.load %arg3[%c7_84, %c0_85, %c0_86] : memref<9x4x4xf32, #tpu.memory_space<vmem>>, vector<1x4x4xf32>
    %90 = vector.shape_cast %89 : vector<1x4x4xf32> to vector<4x4xf32>
    %cst_87 = arith.constant dense<0.000000e+00> : vector<256x4xf32>
    %91 = tpu.matmul %84, %90, %cst_87 {dimension_numbers = #tpu.dot_dimension_numbers<[1], [0], [0], [1], [0, 0, 1, 1], [], []>} : vector<256x4xf32>, vector<4x4xf32>, vector<256x4xf32> -> vector<256x4xf32>
    %92 = arith.addf %82, %91 : vector<256x4xf32>
    %93 = vector.extract_strided_slice %10 {offsets = [0, 2, 2, 0], sizes = [4, 8, 8, 4], strides = [1, 1, 1, 1]} : vector<4x10x10x4xf32> to vector<4x8x8x4xf32>
    %94 = vector.shape_cast %93 : vector<4x8x8x4xf32> to vector<256x4xf32>
    %c8 = arith.constant 8 : index
    %c0_88 = arith.constant 0 : index
    %c0_89 = arith.constant 0 : index
    %95 = vector.load %arg2[%c8, %c0_88, %c0_89] : memref<9x4x4xf32, #tpu.memory_space<vmem>>, vector<1x4x4xf32>
    %96 = vector.shape_cast %95 : vector<1x4x4xf32> to vector<4x4xf32>
    %cst_90 = arith.constant dense<0.000000e+00> : vector<256x4xf32>
    %97 = tpu.matmul %94, %96, %cst_90 {dimension_numbers = #tpu.dot_dimension_numbers<[1], [0], [0], [1], [0, 0, 1, 1], [], []>} : vector<256x4xf32>, vector<4x4xf32>, vector<256x4xf32> -> vector<256x4xf32>
    %98 = arith.addf %88, %97 : vector<256x4xf32>
    %c8_91 = arith.constant 8 : index
    %c0_92 = arith.constant 0 : index
    %c0_93 = arith.constant 0 : index
    %99 = vector.load %arg3[%c8_91, %c0_92, %c0_93] : memref<9x4x4xf32, #tpu.memory_space<vmem>>, vector<1x4x4xf32>
    %100 = vector.shape_cast %99 : vector<1x4x4xf32> to vector<4x4xf32>
    %cst_94 = arith.constant dense<0.000000e+00> : vector<256x4xf32>
    %101 = tpu.matmul %94, %100, %cst_94 {dimension_numbers = #tpu.dot_dimension_numbers<[1], [0], [0], [1], [0, 0, 1, 1], [], []>} : vector<256x4xf32>, vector<4x4xf32>, vector<256x4xf32> -> vector<256x4xf32>
    %102 = arith.addf %92, %101 : vector<256x4xf32>
    %c0_95 = arith.constant 0 : index
    %c0_96 = arith.constant 0 : index
    %103 = vector.load %arg4[%c0_95, %c0_96] : memref<1x4xf32, #tpu.memory_space<vmem>>, vector<1x4xf32>
    %104 = vector.broadcast %103 : vector<1x4xf32> to vector<256x4xf32>
    %105 = arith.addf %98, %104 : vector<256x4xf32>
    %106 = vector.shape_cast %105 : vector<256x4xf32> to vector<4x64x4xf32>
    %c0_97 = arith.constant 0 : index
    %c0_98 = arith.constant 0 : index
    %c0_99 = arith.constant 0 : index
    %107 = vector.load %arg6[%c0_97, %c0_98, %c0_99] : memref<4x64x4xf32, #tpu.memory_space<vmem>>, vector<4x64x4xf32>
    tpu.vector_store %arg6[%c0_97, %c0_98, %c0_99], %106 {strides = array<i32>} : memref<4x64x4xf32, #tpu.memory_space<vmem>>, vector<4x64x4xf32>,
    %c0_100 = arith.constant 0 : index
    %c0_101 = arith.constant 0 : index
    %108 = vector.load %arg5[%c0_100, %c0_101] : memref<1x4xf32, #tpu.memory_space<vmem>>, vector<1x4xf32>
    %109 = vector.broadcast %108 : vector<1x4xf32> to vector<256x4xf32>
    %110 = arith.addf %102, %109 : vector<256x4xf32>
    %111 = vector.shape_cast %110 : vector<256x4xf32> to vector<4x64x4xf32>
    %c0_102 = arith.constant 0 : index
    %c0_103 = arith.constant 0 : index
    %c0_104 = arith.constant 0 : index
    %112 = vector.load %arg7[%c0_102, %c0_103, %c0_104] : memref<4x64x4xf32, #tpu.memory_space<vmem>>, vector<4x64x4xf32>
    tpu.vector_store %arg7[%c0_102, %c0_103, %c0_104], %111 {strides = array<i32>} : memref<4x64x4xf32, #tpu.memory_space<vmem>>, vector<4x64x4xf32>,
    return
  }
  func.func @transform_0(%arg0: i32) -> (i32, i32, i32, i32) {
    %c0_i32 = arith.constant 0 : i32
    %c0_i32_0 = arith.constant 0 : i32
    %c0_i32_1 = arith.constant 0 : i32
    %c0_i32_2 = arith.constant 0 : i32
    return %arg0, %c0_i32, %c0_i32_0, %c0_i32_1 : i32, i32, i32, i32
  }
  func.func @transform_1(%arg0: i32) -> (i32, i32, i32) {
    %c0_i32 = arith.constant 0 : i32
    %c0_i32_0 = arith.constant 0 : i32
    %c0_i32_1 = arith.constant 0 : i32
    %c0_i32_2 = arith.constant 0 : i32
    return %c0_i32, %c0_i32_0, %c0_i32_1 : i32, i32, i32
  }
  func.func @transform_2(%arg0: i32) -> (i32, i32, i32) {
    %c0_i32 = arith.constant 0 : i32
    %c0_i32_0 = arith.constant 0 : i32
    %c0_i32_1 = arith.constant 0 : i32
    %c0_i32_2 = arith.constant 0 : i32
    return %c0_i32, %c0_i32_0, %c0_i32_1 : i32, i32, i32
  }
  func.func @transform_3(%arg0: i32) -> (i32, i32) {
    %c0_i32 = arith.constant 0 : i32
    %c0_i32_0 = arith.constant 0 : i32
    %c0_i32_1 = arith.constant 0 : i32
    return %c0_i32, %c0_i32_0 : i32, i32
  }
  func.func @transform_4(%arg0: i32) -> (i32, i32) {
    %c0_i32 = arith.constant 0 : i32
    %c0_i32_0 = arith.constant 0 : i32
    %c0_i32_1 = arith.constant 0 : i32
    return %c0_i32, %c0_i32_0 : i32, i32
  }
  func.func @transform_5(%arg0: i32) -> (i32, i32, i32) {
    %c0_i32 = arith.constant 0 : i32
    %c0_i32_0 = arith.constant 0 : i32
    %c0_i32_1 = arith.constant 0 : i32
    return %arg0, %c0_i32, %c0_i32_0 : i32, i32, i32
  }
  func.func @transform_6(%arg0: i32) -> (i32, i32, i32) {
    %c0_i32 = arith.constant 0 : i32
    %c0_i32_0 = arith.constant 0 : i32
    %c0_i32_1 = arith.constant 0 : i32
    return %arg0, %c0_i32, %c0_i32_0 : i32, i32, i32
  }
}

</mosaic_0001>

<llo_original>
// kernel: tpu_custom_call.1
$region0: #{tpu_custom_call.1}
  #allocation0 [shape = 'u32[]', space=smem, size = 0x4, offset = 0x4, fixed_abs, tag = 'smem constant byte address 0x4 - core index']
  #allocation1 [shape = 'u32[144,128]{1,0:T(1,128)}', space=vmem, size = 0x12000, scoped, tag = 'internal scratch']
  #allocation2 [shape = 'f32[4,10,10,4]{3,2,1,0:T(8,128)}', space=vmem, size = 0x50000, scoped, tag = 'scratch operand']
  %s0 = inlined_call_operand.vmem [shape: f32[8,8,8,4], index: 0, kind: input, shape index: {}]
  %s1 = inlined_call_operand.vmem [shape: f32[9,4,4], index: 1, kind: input, shape index: {}]
  %s2 = inlined_call_operand.vmem [shape: f32[9,4,4], index: 2, kind: input, shape index: {}]
  %s3 = inlined_call_operand.vmem [shape: f32[1,4], index: 3, kind: input, shape index: {}]
  %s4 = inlined_call_operand.vmem [shape: f32[1,4], index: 4, kind: input, shape index: {}]
  %s5 = inlined_call_operand.vmem [shape: f32[8,64,4], index: 5, kind: output, shape index: {0}]
  %s6 = inlined_call_operand.vmem [shape: f32[8,64,4], index: 6, kind: output, shape index: {1}]
  %7 = xla_tuple %s5, %s6
  %s8 = sld [smem:[#allocation0]]
  $region61: #{tpu_custom_call.1} parent=0
    _
  %s10 = ssub.s32 1, %s8
  %s11 = scalar_select 0, %s10, %s8
  loop: start=0, step=1, limit=4
  $region2: #{tpu_custom_call.1} parent=0 // loop_pre_header
    _
  $region3: #{tpu_custom_call.1} parent=0 // loop_header
    %s13 = sphi 0, %s17
    %p14 = scmp.ge.s32.totalorder %s13, 4
    %s23 = sphi 0, %s25
    %s26 = sphi 0, %s23
    %s27 = sphi 0, %s26
    %s43 = sphi 0, %s27
    %s47 = sphi 0, %s47
    %s49 = sphi 0, %s47
    %s50 = sphi 0, %s49
    %s64 = sphi 0, %s50
    %s68 = sphi 0, %s68
    %s70 = sphi 0, %s68
    %s71 = sphi 0, %s70
    %s85 = sphi 0, %s71
    %s89 = sphi 0, %s89
    %s91 = sphi 0, %s89
    %s92 = sphi 0, %s91
    %s106 = sphi 0, %s92
    %s110 = sphi 0, %s110
    %s112 = sphi 0, %s110
    %s113 = sphi 0, %s112
    %s127 = sphi 0, %s113
    %s133 = sphi 0, %s135
    %s136 = sphi 0, %s133
    %s137 = sphi 0, %s136
    %s153 = sphi 0, %s137
    %s159 = sphi 0, %s161
    %s162 = sphi 0, %s159
    %s163 = sphi 0, %s162
    %s179 = sphi 0, %s163
  $region4: #{tpu_custom_call.1} parent=0 // loop_header_branch
    %16 = sbr.rel (%p14) target = $region8
  $region5: #{tpu_custom_call.1} parent=0 // loop_body
    %s18 = ssub.s32 %s13, 1
    %s19 = ssub.s32 %s13, 2
    %s20 = sadd.s32 %s13, 1
    %s21 = ssub.s32 %s13, %s20
    %p22 = scmp.eq.s32.totalorder %s21, 0
    %s24 = sadd.s32 %s23, 1
    %s25 = scalar_select %p22, %s23, %s24
    %p28 = pneg %p22
    %p29 = scmp.eq.s32.totalorder %s13, 1
    %p30 = por %p28, %p29
    %p31 = scmp.ne.s32.totalorder %s23, %s26
    %p32 = scmp.eq.s32.totalorder %s13, 0
    %p33 = por %p31, %p32
    %p34 = scmp.ne.s32.totalorder %s23, %s26
    %p35 = scmp.eq.s32.totalorder %s18, 1
    %p36 = por %p34, %p35
    %p37 = scmp.ne.s32.totalorder %s26, %s27
    %p38 = scmp.eq.s32.totalorder %s18, 0
    %p39 = por %p37, %p38
    %p40 = scmp.ne.s32.totalorder %s26, %s27
    %p41 = scmp.eq.s32.totalorder %s19, 1
    %p42 = por %p40, %p41
    %p44 = scmp.ne.s32.totalorder %s27, %s43
    %p45 = scmp.eq.s32.totalorder %s19, 0
    %p46 = por %p44, %p45
    %s48 = sadd.s32 %s47, 1
    %p51 = scmp.eq.s32.totalorder %s13, 1
    %p52 = scmp.ne.s32.totalorder %s47, %s49
    %p53 = scmp.eq.s32.totalorder %s13, 0
    %p54 = por %p52, %p53
    %p55 = scmp.ne.s32.totalorder %s47, %s49
    %p56 = scmp.eq.s32.totalorder %s18, 1
    %p57 = por %p55, %p56
    %p58 = scmp.ne.s32.totalorder %s49, %s50
    %p59 = scmp.eq.s32.totalorder %s18, 0
    %p60 = por %p58, %p59
    %p61 = scmp.ne.s32.totalorder %s49, %s50
    %p62 = scmp.eq.s32.totalorder %s19, 1
    %p63 = por %p61, %p62
    %p65 = scmp.ne.s32.totalorder %s50, %s64
    %p66 = scmp.eq.s32.totalorder %s19, 0
    %p67 = por %p65, %p66
    %s69 = sadd.s32 %s68, 1
    %p72 = scmp.eq.s32.totalorder %s13, 1
    %p73 = scmp.ne.s32.totalorder %s68, %s70
    %p74 = scmp.eq.s32.totalorder %s13, 0
    %p75 = por %p73, %p74
    %p76 = scmp.ne.s32.totalorder %s68, %s70
    %p77 = scmp.eq.s32.totalorder %s18, 1
    %p78 = por %p76, %p77
    %p79 = scmp.ne.s32.totalorder %s70, %s71
    %p80 = scmp.eq.s32.totalorder %s18, 0
    %p81 = por %p79, %p80
    %p82 = scmp.ne.s32.totalorder %s70, %s71
    %p83 = scmp.eq.s32.totalorder %s19, 1
    %p84 = por %p82, %p83
    %p86 = scmp.ne.s32.totalorder %s71, %s85
    %p87 = scmp.eq.s32.totalorder %s19, 0
    %p88 = por %p86, %p87
    %s90 = sadd.s32 %s89, 1
    %p93 = scmp.eq.s32.totalorder %s13, 1
    %p94 = scmp.ne.s32.totalorder %s89, %s91
    %p95 = scmp.eq.s32.totalorder %s13, 0
    %p96 = por %p94, %p95
    %p97 = scmp.ne.s32.totalorder %s89, %s91
    %p98 = scmp.eq.s32.totalorder %s18, 1
    %p99 = por %p97, %p98
    %p100 = scmp.ne.s32.totalorder %s91, %s92
    %p101 = scmp.eq.s32.totalorder %s18, 0
    %p102 = por %p100, %p101
    %p103 = scmp.ne.s32.totalorder %s91, %s92
    %p104 = scmp.eq.s32.totalorder %s19, 1
    %p105 = por %p103, %p104
    %p107 = scmp.ne.s32.totalorder %s92, %s106
    %p108 = scmp.eq.s32.totalorder %s19, 0
    %p109 = por %p107, %p108
    %s111 = sadd.s32 %s110, 1
    %p114 = scmp.eq.s32.totalorder %s13, 1
    %p115 = scmp.ne.s32.totalorder %s110, %s112
    %p116 = scmp.eq.s32.totalorder %s13, 0
    %p117 = por %p115, %p116
    %p118 = scmp.ne.s32.totalorder %s110, %s112
    %p119 = scmp.eq.s32.totalorder %s18, 1
    %p120 = por %p118, %p119
    %p121 = scmp.ne.s32.totalorder %s112, %s113
    %p122 = scmp.eq.s32.totalorder %s18, 0
    %p123 = por %p121, %p122
    %p124 = scmp.ne.s32.totalorder %s112, %s113
    %p125 = scmp.eq.s32.totalorder %s19, 1
    %p126 = por %p124, %p125
    %p128 = scmp.ne.s32.totalorder %s113, %s127
    %p129 = scmp.eq.s32.totalorder %s19, 0
    %p130 = por %p128, %p129
    %s131 = ssub.s32 %s13, %s20
    %p132 = scmp.eq.s32.totalorder %s131, 0
    %s134 = sadd.s32 %s133, 1
    %s135 = scalar_select %p132, %s133, %s134
    %p138 = pneg %p132
    %p139 = scmp.eq.s32.totalorder %s13, 1
    %p140 = por %p138, %p139
    %p141 = scmp.ne.s32.totalorder %s133, %s136
    %p142 = scmp.eq.s32.totalorder %s13, 0
    %p143 = por %p141, %p142
    %p144 = scmp.ne.s32.totalorder %s133, %s136
    %p145 = scmp.eq.s32.totalorder %s18, 1
    %p146 = por %p144, %p145
    %p147 = scmp.ne.s32.totalorder %s136, %s137
    %p148 = scmp.eq.s32.totalorder %s18, 0
    %p149 = por %p147, %p148
    %p150 = scmp.ne.s32.totalorder %s136, %s137
    %p151 = scmp.eq.s32.totalorder %s19, 1
    %p152 = por %p150, %p151
    %p154 = scmp.ne.s32.totalorder %s137, %s153
    %p155 = scmp.eq.s32.totalorder %s19, 0
    %p156 = por %p154, %p155
    %s157 = ssub.s32 %s13, %s20
    %p158 = scmp.eq.s32.totalorder %s157, 0
    %s160 = sadd.s32 %s159, 1
    %s161 = scalar_select %p158, %s159, %s160
    %p164 = pneg %p158
    %p165 = scmp.eq.s32.totalorder %s13, 1
    %p166 = por %p164, %p165
    %p167 = scmp.ne.s32.totalorder %s159, %s162
    %p168 = scmp.eq.s32.totalorder %s13, 0
    %p169 = por %p167, %p168
    %p170 = scmp.ne.s32.totalorder %s159, %s162
    %p171 = scmp.eq.s32.totalorder %s18, 1
    %p172 = por %p170, %p171
    %p173 = scmp.ne.s32.totalorder %s162, %s163
    %p174 = scmp.eq.s32.totalorder %s18, 0
    %p175 = por %p173, %p174
    %p176 = scmp.ne.s32.totalorder %s162, %s163
    %p177 = scmp.eq.s32.totalorder %s19, 1
    %p178 = por %p176, %p177
    %p180 = scmp.ne.s32.totalorder %s163, %s179
    %p181 = scmp.eq.s32.totalorder %s19, 0
    %p182 = por %p180, %p181
    %p183 = scmp.le.s32.totalorder 1, %s13
    %p184 = scmp.lt.s32.totalorder %s13, 3
    %p185 = pnand %p183, %p184
    %p186 = pneg %p185
    // Predicated region
    $region9: #{tpu_custom_call.1} parent=5 // pred_check
      _
    $region10: #{tpu_custom_call.1} parent=5 // pred_check_branch
      %188 = sbr.rel (%p185) target = $region12
    $region11: #{tpu_custom_call.1} parent=5 // pred_region
      %s189 = ssub.s32 %s13, 1
      // Predicated region
      $region13: #{tpu_custom_call.1} parent=11 // pred_check
        %p190 = pneg %p60
      $region14: #{tpu_custom_call.1} parent=11 // pred_check_branch
        %192 = sbr.rel (%p190) target = $region16
      $region15: #{tpu_custom_call.1} parent=11 // pred_region
        _
      $region16: #{tpu_custom_call.1} parent=11 // pred_fallthru
        _
      // Predicated region
      $region17: #{tpu_custom_call.1} parent=11 // pred_check
        %p193 = pneg %p81
      $region18: #{tpu_custom_call.1} parent=11 // pred_check_branch
        %195 = sbr.rel (%p193) target = $region20
      $region19: #{tpu_custom_call.1} parent=11 // pred_region
        _
      $region20: #{tpu_custom_call.1} parent=11 // pred_fallthru
        _
      // Predicated region
      $region21: #{tpu_custom_call.1} parent=11 // pred_check
        %p196 = pneg %p102
      $region22: #{tpu_custom_call.1} parent=11 // pred_check_branch
        %198 = sbr.rel (%p196) target = $region24
      $region23: #{tpu_custom_call.1} parent=11 // pred_region
        _
      $region24: #{tpu_custom_call.1} parent=11 // pred_fallthru
        _
      // Predicated region
      $region25: #{tpu_custom_call.1} parent=11 // pred_check
        %p199 = pneg %p123
      $region26: #{tpu_custom_call.1} parent=11 // pred_check_branch
        %201 = sbr.rel (%p199) target = $region28
      $region27: #{tpu_custom_call.1} parent=11 // pred_region
        _
      $region28: #{tpu_custom_call.1} parent=11 // pred_fallthru
        _
    $region12: #{tpu_custom_call.1} parent=5 // pred_fallthru
      _
    %p202 = scmp.lt.s32.totalorder %s13, 2
    // Predicated region
    $region29: #{tpu_custom_call.1} parent=5 // pred_check
      %p203 = pneg %p202
    $region30: #{tpu_custom_call.1} parent=5 // pred_check_branch
      %205 = sbr.rel (%p203) target = $region32
    $region31: #{tpu_custom_call.1} parent=5 // pred_region
      // Predicated region
      $region33: #{tpu_custom_call.1} parent=31 // pred_check
        %p206 = pneg %p33
      $region34: #{tpu_custom_call.1} parent=31 // pred_check_branch
        %208 = sbr.rel (%p206) target = $region36
      $region35: #{tpu_custom_call.1} parent=31 // pred_region
        %s209 = smul.u32 4, %s13
        %p210 = scmp.lt.s32.totalorder %s209, 7
        %s211 = scalar_select %p210, %s209, 7
        %s212 = smul.addr %s211, 8
        %s213 = smul.addr %s212, 8
        %s214 = scalar_lea.vmem %s0, %s213
        %s215 = smul.u32 4, %s13
      $region36: #{tpu_custom_call.1} parent=31 // pred_fallthru
        _
    $region32: #{tpu_custom_call.1} parent=5 // pred_fallthru
      _
    %p216 = scmp.le.s32.totalorder 1, %s13
    %p217 = scmp.lt.s32.totalorder %s13, 3
    %p218 = pnand %p216, %p217
    %p219 = pneg %p218
    // Predicated region
    $region37: #{tpu_custom_call.1} parent=5 // pred_check
      _
    $region38: #{tpu_custom_call.1} parent=5 // pred_check_branch
      %221 = sbr.rel (%p218) target = $region40
    $region39: #{tpu_custom_call.1} parent=5 // pred_region
      %s222 = ssub.s32 %s13, 1
      %s223 = smul.u32 4, %s18
      %p224 = scmp.lt.s32.totalorder %s223, 7
      %s225 = scalar_select %p224, %s223, 7
      %s226 = smul.addr %s225, 8
      %s227 = smul.addr %s226, 8
      %s228 = scalar_lea.vmem %s0, %s227
      %p229 = pneg %p39
      %p230 = pneg %p36
      %p231 = pneg %p60
      %p232 = pneg %p57
      %p233 = pneg %p81
      %p234 = pneg %p78
      %p235 = pneg %p102
      %p236 = pneg %p99
      %p237 = pneg %p123
      %p238 = pneg %p120
      %p239 = pneg %p149
      %p240 = pneg %p146
      %s241 = smul.u32 4, %s18
      %p242 = scmp.lt.s32.totalorder %s241, 7
      %s243 = scalar_select %p242, %s241, 7
      %s244 = smul.addr %s243, 8
      %s245 = smul.addr %s244, 8
      %s246 = scalar_lea.vmem %s5, %s245
      %p247 = pneg %p175
      %p248 = pneg %p172
      %s249 = smul.u32 4, %s18
      %p250 = scmp.lt.s32.totalorder %s249, 7
      %s251 = scalar_select %p250, %s249, 7
      %s252 = smul.addr %s251, 8
      %s253 = smul.addr %s252, 8
      %s254 = scalar_lea.vmem %s6, %s253
      %s255 = smul.u32 4, %s18
      %p256 = scmp.lt.s32.totalorder %s255, 7
      %s257 = scalar_select %p256, %s255, 7
      %s258 = smul.addr %s257, 8
      %s259 = smul.addr %s258, 8
      %s260 = scalar_lea.vmem %s0, %s259
      %s261 = smul.u32 4, %s18
      %s262 = smul.u32 4, %s18
      %p263 = scmp.lt.s32.totalorder %s262, 7
      %s264 = scalar_select %p263, %s262, 7
      %s265 = smul.addr %s264, 8
      %s266 = smul.addr %s265, 8
      %s267 = scalar_lea.vmem %s5, %s266
      %s268 = smul.u32 4, %s18
      %s269 = smul.u32 4, %s18
      %p270 = scmp.lt.s32.totalorder %s269, 7
      %s271 = scalar_select %p270, %s269, 7
      %s272 = smul.addr %s271, 8
      %s273 = smul.addr %s272, 8
      %s274 = scalar_lea.vmem %s6, %s273
      %s275 = smul.u32 4, %s18
      %vm276 = vcmask 31744
      %277 = vst.msk [vmem:[#allocation2] sm:$0xff] %vm276, 0.0
      %vm278 = vcmask 25600
      %279 = vst.msk [vmem:[#allocation2 + $0x8] sm:$0x3] %vm278, 0.0
      %280 = vst.msk [vmem:[#allocation2 + $0xa0] sm:$0xff] %vm276, 0.0
      %281 = vst.msk [vmem:[#allocation2 + $0xa8] sm:$0x3] %vm278, 0.0
      %282 = vst.msk [vmem:[#allocation2 + $0x140] sm:$0xff] %vm276, 0.0
      %283 = vst.msk [vmem:[#allocation2 + $0x148] sm:$0x3] %vm278, 0.0
      %284 = vst.msk [vmem:[#allocation2 + $0x1e0] sm:$0xff] %vm276, 0.0
      %285 = vst.msk [vmem:[#allocation2 + $0x1e8] sm:$0x3] %vm278, 0.0
      %s286 = scalar_lea.vmem [#allocation2], 144
      %287 = vst.msk [vmem:[%s286] sm:$0xff] %vm276, 0.0
      %288 = vst.msk [vmem:[%s286 + $0x8] sm:$0x3] %vm278, 0.0
      %289 = vst.msk [vmem:[%s286 + $0xa0] sm:$0xff] %vm276, 0.0
      %290 = vst.msk [vmem:[%s286 + $0xa8] sm:$0x3] %vm278, 0.0
      %291 = vst.msk [vmem:[%s286 + $0x140] sm:$0xff] %vm276, 0.0
      %292 = vst.msk [vmem:[%s286 + $0x148] sm:$0x3] %vm278, 0.0
      %293 = vst.msk [vmem:[%s286 + $0x1e0] sm:$0xff] %vm276, 0.0
      %294 = vst.msk [vmem:[%s286 + $0x1e8] sm:$0x3] %vm278, 0.0
      %vm295 = vcmask 24576
      %296 = vst.msk [vmem:[#allocation2] sm:$0x1] %vm295, 0.0
      %297 = vst.msk [vmem:[#allocation2 + $0x10] sm:$0x1] %vm295, 0.0
      %298 = vst.msk [vmem:[#allocation2 + $0x20] sm:$0x1] %vm295, 0.0
      %299 = vst.msk [vmem:[#allocation2 + $0x30] sm:$0x1] %vm295, 0.0
      %300 = vst.msk [vmem:[#allocation2 + $0x40] sm:$0x1] %vm295, 0.0
      %301 = vst.msk [vmem:[#allocation2 + $0x50] sm:$0x1] %vm295, 0.0
      %302 = vst.msk [vmem:[#allocation2 + $0x60] sm:$0x1] %vm295, 0.0
      %303 = vst.msk [vmem:[#allocation2 + $0x70] sm:$0x1] %vm295, 0.0
      %304 = vst.msk [vmem:[#allocation2 + $0x80] sm:$0x1] %vm295, 0.0
      %305 = vst.msk [vmem:[#allocation2 + $0x90] sm:$0x1] %vm295, 0.0
      %306 = vst.msk [vmem:[#allocation2 + $0xa0] sm:$0x1] %vm295, 0.0
      %307 = vst.msk [vmem:[#allocation2 + $0xb0] sm:$0x1] %vm295, 0.0
      %308 = vst.msk [vmem:[#allocation2 + $0xc0] sm:$0x1] %vm295, 0.0
      %309 = vst.msk [vmem:[#allocation2 + $0xd0] sm:$0x1] %vm295, 0.0
      %310 = vst.msk [vmem:[#allocation2 + $0xe0] sm:$0x1] %vm295, 0.0
      %311 = vst.msk [vmem:[#allocation2 + $0xf0] sm:$0x1] %vm295, 0.0
      %312 = vst.msk [vmem:[#allocation2 + $0x100] sm:$0x1] %vm295, 0.0
      %313 = vst.msk [vmem:[#allocation2 + $0x110] sm:$0x1] %vm295, 0.0
      %314 = vst.msk [vmem:[#allocation2 + $0x120] sm:$0x1] %vm295, 0.0
      %315 = vst.msk [vmem:[#allocation2 + $0x130] sm:$0x1] %vm295, 0.0
      %316 = vst.msk [vmem:[#allocation2 + $0x140] sm:$0x1] %vm295, 0.0
      %317 = vst.msk [vmem:[#allocation2 + $0x150] sm:$0x1] %vm295, 0.0
      %318 = vst.msk [vmem:[#allocation2 + $0x160] sm:$0x1] %vm295, 0.0
      %319 = vst.msk [vmem:[#allocation2 + $0x170] sm:$0x1] %vm295, 0.0
      %320 = vst.msk [vmem:[#allocation2 + $0x180] sm:$0x1] %vm295, 0.0
      %321 = vst.msk [vmem:[#allocation2 + $0x190] sm:$0x1] %vm295, 0.0
      %322 = vst.msk [vmem:[#allocation2 + $0x1a0] sm:$0x1] %vm295, 0.0
      %323 = vst.msk [vmem:[#allocation2 + $0x1b0] sm:$0x1] %vm295, 0.0
      %324 = vst.msk [vmem:[#allocation2 + $0x1c0] sm:$0x1] %vm295, 0.0
      %325 = vst.msk [vmem:[#allocation2 + $0x1d0] sm:$0x1] %vm295, 0.0
      %326 = vst.msk [vmem:[#allocation2 + $0x1e0] sm:$0x1] %vm295, 0.0
      %327 = vst.msk [vmem:[#allocation2 + $0x1f0] sm:$0x1] %vm295, 0.0
      %328 = vst.msk [vmem:[#allocation2 + $0x200] sm:$0x1] %vm295, 0.0
      %329 = vst.msk [vmem:[#allocation2 + $0x210] sm:$0x1] %vm295, 0.0
      %330 = vst.msk [vmem:[#allocation2 + $0x220] sm:$0x1] %vm295, 0.0
      %331 = vst.msk [vmem:[#allocation2 + $0x230] sm:$0x1] %vm295, 0.0
      %332 = vst.msk [vmem:[#allocation2 + $0x240] sm:$0x1] %vm295, 0.0
      %333 = vst.msk [vmem:[#allocation2 + $0x250] sm:$0x1] %vm295, 0.0
      %334 = vst.msk [vmem:[#allocation2 + $0x260] sm:$0x1] %vm295, 0.0
      %335 = vst.msk [vmem:[#allocation2 + $0x270] sm:$0x1] %vm295, 0.0
      %336 = vst.msk [vmem:[#allocation2 + $0x9] sm:$0x1] %vm295, 0.0
      %337 = vst.msk [vmem:[#allocation2 + $0x19] sm:$0x1] %vm295, 0.0
      %338 = vst.msk [vmem:[#allocation2 + $0x29] sm:$0x1] %vm295, 0.0
      %339 = vst.msk [vmem:[#allocation2 + $0x39] sm:$0x1] %vm295, 0.0
      %340 = vst.msk [vmem:[#allocation2 + $0x49] sm:$0x1] %vm295, 0.0
      %341 = vst.msk [vmem:[#allocation2 + $0x59] sm:$0x1] %vm295, 0.0
      %342 = vst.msk [vmem:[#allocation2 + $0x69] sm:$0x1] %vm295, 0.0
      %343 = vst.msk [vmem:[#allocation2 + $0x79] sm:$0x1] %vm295, 0.0
      %344 = vst.msk [vmem:[#allocation2 + $0x89] sm:$0x1] %vm295, 0.0
      %345 = vst.msk [vmem:[#allocation2 + $0x99] sm:$0x1] %vm295, 0.0
      %346 = vst.msk [vmem:[#allocation2 + $0xa9] sm:$0x1] %vm295, 0.0
      %347 = vst.msk [vmem:[#allocation2 + $0xb9] sm:$0x1] %vm295, 0.0
      %348 = vst.msk [vmem:[#allocation2 + $0xc9] sm:$0x1] %vm295, 0.0
      %349 = vst.msk [vmem:[#allocation2 + $0xd9] sm:$0x1] %vm295, 0.0
      %350 = vst.msk [vmem:[#allocation2 + $0xe9] sm:$0x1] %vm295, 0.0
      %351 = vst.msk [vmem:[#allocation2 + $0xf9] sm:$0x1] %vm295, 0.0
      %352 = vst.msk [vmem:[#allocation2 + $0x109] sm:$0x1] %vm295, 0.0
      %353 = vst.msk [vmem:[#allocation2 + $0x119] sm:$0x1] %vm295, 0.0
      %354 = vst.msk [vmem:[#allocation2 + $0x129] sm:$0x1] %vm295, 0.0
      %355 = vst.msk [vmem:[#allocation2 + $0x139] sm:$0x1] %vm295, 0.0
      %356 = vst.msk [vmem:[#allocation2 + $0x149] sm:$0x1] %vm295, 0.0
      %357 = vst.msk [vmem:[#allocation2 + $0x159] sm:$0x1] %vm295, 0.0
      %358 = vst.msk [vmem:[#allocation2 + $0x169] sm:$0x1] %vm295, 0.0
      %359 = vst.msk [vmem:[#allocation2 + $0x179] sm:$0x1] %vm295, 0.0
      %360 = vst.msk [vmem:[#allocation2 + $0x189] sm:$0x1] %vm295, 0.0
      %361 = vst.msk [vmem:[#allocation2 + $0x199] sm:$0x1] %vm295, 0.0
      %362 = vst.msk [vmem:[#allocation2 + $0x1a9] sm:$0x1] %vm295, 0.0
      %363 = vst.msk [vmem:[#allocation2 + $0x1b9] sm:$0x1] %vm295, 0.0
      %364 = vst.msk [vmem:[#allocation2 + $0x1c9] sm:$0x1] %vm295, 0.0
      %365 = vst.msk [vmem:[#allocation2 + $0x1d9] sm:$0x1] %vm295, 0.0
      %366 = vst.msk [vmem:[#allocation2 + $0x1e9] sm:$0x1] %vm295, 0.0
      %367 = vst.msk [vmem:[#allocation2 + $0x1f9] sm:$0x1] %vm295, 0.0
      %368 = vst.msk [vmem:[#allocation2 + $0x209] sm:$0x1] %vm295, 0.0
      %369 = vst.msk [vmem:[#allocation2 + $0x219] sm:$0x1] %vm295, 0.0
      %370 = vst.msk [vmem:[#allocation2 + $0x229] sm:$0x1] %vm295, 0.0
      %371 = vst.msk [vmem:[#allocation2 + $0x239] sm:$0x1] %vm295, 0.0
      %372 = vst.msk [vmem:[#allocation2 + $0x249] sm:$0x1] %vm295, 0.0
      %373 = vst.msk [vmem:[#allocation2 + $0x259] sm:$0x1] %vm295, 0.0
      %374 = vst.msk [vmem:[#allocation2 + $0x269] sm:$0x1] %vm295, 0.0
      %375 = vst.msk [vmem:[#allocation2 + $0x279] sm:$0x1] %vm295, 0.0
      %v376 = vld [vmem:[%s260] sm:$0xff]
      %v377 = vld [vmem:[%s260 + $0x8] sm:$0xff]
      %v378 = vld [vmem:[%s260 + $0x10] sm:$0xff]
      %v379 = vld [vmem:[%s260 + $0x18] sm:$0xff]
      %v380 = vld [vmem:[%s260 + $0x20] sm:$0xff]
      %v381 = vld [vmem:[%s260 + $0x28] sm:$0xff]
      %v382 = vld [vmem:[%s260 + $0x30] sm:$0xff]
      %v383 = vld [vmem:[%s260 + $0x38] sm:$0xff]
      %v384 = vld [vmem:[%s260 + $0x40] sm:$0xff]
      %v385 = vld [vmem:[%s260 + $0x48] sm:$0xff]
      %v386 = vld [vmem:[%s260 + $0x50] sm:$0xff]
      %v387 = vld [vmem:[%s260 + $0x58] sm:$0xff]
      %v388 = vld [vmem:[%s260 + $0x60] sm:$0xff]
      %v389 = vld [vmem:[%s260 + $0x68] sm:$0xff]
      %v390 = vld [vmem:[%s260 + $0x70] sm:$0xff]
      %v391 = vld [vmem:[%s260 + $0x78] sm:$0xff]
      %v392 = vld [vmem:[%s260 + $0x80] sm:$0xff]
      %v393 = vld [vmem:[%s260 + $0x88] sm:$0xff]
      %v394 = vld [vmem:[%s260 + $0x90] sm:$0xff]
      %v395 = vld [vmem:[%s260 + $0x98] sm:$0xff]
      %v396 = vld [vmem:[%s260 + $0xa0] sm:$0xff]
      %v397 = vld [vmem:[%s260 + $0xa8] sm:$0xff]
      %v398 = vld [vmem:[%s260 + $0xb0] sm:$0xff]
      %v399 = vld [vmem:[%s260 + $0xb8] sm:$0xff]
      %v400 = vld [vmem:[%s260 + $0xc0] sm:$0xff]
      %v401 = vld [vmem:[%s260 + $0xc8] sm:$0xff]
      %v402 = vld [vmem:[%s260 + $0xd0] sm:$0xff]
      %v403 = vld [vmem:[%s260 + $0xd8] sm:$0xff]
      %v404 = vld [vmem:[%s260 + $0xe0] sm:$0xff]
      %v405 = vld [vmem:[%s260 + $0xe8] sm:$0xff]
      %v406 = vld [vmem:[%s260 + $0xf0] sm:$0xff]
      %v407 = vld [vmem:[%s260 + $0xf8] sm:$0xff]
      %s408 = scalar_lea.vmem [#allocation2], 16
      %409 = vst.msk [vmem:[%s408 + $0x1] sm:$0xff] %vm276, %v376
      %410 = vst.msk [vmem:[%s408 + $0x11] sm:$0xff] %vm276, %v377
      %411 = vst.msk [vmem:[%s408 + $0x21] sm:$0xff] %vm276, %v378
      %412 = vst.msk [vmem:[%s408 + $0x31] sm:$0xff] %vm276, %v379
      %413 = vst.msk [vmem:[%s408 + $0x41] sm:$0xff] %vm276, %v380
      %414 = vst.msk [vmem:[%s408 + $0x51] sm:$0xff] %vm276, %v381
      %415 = vst.msk [vmem:[%s408 + $0x61] sm:$0xff] %vm276, %v382
      %416 = vst.msk [vmem:[%s408 + $0x71] sm:$0xff] %vm276, %v383
      %417 = vst.msk [vmem:[%s408 + $0xa1] sm:$0xff] %vm276, %v384
      %418 = vst.msk [vmem:[%s408 + $0xb1] sm:$0xff] %vm276, %v385
      %419 = vst.msk [vmem:[%s408 + $0xc1] sm:$0xff] %vm276, %v386
      %420 = vst.msk [vmem:[%s408 + $0xd1] sm:$0xff] %vm276, %v387
      %421 = vst.msk [vmem:[%s408 + $0xe1] sm:$0xff] %vm276, %v388
      %422 = vst.msk [vmem:[%s408 + $0xf1] sm:$0xff] %vm276, %v389
      %423 = vst.msk [vmem:[%s408 + $0x101] sm:$0xff] %vm276, %v390
      %424 = vst.msk [vmem:[%s408 + $0x111] sm:$0xff] %vm276, %v391
      %425 = vst.msk [vmem:[%s408 + $0x141] sm:$0xff] %vm276, %v392
      %426 = vst.msk [vmem:[%s408 + $0x151] sm:$0xff] %vm276, %v393
      %427 = vst.msk [vmem:[%s408 + $0x161] sm:$0xff] %vm276, %v394
      %428 = vst.msk [vmem:[%s408 + $0x171] sm:$0xff] %vm276, %v395
      %429 = vst.msk [vmem:[%s408 + $0x181] sm:$0xff] %vm276, %v396
      %430 = vst.msk [vmem:[%s408 + $0x191] sm:$0xff] %vm276, %v397
      %431 = vst.msk [vmem:[%s408 + $0x1a1] sm:$0xff] %vm276, %v398
      %432 = vst.msk [vmem:[%s408 + $0x1b1] sm:$0xff] %vm276, %v399
      %433 = vst.msk [vmem:[%s408 + $0x1e1] sm:$0xff] %vm276, %v400
      %434 = vst.msk [vmem:[%s408 + $0x1f1] sm:$0xff] %vm276, %v401
      %435 = vst.msk [vmem:[%s408 + $0x201] sm:$0xff] %vm276, %v402
      %436 = vst.msk [vmem:[%s408 + $0x211] sm:$0xff] %vm276, %v403
      %437 = vst.msk [vmem:[%s408 + $0x221] sm:$0xff] %vm276, %v404
      %438 = vst.msk [vmem:[%s408 + $0x231] sm:$0xff] %vm276, %v405
      %439 = vst.msk [vmem:[%s408 + $0x241] sm:$0xff] %vm276, %v406
      %440 = vst.msk [vmem:[%s408 + $0x251] sm:$0xff] %vm276, %v407
      %v441 = vld [vmem:[#allocation2] sm:$0xff]
      %v442 = vld [vmem:[#allocation2 + $0x8] sm:$0x3]
      %v443 = vld [vmem:[#allocation2 + $0x10] sm:$0xff]
      %v444 = vld [vmem:[#allocation2 + $0x18] sm:$0x3]
      %v445 = vld [vmem:[#allocation2 + $0x20] sm:$0xff]
      %v446 = vld [vmem:[#allocation2 + $0x28] sm:$0x3]
      %v447 = vld [vmem:[#allocation2 + $0x30] sm:$0xff]
      %v448 = vld [vmem:[#allocation2 + $0x38] sm:$0x3]
      %v449 = vld [vmem:[#allocation2 + $0x40] sm:$0xff]
      %v450 = vld [vmem:[#allocation2 + $0x48] sm:$0x3]
      %v451 = vld [vmem:[#allocation2 + $0x50] sm:$0xff]
      %v452 = vld [vmem:[#allocation2 + $0x58] sm:$0x3]
      %v453 = vld [vmem:[#allocation2 + $0x60] sm:$0xff]
      %v454 = vld [vmem:[#allocation2 + $0x68] sm:$0x3]
      %v455 = vld [vmem:[#allocation2 + $0x70] sm:$0xff]
      %v456 = vld [vmem:[#allocation2 + $0x78] sm:$0x3]
      %v457 = vld [vmem:[#allocation2 + $0x80] sm:$0xff]
      %v458 = vld [vmem:[#allocation2 + $0x88] sm:$0x3]
      %v459 = vld [vmem:[#allocation2 + $0x90] sm:$0xff]
      %v460 = vld [vmem:[#allocation2 + $0x98] sm:$0x3]
      %v461 = vld [vmem:[#allocation2 + $0xa0] sm:$0xff]
      %v462 = vld [vmem:[#allocation2 + $0xa8] sm:$0x3]
      %v463 = vld [vmem:[#allocation2 + $0xb0] sm:$0xff]
      %v464 = vld [vmem:[#allocation2 + $0xb8] sm:$0x3]
      %v465 = vld [vmem:[#allocation2 + $0xc0] sm:$0xff]
      %v466 = vld [vmem:[#allocation2 + $0xc8] sm:$0x3]
      %v467 = vld [vmem:[#allocation2 + $0xd0] sm:$0xff]
      %v468 = vld [vmem:[#allocation2 + $0xd8] sm:$0x3]
      %v469 = vld [vmem:[#allocation2 + $0xe0] sm:$0xff]
      %v470 = vld [vmem:[#allocation2 + $0xe8] sm:$0x3]
      %v471 = vld [vmem:[#allocation2 + $0xf0] sm:$0xff]
      %v472 = vld [vmem:[#allocation2 + $0xf8] sm:$0x3]
      %v473 = vld [vmem:[#allocation2 + $0x100] sm:$0xff]
      %v474 = vld [vmem:[#allocation2 + $0x108] sm:$0x3]
      %v475 = vld [vmem:[#allocation2 + $0x110] sm:$0xff]
      %v476 = vld [vmem:[#allocation2 + $0x118] sm:$0x3]
      %v477 = vld [vmem:[#allocation2 + $0x120] sm:$0xff]
      %v478 = vld [vmem:[#allocation2 + $0x128] sm:$0x3]
      %v479 = vld [vmem:[#allocation2 + $0x130] sm:$0xff]
      %v480 = vld [vmem:[#allocation2 + $0x138] sm:$0x3]
      %v481 = vld [vmem:[#allocation2 + $0x140] sm:$0xff]
      %v482 = vld [vmem:[#allocation2 + $0x148] sm:$0x3]
      %v483 = vld [vmem:[#allocation2 + $0x150] sm:$0xff]
      %v484 = vld [vmem:[#allocation2 + $0x158] sm:$0x3]
      %v485 = vld [vmem:[#allocation2 + $0x160] sm:$0xff]
      %v486 = vld [vmem:[#allocation2 + $0x168] sm:$0x3]
      %v487 = vld [vmem:[#allocation2 + $0x170] sm:$0xff]
      %v488 = vld [vmem:[#allocation2 + $0x178] sm:$0x3]
      %v489 = vld [vmem:[#allocation2 + $0x180] sm:$0xff]
      %v490 = vld [vmem:[#allocation2 + $0x188] sm:$0x3]
      %v491 = vld [vmem:[#allocation2 + $0x190] sm:$0xff]
      %v492 = vld [vmem:[#allocation2 + $0x198] sm:$0x3]
      %v493 = vld [vmem:[#allocation2 + $0x1a0] sm:$0xff]
      %v494 = vld [vmem:[#allocation2 + $0x1a8] sm:$0x3]
      %v495 = vld [vmem:[#allocation2 + $0x1b0] sm:$0xff]
      %v496 = vld [vmem:[#allocation2 + $0x1b8] sm:$0x3]
      %v497 = vld [vmem:[#allocation2 + $0x1c0] sm:$0xff]
      %v498 = vld [vmem:[#allocation2 + $0x1c8] sm:$0x3]
      %v499 = vld [vmem:[#allocation2 + $0x1d0] sm:$0xff]
      %v500 = vld [vmem:[#allocation2 + $0x1d8] sm:$0x3]
      %v501 = vld [vmem:[#allocation2 + $0x1e0] sm:$0xff]
      %v502 = vld [vmem:[#allocation2 + $0x1e8] sm:$0x3]
      %v503 = vld [vmem:[#allocation2 + $0x1f0] sm:$0xff]
      %v504 = vld [vmem:[#allocation2 + $0x1f8] sm:$0x3]
      %v505 = vld [vmem:[#allocation2 + $0x200] sm:$0xff]
      %v506 = vld [vmem:[#allocation2 + $0x208] sm:$0x3]
      %v507 = vld [vmem:[#allocation2 + $0x210] sm:$0xff]
      %v508 = vld [vmem:[#allocation2 + $0x218] sm:$0x3]
      %v509 = vld [vmem:[#allocation2 + $0x220] sm:$0xff]
      %v510 = vld [vmem:[#allocation2 + $0x228] sm:$0x3]
      %v511 = vld [vmem:[#allocation2 + $0x230] sm:$0xff]
      %v512 = vld [vmem:[#allocation2 + $0x238] sm:$0x3]
      %v513 = vld [vmem:[#allocation2 + $0x240] sm:$0xff]
      %v514 = vld [vmem:[#allocation2 + $0x248] sm:$0x3]
      %v515 = vld [vmem:[#allocation2 + $0x250] sm:$0xff]
      %v516 = vld [vmem:[#allocation2 + $0x258] sm:$0x3]
      %v517 = vld [vmem:[#allocation2 + $0x260] sm:$0xff]
      %v518 = vld [vmem:[#allocation2 + $0x268] sm:$0x3]
      %v519 = vld [vmem:[#allocation2 + $0x270] sm:$0xff]
      %v520 = vld [vmem:[#allocation2 + $0x278] sm:$0x3]
      %v521 = vld [vmem:[%s1] sm:$0xf]
      %v522 = vld [vmem:[%s2] sm:$0xf]
      %vm587 = vcmask 1046528
      %v588 = vrot.slane %v441, 1
      %v589 = vrot.slane %v442, 1
      %v590 = vsel %vm587, %v588, %v589
      %v591 = vrot.slane %v443, 1
      %v592 = vrot.slane %v444, 1
      %v593 = vsel %vm587, %v591, %v592
      %v594 = vrot.slane %v445, 1
      %v595 = vrot.slane %v446, 1
      %v596 = vsel %vm587, %v594, %v595
      %v597 = vrot.slane %v447, 1
      %v598 = vrot.slane %v448, 1
      %v599 = vsel %vm587, %v597, %v598
      %v600 = vrot.slane %v449, 1
      %v601 = vrot.slane %v450, 1
      %v602 = vsel %vm587, %v600, %v601
      %v603 = vrot.slane %v451, 1
      %v604 = vrot.slane %v452, 1
      %v605 = vsel %vm587, %v603, %v604
      %v606 = vrot.slane %v453, 1
      %v607 = vrot.slane %v454, 1
      %v608 = vsel %vm587, %v606, %v607
      %v609 = vrot.slane %v455, 1
      %v610 = vrot.slane %v456, 1
      %v611 = vsel %vm587, %v609, %v610
      %v612 = vrot.slane %v461, 1
      %v613 = vrot.slane %v462, 1
      %v614 = vsel %vm587, %v612, %v613
      %v615 = vrot.slane %v463, 1
      %v616 = vrot.slane %v464, 1
      %v617 = vsel %vm587, %v615, %v616
      %v618 = vrot.slane %v465, 1
      %v619 = vrot.slane %v466, 1
      %v620 = vsel %vm587, %v618, %v619
      %v621 = vrot.slane %v467, 1
      %v622 = vrot.slane %v468, 1
      %v623 = vsel %vm587, %v621, %v622
      %v624 = vrot.slane %v469, 1
      %v625 = vrot.slane %v470, 1
      %v626 = vsel %vm587, %v624, %v625
      %v627 = vrot.slane %v471, 1
      %v628 = vrot.slane %v472, 1
      %v629 = vsel %vm587, %v627, %v628
      %v630 = vrot.slane %v473, 1
      %v631 = vrot.slane %v474, 1
      %v632 = vsel %vm587, %v630, %v631
      %v633 = vrot.slane %v475, 1
      %v634 = vrot.slane %v476, 1
      %v635 = vsel %vm587, %v633, %v634
      %v636 = vrot.slane %v481, 1
      %v637 = vrot.slane %v482, 1
      %v638 = vsel %vm587, %v636, %v637
      %v639 = vrot.slane %v483, 1
      %v640 = vrot.slane %v484, 1
      %v641 = vsel %vm587, %v639, %v640
      %v642 = vrot.slane %v485, 1
      %v643 = vrot.slane %v486, 1
      %v644 = vsel %vm587, %v642, %v643
      %v645 = vrot.slane %v487, 1
      %v646 = vrot.slane %v488, 1
      %v647 = vsel %vm587, %v645, %v646
      %v648 = vrot.slane %v489, 1
      %v649 = vrot.slane %v490, 1
      %v650 = vsel %vm587, %v648, %v649
      %v651 = vrot.slane %v491, 1
      %v652 = vrot.slane %v492, 1
      %v653 = vsel %vm587, %v651, %v652
      %v654 = vrot.slane %v493, 1
      %v655 = vrot.slane %v494, 1
      %v656 = vsel %vm587, %v654, %v655
      %v657 = vrot.slane %v495, 1
      %v658 = vrot.slane %v496, 1
      %v659 = vsel %vm587, %v657, %v658
      %v660 = vrot.slane %v501, 1
      %v661 = vrot.slane %v502, 1
      %v662 = vsel %vm587, %v660, %v661
      %v663 = vrot.slane %v503, 1
      %v664 = vrot.slane %v504, 1
      %v665 = vsel %vm587, %v663, %v664
      %v666 = vrot.slane %v505, 1
      %v667 = vrot.slane %v506, 1
      %v668 = vsel %vm587, %v666, %v667
      %v669 = vrot.slane %v507, 1
      %v670 = vrot.slane %v508, 1
      %v671 = vsel %vm587, %v669, %v670
      %v672 = vrot.slane %v509, 1
      %v673 = vrot.slane %v510, 1
      %v674 = vsel %vm587, %v672, %v673
      %v675 = vrot.slane %v511, 1
      %v676 = vrot.slane %v512, 1
      %v677 = vsel %vm587, %v675, %v676
      %v678 = vrot.slane %v513, 1
      %v679 = vrot.slane %v514, 1
      %v680 = vsel %vm587, %v678, %v679
      %v681 = vrot.slane %v515, 1
      %v682 = vrot.slane %v516, 1
      %v683 = vsel %vm587, %v681, %v682
      %s684 = scalar_lea.vmem %s1, 4
      %v685 = vld [vmem:[%s684] sm:$0xf]
      %v686 = vsel %vm276, %v590, 0
      %v688 = vsel %vm276, %v593, 0
      %v690 = vsel %vm276, %v596, 0
      %v692 = vsel %vm276, %v599, 0
      %v694 = vsel %vm276, %v602, 0
      %v696 = vsel %vm276, %v605, 0
      %v698 = vsel %vm276, %v608, 0
      %v700 = vsel %vm276, %v611, 0
      %v702 = vsel %vm276, %v614, 0
      %v704 = vsel %vm276, %v617, 0
      %v706 = vsel %vm276, %v620, 0
      %v708 = vsel %vm276, %v623, 0
      %v710 = vsel %vm276, %v626, 0
      %v712 = vsel %vm276, %v629, 0
      %v714 = vsel %vm276, %v632, 0
      %v716 = vsel %vm276, %v635, 0
      %v718 = vsel %vm276, %v638, 0
      %v720 = vsel %vm276, %v641, 0
      %v722 = vsel %vm276, %v644, 0
      %v724 = vsel %vm276, %v647, 0
      %v726 = vsel %vm276, %v650, 0
      %v728 = vsel %vm276, %v653, 0
      %v730 = vsel %vm276, %v656, 0
      %v732 = vsel %vm276, %v659, 0
      %v734 = vsel %vm276, %v662, 0
      %v736 = vsel %vm276, %v665, 0
      %v738 = vsel %vm276, %v668, 0
      %v740 = vsel %vm276, %v671, 0
      %v742 = vsel %vm276, %v674, 0
      %v744 = vsel %vm276, %v677, 0
      %v746 = vsel %vm276, %v680, 0
      %v748 = vsel %vm276, %v683, 0
      %vm750 = vcmask 1043456
      %v752 = vsel %vm750, %v685, 0
      %754 = vmatprep.subr.mxu0 0.0
      %755 = vmatpush1.msra.mxu0 %v752
      %756 = vmatprep.subr.mxu0 0.0
      %757 = vmatpush1.msra.mxu0 0.0
      %758 = vmatprep.subr.mxu0 0.0
      %759 = vmatpush1.msra.mxu0 0.0
      %760 = vmatprep.subr.mxu0 0.0
      %761 = vmatpush1.msra.mxu0 0.0
      %762 = vmatprep.subr.mxu0 0.0
      %763 = vmatpush1.msra.mxu0 0.0
      %764 = vmatprep.subr.mxu0 0.0
      %765 = vmatpush1.msra.mxu0 0.0
      %766 = vmatprep.subr.mxu0 0.0
      %767 = vmatpush1.msra.mxu0 0.0
      %768 = vmatprep.subr.mxu0 0.0
      %769 = vmatpush1.msra.mxu0 0.0
      %770 = vmatprep.subr.mxu0 0.0
      %771 = vmatpush1.msra.mxu0 0.0
      %772 = vmatprep.subr.mxu0 0.0
      %773 = vmatpush1.msra.mxu0 0.0
      %774 = vmatprep.subr.mxu0 0.0
      %775 = vmatpush1.msra.mxu0 0.0
      %776 = vmatprep.subr.mxu0 0.0
      %777 = vmatpush1.msra.mxu0 0.0
      %778 = vmatprep.subr.mxu0 0.0
      %779 = vmatpush1.msra.mxu0 0.0
      %780 = vmatprep.subr.mxu0 0.0
      %781 = vmatpush1.msra.mxu0 0.0
      %782 = vmatprep.subr.mxu0 0.0
      %783 = vmatpush1.msra.mxu0 0.0
      %784 = vmatprep.subr.mxu0 0.0
      %785 = vmatpush1.msra.mxu0 0.0
      %786 = vmatprep.subr.mxu0 0.0
      %787 = vmatpush1.msra.mxu0 0.0
      %788 = vmatprep.subr.mxu0 0.0
      %789 = vmatpush1.msra.mxu0 0.0
      %790 = vmatprep.subr.mxu0 0.0
      %791 = vmatpush1.msra.mxu0 0.0
      %792 = vmatprep.subr.mxu0 0.0
      %793 = vmatpush1.msra.mxu0 0.0
      %794 = vmatprep.subr.mxu0 0.0
      %795 = vmatpush1.msra.mxu0 0.0
      %796 = vmatprep.subr.mxu0 0.0
      %797 = vmatpush1.msra.mxu0 0.0
      %798 = vmatprep.subr.mxu0 0.0
      %799 = vmatpush1.msra.mxu0 0.0
      %800 = vmatprep.subr.mxu0 0.0
      %801 = vmatpush1.msra.mxu0 0.0
      %802 = vmatprep.subr.mxu0 0.0
      %803 = vmatpush1.msra.mxu0 0.0
      %804 = vmatprep.subr.mxu0 0.0
      %805 = vmatpush1.msra.mxu0 0.0
      %806 = vmatprep.subr.mxu0 0.0
      %807 = vmatpush1.msra.mxu0 0.0
      %808 = vmatprep.subr.mxu0 0.0
      %809 = vmatpush1.msra.mxu0 0.0
      %810 = vmatprep.subr.mxu0 0.0
      %811 = vmatpush1.msra.mxu0 0.0
      %812 = vmatprep.subr.mxu0 0.0
      %813 = vmatpush1.msra.mxu0 0.0
      %814 = vmatprep.subr.mxu0 0.0
      %815 = vmatpush1.msra.mxu0 0.0
      %816 = vmatprep.subr.mxu0 0.0
      %817 = vmatpush1.msra.mxu0 0.0
      %818 = vmatprep.mubr.f32.mxu0 0.0
      %819 = vmatmul.mubr.f32.gmra.mrb[0].mxu0 %v686
      %v820 = vpop.f32.mrb[0].mxu0
      %v821 = vadd.f32 0.0, %v820
      %v822 = vpop.f32.mrb[0].mxu0
      %823 = vmatprep.mubr.f32.mxu0 0.0
      %824 = vmatmul.mubr.f32.gmra.mrb[0].mxu0 %v688
      %v825 = vpop.f32.mrb[0].mxu0
      %v826 = vadd.f32 0.0, %v825
      %v827 = vpop.f32.mrb[0].mxu0
      %828 = vmatprep.mubr.f32.mxu0 0.0
      %829 = vmatmul.mubr.f32.gmra.mrb[0].mxu0 %v690
      %v830 = vpop.f32.mrb[0].mxu0
      %v831 = vadd.f32 0.0, %v830
      %v832 = vpop.f32.mrb[0].mxu0
      %833 = vmatprep.mubr.f32.mxu0 0.0
      %834 = vmatmul.mubr.f32.gmra.mrb[0].mxu0 %v692
      %v835 = vpop.f32.mrb[0].mxu0
      %v836 = vadd.f32 0.0, %v835
      %v837 = vpop.f32.mrb[0].mxu0
      %838 = vmatprep.mubr.f32.mxu0 0.0
      %839 = vmatmul.mubr.f32.gmra.mrb[0].mxu0 %v694
      %v840 = vpop.f32.mrb[0].mxu0
      %v841 = vadd.f32 0.0, %v840
      %v842 = vpop.f32.mrb[0].mxu0
      %843 = vmatprep.mubr.f32.mxu0 0.0
      %844 = vmatmul.mubr.f32.gmra.mrb[0].mxu0 %v696
      %v845 = vpop.f32.mrb[0].mxu0
      %v846 = vadd.f32 0.0, %v845
      %v847 = vpop.f32.mrb[0].mxu0
      %848 = vmatprep.mubr.f32.mxu0 0.0
      %849 = vmatmul.mubr.f32.gmra.mrb[0].mxu0 %v698
      %v850 = vpop.f32.mrb[0].mxu0
      %v851 = vadd.f32 0.0, %v850
      %v852 = vpop.f32.mrb[0].mxu0
      %853 = vmatprep.mubr.f32.mxu0 0.0
      %854 = vmatmul.mubr.f32.gmra.mrb[0].mxu0 %v700
      %v855 = vpop.f32.mrb[0].mxu0
      %v856 = vadd.f32 0.0, %v855
      %v857 = vpop.f32.mrb[0].mxu0
      %858 = vmatprep.mubr.f32.mxu0 0.0
      %859 = vmatmul.mubr.f32.gmra.mrb[0].mxu0 %v702
      %v860 = vpop.f32.mrb[0].mxu0
      %v861 = vadd.f32 0.0, %v860
      %v862 = vpop.f32.mrb[0].mxu0
      %863 = vmatprep.mubr.f32.mxu0 0.0
      %864 = vmatmul.mubr.f32.gmra.mrb[0].mxu0 %v704
      %v865 = vpop.f32.mrb[0].mxu0
      %v866 = vadd.f32 0.0, %v865
      %v867 = vpop.f32.mrb[0].mxu0
      %868 = vmatprep.mubr.f32.mxu0 0.0
      %869 = vmatmul.mubr.f32.gmra.mrb[0].mxu0 %v706
      %v870 = vpop.f32.mrb[0].mxu0
      %v871 = vadd.f32 0.0, %v870
      %v872 = vpop.f32.mrb[0].mxu0
      %873 = vmatprep.mubr.f32.mxu0 0.0
      %874 = vmatmul.mubr.f32.gmra.mrb[0].mxu0 %v708
      %v875 = vpop.f32.mrb[0].mxu0
      %v876 = vadd.f32 0.0, %v875
      %v877 = vpop.f32.mrb[0].mxu0
      %878 = vmatprep.mubr.f32.mxu0 0.0
      %879 = vmatmul.mubr.f32.gmra.mrb[0].mxu0 %v710
      %v880 = vpop.f32.mrb[0].mxu0
      %v881 = vadd.f32 0.0, %v880
      %v882 = vpop.f32.mrb[0].mxu0
      %883 = vmatprep.mubr.f32.mxu0 0.0
      %884 = vmatmul.mubr.f32.gmra.mrb[0].mxu0 %v712
      %v885 = vpop.f32.mrb[0].mxu0
      %v886 = vadd.f32 0.0, %v885
      %v887 = vpop.f32.mrb[0].mxu0
      %888 = vmatprep.mubr.f32.mxu0 0.0
      %889 = vmatmul.mubr.f32.gmra.mrb[0].mxu0 %v714
      %v890 = vpop.f32.mrb[0].mxu0
      %v891 = vadd.f32 0.0, %v890
      %v892 = vpop.f32.mrb[0].mxu0
      %893 = vmatprep.mubr.f32.mxu0 0.0
      %894 = vmatmul.mubr.f32.gmra.mrb[0].mxu0 %v716
      %v895 = vpop.f32.mrb[0].mxu0
      %v896 = vadd.f32 0.0, %v895
      %v897 = vpop.f32.mrb[0].mxu0
      %898 = vmatprep.mubr.f32.mxu0 0.0
      %899 = vmatmul.mubr.f32.gmra.mrb[0].mxu0 %v718
      %v900 = vpop.f32.mrb[0].mxu0
      %v901 = vadd.f32 0.0, %v900
      %v902 = vpop.f32.mrb[0].mxu0
      %903 = vmatprep.mubr.f32.mxu0 0.0
      %904 = vmatmul.mubr.f32.gmra.mrb[0].mxu0 %v720
      %v905 = vpop.f32.mrb[0].mxu0
      %v906 = vadd.f32 0.0, %v905
      %v907 = vpop.f32.mrb[0].mxu0
      %908 = vmatprep.mubr.f32.mxu0 0.0
      %909 = vmatmul.mubr.f32.gmra.mrb[0].mxu0 %v722
      %v910 = vpop.f32.mrb[0].mxu0
      %v911 = vadd.f32 0.0, %v910
      %v912 = vpop.f32.mrb[0].mxu0
      %913 = vmatprep.mubr.f32.mxu0 0.0
      %914 = vmatmul.mubr.f32.gmra.mrb[0].mxu0 %v724
      %v915 = vpop.f32.mrb[0].mxu0
      %v916 = vadd.f32 0.0, %v915
      %v917 = vpop.f32.mrb[0].mxu0
      %918 = vmatprep.mubr.f32.mxu0 0.0
      %919 = vmatmul.mubr.f32.gmra.mrb[0].mxu0 %v726
      %v920 = vpop.f32.mrb[0].mxu0
      %v921 = vadd.f32 0.0, %v920
      %v922 = vpop.f32.mrb[0].mxu0
      %923 = vmatprep.mubr.f32.mxu0 0.0
      %924 = vmatmul.mubr.f32.gmra.mrb[0].mxu0 %v728
      %v925 = vpop.f32.mrb[0].mxu0
      %v926 = vadd.f32 0.0, %v925
      %v927 = vpop.f32.mrb[0].mxu0
      %928 = vmatprep.mubr.f32.mxu0 0.0
      %929 = vmatmul.mubr.f32.gmra.mrb[0].mxu0 %v730
      %v930 = vpop.f32.mrb[0].mxu0
      %v931 = vadd.f32 0.0, %v930
      %v932 = vpop.f32.mrb[0].mxu0
      %933 = vmatprep.mubr.f32.mxu0 0.0
      %934 = vmatmul.mubr.f32.gmra.mrb[0].mxu0 %v732
      %v935 = vpop.f32.mrb[0].mxu0
      %v936 = vadd.f32 0.0, %v935
      %v937 = vpop.f32.mrb[0].mxu0
      %938 = vmatprep.mubr.f32.mxu0 0.0
      %939 = vmatmul.mubr.f32.gmra.mrb[0].mxu0 %v734
      %v940 = vpop.f32.mrb[0].mxu0
      %v941 = vadd.f32 0.0, %v940
      %v942 = vpop.f32.mrb[0].mxu0
      %943 = vmatprep.mubr.f32.mxu0 0.0
      %944 = vmatmul.mubr.f32.gmra.mrb[0].mxu0 %v736
      %v945 = vpop.f32.mrb[0].mxu0
      %v946 = vadd.f32 0.0, %v945
      %v947 = vpop.f32.mrb[0].mxu0
      %948 = vmatprep.mubr.f32.mxu0 0.0
      %949 = vmatmul.mubr.f32.gmra.mrb[0].mxu0 %v738
      %v950 = vpop.f32.mrb[0].mxu0
      %v951 = vadd.f32 0.0, %v950
      %v952 = vpop.f32.mrb[0].mxu0
      %953 = vmatprep.mubr.f32.mxu0 0.0
      %954 = vmatmul.mubr.f32.gmra.mrb[0].mxu0 %v740
      %v955 = vpop.f32.mrb[0].mxu0
      %v956 = vadd.f32 0.0, %v955
      %v957 = vpop.f32.mrb[0].mxu0
      %958 = vmatprep.mubr.f32.mxu0 0.0
      %959 = vmatmul.mubr.f32.gmra.mrb[0].mxu0 %v742
      %v960 = vpop.f32.mrb[0].mxu0
      %v961 = vadd.f32 0.0, %v960
      %v962 = vpop.f32.mrb[0].mxu0
      %963 = vmatprep.mubr.f32.mxu0 0.0
      %964 = vmatmul.mubr.f32.gmra.mrb[0].mxu0 %v744
      %v965 = vpop.f32.mrb[0].mxu0
      %v966 = vadd.f32 0.0, %v965
      %v967 = vpop.f32.mrb[0].mxu0
      %968 = vmatprep.mubr.f32.mxu0 0.0
      %969 = vmatmul.mubr.f32.gmra.mrb[0].mxu0 %v746
      %v970 = vpop.f32.mrb[0].mxu0
      %v971 = vadd.f32 0.0, %v970
      %v972 = vpop.f32.mrb[0].mxu0
      %973 = vmatprep.mubr.f32.mxu0 0.0
      %974 = vmatmul.mubr.f32.gmra.mrb[0].mxu0 %v748
      %v975 = vpop.f32.mrb[0].mxu0
      %v976 = vadd.f32 0.0, %v975
      %v977 = vpop.f32.mrb[0].mxu0
      %978 = vdwg.mxu0
      %v979 = vsel %vm276, %v441, 0
      %v981 = vsel %vm276, %v443, 0
      %v983 = vsel %vm276, %v445, 0
      %v985 = vsel %vm276, %v447, 0
      %v987 = vsel %vm276, %v449, 0
      %v989 = vsel %vm276, %v451, 0
      %v991 = vsel %vm276, %v453, 0
      %v993 = vsel %vm276, %v455, 0
      %v995 = vsel %vm276, %v461, 0
      %v997 = vsel %vm276, %v463, 0
      %v999 = vsel %vm276, %v465, 0
      %v1001 = vsel %vm276, %v467, 0
      %v1003 = vsel %vm276, %v469, 0
      %v1005 = vsel %vm276, %v471, 0
      %v1007 = vsel %vm276, %v473, 0
      %v1009 = vsel %vm276, %v475, 0
      %v1011 = vsel %vm276, %v481, 0
      %v1013 = vsel %vm276, %v483, 0
      %v1015 = vsel %vm276, %v485, 0
      %v1017 = vsel %vm276, %v487, 0
      %v1019 = vsel %vm276, %v489, 0
      %v1021 = vsel %vm276, %v491, 0
      %v1023 = vsel %vm276, %v493, 0
      %v1025 = vsel %vm276, %v495, 0
      %v1027 = vsel %vm276, %v501, 0
      %v1029 = vsel %vm276, %v503, 0
      %v1031 = vsel %vm276, %v505, 0
      %v1033 = vsel %vm276, %v507, 0
      %v1035 = vsel %vm276, %v509, 0
      %v1037 = vsel %vm276, %v511, 0
      %v1039 = vsel %vm276, %v513, 0
      %v1041 = vsel %vm276, %v515, 0
      %v1044 = vsel %vm750, %v521, 0
      %1046 = vmatprep.subr.mxu0 0.0
      %1047 = vmatpush1.msra.mxu0 %v1044
      %1048 = vmatprep.subr.mxu0 0.0
      %1049 = vmatpush1.msra.mxu0 0.0
      %1050 = vmatprep.subr.mxu0 0.0
      %1051 = vmatpush1.msra.mxu0 0.0
      %1052 = vmatprep.subr.mxu0 0.0
      %1053 = vmatpush1.msra.mxu0 0.0
      %1054 = vmatprep.subr.mxu0 0.0
      %1055 = vmatpush1.msra.mxu0 0.0
      %1056 = vmatprep.subr.mxu0 0.0
      %1057 = vmatpush1.msra.mxu0 0.0
      %1058 = vmatprep.subr.mxu0 0.0
      %1059 = vmatpush1.msra.mxu0 0.0
      %1060 = vmatprep.subr.mxu0 0.0
      %1061 = vmatpush1.msra.mxu0 0.0
      %1062 = vmatprep.subr.mxu0 0.0
      %1063 = vmatpush1.msra.mxu0 0.0
      %1064 = vmatprep.subr.mxu0 0.0
      %1065 = vmatpush1.msra.mxu0 0.0
      %1066 = vmatprep.subr.mxu0 0.0
      %1067 = vmatpush1.msra.mxu0 0.0
      %1068 = vmatprep.subr.mxu0 0.0
      %1069 = vmatpush1.msra.mxu0 0.0
      %1070 = vmatprep.subr.mxu0 0.0
      %1071 = vmatpush1.msra.mxu0 0.0
      %1072 = vmatprep.subr.mxu0 0.0
      %1073 = vmatpush1.msra.mxu0 0.0
      %1074 = vmatprep.subr.mxu0 0.0
      %1075 = vmatpush1.msra.mxu0 0.0
      %1076 = vmatprep.subr.mxu0 0.0
      %1077 = vmatpush1.msra.mxu0 0.0
      %1078 = vmatprep.subr.mxu0 0.0
      %1079 = vmatpush1.msra.mxu0 0.0
      %1080 = vmatprep.subr.mxu0 0.0
      %1081 = vmatpush1.msra.mxu0 0.0
      %1082 = vmatprep.subr.mxu0 0.0
      %1083 = vmatpush1.msra.mxu0 0.0
      %1084 = vmatprep.subr.mxu0 0.0
      %1085 = vmatpush1.msra.mxu0 0.0
      %1086 = vmatprep.subr.mxu0 0.0
      %1087 = vmatpush1.msra.mxu0 0.0
      %1088 = vmatprep.subr.mxu0 0.0
      %1089 = vmatpush1.msra.mxu0 0.0
      %1090 = vmatprep.subr.mxu0 0.0
      %1091 = vmatpush1.msra.mxu0 0.0
      %1092 = vmatprep.subr.mxu0 0.0
      %1093 = vmatpush1.msra.mxu0 0.0
      %1094 = vmatprep.subr.mxu0 0.0
      %1095 = vmatpush1.msra.mxu0 0.0
      %1096 = vmatprep.subr.mxu0 0.0
      %1097 = vmatpush1.msra.mxu0 0.0
      %1098 = vmatprep.subr.mxu0 0.0
      %1099 = vmatpush1.msra.mxu0 0.0
      %1100 = vmatprep.subr.mxu0 0.0
      %1101 = vmatpush1.msra.mxu0 0.0
      %1102 = vmatprep.subr.mxu0 0.0
      %1103 = vmatpush1.msra.mxu0 0.0
      %1104 = vmatprep.subr.mxu0 0.0
      %1105 = vmatpush1.msra.mxu0 0.0
      %1106 = vmatprep.subr.mxu0 0.0
      %1107 = vmatpush1.msra.mxu0 0.0
      %1108 = vmatprep.subr.mxu0 0.0
      %1109 = vmatpush1.msra.mxu0 0.0
      %1110 = vmatprep.mubr.f32.mxu0 0.0
      %1111 = vmatmul.mubr.f32.gmra.mrb[0].mxu0 %v979
      %v1112 = vpop.f32.mrb[0].mxu0
      %v1113 = vadd.f32 %v821, %v1112
      %v1114 = vpop.f32.mrb[0].mxu0
      %1115 = vmatprep.mubr.f32.mxu0 0.0
      %1116 = vmatmul.mubr.f32.gmra.mrb[0].mxu0 %v981
      %v1117 = vpop.f32.mrb[0].mxu0
      %v1118 = vadd.f32 %v826, %v1117
      %v1119 = vpop.f32.mrb[0].mxu0
      %1120 = vmatprep.mubr.f32.mxu0 0.0
      %1121 = vmatmul.mubr.f32.gmra.mrb[0].mxu0 %v983
      %v1122 = vpop.f32.mrb[0].mxu0
      %v1123 = vadd.f32 %v831, %v1122
      %v1124 = vpop.f32.mrb[0].mxu0
      %1125 = vmatprep.mubr.f32.mxu0 0.0
      %1126 = vmatmul.mubr.f32.gmra.mrb[0].mxu0 %v985
      %v1127 = vpop.f32.mrb[0].mxu0
      %v1128 = vadd.f32 %v836, %v1127
      %v1129 = vpop.f32.mrb[0].mxu0
      %1130 = vmatprep.mubr.f32.mxu0 0.0
      %1131 = vmatmul.mubr.f32.gmra.mrb[0].mxu0 %v987
      %v1132 = vpop.f32.mrb[0].mxu0
      %v1133 = vadd.f32 %v841, %v1132
      %v1134 = vpop.f32.mrb[0].mxu0
      %1135 = vmatprep.mubr.f32.mxu0 0.0
      %1136 = vmatmul.mubr.f32.gmra.mrb[0].mxu0 %v989
      %v1137 = vpop.f32.mrb[0].mxu0
      %v1138 = vadd.f32 %v846, %v1137
      %v1139 = vpop.f32.mrb[0].mxu0
      %1140 = vmatprep.mubr.f32.mxu0 0.0
      %1141 = vmatmul.mubr.f32.gmra.mrb[0].mxu0 %v991
      %v1142 = vpop.f32.mrb[0].mxu0
      %v1143 = vadd.f32 %v851, %v1142
      %v1144 = vpop.f32.mrb[0].mxu0
      %1145 = vmatprep.mubr.f32.mxu0 0.0
      %1146 = vmatmul.mubr.f32.gmra.mrb[0].mxu0 %v993
      %v1147 = vpop.f32.mrb[0].mxu0
      %v1148 = vadd.f32 %v856, %v1147
      %v1149 = vpop.f32.mrb[0].mxu0
      %1150 = vmatprep.mubr.f32.mxu0 0.0
      %1151 = vmatmul.mubr.f32.gmra.mrb[0].mxu0 %v995
      %v1152 = vpop.f32.mrb[0].mxu0
      %v1153 = vadd.f32 %v861, %v1152
      %v1154 = vpop.f32.mrb[0].mxu0
      %1155 = vmatprep.mubr.f32.mxu0 0.0
      %1156 = vmatmul.mubr.f32.gmra.mrb[0].mxu0 %v997
      %v1157 = vpop.f32.mrb[0].mxu0
      %v1158 = vadd.f32 %v866, %v1157
      %v1159 = vpop.f32.mrb[0].mxu0
      %1160 = vmatprep.mubr.f32.mxu0 0.0
      %1161 = vmatmul.mubr.f32.gmra.mrb[0].mxu0 %v999
      %v1162 = vpop.f32.mrb[0].mxu0
      %v1163 = vadd.f32 %v871, %v1162
      %v1164 = vpop.f32.mrb[0].mxu0
      %1165 = vmatprep.mubr.f32.mxu0 0.0
      %1166 = vmatmul.mubr.f32.gmra.mrb[0].mxu0 %v1001
      %v1167 = vpop.f32.mrb[0].mxu0
      %v1168 = vadd.f32 %v876, %v1167
      %v1169 = vpop.f32.mrb[0].mxu0
      %1170 = vmatprep.mubr.f32.mxu0 0.0
      %1171 = vmatmul.mubr.f32.gmra.mrb[0].mxu0 %v1003
      %v1172 = vpop.f32.mrb[0].mxu0
      %v1173 = vadd.f32 %v881, %v1172
      %v1174 = vpop.f32.mrb[0].mxu0
      %1175 = vmatprep.mubr.f32.mxu0 0.0
      %1176 = vmatmul.mubr.f32.gmra.mrb[0].mxu0 %v1005
      %v1177 = vpop.f32.mrb[0].mxu0
      %v1178 = vadd.f32 %v886, %v1177
      %v1179 = vpop.f32.mrb[0].mxu0
      %1180 = vmatprep.mubr.f32.mxu0 0.0
      %1181 = vmatmul.mubr.f32.gmra.mrb[0].mxu0 %v1007
      %v1182 = vpop.f32.mrb[0].mxu0
      %v1183 = vadd.f32 %v891, %v1182
      %v1184 = vpop.f32.mrb[0].mxu0
      %1185 = vmatprep.mubr.f32.mxu0 0.0
      %1186 = vmatmul.mubr.f32.gmra.mrb[0].mxu0 %v1009
      %v1187 = vpop.f32.mrb[0].mxu0
      %v1188 = vadd.f32 %v896, %v1187
      %v1189 = vpop.f32.mrb[0].mxu0
      %1190 = vmatprep.mubr.f32.mxu0 0.0
      %1191 = vmatmul.mubr.f32.gmra.mrb[0].mxu0 %v1011
      %v1192 = vpop.f32.mrb[0].mxu0
      %v1193 = vadd.f32 %v901, %v1192
      %v1194 = vpop.f32.mrb[0].mxu0
      %1195 = vmatprep.mubr.f32.mxu0 0.0
      %1196 = vmatmul.mubr.f32.gmra.mrb[0].mxu0 %v1013
      %v1197 = vpop.f32.mrb[0].mxu0
      %v1198 = vadd.f32 %v906, %v1197
      %v1199 = vpop.f32.mrb[0].mxu0
      %1200 = vmatprep.mubr.f32.mxu0 0.0
      %1201 = vmatmul.mubr.f32.gmra.mrb[0].mxu0 %v1015
      %v1202 = vpop.f32.mrb[0].mxu0
      %v1203 = vadd.f32 %v911, %v1202
      %v1204 = vpop.f32.mrb[0].mxu0
      %1205 = vmatprep.mubr.f32.mxu0 0.0
      %1206 = vmatmul.mubr.f32.gmra.mrb[0].mxu0 %v1017
      %v1207 = vpop.f32.mrb[0].mxu0
      %v1208 = vadd.f32 %v916, %v1207
      %v1209 = vpop.f32.mrb[0].mxu0
      %1210 = vmatprep.mubr.f32.mxu0 0.0
      %1211 = vmatmul.mubr.f32.gmra.mrb[0].mxu0 %v1019
      %v1212 = vpop.f32.mrb[0].mxu0
      %v1213 = vadd.f32 %v921, %v1212
      %v1214 = vpop.f32.mrb[0].mxu0
      %1215 = vmatprep.mubr.f32.mxu0 0.0
      %1216 = vmatmul.mubr.f32.gmra.mrb[0].mxu0 %v1021
      %v1217 = vpop.f32.mrb[0].mxu0
      %v1218 = vadd.f32 %v926, %v1217
      %v1219 = vpop.f32.mrb[0].mxu0
      %1220 = vmatprep.mubr.f32.mxu0 0.0
      %1221 = vmatmul.mubr.f32.gmra.mrb[0].mxu0 %v1023
      %v1222 = vpop.f32.mrb[0].mxu0
      %v1223 = vadd.f32 %v931, %v1222
      %v1224 = vpop.f32.mrb[0].mxu0
      %1225 = vmatprep.mubr.f32.mxu0 0.0
      %1226 = vmatmul.mubr.f32.gmra.mrb[0].mxu0 %v1025
      %v1227 = vpop.f32.mrb[0].mxu0
      %v1228 = vadd.f32 %v936, %v1227
      %v1229 = vpop.f32.mrb[0].mxu0
      %1230 = vmatprep.mubr.f32.mxu0 0.0
      %1231 = vmatmul.mubr.f32.gmra.mrb[0].mxu0 %v1027
      %v1232 = vpop.f32.mrb[0].mxu0
      %v1233 = vadd.f32 %v941, %v1232
      %v1234 = vpop.f32.mrb[0].mxu0
      %1235 = vmatprep.mubr.f32.mxu0 0.0
      %1236 = vmatmul.mubr.f32.gmra.mrb[0].mxu0 %v1029
      %v1237 = vpop.f32.mrb[0].mxu0
      %v1238 = vadd.f32 %v946, %v1237
      %v1239 = vpop.f32.mrb[0].mxu0
      %1240 = vmatprep.mubr.f32.mxu0 0.0
      %1241 = vmatmul.mubr.f32.gmra.mrb[0].mxu0 %v1031
      %v1242 = vpop.f32.mrb[0].mxu0
      %v1243 = vadd.f32 %v951, %v1242
      %v1244 = vpop.f32.mrb[0].mxu0
      %1245 = vmatprep.mubr.f32.mxu0 0.0
      %1246 = vmatmul.mubr.f32.gmra.mrb[0].mxu0 %v1033
      %v1247 = vpop.f32.mrb[0].mxu0
      %v1248 = vadd.f32 %v956, %v1247
      %v1249 = vpop.f32.mrb[0].mxu0
      %1250 = vmatprep.mubr.f32.mxu0 0.0
      %1251 = vmatmul.mubr.f32.gmra.mrb[0].mxu0 %v1035
      %v1252 = vpop.f32.mrb[0].mxu0
      %v1253 = vadd.f32 %v961, %v1252
      %v1254 = vpop.f32.mrb[0].mxu0
      %1255 = vmatprep.mubr.f32.mxu0 0.0
      %1256 = vmatmul.mubr.f32.gmra.mrb[0].mxu0 %v1037
      %v1257 = vpop.f32.mrb[0].mxu0
      %v1258 = vadd.f32 %v966, %v1257
      %v1259 = vpop.f32.mrb[0].mxu0
      %1260 = vmatprep.mubr.f32.mxu0 0.0
      %1261 = vmatmul.mubr.f32.gmra.mrb[0].mxu0 %v1039
      %v1262 = vpop.f32.mrb[0].mxu0
      %v1263 = vadd.f32 %v971, %v1262
      %v1264 = vpop.f32.mrb[0].mxu0
      %1265 = vmatprep.mubr.f32.mxu0 0.0
      %1266 = vmatmul.mubr.f32.gmra.mrb[0].mxu0 %v1041
      %v1267 = vpop.f32.mrb[0].mxu0
      %v1268 = vadd.f32 %v976, %v1267
      %v1269 = vpop.f32.mrb[0].mxu0
      %1270 = vdwg.mxu0
      %s1271 = scalar_lea.vmem %s2, 4
      %v1272 = vld [vmem:[%s1271] sm:$0xf]
      %v1274 = vsel %vm750, %v1272, 0
      %1276 = vmatprep.subr.mxu0 0.0
      %1277 = vmatpush1.msra.mxu0 %v1274
      %1278 = vmatprep.subr.mxu0 0.0
      %1279 = vmatpush1.msra.mxu0 0.0
      %1280 = vmatprep.subr.mxu0 0.0
      %1281 = vmatpush1.msra.mxu0 0.0
      %1282 = vmatprep.subr.mxu0 0.0
      %1283 = vmatpush1.msra.mxu0 0.0
      %1284 = vmatprep.subr.mxu0 0.0
      %1285 = vmatpush1.msra.mxu0 0.0
      %1286 = vmatprep.subr.mxu0 0.0
      %1287 = vmatpush1.msra.mxu0 0.0
      %1288 = vmatprep.subr.mxu0 0.0
      %1289 = vmatpush1.msra.mxu0 0.0
      %1290 = vmatprep.subr.mxu0 0.0
      %1291 = vmatpush1.msra.mxu0 0.0
      %1292 = vmatprep.subr.mxu0 0.0
      %1293 = vmatpush1.msra.mxu0 0.0
      %1294 = vmatprep.subr.mxu0 0.0
      %1295 = vmatpush1.msra.mxu0 0.0
      %1296 = vmatprep.subr.mxu0 0.0
      %1297 = vmatpush1.msra.mxu0 0.0
      %1298 = vmatprep.subr.mxu0 0.0
      %1299 = vmatpush1.msra.mxu0 0.0
      %1300 = vmatprep.subr.mxu0 0.0
      %1301 = vmatpush1.msra.mxu0 0.0
      %1302 = vmatprep.subr.mxu0 0.0
      %1303 = vmatpush1.msra.mxu0 0.0
      %1304 = vmatprep.subr.mxu0 0.0
      %1305 = vmatpush1.msra.mxu0 0.0
      %1306 = vmatprep.subr.mxu0 0.0
      %1307 = vmatpush1.msra.mxu0 0.0
      %1308 = vmatprep.subr.mxu0 0.0
      %1309 = vmatpush1.msra.mxu0 0.0
      %1310 = vmatprep.subr.mxu0 0.0
      %1311 = vmatpush1.msra.mxu0 0.0
      %1312 = vmatprep.subr.mxu0 0.0
      %1313 = vmatpush1.msra.mxu0 0.0
      %1314 = vmatprep.subr.mxu0 0.0
      %1315 = vmatpush1.msra.mxu0 0.0
      %1316 = vmatprep.subr.mxu0 0.0
      %1317 = vmatpush1.msra.mxu0 0.0
      %1318 = vmatprep.subr.mxu0 0.0
      %1319 = vmatpush1.msra.mxu0 0.0
      %1320 = vmatprep.subr.mxu0 0.0
      %1321 = vmatpush1.msra.mxu0 0.0
      %1322 = vmatprep.subr.mxu0 0.0
      %1323 = vmatpush1.msra.mxu0 0.0
      %1324 = vmatprep.subr.mxu0 0.0
      %1325 = vmatpush1.msra.mxu0 0.0
      %1326 = vmatprep.subr.mxu0 0.0
      %1327 = vmatpush1.msra.mxu0 0.0
      %1328 = vmatprep.subr.mxu0 0.0
      %1329 = vmatpush1.msra.mxu0 0.0
      %1330 = vmatprep.subr.mxu0 0.0
      %1331 = vmatpush1.msra.mxu0 0.0
      %1332 = vmatprep.subr.mxu0 0.0
      %1333 = vmatpush1.msra.mxu0 0.0
      %1334 = vmatprep.subr.mxu0 0.0
      %1335 = vmatpush1.msra.mxu0 0.0
      %1336 = vmatprep.subr.mxu0 0.0
      %1337 = vmatpush1.msra.mxu0 0.0
      %1338 = vmatprep.subr.mxu0 0.0
      %1339 = vmatpush1.msra.mxu0 0.0
      %1340 = vmatprep.mubr.f32.mxu0 0.0
      %1341 = vmatmul.mubr.f32.gmra.mrb[0].mxu0 %v686
      %v1342 = vpop.f32.mrb[0].mxu0
      %v1343 = vadd.f32 0.0, %v1342
      %v1344 = vpop.f32.mrb[0].mxu0
      %1345 = vmatprep.mubr.f32.mxu0 0.0
      %1346 = vmatmul.mubr.f32.gmra.mrb[0].mxu0 %v688
      %v1347 = vpop.f32.mrb[0].mxu0
      %v1348 = vadd.f32 0.0, %v1347
      %v1349 = vpop.f32.mrb[0].mxu0
      %1350 = vmatprep.mubr.f32.mxu0 0.0
      %1351 = vmatmul.mubr.f32.gmra.mrb[0].mxu0 %v690
      %v1352 = vpop.f32.mrb[0].mxu0
      %v1353 = vadd.f32 0.0, %v1352
      %v1354 = vpop.f32.mrb[0].mxu0
      %1355 = vmatprep.mubr.f32.mxu0 0.0
      %1356 = vmatmul.mubr.f32.gmra.mrb[0].mxu0 %v692
      %v1357 = vpop.f32.mrb[0].mxu0
      %v1358 = vadd.f32 0.0, %v1357
      %v1359 = vpop.f32.mrb[0].mxu0
      %1360 = vmatprep.mubr.f32.mxu0 0.0
      %1361 = vmatmul.mubr.f32.gmra.mrb[0].mxu0 %v694
      %v1362 = vpop.f32.mrb[0].mxu0
      %v1363 = vadd.f32 0.0, %v1362
      %v1364 = vpop.f32.mrb[0].mxu0
      %1365 = vmatprep.mubr.f32.mxu0 0.0
      %1366 = vmatmul.mubr.f32.gmra.mrb[0].mxu0 %v696
      %v1367 = vpop.f32.mrb[0].mxu0
      %v1368 = vadd.f32 0.0, %v1367
      %v1369 = vpop.f32.mrb[0].mxu0
      %1370 = vmatprep.mubr.f32.mxu0 0.0
      %1371 = vmatmul.mubr.f32.gmra.mrb[0].mxu0 %v698
      %v1372 = vpop.f32.mrb[0].mxu0
      %v1373 = vadd.f32 0.0, %v1372
      %v1374 = vpop.f32.mrb[0].mxu0
      %1375 = vmatprep.mubr.f32.mxu0 0.0
      %1376 = vmatmul.mubr.f32.gmra.mrb[0].mxu0 %v700
      %v1377 = vpop.f32.mrb[0].mxu0
      %v1378 = vadd.f32 0.0, %v1377
      %v1379 = vpop.f32.mrb[0].mxu0
      %1380 = vmatprep.mubr.f32.mxu0 0.0
      %1381 = vmatmul.mubr.f32.gmra.mrb[0].mxu0 %v702
      %v1382 = vpop.f32.mrb[0].mxu0
      %v1383 = vadd.f32 0.0, %v1382
      %v1384 = vpop.f32.mrb[0].mxu0
      %1385 = vmatprep.mubr.f32.mxu0 0.0
      %1386 = vmatmul.mubr.f32.gmra.mrb[0].mxu0 %v704
      %v1387 = vpop.f32.mrb[0].mxu0
      %v1388 = vadd.f32 0.0, %v1387
      %v1389 = vpop.f32.mrb[0].mxu0
      %1390 = vmatprep.mubr.f32.mxu0 0.0
      %1391 = vmatmul.mubr.f32.gmra.mrb[0].mxu0 %v706
      %v1392 = vpop.f32.mrb[0].mxu0
      %v1393 = vadd.f32 0.0, %v1392
      %v1394 = vpop.f32.mrb[0].mxu0
      %1395 = vmatprep.mubr.f32.mxu0 0.0
      %1396 = vmatmul.mubr.f32.gmra.mrb[0].mxu0 %v708
      %v1397 = vpop.f32.mrb[0].mxu0
      %v1398 = vadd.f32 0.0, %v1397
      %v1399 = vpop.f32.mrb[0].mxu0
      %1400 = vmatprep.mubr.f32.mxu0 0.0
      %1401 = vmatmul.mubr.f32.gmra.mrb[0].mxu0 %v710
      %v1402 = vpop.f32.mrb[0].mxu0
      %v1403 = vadd.f32 0.0, %v1402
      %v1404 = vpop.f32.mrb[0].mxu0
      %1405 = vmatprep.mubr.f32.mxu0 0.0
      %1406 = vmatmul.mubr.f32.gmra.mrb[0].mxu0 %v712
      %v1407 = vpop.f32.mrb[0].mxu0
      %v1408 = vadd.f32 0.0, %v1407
      %v1409 = vpop.f32.mrb[0].mxu0
      %1410 = vmatprep.mubr.f32.mxu0 0.0
      %1411 = vmatmul.mubr.f32.gmra.mrb[0].mxu0 %v714
      %v1412 = vpop.f32.mrb[0].mxu0
      %v1413 = vadd.f32 0.0, %v1412
      %v1414 = vpop.f32.mrb[0].mxu0
      %1415 = vmatprep.mubr.f32.mxu0 0.0
      %1416 = vmatmul.mubr.f32.gmra.mrb[0].mxu0 %v716
      %v1417 = vpop.f32.mrb[0].mxu0
      %v1418 = vadd.f32 0.0, %v1417
      %v1419 = vpop.f32.mrb[0].mxu0
      %1420 = vmatprep.mubr.f32.mxu0 0.0
      %1421 = vmatmul.mubr.f32.gmra.mrb[0].mxu0 %v718
      %v1422 = vpop.f32.mrb[0].mxu0
      %v1423 = vadd.f32 0.0, %v1422
      %v1424 = vpop.f32.mrb[0].mxu0
      %1425 = vmatprep.mubr.f32.mxu0 0.0
      %1426 = vmatmul.mubr.f32.gmra.mrb[0].mxu0 %v720
      %v1427 = vpop.f32.mrb[0].mxu0
      %v1428 = vadd.f32 0.0, %v1427
      %v1429 = vpop.f32.mrb[0].mxu0
      %1430 = vmatprep.mubr.f32.mxu0 0.0
      %1431 = vmatmul.mubr.f32.gmra.mrb[0].mxu0 %v722
      %v1432 = vpop.f32.mrb[0].mxu0
      %v1433 = vadd.f32 0.0, %v1432
      %v1434 = vpop.f32.mrb[0].mxu0
      %1435 = vmatprep.mubr.f32.mxu0 0.0
      %1436 = vmatmul.mubr.f32.gmra.mrb[0].mxu0 %v724
      %v1437 = vpop.f32.mrb[0].mxu0
      %v1438 = vadd.f32 0.0, %v1437
      %v1439 = vpop.f32.mrb[0].mxu0
      %1440 = vmatprep.mubr.f32.mxu0 0.0
      %1441 = vmatmul.mubr.f32.gmra.mrb[0].mxu0 %v726
      %v1442 = vpop.f32.mrb[0].mxu0
      %v1443 = vadd.f32 0.0, %v1442
      %v1444 = vpop.f32.mrb[0].mxu0
      %1445 = vmatprep.mubr.f32.mxu0 0.0
      %1446 = vmatmul.mubr.f32.gmra.mrb[0].mxu0 %v728
      %v1447 = vpop.f32.mrb[0].mxu0
      %v1448 = vadd.f32 0.0, %v1447
      %v1449 = vpop.f32.mrb[0].mxu0
      %1450 = vmatprep.mubr.f32.mxu0 0.0
      %1451 = vmatmul.mubr.f32.gmra.mrb[0].mxu0 %v730
      %v1452 = vpop.f32.mrb[0].mxu0
      %v1453 = vadd.f32 0.0, %v1452
      %v1454 = vpop.f32.mrb[0].mxu0
      %1455 = vmatprep.mubr.f32.mxu0 0.0
      %1456 = vmatmul.mubr.f32.gmra.mrb[0].mxu0 %v732
      %v1457 = vpop.f32.mrb[0].mxu0
      %v1458 = vadd.f32 0.0, %v1457
      %v1459 = vpop.f32.mrb[0].mxu0
      %1460 = vmatprep.mubr.f32.mxu0 0.0
      %1461 = vmatmul.mubr.f32.gmra.mrb[0].mxu0 %v734
      %v1462 = vpop.f32.mrb[0].mxu0
      %v1463 = vadd.f32 0.0, %v1462
      %v1464 = vpop.f32.mrb[0].mxu0
      %1465 = vmatprep.mubr.f32.mxu0 0.0
      %1466 = vmatmul.mubr.f32.gmra.mrb[0].mxu0 %v736
      %v1467 = vpop.f32.mrb[0].mxu0
      %v1468 = vadd.f32 0.0, %v1467
      %v1469 = vpop.f32.mrb[0].mxu0
      %1470 = vmatprep.mubr.f32.mxu0 0.0
      %1471 = vmatmul.mubr.f32.gmra.mrb[0].mxu0 %v738
      %v1472 = vpop.f32.mrb[0].mxu0
      %v1473 = vadd.f32 0.0, %v1472
      %v1474 = vpop.f32.mrb[0].mxu0
      %1475 = vmatprep.mubr.f32.mxu0 0.0
      %1476 = vmatmul.mubr.f32.gmra.mrb[0].mxu0 %v740
      %v1477 = vpop.f32.mrb[0].mxu0
      %v1478 = vadd.f32 0.0, %v1477
      %v1479 = vpop.f32.mrb[0].mxu0
      %1480 = vmatprep.mubr.f32.mxu0 0.0
      %1481 = vmatmul.mubr.f32.gmra.mrb[0].mxu0 %v742
      %v1482 = vpop.f32.mrb[0].mxu0
      %v1483 = vadd.f32 0.0, %v1482
      %v1484 = vpop.f32.mrb[0].mxu0
      %1485 = vmatprep.mubr.f32.mxu0 0.0
      %1486 = vmatmul.mubr.f32.gmra.mrb[0].mxu0 %v744
      %v1487 = vpop.f32.mrb[0].mxu0
      %v1488 = vadd.f32 0.0, %v1487
      %v1489 = vpop.f32.mrb[0].mxu0
      %1490 = vmatprep.mubr.f32.mxu0 0.0
      %1491 = vmatmul.mubr.f32.gmra.mrb[0].mxu0 %v746
      %v1492 = vpop.f32.mrb[0].mxu0
      %v1493 = vadd.f32 0.0, %v1492
      %v1494 = vpop.f32.mrb[0].mxu0
      %1495 = vmatprep.mubr.f32.mxu0 0.0
      %1496 = vmatmul.mubr.f32.gmra.mrb[0].mxu0 %v748
      %v1497 = vpop.f32.mrb[0].mxu0
      %v1498 = vadd.f32 0.0, %v1497
      %v1499 = vpop.f32.mrb[0].mxu0
      %1500 = vdwg.mxu0
      %v1502 = vsel %vm750, %v522, 0
      %1504 = vmatprep.subr.mxu0 0.0
      %1505 = vmatpush1.msra.mxu0 %v1502
      %1506 = vmatprep.subr.mxu0 0.0
      %1507 = vmatpush1.msra.mxu0 0.0
      %1508 = vmatprep.subr.mxu0 0.0
      %1509 = vmatpush1.msra.mxu0 0.0
      %1510 = vmatprep.subr.mxu0 0.0
      %1511 = vmatpush1.msra.mxu0 0.0
      %1512 = vmatprep.subr.mxu0 0.0
      %1513 = vmatpush1.msra.mxu0 0.0
      %1514 = vmatprep.subr.mxu0 0.0
      %1515 = vmatpush1.msra.mxu0 0.0
      %1516 = vmatprep.subr.mxu0 0.0
      %1517 = vmatpush1.msra.mxu0 0.0
      %1518 = vmatprep.subr.mxu0 0.0
      %1519 = vmatpush1.msra.mxu0 0.0
      %1520 = vmatprep.subr.mxu0 0.0
      %1521 = vmatpush1.msra.mxu0 0.0
      %1522 = vmatprep.subr.mxu0 0.0
      %1523 = vmatpush1.msra.mxu0 0.0
      %1524 = vmatprep.subr.mxu0 0.0
      %1525 = vmatpush1.msra.mxu0 0.0
      %1526 = vmatprep.subr.mxu0 0.0
      %1527 = vmatpush1.msra.mxu0 0.0
      %1528 = vmatprep.subr.mxu0 0.0
      %1529 = vmatpush1.msra.mxu0 0.0
      %1530 = vmatprep.subr.mxu0 0.0
      %1531 = vmatpush1.msra.mxu0 0.0
      %1532 = vmatprep.subr.mxu0 0.0
      %1533 = vmatpush1.msra.mxu0 0.0
      %1534 = vmatprep.subr.mxu0 0.0
      %1535 = vmatpush1.msra.mxu0 0.0
      %1536 = vmatprep.subr.mxu0 0.0
      %1537 = vmatpush1.msra.mxu0 0.0
      %1538 = vmatprep.subr.mxu0 0.0
      %1539 = vmatpush1.msra.mxu0 0.0
      %1540 = vmatprep.subr.mxu0 0.0
      %1541 = vmatpush1.msra.mxu0 0.0
      %1542 = vmatprep.subr.mxu0 0.0
      %1543 = vmatpush1.msra.mxu0 0.0
      %1544 = vmatprep.subr.mxu0 0.0
      %1545 = vmatpush1.msra.mxu0 0.0
      %1546 = vmatprep.subr.mxu0 0.0
      %1547 = vmatpush1.msra.mxu0 0.0
      %1548 = vmatprep.subr.mxu0 0.0
      %1549 = vmatpush1.msra.mxu0 0.0
      %1550 = vmatprep.subr.mxu0 0.0
      %1551 = vmatpush1.msra.mxu0 0.0
      %1552 = vmatprep.subr.mxu0 0.0
      %1553 = vmatpush1.msra.mxu0 0.0
      %1554 = vmatprep.subr.mxu0 0.0
      %1555 = vmatpush1.msra.mxu0 0.0
      %1556 = vmatprep.subr.mxu0 0.0
      %1557 = vmatpush1.msra.mxu0 0.0
      %1558 = vmatprep.subr.mxu0 0.0
      %1559 = vmatpush1.msra.mxu0 0.0
      %1560 = vmatprep.subr.mxu0 0.0
      %1561 = vmatpush1.msra.mxu0 0.0
      %1562 = vmatprep.subr.mxu0 0.0
      %1563 = vmatpush1.msra.mxu0 0.0
      %1564 = vmatprep.subr.mxu0 0.0
      %1565 = vmatpush1.msra.mxu0 0.0
      %1566 = vmatprep.subr.mxu0 0.0
      %1567 = vmatpush1.msra.mxu0 0.0
      %1568 = vmatprep.mubr.f32.mxu0 0.0
      %1569 = vmatmul.mubr.f32.gmra.mrb[0].mxu0 %v979
      %v1570 = vpop.f32.mrb[0].mxu0
      %v1571 = vadd.f32 %v1343, %v1570
      %v1572 = vpop.f32.mrb[0].mxu0
      %1573 = vmatprep.mubr.f32.mxu0 0.0
      %1574 = vmatmul.mubr.f32.gmra.mrb[0].mxu0 %v981
      %v1575 = vpop.f32.mrb[0].mxu0
      %v1576 = vadd.f32 %v1348, %v1575
      %v1577 = vpop.f32.mrb[0].mxu0
      %1578 = vmatprep.mubr.f32.mxu0 0.0
      %1579 = vmatmul.mubr.f32.gmra.mrb[0].mxu0 %v983
      %v1580 = vpop.f32.mrb[0].mxu0
      %v1581 = vadd.f32 %v1353, %v1580
      %v1582 = vpop.f32.mrb[0].mxu0
      %1583 = vmatprep.mubr.f32.mxu0 0.0
      %1584 = vmatmul.mubr.f32.gmra.mrb[0].mxu0 %v985
      %v1585 = vpop.f32.mrb[0].mxu0
      %v1586 = vadd.f32 %v1358, %v1585
      %v1587 = vpop.f32.mrb[0].mxu0
      %1588 = vmatprep.mubr.f32.mxu0 0.0
      %1589 = vmatmul.mubr.f32.gmra.mrb[0].mxu0 %v987
      %v1590 = vpop.f32.mrb[0].mxu0
      %v1591 = vadd.f32 %v1363, %v1590
      %v1592 = vpop.f32.mrb[0].mxu0
      %1593 = vmatprep.mubr.f32.mxu0 0.0
      %1594 = vmatmul.mubr.f32.gmra.mrb[0].mxu0 %v989
      %v1595 = vpop.f32.mrb[0].mxu0
      %v1596 = vadd.f32 %v1368, %v1595
      %v1597 = vpop.f32.mrb[0].mxu0
      %1598 = vmatprep.mubr.f32.mxu0 0.0
      %1599 = vmatmul.mubr.f32.gmra.mrb[0].mxu0 %v991
      %v1600 = vpop.f32.mrb[0].mxu0
      %v1601 = vadd.f32 %v1373, %v1600
      %v1602 = vpop.f32.mrb[0].mxu0
      %1603 = vmatprep.mubr.f32.mxu0 0.0
      %1604 = vmatmul.mubr.f32.gmra.mrb[0].mxu0 %v993
      %v1605 = vpop.f32.mrb[0].mxu0
      %v1606 = vadd.f32 %v1378, %v1605
      %v1607 = vpop.f32.mrb[0].mxu0
      %1608 = vmatprep.mubr.f32.mxu0 0.0
      %1609 = vmatmul.mubr.f32.gmra.mrb[0].mxu0 %v995
      %v1610 = vpop.f32.mrb[0].mxu0
      %v1611 = vadd.f32 %v1383, %v1610
      %v1612 = vpop.f32.mrb[0].mxu0
      %1613 = vmatprep.mubr.f32.mxu0 0.0
      %1614 = vmatmul.mubr.f32.gmra.mrb[0].mxu0 %v997
      %v1615 = vpop.f32.mrb[0].mxu0
      %v1616 = vadd.f32 %v1388, %v1615
      %v1617 = vpop.f32.mrb[0].mxu0
      %1618 = vmatprep.mubr.f32.mxu0 0.0
      %1619 = vmatmul.mubr.f32.gmra.mrb[0].mxu0 %v999
      %v1620 = vpop.f32.mrb[0].mxu0
      %v1621 = vadd.f32 %v1393, %v1620
      %v1622 = vpop.f32.mrb[0].mxu0
      %1623 = vmatprep.mubr.f32.mxu0 0.0
      %1624 = vmatmul.mubr.f32.gmra.mrb[0].mxu0 %v1001
      %v1625 = vpop.f32.mrb[0].mxu0
      %v1626 = vadd.f32 %v1398, %v1625
      %v1627 = vpop.f32.mrb[0].mxu0
      %1628 = vmatprep.mubr.f32.mxu0 0.0
      %1629 = vmatmul.mubr.f32.gmra.mrb[0].mxu0 %v1003
      %v1630 = vpop.f32.mrb[0].mxu0
      %v1631 = vadd.f32 %v1403, %v1630
      %v1632 = vpop.f32.mrb[0].mxu0
      %1633 = vmatprep.mubr.f32.mxu0 0.0
      %1634 = vmatmul.mubr.f32.gmra.mrb[0].mxu0 %v1005
      %v1635 = vpop.f32.mrb[0].mxu0
      %v1636 = vadd.f32 %v1408, %v1635
      %v1637 = vpop.f32.mrb[0].mxu0
      %1638 = vmatprep.mubr.f32.mxu0 0.0
      %1639 = vmatmul.mubr.f32.gmra.mrb[0].mxu0 %v1007
      %v1640 = vpop.f32.mrb[0].mxu0
      %v1641 = vadd.f32 %v1413, %v1640
      %v1642 = vpop.f32.mrb[0].mxu0
      %1643 = vmatprep.mubr.f32.mxu0 0.0
      %1644 = vmatmul.mubr.f32.gmra.mrb[0].mxu0 %v1009
      %v1645 = vpop.f32.mrb[0].mxu0
      %v1646 = vadd.f32 %v1418, %v1645
      %v1647 = vpop.f32.mrb[0].mxu0
      %1648 = vmatprep.mubr.f32.mxu0 0.0
      %1649 = vmatmul.mubr.f32.gmra.mrb[0].mxu0 %v1011
      %v1650 = vpop.f32.mrb[0].mxu0
      %v1651 = vadd.f32 %v1423, %v1650
      %v1652 = vpop.f32.mrb[0].mxu0
      %1653 = vmatprep.mubr.f32.mxu0 0.0
      %1654 = vmatmul.mubr.f32.gmra.mrb[0].mxu0 %v1013
      %v1655 = vpop.f32.mrb[0].mxu0
      %v1656 = vadd.f32 %v1428, %v1655
      %v1657 = vpop.f32.mrb[0].mxu0
      %1658 = vmatprep.mubr.f32.mxu0 0.0
      %1659 = vmatmul.mubr.f32.gmra.mrb[0].mxu0 %v1015
      %v1660 = vpop.f32.mrb[0].mxu0
      %v1661 = vadd.f32 %v1433, %v1660
      %v1662 = vpop.f32.mrb[0].mxu0
      %1663 = vmatprep.mubr.f32.mxu0 0.0
      %1664 = vmatmul.mubr.f32.gmra.mrb[0].mxu0 %v1017
      %v1665 = vpop.f32.mrb[0].mxu0
      %v1666 = vadd.f32 %v1438, %v1665
      %v1667 = vpop.f32.mrb[0].mxu0
      %1668 = vmatprep.mubr.f32.mxu0 0.0
      %1669 = vmatmul.mubr.f32.gmra.mrb[0].mxu0 %v1019
      %v1670 = vpop.f32.mrb[0].mxu0
      %v1671 = vadd.f32 %v1443, %v1670
      %v1672 = vpop.f32.mrb[0].mxu0
      %1673 = vmatprep.mubr.f32.mxu0 0.0
      %1674 = vmatmul.mubr.f32.gmra.mrb[0].mxu0 %v1021
      %v1675 = vpop.f32.mrb[0].mxu0
      %v1676 = vadd.f32 %v1448, %v1675
      %v1677 = vpop.f32.mrb[0].mxu0
      %1678 = vmatprep.mubr.f32.mxu0 0.0
      %1679 = vmatmul.mubr.f32.gmra.mrb[0].mxu0 %v1023
      %v1680 = vpop.f32.mrb[0].mxu0
      %v1681 = vadd.f32 %v1453, %v1680
      %v1682 = vpop.f32.mrb[0].mxu0
      %1683 = vmatprep.mubr.f32.mxu0 0.0
      %1684 = vmatmul.mubr.f32.gmra.mrb[0].mxu0 %v1025
      %v1685 = vpop.f32.mrb[0].mxu0
      %v1686 = vadd.f32 %v1458, %v1685
      %v1687 = vpop.f32.mrb[0].mxu0
      %1688 = vmatprep.mubr.f32.mxu0 0.0
      %1689 = vmatmul.mubr.f32.gmra.mrb[0].mxu0 %v1027
      %v1690 = vpop.f32.mrb[0].mxu0
      %v1691 = vadd.f32 %v1463, %v1690
      %v1692 = vpop.f32.mrb[0].mxu0
      %1693 = vmatprep.mubr.f32.mxu0 0.0
      %1694 = vmatmul.mubr.f32.gmra.mrb[0].mxu0 %v1029
      %v1695 = vpop.f32.mrb[0].mxu0
      %v1696 = vadd.f32 %v1468, %v1695
      %v1697 = vpop.f32.mrb[0].mxu0
      %1698 = vmatprep.mubr.f32.mxu0 0.0
      %1699 = vmatmul.mubr.f32.gmra.mrb[0].mxu0 %v1031
      %v1700 = vpop.f32.mrb[0].mxu0
      %v1701 = vadd.f32 %v1473, %v1700
      %v1702 = vpop.f32.mrb[0].mxu0
      %1703 = vmatprep.mubr.f32.mxu0 0.0
      %1704 = vmatmul.mubr.f32.gmra.mrb[0].mxu0 %v1033
      %v1705 = vpop.f32.mrb[0].mxu0
      %v1706 = vadd.f32 %v1478, %v1705
      %v1707 = vpop.f32.mrb[0].mxu0
      %1708 = vmatprep.mubr.f32.mxu0 0.0
      %1709 = vmatmul.mubr.f32.gmra.mrb[0].mxu0 %v1035
      %v1710 = vpop.f32.mrb[0].mxu0
      %v1711 = vadd.f32 %v1483, %v1710
      %v1712 = vpop.f32.mrb[0].mxu0
      %1713 = vmatprep.mubr.f32.mxu0 0.0
      %1714 = vmatmul.mubr.f32.gmra.mrb[0].mxu0 %v1037
      %v1715 = vpop.f32.mrb[0].mxu0
      %v1716 = vadd.f32 %v1488, %v1715
      %v1717 = vpop.f32.mrb[0].mxu0
      %1718 = vmatprep.mubr.f32.mxu0 0.0
      %1719 = vmatmul.mubr.f32.gmra.mrb[0].mxu0 %v1039
      %v1720 = vpop.f32.mrb[0].mxu0
      %v1721 = vadd.f32 %v1493, %v1720
      %v1722 = vpop.f32.mrb[0].mxu0
      %1723 = vmatprep.mubr.f32.mxu0 0.0
      %1724 = vmatmul.mubr.f32.gmra.mrb[0].mxu0 %v1041
      %v1725 = vpop.f32.mrb[0].mxu0
      %v1726 = vadd.f32 %v1498, %v1725
      %v1727 = vpop.f32.mrb[0].mxu0
      %1728 = vdwg.mxu0
      %vm1729 = vcmask 1045504
      %v1730 = vrot.slane %v441, 2
      %v1731 = vrot.slane %v442, 2
      %v1732 = vsel %vm1729, %v1730, %v1731
      %v1733 = vrot.slane %v443, 2
      %v1734 = vrot.slane %v444, 2
      %v1735 = vsel %vm1729, %v1733, %v1734
      %v1736 = vrot.slane %v445, 2
      %v1737 = vrot.slane %v446, 2
      %v1738 = vsel %vm1729, %v1736, %v1737
      %v1739 = vrot.slane %v447, 2
      %v1740 = vrot.slane %v448, 2
      %v1741 = vsel %vm1729, %v1739, %v1740
      %v1742 = vrot.slane %v449, 2
      %v1743 = vrot.slane %v450, 2
      %v1744 = vsel %vm1729, %v1742, %v1743
      %v1745 = vrot.slane %v451, 2
      %v1746 = vrot.slane %v452, 2
      %v1747 = vsel %vm1729, %v1745, %v1746
      %v1748 = vrot.slane %v453, 2
      %v1749 = vrot.slane %v454, 2
      %v1750 = vsel %vm1729, %v1748, %v1749
      %v1751 = vrot.slane %v455, 2
      %v1752 = vrot.slane %v456, 2
      %v1753 = vsel %vm1729, %v1751, %v1752
      %v1754 = vrot.slane %v461, 2
      %v1755 = vrot.slane %v462, 2
      %v1756 = vsel %vm1729, %v1754, %v1755
      %v1757 = vrot.slane %v463, 2
      %v1758 = vrot.slane %v464, 2
      %v1759 = vsel %vm1729, %v1757, %v1758
      %v1760 = vrot.slane %v465, 2
      %v1761 = vrot.slane %v466, 2
      %v1762 = vsel %vm1729, %v1760, %v1761
      %v1763 = vrot.slane %v467, 2
      %v1764 = vrot.slane %v468, 2
      %v1765 = vsel %vm1729, %v1763, %v1764
      %v1766 = vrot.slane %v469, 2
      %v1767 = vrot.slane %v470, 2
      %v1768 = vsel %vm1729, %v1766, %v1767
      %v1769 = vrot.slane %v471, 2
      %v1770 = vrot.slane %v472, 2
      %v1771 = vsel %vm1729, %v1769, %v1770
      %v1772 = vrot.slane %v473, 2
      %v1773 = vrot.slane %v474, 2
      %v1774 = vsel %vm1729, %v1772, %v1773
      %v1775 = vrot.slane %v475, 2
      %v1776 = vrot.slane %v476, 2
      %v1777 = vsel %vm1729, %v1775, %v1776
      %v1778 = vrot.slane %v481, 2
      %v1779 = vrot.slane %v482, 2
      %v1780 = vsel %vm1729, %v1778, %v1779
      %v1781 = vrot.slane %v483, 2
      %v1782 = vrot.slane %v484, 2
      %v1783 = vsel %vm1729, %v1781, %v1782
      %v1784 = vrot.slane %v485, 2
      %v1785 = vrot.slane %v486, 2
      %v1786 = vsel %vm1729, %v1784, %v1785
      %v1787 = vrot.slane %v487, 2
      %v1788 = vrot.slane %v488, 2
      %v1789 = vsel %vm1729, %v1787, %v1788
      %v1790 = vrot.slane %v489, 2
      %v1791 = vrot.slane %v490, 2
      %v1792 = vsel %vm1729, %v1790, %v1791
      %v1793 = vrot.slane %v491, 2
      %v1794 = vrot.slane %v492, 2
      %v1795 = vsel %vm1729, %v1793, %v1794
      %v1796 = vrot.slane %v493, 2
      %v1797 = vrot.slane %v494, 2
      %v1798 = vsel %vm1729, %v1796, %v1797
      %v1799 = vrot.slane %v495, 2
      %v1800 = vrot.slane %v496, 2
      %v1801 = vsel %vm1729, %v1799, %v1800
      %v1802 = vrot.slane %v501, 2
      %v1803 = vrot.slane %v502, 2
      %v1804 = vsel %vm1729, %v1802, %v1803
      %v1805 = vrot.slane %v503, 2
      %v1806 = vrot.slane %v504, 2
      %v1807 = vsel %vm1729, %v1805, %v1806
      %v1808 = vrot.slane %v505, 2
      %v1809 = vrot.slane %v506, 2
      %v1810 = vsel %vm1729, %v1808, %v1809
      %v1811 = vrot.slane %v507, 2
      %v1812 = vrot.slane %v508, 2
      %v1813 = vsel %vm1729, %v1811, %v1812
      %v1814 = vrot.slane %v509, 2
      %v1815 = vrot.slane %v510, 2
      %v1816 = vsel %vm1729, %v1814, %v1815
      %v1817 = vrot.slane %v511, 2
      %v1818 = vrot.slane %v512, 2
      %v1819 = vsel %vm1729, %v1817, %v1818
      %v1820 = vrot.slane %v513, 2
      %v1821 = vrot.slane %v514, 2
      %v1822 = vsel %vm1729, %v1820, %v1821
      %v1823 = vrot.slane %v515, 2
      %v1824 = vrot.slane %v516, 2
      %v1825 = vsel %vm1729, %v1823, %v1824
      %s1826 = scalar_lea.vmem %s1, 8
      %v1827 = vld [vmem:[%s1826] sm:$0xf]
      %v1828 = vsel %vm276, %v1732, 0
      %v1830 = vsel %vm276, %v1735, 0
      %v1832 = vsel %vm276, %v1738, 0
      %v1834 = vsel %vm276, %v1741, 0
      %v1836 = vsel %vm276, %v1744, 0
      %v1838 = vsel %vm276, %v1747, 0
      %v1840 = vsel %vm276, %v1750, 0
      %v1842 = vsel %vm276, %v1753, 0
      %v1844 = vsel %vm276, %v1756, 0
      %v1846 = vsel %vm276, %v1759, 0
      %v1848 = vsel %vm276, %v1762, 0
      %v1850 = vsel %vm276, %v1765, 0
      %v1852 = vsel %vm276, %v1768, 0
      %v1854 = vsel %vm276, %v1771, 0
      %v1856 = vsel %vm276, %v1774, 0
      %v1858 = vsel %vm276, %v1777, 0
      %v1860 = vsel %vm276, %v1780, 0
      %v1862 = vsel %vm276, %v1783, 0
      %v1864 = vsel %vm276, %v1786, 0
      %v1866 = vsel %vm276, %v1789, 0
      %v1868 = vsel %vm276, %v1792, 0
      %v1870 = vsel %vm276, %v1795, 0
      %v1872 = vsel %vm276, %v1798, 0
      %v1874 = vsel %vm276, %v1801, 0
      %v1876 = vsel %vm276, %v1804, 0
      %v1878 = vsel %vm276, %v1807, 0
      %v1880 = vsel %vm276, %v1810, 0
      %v1882 = vsel %vm276, %v1813, 0
      %v1884 = vsel %vm276, %v1816, 0
      %v1886 = vsel %vm276, %v1819, 0
      %v1888 = vsel %vm276, %v1822, 0
      %v1890 = vsel %vm276, %v1825, 0
      %v1893 = vsel %vm750, %v1827, 0
      %1895 = vmatprep.subr.mxu0 0.0
      %1896 = vmatpush1.msra.mxu0 %v1893
      %1897 = vmatprep.subr.mxu0 0.0
      %1898 = vmatpush1.msra.mxu0 0.0
      %1899 = vmatprep.subr.mxu0 0.0
      %1900 = vmatpush1.msra.mxu0 0.0
      %1901 = vmatprep.subr.mxu0 0.0
      %1902 = vmatpush1.msra.mxu0 0.0
      %1903 = vmatprep.subr.mxu0 0.0
      %1904 = vmatpush1.msra.mxu0 0.0
      %1905 = vmatprep.subr.mxu0 0.0
      %1906 = vmatpush1.msra.mxu0 0.0
      %1907 = vmatprep.subr.mxu0 0.0
      %1908 = vmatpush1.msra.mxu0 0.0
      %1909 = vmatprep.subr.mxu0 0.0
      %1910 = vmatpush1.msra.mxu0 0.0
      %1911 = vmatprep.subr.mxu0 0.0
      %1912 = vmatpush1.msra.mxu0 0.0
      %1913 = vmatprep.subr.mxu0 0.0
      %1914 = vmatpush1.msra.mxu0 0.0
      %1915 = vmatprep.subr.mxu0 0.0
      %1916 = vmatpush1.msra.mxu0 0.0
      %1917 = vmatprep.subr.mxu0 0.0
      %1918 = vmatpush1.msra.mxu0 0.0
      %1919 = vmatprep.subr.mxu0 0.0
      %1920 = vmatpush1.msra.mxu0 0.0
      %1921 = vmatprep.subr.mxu0 0.0
      %1922 = vmatpush1.msra.mxu0 0.0
      %1923 = vmatprep.subr.mxu0 0.0
      %1924 = vmatpush1.msra.mxu0 0.0
      %1925 = vmatprep.subr.mxu0 0.0
      %1926 = vmatpush1.msra.mxu0 0.0
      %1927 = vmatprep.subr.mxu0 0.0
      %1928 = vmatpush1.msra.mxu0 0.0
      %1929 = vmatprep.subr.mxu0 0.0
      %1930 = vmatpush1.msra.mxu0 0.0
      %1931 = vmatprep.subr.mxu0 0.0
      %1932 = vmatpush1.msra.mxu0 0.0
      %1933 = vmatprep.subr.mxu0 0.0
      %1934 = vmatpush1.msra.mxu0 0.0
      %1935 = vmatprep.subr.mxu0 0.0
      %1936 = vmatpush1.msra.mxu0 0.0
      %1937 = vmatprep.subr.mxu0 0.0
      %1938 = vmatpush1.msra.mxu0 0.0
      %1939 = vmatprep.subr.mxu0 0.0
      %1940 = vmatpush1.msra.mxu0 0.0
      %1941 = vmatprep.subr.mxu0 0.0
      %1942 = vmatpush1.msra.mxu0 0.0
      %1943 = vmatprep.subr.mxu0 0.0
      %1944 = vmatpush1.msra.mxu0 0.0
      %1945 = vmatprep.subr.mxu0 0.0
      %1946 = vmatpush1.msra.mxu0 0.0
      %1947 = vmatprep.subr.mxu0 0.0
      %1948 = vmatpush1.msra.mxu0 0.0
      %1949 = vmatprep.subr.mxu0 0.0
      %1950 = vmatpush1.msra.mxu0 0.0
      %1951 = vmatprep.subr.mxu0 0.0
      %1952 = vmatpush1.msra.mxu0 0.0
      %1953 = vmatprep.subr.mxu0 0.0
      %1954 = vmatpush1.msra.mxu0 0.0
      %1955 = vmatprep.subr.mxu0 0.0
      %1956 = vmatpush1.msra.mxu0 0.0
      %1957 = vmatprep.subr.mxu0 0.0
      %1958 = vmatpush1.msra.mxu0 0.0
      %1959 = vmatprep.mubr.f32.mxu0 0.0
      %1960 = vmatmul.mubr.f32.gmra.mrb[0].mxu0 %v1828
      %v1961 = vpop.f32.mrb[0].mxu0
      %v1962 = vadd.f32 0.0, %v1961
      %v1963 = vpop.f32.mrb[0].mxu0
      %1964 = vmatprep.mubr.f32.mxu0 0.0
      %1965 = vmatmul.mubr.f32.gmra.mrb[0].mxu0 %v1830
      %v1966 = vpop.f32.mrb[0].mxu0
      %v1967 = vadd.f32 0.0, %v1966
      %v1968 = vpop.f32.mrb[0].mxu0
      %1969 = vmatprep.mubr.f32.mxu0 0.0
      %1970 = vmatmul.mubr.f32.gmra.mrb[0].mxu0 %v1832
      %v1971 = vpop.f32.mrb[0].mxu0
      %v1972 = vadd.f32 0.0, %v1971
      %v1973 = vpop.f32.mrb[0].mxu0
      %1974 = vmatprep.mubr.f32.mxu0 0.0
      %1975 = vmatmul.mubr.f32.gmra.mrb[0].mxu0 %v1834
      %v1976 = vpop.f32.mrb[0].mxu0
      %v1977 = vadd.f32 0.0, %v1976
      %v1978 = vpop.f32.mrb[0].mxu0
      %1979 = vmatprep.mubr.f32.mxu0 0.0
      %1980 = vmatmul.mubr.f32.gmra.mrb[0].mxu0 %v1836
      %v1981 = vpop.f32.mrb[0].mxu0
      %v1982 = vadd.f32 0.0, %v1981
      %v1983 = vpop.f32.mrb[0].mxu0
      %1984 = vmatprep.mubr.f32.mxu0 0.0
      %1985 = vmatmul.mubr.f32.gmra.mrb[0].mxu0 %v1838
      %v1986 = vpop.f32.mrb[0].mxu0
      %v1987 = vadd.f32 0.0, %v1986
      %v1988 = vpop.f32.mrb[0].mxu0
      %1989 = vmatprep.mubr.f32.mxu0 0.0
      %1990 = vmatmul.mubr.f32.gmra.mrb[0].mxu0 %v1840
      %v1991 = vpop.f32.mrb[0].mxu0
      %v1992 = vadd.f32 0.0, %v1991
      %v1993 = vpop.f32.mrb[0].mxu0
      %1994 = vmatprep.mubr.f32.mxu0 0.0
      %1995 = vmatmul.mubr.f32.gmra.mrb[0].mxu0 %v1842
      %v1996 = vpop.f32.mrb[0].mxu0
      %v1997 = vadd.f32 0.0, %v1996
      %v1998 = vpop.f32.mrb[0].mxu0
      %1999 = vmatprep.mubr.f32.mxu0 0.0
      %2000 = vmatmul.mubr.f32.gmra.mrb[0].mxu0 %v1844
      %v2001 = vpop.f32.mrb[0].mxu0
      %v2002 = vadd.f32 0.0, %v2001
      %v2003 = vpop.f32.mrb[0].mxu0
      %2004 = vmatprep.mubr.f32.mxu0 0.0
      %2005 = vmatmul.mubr.f32.gmra.mrb[0].mxu0 %v1846
      %v2006 = vpop.f32.mrb[0].mxu0
      %v2007 = vadd.f32 0.0, %v2006
      %v2008 = vpop.f32.mrb[0].mxu0
      %2009 = vmatprep.mubr.f32.mxu0 0.0
      %2010 = vmatmul.mubr.f32.gmra.mrb[0].mxu0 %v1848
      %v2011 = vpop.f32.mrb[0].mxu0
      %v2012 = vadd.f32 0.0, %v2011
      %v2013 = vpop.f32.mrb[0].mxu0
      %2014 = vmatprep.mubr.f32.mxu0 0.0
      %2015 = vmatmul.mubr.f32.gmra.mrb[0].mxu0 %v1850
      %v2016 = vpop.f32.mrb[0].mxu0
      %v2017 = vadd.f32 0.0, %v2016
      %v2018 = vpop.f32.mrb[0].mxu0
      %2019 = vmatprep.mubr.f32.mxu0 0.0
      %2020 = vmatmul.mubr.f32.gmra.mrb[0].mxu0 %v1852
      %v2021 = vpop.f32.mrb[0].mxu0
      %v2022 = vadd.f32 0.0, %v2021
      %v2023 = vpop.f32.mrb[0].mxu0
      %2024 = vmatprep.mubr.f32.mxu0 0.0
      %2025 = vmatmul.mubr.f32.gmra.mrb[0].mxu0 %v1854
      %v2026 = vpop.f32.mrb[0].mxu0
      %v2027 = vadd.f32 0.0, %v2026
      %v2028 = vpop.f32.mrb[0].mxu0
      %2029 = vmatprep.mubr.f32.mxu0 0.0
      %2030 = vmatmul.mubr.f32.gmra.mrb[0].mxu0 %v1856
      %v2031 = vpop.f32.mrb[0].mxu0
      %v2032 = vadd.f32 0.0, %v2031
      %v2033 = vpop.f32.mrb[0].mxu0
      %2034 = vmatprep.mubr.f32.mxu0 0.0
      %2035 = vmatmul.mubr.f32.gmra.mrb[0].mxu0 %v1858
      %v2036 = vpop.f32.mrb[0].mxu0
      %v2037 = vadd.f32 0.0, %v2036
      %v2038 = vpop.f32.mrb[0].mxu0
      %2039 = vmatprep.mubr.f32.mxu0 0.0
      %2040 = vmatmul.mubr.f32.gmra.mrb[0].mxu0 %v1860
      %v2041 = vpop.f32.mrb[0].mxu0
      %v2042 = vadd.f32 0.0, %v2041
      %v2043 = vpop.f32.mrb[0].mxu0
      %2044 = vmatprep.mubr.f32.mxu0 0.0
      %2045 = vmatmul.mubr.f32.gmra.mrb[0].mxu0 %v1862
      %v2046 = vpop.f32.mrb[0].mxu0
      %v2047 = vadd.f32 0.0, %v2046
      %v2048 = vpop.f32.mrb[0].mxu0
      %2049 = vmatprep.mubr.f32.mxu0 0.0
      %2050 = vmatmul.mubr.f32.gmra.mrb[0].mxu0 %v1864
      %v2051 = vpop.f32.mrb[0].mxu0
      %v2052 = vadd.f32 0.0, %v2051
      %v2053 = vpop.f32.mrb[0].mxu0
      %2054 = vmatprep.mubr.f32.mxu0 0.0
      %2055 = vmatmul.mubr.f32.gmra.mrb[0].mxu0 %v1866
      %v2056 = vpop.f32.mrb[0].mxu0
      %v2057 = vadd.f32 0.0, %v2056
      %v2058 = vpop.f32.mrb[0].mxu0
      %2059 = vmatprep.mubr.f32.mxu0 0.0
      %2060 = vmatmul.mubr.f32.gmra.mrb[0].mxu0 %v1868
      %v2061 = vpop.f32.mrb[0].mxu0
      %v2062 = vadd.f32 0.0, %v2061
      %v2063 = vpop.f32.mrb[0].mxu0
      %2064 = vmatprep.mubr.f32.mxu0 0.0
      %2065 = vmatmul.mubr.f32.gmra.mrb[0].mxu0 %v1870
      %v2066 = vpop.f32.mrb[0].mxu0
      %v2067 = vadd.f32 0.0, %v2066
      %v2068 = vpop.f32.mrb[0].mxu0
      %2069 = vmatprep.mubr.f32.mxu0 0.0
      %2070 = vmatmul.mubr.f32.gmra.mrb[0].mxu0 %v1872
      %v2071 = vpop.f32.mrb[0].mxu0
      %v2072 = vadd.f32 0.0, %v2071
      %v2073 = vpop.f32.mrb[0].mxu0
      %2074 = vmatprep.mubr.f32.mxu0 0.0
      %2075 = vmatmul.mubr.f32.gmra.mrb[0].mxu0 %v1874
      %v2076 = vpop.f32.mrb[0].mxu0
      %v2077 = vadd.f32 0.0, %v2076
      %v2078 = vpop.f32.mrb[0].mxu0
      %2079 = vmatprep.mubr.f32.mxu0 0.0
      %2080 = vmatmul.mubr.f32.gmra.mrb[0].mxu0 %v1876
      %v2081 = vpop.f32.mrb[0].mxu0
      %v2082 = vadd.f32 0.0, %v2081
      %v2083 = vpop.f32.mrb[0].mxu0
      %2084 = vmatprep.mubr.f32.mxu0 0.0
      %2085 = vmatmul.mubr.f32.gmra.mrb[0].mxu0 %v1878
      %v2086 = vpop.f32.mrb[0].mxu0
      %v2087 = vadd.f32 0.0, %v2086
      %v2088 = vpop.f32.mrb[0].mxu0
      %2089 = vmatprep.mubr.f32.mxu0 0.0
      %2090 = vmatmul.mubr.f32.gmra.mrb[0].mxu0 %v1880
      %v2091 = vpop.f32.mrb[0].mxu0
      %v2092 = vadd.f32 0.0, %v2091
      %v2093 = vpop.f32.mrb[0].mxu0
      %2094 = vmatprep.mubr.f32.mxu0 0.0
      %2095 = vmatmul.mubr.f32.gmra.mrb[0].mxu0 %v1882
      %v2096 = vpop.f32.mrb[0].mxu0
      %v2097 = vadd.f32 0.0, %v2096
      %v2098 = vpop.f32.mrb[0].mxu0
      %2099 = vmatprep.mubr.f32.mxu0 0.0
      %2100 = vmatmul.mubr.f32.gmra.mrb[0].mxu0 %v1884
      %v2101 = vpop.f32.mrb[0].mxu0
      %v2102 = vadd.f32 0.0, %v2101
      %v2103 = vpop.f32.mrb[0].mxu0
      %2104 = vmatprep.mubr.f32.mxu0 0.0
      %2105 = vmatmul.mubr.f32.gmra.mrb[0].mxu0 %v1886
      %v2106 = vpop.f32.mrb[0].mxu0
      %v2107 = vadd.f32 0.0, %v2106
      %v2108 = vpop.f32.mrb[0].mxu0
      %2109 = vmatprep.mubr.f32.mxu0 0.0
      %2110 = vmatmul.mubr.f32.gmra.mrb[0].mxu0 %v1888
      %v2111 = vpop.f32.mrb[0].mxu0
      %v2112 = vadd.f32 0.0, %v2111
      %v2113 = vpop.f32.mrb[0].mxu0
      %2114 = vmatprep.mubr.f32.mxu0 0.0
      %2115 = vmatmul.mubr.f32.gmra.mrb[0].mxu0 %v1890
      %v2116 = vpop.f32.mrb[0].mxu0
      %v2117 = vadd.f32 0.0, %v2116
      %v2118 = vpop.f32.mrb[0].mxu0
      %2119 = vdwg.mxu0
      %v2120 = vadd.f32 %v1113, %v1962
      %v2121 = vadd.f32 %v1118, %v1967
      %v2122 = vadd.f32 %v1123, %v1972
      %v2123 = vadd.f32 %v1128, %v1977
      %v2124 = vadd.f32 %v1133, %v1982
      %v2125 = vadd.f32 %v1138, %v1987
      %v2126 = vadd.f32 %v1143, %v1992
      %v2127 = vadd.f32 %v1148, %v1997
      %v2128 = vadd.f32 %v1153, %v2002
      %v2129 = vadd.f32 %v1158, %v2007
      %v2130 = vadd.f32 %v1163, %v2012
      %v2131 = vadd.f32 %v1168, %v2017
      %v2132 = vadd.f32 %v1173, %v2022
      %v2133 = vadd.f32 %v1178, %v2027
      %v2134 = vadd.f32 %v1183, %v2032
      %v2135 = vadd.f32 %v1188, %v2037
      %v2136 = vadd.f32 %v1193, %v2042
      %v2137 = vadd.f32 %v1198, %v2047
      %v2138 = vadd.f32 %v1203, %v2052
      %v2139 = vadd.f32 %v1208, %v2057
      %v2140 = vadd.f32 %v1213, %v2062
      %v2141 = vadd.f32 %v1218, %v2067
      %v2142 = vadd.f32 %v1223, %v2072
      %v2143 = vadd.f32 %v1228, %v2077
      %v2144 = vadd.f32 %v1233, %v2082
      %v2145 = vadd.f32 %v1238, %v2087
      %v2146 = vadd.f32 %v1243, %v2092
      %v2147 = vadd.f32 %v1248, %v2097
      %v2148 = vadd.f32 %v1253, %v2102
      %v2149 = vadd.f32 %v1258, %v2107
      %v2150 = vadd.f32 %v1263, %v2112
      %v2151 = vadd.f32 %v1268, %v2117
      %s2152 = scalar_lea.vmem %s2, 8
      %v2153 = vld [vmem:[%s2152] sm:$0xf]
      %v2155 = vsel %vm750, %v2153, 0
      %2157 = vmatprep.subr.mxu0 0.0
      %2158 = vmatpush1.msra.mxu0 %v2155
      %2159 = vmatprep.subr.mxu0 0.0
      %2160 = vmatpush1.msra.mxu0 0.0
      %2161 = vmatprep.subr.mxu0 0.0
      %2162 = vmatpush1.msra.mxu0 0.0
      %2163 = vmatprep.subr.mxu0 0.0
      %2164 = vmatpush1.msra.mxu0 0.0
      %2165 = vmatprep.subr.mxu0 0.0
      %2166 = vmatpush1.msra.mxu0 0.0
      %2167 = vmatprep.subr.mxu0 0.0
      %2168 = vmatpush1.msra.mxu0 0.0
      %2169 = vmatprep.subr.mxu0 0.0
      %2170 = vmatpush1.msra.mxu0 0.0
      %2171 = vmatprep.subr.mxu0 0.0
      %2172 = vmatpush1.msra.mxu0 0.0
      %2173 = vmatprep.subr.mxu0 0.0
      %2174 = vmatpush1.msra.mxu0 0.0
      %2175 = vmatprep.subr.mxu0 0.0
      %2176 = vmatpush1.msra.mxu0 0.0
      %2177 = vmatprep.subr.mxu0 0.0
      %2178 = vmatpush1.msra.mxu0 0.0
      %2179 = vmatprep.subr.mxu0 0.0
      %2180 = vmatpush1.msra.mxu0 0.0
      %2181 = vmatprep.subr.mxu0 0.0
      %2182 = vmatpush1.msra.mxu0 0.0
      %2183 = vmatprep.subr.mxu0 0.0
      %2184 = vmatpush1.msra.mxu0 0.0
      %2185 = vmatprep.subr.mxu0 0.0
      %2186 = vmatpush1.msra.mxu0 0.0
      %2187 = vmatprep.subr.mxu0 0.0
      %2188 = vmatpush1.msra.mxu0 0.0
      %2189 = vmatprep.subr.mxu0 0.0
      %2190 = vmatpush1.msra.mxu0 0.0
      %2191 = vmatprep.subr.mxu0 0.0
      %2192 = vmatpush1.msra.mxu0 0.0
      %2193 = vmatprep.subr.mxu0 0.0
      %2194 = vmatpush1.msra.mxu0 0.0
      %2195 = vmatprep.subr.mxu0 0.0
      %2196 = vmatpush1.msra.mxu0 0.0
      %2197 = vmatprep.subr.mxu0 0.0
      %2198 = vmatpush1.msra.mxu0 0.0
      %2199 = vmatprep.subr.mxu0 0.0
      %2200 = vmatpush1.msra.mxu0 0.0
      %2201 = vmatprep.subr.mxu0 0.0
      %2202 = vmatpush1.msra.mxu0 0.0
      %2203 = vmatprep.subr.mxu0 0.0
      %2204 = vmatpush1.msra.mxu0 0.0
      %2205 = vmatprep.subr.mxu0 0.0
      %2206 = vmatpush1.msra.mxu0 0.0
      %2207 = vmatprep.subr.mxu0 0.0
      %2208 = vmatpush1.msra.mxu0 0.0
      %2209 = vmatprep.subr.mxu0 0.0
      %2210 = vmatpush1.msra.mxu0 0.0
      %2211 = vmatprep.subr.mxu0 0.0
      %2212 = vmatpush1.msra.mxu0 0.0
      %2213 = vmatprep.subr.mxu0 0.0
      %2214 = vmatpush1.msra.mxu0 0.0
      %2215 = vmatprep.subr.mxu0 0.0
      %2216 = vmatpush1.msra.mxu0 0.0
      %2217 = vmatprep.subr.mxu0 0.0
      %2218 = vmatpush1.msra.mxu0 0.0
      %2219 = vmatprep.subr.mxu0 0.0
      %2220 = vmatpush1.msra.mxu0 0.0
      %2221 = vmatprep.mubr.f32.mxu0 0.0
      %2222 = vmatmul.mubr.f32.gmra.mrb[0].mxu0 %v1828
      %v2223 = vpop.f32.mrb[0].mxu0
      %v2224 = vadd.f32 0.0, %v2223
      %v2225 = vpop.f32.mrb[0].mxu0
      %2226 = vmatprep.mubr.f32.mxu0 0.0
      %2227 = vmatmul.mubr.f32.gmra.mrb[0].mxu0 %v1830
      %v2228 = vpop.f32.mrb[0].mxu0
      %v2229 = vadd.f32 0.0, %v2228
      %v2230 = vpop.f32.mrb[0].mxu0
      %2231 = vmatprep.mubr.f32.mxu0 0.0
      %2232 = vmatmul.mubr.f32.gmra.mrb[0].mxu0 %v1832
      %v2233 = vpop.f32.mrb[0].mxu0
      %v2234 = vadd.f32 0.0, %v2233
      %v2235 = vpop.f32.mrb[0].mxu0
      %2236 = vmatprep.mubr.f32.mxu0 0.0
      %2237 = vmatmul.mubr.f32.gmra.mrb[0].mxu0 %v1834
      %v2238 = vpop.f32.mrb[0].mxu0
      %v2239 = vadd.f32 0.0, %v2238
      %v2240 = vpop.f32.mrb[0].mxu0
      %2241 = vmatprep.mubr.f32.mxu0 0.0
      %2242 = vmatmul.mubr.f32.gmra.mrb[0].mxu0 %v1836
      %v2243 = vpop.f32.mrb[0].mxu0
      %v2244 = vadd.f32 0.0, %v2243
      %v2245 = vpop.f32.mrb[0].mxu0
      %2246 = vmatprep.mubr.f32.mxu0 0.0
      %2247 = vmatmul.mubr.f32.gmra.mrb[0].mxu0 %v1838
      %v2248 = vpop.f32.mrb[0].mxu0
      %v2249 = vadd.f32 0.0, %v2248
      %v2250 = vpop.f32.mrb[0].mxu0
      %2251 = vmatprep.mubr.f32.mxu0 0.0
      %2252 = vmatmul.mubr.f32.gmra.mrb[0].mxu0 %v1840
      %v2253 = vpop.f32.mrb[0].mxu0
      %v2254 = vadd.f32 0.0, %v2253
      %v2255 = vpop.f32.mrb[0].mxu0
      %2256 = vmatprep.mubr.f32.mxu0 0.0
      %2257 = vmatmul.mubr.f32.gmra.mrb[0].mxu0 %v1842
      %v2258 = vpop.f32.mrb[0].mxu0
      %v2259 = vadd.f32 0.0, %v2258
      %v2260 = vpop.f32.mrb[0].mxu0
      %2261 = vmatprep.mubr.f32.mxu0 0.0
      %2262 = vmatmul.mubr.f32.gmra.mrb[0].mxu0 %v1844
      %v2263 = vpop.f32.mrb[0].mxu0
      %v2264 = vadd.f32 0.0, %v2263
      %v2265 = vpop.f32.mrb[0].mxu0
      %2266 = vmatprep.mubr.f32.mxu0 0.0
      %2267 = vmatmul.mubr.f32.gmra.mrb[0].mxu0 %v1846
      %v2268 = vpop.f32.mrb[0].mxu0
      %v2269 = vadd.f32 0.0, %v2268
      %v2270 = vpop.f32.mrb[0].mxu0
      %2271 = vmatprep.mubr.f32.mxu0 0.0
      %2272 = vmatmul.mubr.f32.gmra.mrb[0].mxu0 %v1848
      %v2273 = vpop.f32.mrb[0].mxu0
      %v2274 = vadd.f32 0.0, %v2273
      %v2275 = vpop.f32.mrb[0].mxu0
      %2276 = vmatprep.mubr.f32.mxu0 0.0
      %2277 = vmatmul.mubr.f32.gmra.mrb[0].mxu0 %v1850
      %v2278 = vpop.f32.mrb[0].mxu0
      %v2279 = vadd.f32 0.0, %v2278
      %v2280 = vpop.f32.mrb[0].mxu0
      %2281 = vmatprep.mubr.f32.mxu0 0.0
      %2282 = vmatmul.mubr.f32.gmra.mrb[0].mxu0 %v1852
      %v2283 = vpop.f32.mrb[0].mxu0
      %v2284 = vadd.f32 0.0, %v2283
      %v2285 = vpop.f32.mrb[0].mxu0
      %2286 = vmatprep.mubr.f32.mxu0 0.0
      %2287 = vmatmul.mubr.f32.gmra.mrb[0].mxu0 %v1854
      %v2288 = vpop.f32.mrb[0].mxu0
      %v2289 = vadd.f32 0.0, %v2288
      %v2290 = vpop.f32.mrb[0].mxu0
      %2291 = vmatprep.mubr.f32.mxu0 0.0
      %2292 = vmatmul.mubr.f32.gmra.mrb[0].mxu0 %v1856
      %v2293 = vpop.f32.mrb[0].mxu0
      %v2294 = vadd.f32 0.0, %v2293
      %v2295 = vpop.f32.mrb[0].mxu0
      %2296 = vmatprep.mubr.f32.mxu0 0.0
      %2297 = vmatmul.mubr.f32.gmra.mrb[0].mxu0 %v1858
      %v2298 = vpop.f32.mrb[0].mxu0
      %v2299 = vadd.f32 0.0, %v2298
      %v2300 = vpop.f32.mrb[0].mxu0
      %2301 = vmatprep.mubr.f32.mxu0 0.0
      %2302 = vmatmul.mubr.f32.gmra.mrb[0].mxu0 %v1860
      %v2303 = vpop.f32.mrb[0].mxu0
      %v2304 = vadd.f32 0.0, %v2303
      %v2305 = vpop.f32.mrb[0].mxu0
      %2306 = vmatprep.mubr.f32.mxu0 0.0
      %2307 = vmatmul.mubr.f32.gmra.mrb[0].mxu0 %v1862
      %v2308 = vpop.f32.mrb[0].mxu0
      %v2309 = vadd.f32 0.0, %v2308
      %v2310 = vpop.f32.mrb[0].mxu0
      %2311 = vmatprep.mubr.f32.mxu0 0.0
      %2312 = vmatmul.mubr.f32.gmra.mrb[0].mxu0 %v1864
      %v2313 = vpop.f32.mrb[0].mxu0
      %v2314 = vadd.f32 0.0, %v2313
      %v2315 = vpop.f32.mrb[0].mxu0
      %2316 = vmatprep.mubr.f32.mxu0 0.0
      %2317 = vmatmul.mubr.f32.gmra.mrb[0].mxu0 %v1866
      %v2318 = vpop.f32.mrb[0].mxu0
      %v2319 = vadd.f32 0.0, %v2318
      %v2320 = vpop.f32.mrb[0].mxu0
      %2321 = vmatprep.mubr.f32.mxu0 0.0
      %2322 = vmatmul.mubr.f32.gmra.mrb[0].mxu0 %v1868
      %v2323 = vpop.f32.mrb[0].mxu0
      %v2324 = vadd.f32 0.0, %v2323
      %v2325 = vpop.f32.mrb[0].mxu0
      %2326 = vmatprep.mubr.f32.mxu0 0.0
      %2327 = vmatmul.mubr.f32.gmra.mrb[0].mxu0 %v1870
      %v2328 = vpop.f32.mrb[0].mxu0
      %v2329 = vadd.f32 0.0, %v2328
      %v2330 = vpop.f32.mrb[0].mxu0
      %2331 = vmatprep.mubr.f32.mxu0 0.0
      %2332 = vmatmul.mubr.f32.gmra.mrb[0].mxu0 %v1872
      %v2333 = vpop.f32.mrb[0].mxu0
      %v2334 = vadd.f32 0.0, %v2333
      %v2335 = vpop.f32.mrb[0].mxu0
      %2336 = vmatprep.mubr.f32.mxu0 0.0
      %2337 = vmatmul.mubr.f32.gmra.mrb[0].mxu0 %v1874
      %v2338 = vpop.f32.mrb[0].mxu0
      %v2339 = vadd.f32 0.0, %v2338
      %v2340 = vpop.f32.mrb[0].mxu0
      %2341 = vmatprep.mubr.f32.mxu0 0.0
      %2342 = vmatmul.mubr.f32.gmra.mrb[0].mxu0 %v1876
      %v2343 = vpop.f32.mrb[0].mxu0
      %v2344 = vadd.f32 0.0, %v2343
      %v2345 = vpop.f32.mrb[0].mxu0
      %2346 = vmatprep.mubr.f32.mxu0 0.0
      %2347 = vmatmul.mubr.f32.gmra.mrb[0].mxu0 %v1878
      %v2348 = vpop.f32.mrb[0].mxu0
      %v2349 = vadd.f32 0.0, %v2348
      %v2350 = vpop.f32.mrb[0].mxu0
      %2351 = vmatprep.mubr.f32.mxu0 0.0
      %2352 = vmatmul.mubr.f32.gmra.mrb[0].mxu0 %v1880
      %v2353 = vpop.f32.mrb[0].mxu0
      %v2354 = vadd.f32 0.0, %v2353
      %v2355 = vpop.f32.mrb[0].mxu0
      %2356 = vmatprep.mubr.f32.mxu0 0.0
      %2357 = vmatmul.mubr.f32.gmra.mrb[0].mxu0 %v1882
      %v2358 = vpop.f32.mrb[0].mxu0
      %v2359 = vadd.f32 0.0, %v2358
      %v2360 = vpop.f32.mrb[0].mxu0
      %2361 = vmatprep.mubr.f32.mxu0 0.0
      %2362 = vmatmul.mubr.f32.gmra.mrb[0].mxu0 %v1884
      %v2363 = vpop.f32.mrb[0].mxu0
      %v2364 = vadd.f32 0.0, %v2363
      %v2365 = vpop.f32.mrb[0].mxu0
      %2366 = vmatprep.mubr.f32.mxu0 0.0
      %2367 = vmatmul.mubr.f32.gmra.mrb[0].mxu0 %v1886
      %v2368 = vpop.f32.mrb[0].mxu0
      %v2369 = vadd.f32 0.0, %v2368
      %v2370 = vpop.f32.mrb[0].mxu0
      %2371 = vmatprep.mubr.f32.mxu0 0.0
      %2372 = vmatmul.mubr.f32.gmra.mrb[0].mxu0 %v1888
      %v2373 = vpop.f32.mrb[0].mxu0
      %v2374 = vadd.f32 0.0, %v2373
      %v2375 = vpop.f32.mrb[0].mxu0
      %2376 = vmatprep.mubr.f32.mxu0 0.0
      %2377 = vmatmul.mubr.f32.gmra.mrb[0].mxu0 %v1890
      %v2378 = vpop.f32.mrb[0].mxu0
      %v2379 = vadd.f32 0.0, %v2378
      %v2380 = vpop.f32.mrb[0].mxu0
      %2381 = vdwg.mxu0
      %v2382 = vadd.f32 %v1571, %v2224
      %v2383 = vadd.f32 %v1576, %v2229
      %v2384 = vadd.f32 %v1581, %v2234
      %v2385 = vadd.f32 %v1586, %v2239
      %v2386 = vadd.f32 %v1591, %v2244
      %v2387 = vadd.f32 %v1596, %v2249
      %v2388 = vadd.f32 %v1601, %v2254
      %v2389 = vadd.f32 %v1606, %v2259
      %v2390 = vadd.f32 %v1611, %v2264
      %v2391 = vadd.f32 %v1616, %v2269
      %v2392 = vadd.f32 %v1621, %v2274
      %v2393 = vadd.f32 %v1626, %v2279
      %v2394 = vadd.f32 %v1631, %v2284
      %v2395 = vadd.f32 %v1636, %v2289
      %v2396 = vadd.f32 %v1641, %v2294
      %v2397 = vadd.f32 %v1646, %v2299
      %v2398 = vadd.f32 %v1651, %v2304
      %v2399 = vadd.f32 %v1656, %v2309
      %v2400 = vadd.f32 %v1661, %v2314
      %v2401 = vadd.f32 %v1666, %v2319
      %v2402 = vadd.f32 %v1671, %v2324
      %v2403 = vadd.f32 %v1676, %v2329
      %v2404 = vadd.f32 %v1681, %v2334
      %v2405 = vadd.f32 %v1686, %v2339
      %v2406 = vadd.f32 %v1691, %v2344
      %v2407 = vadd.f32 %v1696, %v2349
      %v2408 = vadd.f32 %v1701, %v2354
      %v2409 = vadd.f32 %v1706, %v2359
      %v2410 = vadd.f32 %v1711, %v2364
      %v2411 = vadd.f32 %v1716, %v2369
      %v2412 = vadd.f32 %v1721, %v2374
      %v2413 = vadd.f32 %v1726, %v2379
      %s2414 = scalar_lea.vmem %s1, 12
      %v2415 = vld [vmem:[%s2414] sm:$0xf]
      %v2417 = vsel %vm276, %v457, 0
      %v2420 = vsel %vm276, %v477, 0
      %v2423 = vsel %vm276, %v497, 0
      %v2426 = vsel %vm276, %v517, 0
      %v2429 = vsel %vm750, %v2415, 0
      %2431 = vmatprep.subr.mxu0 0.0
      %2432 = vmatpush1.msra.mxu0 %v2429
      %2433 = vmatprep.subr.mxu0 0.0
      %2434 = vmatpush1.msra.mxu0 0.0
      %2435 = vmatprep.subr.mxu0 0.0
      %2436 = vmatpush1.msra.mxu0 0.0
      %2437 = vmatprep.subr.mxu0 0.0
      %2438 = vmatpush1.msra.mxu0 0.0
      %2439 = vmatprep.subr.mxu0 0.0
      %2440 = vmatpush1.msra.mxu0 0.0
      %2441 = vmatprep.subr.mxu0 0.0
      %2442 = vmatpush1.msra.mxu0 0.0
      %2443 = vmatprep.subr.mxu0 0.0
      %2444 = vmatpush1.msra.mxu0 0.0
      %2445 = vmatprep.subr.mxu0 0.0
      %2446 = vmatpush1.msra.mxu0 0.0
      %2447 = vmatprep.subr.mxu0 0.0
      %2448 = vmatpush1.msra.mxu0 0.0
      %2449 = vmatprep.subr.mxu0 0.0
      %2450 = vmatpush1.msra.mxu0 0.0
      %2451 = vmatprep.subr.mxu0 0.0
      %2452 = vmatpush1.msra.mxu0 0.0
      %2453 = vmatprep.subr.mxu0 0.0
      %2454 = vmatpush1.msra.mxu0 0.0
      %2455 = vmatprep.subr.mxu0 0.0
      %2456 = vmatpush1.msra.mxu0 0.0
      %2457 = vmatprep.subr.mxu0 0.0
      %2458 = vmatpush1.msra.mxu0 0.0
      %2459 = vmatprep.subr.mxu0 0.0
      %2460 = vmatpush1.msra.mxu0 0.0
      %2461 = vmatprep.subr.mxu0 0.0
      %2462 = vmatpush1.msra.mxu0 0.0
      %2463 = vmatprep.subr.mxu0 0.0
      %2464 = vmatpush1.msra.mxu0 0.0
      %2465 = vmatprep.subr.mxu0 0.0
      %2466 = vmatpush1.msra.mxu0 0.0
      %2467 = vmatprep.subr.mxu0 0.0
      %2468 = vmatpush1.msra.mxu0 0.0
      %2469 = vmatprep.subr.mxu0 0.0
      %2470 = vmatpush1.msra.mxu0 0.0
      %2471 = vmatprep.subr.mxu0 0.0
      %2472 = vmatpush1.msra.mxu0 0.0
      %2473 = vmatprep.subr.mxu0 0.0
      %2474 = vmatpush1.msra.mxu0 0.0
      %2475 = vmatprep.subr.mxu0 0.0
      %2476 = vmatpush1.msra.mxu0 0.0
      %2477 = vmatprep.subr.mxu0 0.0
      %2478 = vmatpush1.msra.mxu0 0.0
      %2479 = vmatprep.subr.mxu0 0.0
      %2480 = vmatpush1.msra.mxu0 0.0
      %2481 = vmatprep.subr.mxu0 0.0
      %2482 = vmatpush1.msra.mxu0 0.0
      %2483 = vmatprep.subr.mxu0 0.0
      %2484 = vmatpush1.msra.mxu0 0.0
      %2485 = vmatprep.subr.mxu0 0.0
      %2486 = vmatpush1.msra.mxu0 0.0
      %2487 = vmatprep.subr.mxu0 0.0
      %2488 = vmatpush1.msra.mxu0 0.0
      %2489 = vmatprep.subr.mxu0 0.0
      %2490 = vmatpush1.msra.mxu0 0.0
      %2491 = vmatprep.subr.mxu0 0.0
      %2492 = vmatpush1.msra.mxu0 0.0
      %2493 = vmatprep.subr.mxu0 0.0
      %2494 = vmatpush1.msra.mxu0 0.0
      %2495 = vmatprep.mubr.f32.mxu0 0.0
      %2496 = vmatmul.mubr.f32.gmra.mrb[0].mxu0 %v981
      %v2497 = vpop.f32.mrb[0].mxu0
      %v2498 = vadd.f32 0.0, %v2497
      %v2499 = vpop.f32.mrb[0].mxu0
      %2500 = vmatprep.mubr.f32.mxu0 0.0
      %2501 = vmatmul.mubr.f32.gmra.mrb[0].mxu0 %v983
      %v2502 = vpop.f32.mrb[0].mxu0
      %v2503 = vadd.f32 0.0, %v2502
      %v2504 = vpop.f32.mrb[0].mxu0
      %2505 = vmatprep.mubr.f32.mxu0 0.0
      %2506 = vmatmul.mubr.f32.gmra.mrb[0].mxu0 %v985
      %v2507 = vpop.f32.mrb[0].mxu0
      %v2508 = vadd.f32 0.0, %v2507
      %v2509 = vpop.f32.mrb[0].mxu0
      %2510 = vmatprep.mubr.f32.mxu0 0.0
      %2511 = vmatmul.mubr.f32.gmra.mrb[0].mxu0 %v987
      %v2512 = vpop.f32.mrb[0].mxu0
      %v2513 = vadd.f32 0.0, %v2512
      %v2514 = vpop.f32.mrb[0].mxu0
      %2515 = vmatprep.mubr.f32.mxu0 0.0
      %2516 = vmatmul.mubr.f32.gmra.mrb[0].mxu0 %v989
      %v2517 = vpop.f32.mrb[0].mxu0
      %v2518 = vadd.f32 0.0, %v2517
      %v2519 = vpop.f32.mrb[0].mxu0
      %2520 = vmatprep.mubr.f32.mxu0 0.0
      %2521 = vmatmul.mubr.f32.gmra.mrb[0].mxu0 %v991
      %v2522 = vpop.f32.mrb[0].mxu0
      %v2523 = vadd.f32 0.0, %v2522
      %v2524 = vpop.f32.mrb[0].mxu0
      %2525 = vmatprep.mubr.f32.mxu0 0.0
      %2526 = vmatmul.mubr.f32.gmra.mrb[0].mxu0 %v993
      %v2527 = vpop.f32.mrb[0].mxu0
      %v2528 = vadd.f32 0.0, %v2527
      %v2529 = vpop.f32.mrb[0].mxu0
      %2530 = vmatprep.mubr.f32.mxu0 0.0
      %2531 = vmatmul.mubr.f32.gmra.mrb[0].mxu0 %v2417
      %v2532 = vpop.f32.mrb[0].mxu0
      %v2533 = vadd.f32 0.0, %v2532
      %v2534 = vpop.f32.mrb[0].mxu0
      %2535 = vmatprep.mubr.f32.mxu0 0.0
      %2536 = vmatmul.mubr.f32.gmra.mrb[0].mxu0 %v997
      %v2537 = vpop.f32.mrb[0].mxu0
      %v2538 = vadd.f32 0.0, %v2537
      %v2539 = vpop.f32.mrb[0].mxu0
      %2540 = vmatprep.mubr.f32.mxu0 0.0
      %2541 = vmatmul.mubr.f32.gmra.mrb[0].mxu0 %v999
      %v2542 = vpop.f32.mrb[0].mxu0
      %v2543 = vadd.f32 0.0, %v2542
      %v2544 = vpop.f32.mrb[0].mxu0
      %2545 = vmatprep.mubr.f32.mxu0 0.0
      %2546 = vmatmul.mubr.f32.gmra.mrb[0].mxu0 %v1001
      %v2547 = vpop.f32.mrb[0].mxu0
      %v2548 = vadd.f32 0.0, %v2547
      %v2549 = vpop.f32.mrb[0].mxu0
      %2550 = vmatprep.mubr.f32.mxu0 0.0
      %2551 = vmatmul.mubr.f32.gmra.mrb[0].mxu0 %v1003
      %v2552 = vpop.f32.mrb[0].mxu0
      %v2553 = vadd.f32 0.0, %v2552
      %v2554 = vpop.f32.mrb[0].mxu0
      %2555 = vmatprep.mubr.f32.mxu0 0.0
      %2556 = vmatmul.mubr.f32.gmra.mrb[0].mxu0 %v1005
      %v2557 = vpop.f32.mrb[0].mxu0
      %v2558 = vadd.f32 0.0, %v2557
      %v2559 = vpop.f32.mrb[0].mxu0
      %2560 = vmatprep.mubr.f32.mxu0 0.0
      %2561 = vmatmul.mubr.f32.gmra.mrb[0].mxu0 %v1007
      %v2562 = vpop.f32.mrb[0].mxu0
      %v2563 = vadd.f32 0.0, %v2562
      %v2564 = vpop.f32.mrb[0].mxu0
      %2565 = vmatprep.mubr.f32.mxu0 0.0
      %2566 = vmatmul.mubr.f32.gmra.mrb[0].mxu0 %v1009
      %v2567 = vpop.f32.mrb[0].mxu0
      %v2568 = vadd.f32 0.0, %v2567
      %v2569 = vpop.f32.mrb[0].mxu0
      %2570 = vmatprep.mubr.f32.mxu0 0.0
      %2571 = vmatmul.mubr.f32.gmra.mrb[0].mxu0 %v2420
      %v2572 = vpop.f32.mrb[0].mxu0
      %v2573 = vadd.f32 0.0, %v2572
      %v2574 = vpop.f32.mrb[0].mxu0
      %2575 = vmatprep.mubr.f32.mxu0 0.0
      %2576 = vmatmul.mubr.f32.gmra.mrb[0].mxu0 %v1013
      %v2577 = vpop.f32.mrb[0].mxu0
      %v2578 = vadd.f32 0.0, %v2577
      %v2579 = vpop.f32.mrb[0].mxu0
      %2580 = vmatprep.mubr.f32.mxu0 0.0
      %2581 = vmatmul.mubr.f32.gmra.mrb[0].mxu0 %v1015
      %v2582 = vpop.f32.mrb[0].mxu0
      %v2583 = vadd.f32 0.0, %v2582
      %v2584 = vpop.f32.mrb[0].mxu0
      %2585 = vmatprep.mubr.f32.mxu0 0.0
      %2586 = vmatmul.mubr.f32.gmra.mrb[0].mxu0 %v1017
      %v2587 = vpop.f32.mrb[0].mxu0
      %v2588 = vadd.f32 0.0, %v2587
      %v2589 = vpop.f32.mrb[0].mxu0
      %2590 = vmatprep.mubr.f32.mxu0 0.0
      %2591 = vmatmul.mubr.f32.gmra.mrb[0].mxu0 %v1019
      %v2592 = vpop.f32.mrb[0].mxu0
      %v2593 = vadd.f32 0.0, %v2592
      %v2594 = vpop.f32.mrb[0].mxu0
      %2595 = vmatprep.mubr.f32.mxu0 0.0
      %2596 = vmatmul.mubr.f32.gmra.mrb[0].mxu0 %v1021
      %v2597 = vpop.f32.mrb[0].mxu0
      %v2598 = vadd.f32 0.0, %v2597
      %v2599 = vpop.f32.mrb[0].mxu0
      %2600 = vmatprep.mubr.f32.mxu0 0.0
      %2601 = vmatmul.mubr.f32.gmra.mrb[0].mxu0 %v1023
      %v2602 = vpop.f32.mrb[0].mxu0
      %v2603 = vadd.f32 0.0, %v2602
      %v2604 = vpop.f32.mrb[0].mxu0
      %2605 = vmatprep.mubr.f32.mxu0 0.0
      %2606 = vmatmul.mubr.f32.gmra.mrb[0].mxu0 %v1025
      %v2607 = vpop.f32.mrb[0].mxu0
      %v2608 = vadd.f32 0.0, %v2607
      %v2609 = vpop.f32.mrb[0].mxu0
      %2610 = vmatprep.mubr.f32.mxu0 0.0
      %2611 = vmatmul.mubr.f32.gmra.mrb[0].mxu0 %v2423
      %v2612 = vpop.f32.mrb[0].mxu0
      %v2613 = vadd.f32 0.0, %v2612
      %v2614 = vpop.f32.mrb[0].mxu0
      %2615 = vmatprep.mubr.f32.mxu0 0.0
      %2616 = vmatmul.mubr.f32.gmra.mrb[0].mxu0 %v1029
      %v2617 = vpop.f32.mrb[0].mxu0
      %v2618 = vadd.f32 0.0, %v2617
      %v2619 = vpop.f32.mrb[0].mxu0
      %2620 = vmatprep.mubr.f32.mxu0 0.0
      %2621 = vmatmul.mubr.f32.gmra.mrb[0].mxu0 %v1031
      %v2622 = vpop.f32.mrb[0].mxu0
      %v2623 = vadd.f32 0.0, %v2622
      %v2624 = vpop.f32.mrb[0].mxu0
      %2625 = vmatprep.mubr.f32.mxu0 0.0
      %2626 = vmatmul.mubr.f32.gmra.mrb[0].mxu0 %v1033
      %v2627 = vpop.f32.mrb[0].mxu0
      %v2628 = vadd.f32 0.0, %v2627
      %v2629 = vpop.f32.mrb[0].mxu0
      %2630 = vmatprep.mubr.f32.mxu0 0.0
      %2631 = vmatmul.mubr.f32.gmra.mrb[0].mxu0 %v1035
      %v2632 = vpop.f32.mrb[0].mxu0
      %v2633 = vadd.f32 0.0, %v2632
      %v2634 = vpop.f32.mrb[0].mxu0
      %2635 = vmatprep.mubr.f32.mxu0 0.0
      %2636 = vmatmul.mubr.f32.gmra.mrb[0].mxu0 %v1037
      %v2637 = vpop.f32.mrb[0].mxu0
      %v2638 = vadd.f32 0.0, %v2637
      %v2639 = vpop.f32.mrb[0].mxu0
      %2640 = vmatprep.mubr.f32.mxu0 0.0
      %2641 = vmatmul.mubr.f32.gmra.mrb[0].mxu0 %v1039
      %v2642 = vpop.f32.mrb[0].mxu0
      %v2643 = vadd.f32 0.0, %v2642
      %v2644 = vpop.f32.mrb[0].mxu0
      %2645 = vmatprep.mubr.f32.mxu0 0.0
      %2646 = vmatmul.mubr.f32.gmra.mrb[0].mxu0 %v1041
      %v2647 = vpop.f32.mrb[0].mxu0
      %v2648 = vadd.f32 0.0, %v2647
      %v2649 = vpop.f32.mrb[0].mxu0
      %2650 = vmatprep.mubr.f32.mxu0 0.0
      %2651 = vmatmul.mubr.f32.gmra.mrb[0].mxu0 %v2426
      %v2652 = vpop.f32.mrb[0].mxu0
      %v2653 = vadd.f32 0.0, %v2652
      %v2654 = vpop.f32.mrb[0].mxu0
      %2655 = vdwg.mxu0
      %v2656 = vadd.f32 %v2120, %v2498
      %v2657 = vadd.f32 %v2121, %v2503
      %v2658 = vadd.f32 %v2122, %v2508
      %v2659 = vadd.f32 %v2123, %v2513
      %v2660 = vadd.f32 %v2124, %v2518
      %v2661 = vadd.f32 %v2125, %v2523
      %v2662 = vadd.f32 %v2126, %v2528
      %v2663 = vadd.f32 %v2127, %v2533
      %v2664 = vadd.f32 %v2128, %v2538
      %v2665 = vadd.f32 %v2129, %v2543
      %v2666 = vadd.f32 %v2130, %v2548
      %v2667 = vadd.f32 %v2131, %v2553
      %v2668 = vadd.f32 %v2132, %v2558
      %v2669 = vadd.f32 %v2133, %v2563
      %v2670 = vadd.f32 %v2134, %v2568
      %v2671 = vadd.f32 %v2135, %v2573
      %v2672 = vadd.f32 %v2136, %v2578
      %v2673 = vadd.f32 %v2137, %v2583
      %v2674 = vadd.f32 %v2138, %v2588
      %v2675 = vadd.f32 %v2139, %v2593
      %v2676 = vadd.f32 %v2140, %v2598
      %v2677 = vadd.f32 %v2141, %v2603
      %v2678 = vadd.f32 %v2142, %v2608
      %v2679 = vadd.f32 %v2143, %v2613
      %v2680 = vadd.f32 %v2144, %v2618
      %v2681 = vadd.f32 %v2145, %v2623
      %v2682 = vadd.f32 %v2146, %v2628
      %v2683 = vadd.f32 %v2147, %v2633
      %v2684 = vadd.f32 %v2148, %v2638
      %v2685 = vadd.f32 %v2149, %v2643
      %v2686 = vadd.f32 %v2150, %v2648
      %v2687 = vadd.f32 %v2151, %v2653
      %s2688 = scalar_lea.vmem %s2, 12
      %v2689 = vld [vmem:[%s2688] sm:$0xf]
      %v2691 = vsel %vm750, %v2689, 0
      %2693 = vmatprep.subr.mxu0 0.0
      %2694 = vmatpush1.msra.mxu0 %v2691
      %2695 = vmatprep.subr.mxu0 0.0
      %2696 = vmatpush1.msra.mxu0 0.0
      %2697 = vmatprep.subr.mxu0 0.0
      %2698 = vmatpush1.msra.mxu0 0.0
      %2699 = vmatprep.subr.mxu0 0.0
      %2700 = vmatpush1.msra.mxu0 0.0
      %2701 = vmatprep.subr.mxu0 0.0
      %2702 = vmatpush1.msra.mxu0 0.0
      %2703 = vmatprep.subr.mxu0 0.0
      %2704 = vmatpush1.msra.mxu0 0.0
      %2705 = vmatprep.subr.mxu0 0.0
      %2706 = vmatpush1.msra.mxu0 0.0
      %2707 = vmatprep.subr.mxu0 0.0
      %2708 = vmatpush1.msra.mxu0 0.0
      %2709 = vmatprep.subr.mxu0 0.0
      %2710 = vmatpush1.msra.mxu0 0.0
      %2711 = vmatprep.subr.mxu0 0.0
      %2712 = vmatpush1.msra.mxu0 0.0
      %2713 = vmatprep.subr.mxu0 0.0
      %2714 = vmatpush1.msra.mxu0 0.0
      %2715 = vmatprep.subr.mxu0 0.0
      %2716 = vmatpush1.msra.mxu0 0.0
      %2717 = vmatprep.subr.mxu0 0.0
      %2718 = vmatpush1.msra.mxu0 0.0
      %2719 = vmatprep.subr.mxu0 0.0
      %2720 = vmatpush1.msra.mxu0 0.0
      %2721 = vmatprep.subr.mxu0 0.0
      %2722 = vmatpush1.msra.mxu0 0.0
      %2723 = vmatprep.subr.mxu0 0.0
      %2724 = vmatpush1.msra.mxu0 0.0
      %2725 = vmatprep.subr.mxu0 0.0
      %2726 = vmatpush1.msra.mxu0 0.0
      %2727 = vmatprep.subr.mxu0 0.0
      %2728 = vmatpush1.msra.mxu0 0.0
      %2729 = vmatprep.subr.mxu0 0.0
      %2730 = vmatpush1.msra.mxu0 0.0
      %2731 = vmatprep.subr.mxu0 0.0
      %2732 = vmatpush1.msra.mxu0 0.0
      %2733 = vmatprep.subr.mxu0 0.0
      %2734 = vmatpush1.msra.mxu0 0.0
      %2735 = vmatprep.subr.mxu0 0.0
      %2736 = vmatpush1.msra.mxu0 0.0
      %2737 = vmatprep.subr.mxu0 0.0
      %2738 = vmatpush1.msra.mxu0 0.0
      %2739 = vmatprep.subr.mxu0 0.0
      %2740 = vmatpush1.msra.mxu0 0.0
      %2741 = vmatprep.subr.mxu0 0.0
      %2742 = vmatpush1.msra.mxu0 0.0
      %2743 = vmatprep.subr.mxu0 0.0
      %2744 = vmatpush1.msra.mxu0 0.0
      %2745 = vmatprep.subr.mxu0 0.0
      %2746 = vmatpush1.msra.mxu0 0.0
      %2747 = vmatprep.subr.mxu0 0.0
      %2748 = vmatpush1.msra.mxu0 0.0
      %2749 = vmatprep.subr.mxu0 0.0
      %2750 = vmatpush1.msra.mxu0 0.0
      %2751 = vmatprep.subr.mxu0 0.0
      %2752 = vmatpush1.msra.mxu0 0.0
      %2753 = vmatprep.subr.mxu0 0.0
      %2754 = vmatpush1.msra.mxu0 0.0
      %2755 = vmatprep.subr.mxu0 0.0
      %2756 = vmatpush1.msra.mxu0 0.0
      %2757 = vmatprep.mubr.f32.mxu0 0.0
      %2758 = vmatmul.mubr.f32.gmra.mrb[0].mxu0 %v981
      %v2759 = vpop.f32.mrb[0].mxu0
      %v2760 = vadd.f32 0.0, %v2759
      %v2761 = vpop.f32.mrb[0].mxu0
      %2762 = vmatprep.mubr.f32.mxu0 0.0
      %2763 = vmatmul.mubr.f32.gmra.mrb[0].mxu0 %v983
      %v2764 = vpop.f32.mrb[0].mxu0
      %v2765 = vadd.f32 0.0, %v2764
      %v2766 = vpop.f32.mrb[0].mxu0
      %2767 = vmatprep.mubr.f32.mxu0 0.0
      %2768 = vmatmul.mubr.f32.gmra.mrb[0].mxu0 %v985
      %v2769 = vpop.f32.mrb[0].mxu0
      %v2770 = vadd.f32 0.0, %v2769
      %v2771 = vpop.f32.mrb[0].mxu0
      %2772 = vmatprep.mubr.f32.mxu0 0.0
      %2773 = vmatmul.mubr.f32.gmra.mrb[0].mxu0 %v987
      %v2774 = vpop.f32.mrb[0].mxu0
      %v2775 = vadd.f32 0.0, %v2774
      %v2776 = vpop.f32.mrb[0].mxu0
      %2777 = vmatprep.mubr.f32.mxu0 0.0
      %2778 = vmatmul.mubr.f32.gmra.mrb[0].mxu0 %v989
      %v2779 = vpop.f32.mrb[0].mxu0
      %v2780 = vadd.f32 0.0, %v2779
      %v2781 = vpop.f32.mrb[0].mxu0
      %2782 = vmatprep.mubr.f32.mxu0 0.0
      %2783 = vmatmul.mubr.f32.gmra.mrb[0].mxu0 %v991
      %v2784 = vpop.f32.mrb[0].mxu0
      %v2785 = vadd.f32 0.0, %v2784
      %v2786 = vpop.f32.mrb[0].mxu0
      %2787 = vmatprep.mubr.f32.mxu0 0.0
      %2788 = vmatmul.mubr.f32.gmra.mrb[0].mxu0 %v993
      %v2789 = vpop.f32.mrb[0].mxu0
      %v2790 = vadd.f32 0.0, %v2789
      %v2791 = vpop.f32.mrb[0].mxu0
      %2792 = vmatprep.mubr.f32.mxu0 0.0
      %2793 = vmatmul.mubr.f32.gmra.mrb[0].mxu0 %v2417
      %v2794 = vpop.f32.mrb[0].mxu0
      %v2795 = vadd.f32 0.0, %v2794
      %v2796 = vpop.f32.mrb[0].mxu0
      %2797 = vmatprep.mubr.f32.mxu0 0.0
      %2798 = vmatmul.mubr.f32.gmra.mrb[0].mxu0 %v997
      %v2799 = vpop.f32.mrb[0].mxu0
      %v2800 = vadd.f32 0.0, %v2799
      %v2801 = vpop.f32.mrb[0].mxu0
      %2802 = vmatprep.mubr.f32.mxu0 0.0
      %2803 = vmatmul.mubr.f32.gmra.mrb[0].mxu0 %v999
      %v2804 = vpop.f32.mrb[0].mxu0
      %v2805 = vadd.f32 0.0, %v2804
      %v2806 = vpop.f32.mrb[0].mxu0
      %2807 = vmatprep.mubr.f32.mxu0 0.0
      %2808 = vmatmul.mubr.f32.gmra.mrb[0].mxu0 %v1001
      %v2809 = vpop.f32.mrb[0].mxu0
      %v2810 = vadd.f32 0.0, %v2809
      %v2811 = vpop.f32.mrb[0].mxu0
      %2812 = vmatprep.mubr.f32.mxu0 0.0
      %2813 = vmatmul.mubr.f32.gmra.mrb[0].mxu0 %v1003
      %v2814 = vpop.f32.mrb[0].mxu0
      %v2815 = vadd.f32 0.0, %v2814
      %v2816 = vpop.f32.mrb[0].mxu0
      %2817 = vmatprep.mubr.f32.mxu0 0.0
      %2818 = vmatmul.mubr.f32.gmra.mrb[0].mxu0 %v1005
      %v2819 = vpop.f32.mrb[0].mxu0
      %v2820 = vadd.f32 0.0, %v2819
      %v2821 = vpop.f32.mrb[0].mxu0
      %2822 = vmatprep.mubr.f32.mxu0 0.0
      %2823 = vmatmul.mubr.f32.gmra.mrb[0].mxu0 %v1007
      %v2824 = vpop.f32.mrb[0].mxu0
      %v2825 = vadd.f32 0.0, %v2824
      %v2826 = vpop.f32.mrb[0].mxu0
      %2827 = vmatprep.mubr.f32.mxu0 0.0
      %2828 = vmatmul.mubr.f32.gmra.mrb[0].mxu0 %v1009
      %v2829 = vpop.f32.mrb[0].mxu0
      %v2830 = vadd.f32 0.0, %v2829
      %v2831 = vpop.f32.mrb[0].mxu0
      %2832 = vmatprep.mubr.f32.mxu0 0.0
      %2833 = vmatmul.mubr.f32.gmra.mrb[0].mxu0 %v2420
      %v2834 = vpop.f32.mrb[0].mxu0
      %v2835 = vadd.f32 0.0, %v2834
      %v2836 = vpop.f32.mrb[0].mxu0
      %2837 = vmatprep.mubr.f32.mxu0 0.0
      %2838 = vmatmul.mubr.f32.gmra.mrb[0].mxu0 %v1013
      %v2839 = vpop.f32.mrb[0].mxu0
      %v2840 = vadd.f32 0.0, %v2839
      %v2841 = vpop.f32.mrb[0].mxu0
      %2842 = vmatprep.mubr.f32.mxu0 0.0
      %2843 = vmatmul.mubr.f32.gmra.mrb[0].mxu0 %v1015
      %v2844 = vpop.f32.mrb[0].mxu0
      %v2845 = vadd.f32 0.0, %v2844
      %v2846 = vpop.f32.mrb[0].mxu0
      %2847 = vmatprep.mubr.f32.mxu0 0.0
      %2848 = vmatmul.mubr.f32.gmra.mrb[0].mxu0 %v1017
      %v2849 = vpop.f32.mrb[0].mxu0
      %v2850 = vadd.f32 0.0, %v2849
      %v2851 = vpop.f32.mrb[0].mxu0
      %2852 = vmatprep.mubr.f32.mxu0 0.0
      %2853 = vmatmul.mubr.f32.gmra.mrb[0].mxu0 %v1019
      %v2854 = vpop.f32.mrb[0].mxu0
      %v2855 = vadd.f32 0.0, %v2854
      %v2856 = vpop.f32.mrb[0].mxu0
      %2857 = vmatprep.mubr.f32.mxu0 0.0
      %2858 = vmatmul.mubr.f32.gmra.mrb[0].mxu0 %v1021
      %v2859 = vpop.f32.mrb[0].mxu0
      %v2860 = vadd.f32 0.0, %v2859
      %v2861 = vpop.f32.mrb[0].mxu0
      %2862 = vmatprep.mubr.f32.mxu0 0.0
      %2863 = vmatmul.mubr.f32.gmra.mrb[0].mxu0 %v1023
      %v2864 = vpop.f32.mrb[0].mxu0
      %v2865 = vadd.f32 0.0, %v2864
      %v2866 = vpop.f32.mrb[0].mxu0
      %2867 = vmatprep.mubr.f32.mxu0 0.0
      %2868 = vmatmul.mubr.f32.gmra.mrb[0].mxu0 %v1025
      %v2869 = vpop.f32.mrb[0].mxu0
      %v2870 = vadd.f32 0.0, %v2869
      %v2871 = vpop.f32.mrb[0].mxu0
      %2872 = vmatprep.mubr.f32.mxu0 0.0
      %2873 = vmatmul.mubr.f32.gmra.mrb[0].mxu0 %v2423
      %v2874 = vpop.f32.mrb[0].mxu0
      %v2875 = vadd.f32 0.0, %v2874
      %v2876 = vpop.f32.mrb[0].mxu0
      %2877 = vmatprep.mubr.f32.mxu0 0.0
      %2878 = vmatmul.mubr.f32.gmra.mrb[0].mxu0 %v1029
      %v2879 = vpop.f32.mrb[0].mxu0
      %v2880 = vadd.f32 0.0, %v2879
      %v2881 = vpop.f32.mrb[0].mxu0
      %2882 = vmatprep.mubr.f32.mxu0 0.0
      %2883 = vmatmul.mubr.f32.gmra.mrb[0].mxu0 %v1031
      %v2884 = vpop.f32.mrb[0].mxu0
      %v2885 = vadd.f32 0.0, %v2884
      %v2886 = vpop.f32.mrb[0].mxu0
      %2887 = vmatprep.mubr.f32.mxu0 0.0
      %2888 = vmatmul.mubr.f32.gmra.mrb[0].mxu0 %v1033
      %v2889 = vpop.f32.mrb[0].mxu0
      %v2890 = vadd.f32 0.0, %v2889
      %v2891 = vpop.f32.mrb[0].mxu0
      %2892 = vmatprep.mubr.f32.mxu0 0.0
      %2893 = vmatmul.mubr.f32.gmra.mrb[0].mxu0 %v1035
      %v2894 = vpop.f32.mrb[0].mxu0
      %v2895 = vadd.f32 0.0, %v2894
      %v2896 = vpop.f32.mrb[0].mxu0
      %2897 = vmatprep.mubr.f32.mxu0 0.0
      %2898 = vmatmul.mubr.f32.gmra.mrb[0].mxu0 %v1037
      %v2899 = vpop.f32.mrb[0].mxu0
      %v2900 = vadd.f32 0.0, %v2899
      %v2901 = vpop.f32.mrb[0].mxu0
      %2902 = vmatprep.mubr.f32.mxu0 0.0
      %2903 = vmatmul.mubr.f32.gmra.mrb[0].mxu0 %v1039
      %v2904 = vpop.f32.mrb[0].mxu0
      %v2905 = vadd.f32 0.0, %v2904
      %v2906 = vpop.f32.mrb[0].mxu0
      %2907 = vmatprep.mubr.f32.mxu0 0.0
      %2908 = vmatmul.mubr.f32.gmra.mrb[0].mxu0 %v1041
      %v2909 = vpop.f32.mrb[0].mxu0
      %v2910 = vadd.f32 0.0, %v2909
      %v2911 = vpop.f32.mrb[0].mxu0
      %2912 = vmatprep.mubr.f32.mxu0 0.0
      %2913 = vmatmul.mubr.f32.gmra.mrb[0].mxu0 %v2426
      %v2914 = vpop.f32.mrb[0].mxu0
      %v2915 = vadd.f32 0.0, %v2914
      %v2916 = vpop.f32.mrb[0].mxu0
      %2917 = vdwg.mxu0
      %v2918 = vadd.f32 %v2382, %v2760
      %v2919 = vadd.f32 %v2383, %v2765
      %v2920 = vadd.f32 %v2384, %v2770
      %v2921 = vadd.f32 %v2385, %v2775
      %v2922 = vadd.f32 %v2386, %v2780
      %v2923 = vadd.f32 %v2387, %v2785
      %v2924 = vadd.f32 %v2388, %v2790
      %v2925 = vadd.f32 %v2389, %v2795
      %v2926 = vadd.f32 %v2390, %v2800
      %v2927 = vadd.f32 %v2391, %v2805
      %v2928 = vadd.f32 %v2392, %v2810
      %v2929 = vadd.f32 %v2393, %v2815
      %v2930 = vadd.f32 %v2394, %v2820
      %v2931 = vadd.f32 %v2395, %v2825
      %v2932 = vadd.f32 %v2396, %v2830
      %v2933 = vadd.f32 %v2397, %v2835
      %v2934 = vadd.f32 %v2398, %v2840
      %v2935 = vadd.f32 %v2399, %v2845
      %v2936 = vadd.f32 %v2400, %v2850
      %v2937 = vadd.f32 %v2401, %v2855
      %v2938 = vadd.f32 %v2402, %v2860
      %v2939 = vadd.f32 %v2403, %v2865
      %v2940 = vadd.f32 %v2404, %v2870
      %v2941 = vadd.f32 %v2405, %v2875
      %v2942 = vadd.f32 %v2406, %v2880
      %v2943 = vadd.f32 %v2407, %v2885
      %v2944 = vadd.f32 %v2408, %v2890
      %v2945 = vadd.f32 %v2409, %v2895
      %v2946 = vadd.f32 %v2410, %v2900
      %v2947 = vadd.f32 %v2411, %v2905
      %v2948 = vadd.f32 %v2412, %v2910
      %v2949 = vadd.f32 %v2413, %v2915
      %v2954 = vrot.slane %v457, 1
      %v2955 = vrot.slane %v458, 1
      %v2956 = vsel %vm587, %v2954, %v2955
      %v2957 = vrot.slane %v477, 1
      %v2958 = vrot.slane %v478, 1
      %v2959 = vsel %vm587, %v2957, %v2958
      %v2960 = vrot.slane %v497, 1
      %v2961 = vrot.slane %v498, 1
      %v2962 = vsel %vm587, %v2960, %v2961
      %v2963 = vrot.slane %v517, 1
      %v2964 = vrot.slane %v518, 1
      %v2965 = vsel %vm587, %v2963, %v2964
      %s2966 = scalar_lea.vmem %s1, 16
      %v2967 = vld [vmem:[%s2966] sm:$0xf]
      %v2968 = vsel %vm276, %v2956, 0
      %v2970 = vsel %vm276, %v2959, 0
      %v2972 = vsel %vm276, %v2962, 0
      %v2974 = vsel %vm276, %v2965, 0
      %v2977 = vsel %vm750, %v2967, 0
      %2979 = vmatprep.subr.mxu0 0.0
      %2980 = vmatpush1.msra.mxu0 %v2977
      %2981 = vmatprep.subr.mxu0 0.0
      %2982 = vmatpush1.msra.mxu0 0.0
      %2983 = vmatprep.subr.mxu0 0.0
      %2984 = vmatpush1.msra.mxu0 0.0
      %2985 = vmatprep.subr.mxu0 0.0
      %2986 = vmatpush1.msra.mxu0 0.0
      %2987 = vmatprep.subr.mxu0 0.0
      %2988 = vmatpush1.msra.mxu0 0.0
      %2989 = vmatprep.subr.mxu0 0.0
      %2990 = vmatpush1.msra.mxu0 0.0
      %2991 = vmatprep.subr.mxu0 0.0
      %2992 = vmatpush1.msra.mxu0 0.0
      %2993 = vmatprep.subr.mxu0 0.0
      %2994 = vmatpush1.msra.mxu0 0.0
      %2995 = vmatprep.subr.mxu0 0.0
      %2996 = vmatpush1.msra.mxu0 0.0
      %2997 = vmatprep.subr.mxu0 0.0
      %2998 = vmatpush1.msra.mxu0 0.0
      %2999 = vmatprep.subr.mxu0 0.0
      %3000 = vmatpush1.msra.mxu0 0.0
      %3001 = vmatprep.subr.mxu0 0.0
      %3002 = vmatpush1.msra.mxu0 0.0
      %3003 = vmatprep.subr.mxu0 0.0
      %3004 = vmatpush1.msra.mxu0 0.0
      %3005 = vmatprep.subr.mxu0 0.0
      %3006 = vmatpush1.msra.mxu0 0.0
      %3007 = vmatprep.subr.mxu0 0.0
      %3008 = vmatpush1.msra.mxu0 0.0
      %3009 = vmatprep.subr.mxu0 0.0
      %3010 = vmatpush1.msra.mxu0 0.0
      %3011 = vmatprep.subr.mxu0 0.0
      %3012 = vmatpush1.msra.mxu0 0.0
      %3013 = vmatprep.subr.mxu0 0.0
      %3014 = vmatpush1.msra.mxu0 0.0
      %3015 = vmatprep.subr.mxu0 0.0
      %3016 = vmatpush1.msra.mxu0 0.0
      %3017 = vmatprep.subr.mxu0 0.0
      %3018 = vmatpush1.msra.mxu0 0.0
      %3019 = vmatprep.subr.mxu0 0.0
      %3020 = vmatpush1.msra.mxu0 0.0
      %3021 = vmatprep.subr.mxu0 0.0
      %3022 = vmatpush1.msra.mxu0 0.0
      %3023 = vmatprep.subr.mxu0 0.0
      %3024 = vmatpush1.msra.mxu0 0.0
      %3025 = vmatprep.subr.mxu0 0.0
      %3026 = vmatpush1.msra.mxu0 0.0
      %3027 = vmatprep.subr.mxu0 0.0
      %3028 = vmatpush1.msra.mxu0 0.0
      %3029 = vmatprep.subr.mxu0 0.0
      %3030 = vmatpush1.msra.mxu0 0.0
      %3031 = vmatprep.subr.mxu0 0.0
      %3032 = vmatpush1.msra.mxu0 0.0
      %3033 = vmatprep.subr.mxu0 0.0
      %3034 = vmatpush1.msra.mxu0 0.0
      %3035 = vmatprep.subr.mxu0 0.0
      %3036 = vmatpush1.msra.mxu0 0.0
      %3037 = vmatprep.subr.mxu0 0.0
      %3038 = vmatpush1.msra.mxu0 0.0
      %3039 = vmatprep.subr.mxu0 0.0
      %3040 = vmatpush1.msra.mxu0 0.0
      %3041 = vmatprep.subr.mxu0 0.0
      %3042 = vmatpush1.msra.mxu0 0.0
      %3043 = vmatprep.mubr.f32.mxu0 0.0
      %3044 = vmatmul.mubr.f32.gmra.mrb[0].mxu0 %v688
      %v3045 = vpop.f32.mrb[0].mxu0
      %v3046 = vadd.f32 0.0, %v3045
      %v3047 = vpop.f32.mrb[0].mxu0
      %3048 = vmatprep.mubr.f32.mxu0 0.0
      %3049 = vmatmul.mubr.f32.gmra.mrb[0].mxu0 %v690
      %v3050 = vpop.f32.mrb[0].mxu0
      %v3051 = vadd.f32 0.0, %v3050
      %v3052 = vpop.f32.mrb[0].mxu0
      %3053 = vmatprep.mubr.f32.mxu0 0.0
      %3054 = vmatmul.mubr.f32.gmra.mrb[0].mxu0 %v692
      %v3055 = vpop.f32.mrb[0].mxu0
      %v3056 = vadd.f32 0.0, %v3055
      %v3057 = vpop.f32.mrb[0].mxu0
      %3058 = vmatprep.mubr.f32.mxu0 0.0
      %3059 = vmatmul.mubr.f32.gmra.mrb[0].mxu0 %v694
      %v3060 = vpop.f32.mrb[0].mxu0
      %v3061 = vadd.f32 0.0, %v3060
      %v3062 = vpop.f32.mrb[0].mxu0
      %3063 = vmatprep.mubr.f32.mxu0 0.0
      %3064 = vmatmul.mubr.f32.gmra.mrb[0].mxu0 %v696
      %v3065 = vpop.f32.mrb[0].mxu0
      %v3066 = vadd.f32 0.0, %v3065
      %v3067 = vpop.f32.mrb[0].mxu0
      %3068 = vmatprep.mubr.f32.mxu0 0.0
      %3069 = vmatmul.mubr.f32.gmra.mrb[0].mxu0 %v698
      %v3070 = vpop.f32.mrb[0].mxu0
      %v3071 = vadd.f32 0.0, %v3070
      %v3072 = vpop.f32.mrb[0].mxu0
      %3073 = vmatprep.mubr.f32.mxu0 0.0
      %3074 = vmatmul.mubr.f32.gmra.mrb[0].mxu0 %v700
      %v3075 = vpop.f32.mrb[0].mxu0
      %v3076 = vadd.f32 0.0, %v3075
      %v3077 = vpop.f32.mrb[0].mxu0
      %3078 = vmatprep.mubr.f32.mxu0 0.0
      %3079 = vmatmul.mubr.f32.gmra.mrb[0].mxu0 %v2968
      %v3080 = vpop.f32.mrb[0].mxu0
      %v3081 = vadd.f32 0.0, %v3080
      %v3082 = vpop.f32.mrb[0].mxu0
      %3083 = vmatprep.mubr.f32.mxu0 0.0
      %3084 = vmatmul.mubr.f32.gmra.mrb[0].mxu0 %v704
      %v3085 = vpop.f32.mrb[0].mxu0
      %v3086 = vadd.f32 0.0, %v3085
      %v3087 = vpop.f32.mrb[0].mxu0
      %3088 = vmatprep.mubr.f32.mxu0 0.0
      %3089 = vmatmul.mubr.f32.gmra.mrb[0].mxu0 %v706
      %v3090 = vpop.f32.mrb[0].mxu0
      %v3091 = vadd.f32 0.0, %v3090
      %v3092 = vpop.f32.mrb[0].mxu0
      %3093 = vmatprep.mubr.f32.mxu0 0.0
      %3094 = vmatmul.mubr.f32.gmra.mrb[0].mxu0 %v708
      %v3095 = vpop.f32.mrb[0].mxu0
      %v3096 = vadd.f32 0.0, %v3095
      %v3097 = vpop.f32.mrb[0].mxu0
      %3098 = vmatprep.mubr.f32.mxu0 0.0
      %3099 = vmatmul.mubr.f32.gmra.mrb[0].mxu0 %v710
      %v3100 = vpop.f32.mrb[0].mxu0
      %v3101 = vadd.f32 0.0, %v3100
      %v3102 = vpop.f32.mrb[0].mxu0
      %3103 = vmatprep.mubr.f32.mxu0 0.0
      %3104 = vmatmul.mubr.f32.gmra.mrb[0].mxu0 %v712
      %v3105 = vpop.f32.mrb[0].mxu0
      %v3106 = vadd.f32 0.0, %v3105
      %v3107 = vpop.f32.mrb[0].mxu0
      %3108 = vmatprep.mubr.f32.mxu0 0.0
      %3109 = vmatmul.mubr.f32.gmra.mrb[0].mxu0 %v714
      %v3110 = vpop.f32.mrb[0].mxu0
      %v3111 = vadd.f32 0.0, %v3110
      %v3112 = vpop.f32.mrb[0].mxu0
      %3113 = vmatprep.mubr.f32.mxu0 0.0
      %3114 = vmatmul.mubr.f32.gmra.mrb[0].mxu0 %v716
      %v3115 = vpop.f32.mrb[0].mxu0
      %v3116 = vadd.f32 0.0, %v3115
      %v3117 = vpop.f32.mrb[0].mxu0
      %3118 = vmatprep.mubr.f32.mxu0 0.0
      %3119 = vmatmul.mubr.f32.gmra.mrb[0].mxu0 %v2970
      %v3120 = vpop.f32.mrb[0].mxu0
      %v3121 = vadd.f32 0.0, %v3120
      %v3122 = vpop.f32.mrb[0].mxu0
      %3123 = vmatprep.mubr.f32.mxu0 0.0
      %3124 = vmatmul.mubr.f32.gmra.mrb[0].mxu0 %v720
      %v3125 = vpop.f32.mrb[0].mxu0
      %v3126 = vadd.f32 0.0, %v3125
      %v3127 = vpop.f32.mrb[0].mxu0
      %3128 = vmatprep.mubr.f32.mxu0 0.0
      %3129 = vmatmul.mubr.f32.gmra.mrb[0].mxu0 %v722
      %v3130 = vpop.f32.mrb[0].mxu0
      %v3131 = vadd.f32 0.0, %v3130
      %v3132 = vpop.f32.mrb[0].mxu0
      %3133 = vmatprep.mubr.f32.mxu0 0.0
      %3134 = vmatmul.mubr.f32.gmra.mrb[0].mxu0 %v724
      %v3135 = vpop.f32.mrb[0].mxu0
      %v3136 = vadd.f32 0.0, %v3135
      %v3137 = vpop.f32.mrb[0].mxu0
      %3138 = vmatprep.mubr.f32.mxu0 0.0
      %3139 = vmatmul.mubr.f32.gmra.mrb[0].mxu0 %v726
      %v3140 = vpop.f32.mrb[0].mxu0
      %v3141 = vadd.f32 0.0, %v3140
      %v3142 = vpop.f32.mrb[0].mxu0
      %3143 = vmatprep.mubr.f32.mxu0 0.0
      %3144 = vmatmul.mubr.f32.gmra.mrb[0].mxu0 %v728
      %v3145 = vpop.f32.mrb[0].mxu0
      %v3146 = vadd.f32 0.0, %v3145
      %v3147 = vpop.f32.mrb[0].mxu0
      %3148 = vmatprep.mubr.f32.mxu0 0.0
      %3149 = vmatmul.mubr.f32.gmra.mrb[0].mxu0 %v730
      %v3150 = vpop.f32.mrb[0].mxu0
      %v3151 = vadd.f32 0.0, %v3150
      %v3152 = vpop.f32.mrb[0].mxu0
      %3153 = vmatprep.mubr.f32.mxu0 0.0
      %3154 = vmatmul.mubr.f32.gmra.mrb[0].mxu0 %v732
      %v3155 = vpop.f32.mrb[0].mxu0
      %v3156 = vadd.f32 0.0, %v3155
      %v3157 = vpop.f32.mrb[0].mxu0
      %3158 = vmatprep.mubr.f32.mxu0 0.0
      %3159 = vmatmul.mubr.f32.gmra.mrb[0].mxu0 %v2972
      %v3160 = vpop.f32.mrb[0].mxu0
      %v3161 = vadd.f32 0.0, %v3160
      %v3162 = vpop.f32.mrb[0].mxu0
      %3163 = vmatprep.mubr.f32.mxu0 0.0
      %3164 = vmatmul.mubr.f32.gmra.mrb[0].mxu0 %v736
      %v3165 = vpop.f32.mrb[0].mxu0
      %v3166 = vadd.f32 0.0, %v3165
      %v3167 = vpop.f32.mrb[0].mxu0
      %3168 = vmatprep.mubr.f32.mxu0 0.0
      %3169 = vmatmul.mubr.f32.gmra.mrb[0].mxu0 %v738
      %v3170 = vpop.f32.mrb[0].mxu0
      %v3171 = vadd.f32 0.0, %v3170
      %v3172 = vpop.f32.mrb[0].mxu0
      %3173 = vmatprep.mubr.f32.mxu0 0.0
      %3174 = vmatmul.mubr.f32.gmra.mrb[0].mxu0 %v740
      %v3175 = vpop.f32.mrb[0].mxu0
      %v3176 = vadd.f32 0.0, %v3175
      %v3177 = vpop.f32.mrb[0].mxu0
      %3178 = vmatprep.mubr.f32.mxu0 0.0
      %3179 = vmatmul.mubr.f32.gmra.mrb[0].mxu0 %v742
      %v3180 = vpop.f32.mrb[0].mxu0
      %v3181 = vadd.f32 0.0, %v3180
      %v3182 = vpop.f32.mrb[0].mxu0
      %3183 = vmatprep.mubr.f32.mxu0 0.0
      %3184 = vmatmul.mubr.f32.gmra.mrb[0].mxu0 %v744
      %v3185 = vpop.f32.mrb[0].mxu0
      %v3186 = vadd.f32 0.0, %v3185
      %v3187 = vpop.f32.mrb[0].mxu0
      %3188 = vmatprep.mubr.f32.mxu0 0.0
      %3189 = vmatmul.mubr.f32.gmra.mrb[0].mxu0 %v746
      %v3190 = vpop.f32.mrb[0].mxu0
      %v3191 = vadd.f32 0.0, %v3190
      %v3192 = vpop.f32.mrb[0].mxu0
      %3193 = vmatprep.mubr.f32.mxu0 0.0
      %3194 = vmatmul.mubr.f32.gmra.mrb[0].mxu0 %v748
      %v3195 = vpop.f32.mrb[0].mxu0
      %v3196 = vadd.f32 0.0, %v3195
      %v3197 = vpop.f32.mrb[0].mxu0
      %3198 = vmatprep.mubr.f32.mxu0 0.0
      %3199 = vmatmul.mubr.f32.gmra.mrb[0].mxu0 %v2974
      %v3200 = vpop.f32.mrb[0].mxu0
      %v3201 = vadd.f32 0.0, %v3200
      %v3202 = vpop.f32.mrb[0].mxu0
      %3203 = vdwg.mxu0
      %v3204 = vadd.f32 %v2656, %v3046
      %v3205 = vadd.f32 %v2657, %v3051
      %v3206 = vadd.f32 %v2658, %v3056
      %v3207 = vadd.f32 %v2659, %v3061
      %v3208 = vadd.f32 %v2660, %v3066
      %v3209 = vadd.f32 %v2661, %v3071
      %v3210 = vadd.f32 %v2662, %v3076
      %v3211 = vadd.f32 %v2663, %v3081
      %v3212 = vadd.f32 %v2664, %v3086
      %v3213 = vadd.f32 %v2665, %v3091
      %v3214 = vadd.f32 %v2666, %v3096
      %v3215 = vadd.f32 %v2667, %v3101
      %v3216 = vadd.f32 %v2668, %v3106
      %v3217 = vadd.f32 %v2669, %v3111
      %v3218 = vadd.f32 %v2670, %v3116
      %v3219 = vadd.f32 %v2671, %v3121
      %v3220 = vadd.f32 %v2672, %v3126
      %v3221 = vadd.f32 %v2673, %v3131
      %v3222 = vadd.f32 %v2674, %v3136
      %v3223 = vadd.f32 %v2675, %v3141
      %v3224 = vadd.f32 %v2676, %v3146
      %v3225 = vadd.f32 %v2677, %v3151
      %v3226 = vadd.f32 %v2678, %v3156
      %v3227 = vadd.f32 %v2679, %v3161
      %v3228 = vadd.f32 %v2680, %v3166
      %v3229 = vadd.f32 %v2681, %v3171
      %v3230 = vadd.f32 %v2682, %v3176
      %v3231 = vadd.f32 %v2683, %v3181
      %v3232 = vadd.f32 %v2684, %v3186
      %v3233 = vadd.f32 %v2685, %v3191
      %v3234 = vadd.f32 %v2686, %v3196
      %v3235 = vadd.f32 %v2687, %v3201
      %s3236 = scalar_lea.vmem %s2, 16
      %v3237 = vld [vmem:[%s3236] sm:$0xf]
      %v3239 = vsel %vm750, %v3237, 0
      %3241 = vmatprep.subr.mxu0 0.0
      %3242 = vmatpush1.msra.mxu0 %v3239
      %3243 = vmatprep.subr.mxu0 0.0
      %3244 = vmatpush1.msra.mxu0 0.0
      %3245 = vmatprep.subr.mxu0 0.0
      %3246 = vmatpush1.msra.mxu0 0.0
      %3247 = vmatprep.subr.mxu0 0.0
      %3248 = vmatpush1.msra.mxu0 0.0
      %3249 = vmatprep.subr.mxu0 0.0
      %3250 = vmatpush1.msra.mxu0 0.0
      %3251 = vmatprep.subr.mxu0 0.0
      %3252 = vmatpush1.msra.mxu0 0.0
      %3253 = vmatprep.subr.mxu0 0.0
      %3254 = vmatpush1.msra.mxu0 0.0
      %3255 = vmatprep.subr.mxu0 0.0
      %3256 = vmatpush1.msra.mxu0 0.0
      %3257 = vmatprep.subr.mxu0 0.0
      %3258 = vmatpush1.msra.mxu0 0.0
      %3259 = vmatprep.subr.mxu0 0.0
      %3260 = vmatpush1.msra.mxu0 0.0
      %3261 = vmatprep.subr.mxu0 0.0
      %3262 = vmatpush1.msra.mxu0 0.0
      %3263 = vmatprep.subr.mxu0 0.0
      %3264 = vmatpush1.msra.mxu0 0.0
      %3265 = vmatprep.subr.mxu0 0.0
      %3266 = vmatpush1.msra.mxu0 0.0
      %3267 = vmatprep.subr.mxu0 0.0
      %3268 = vmatpush1.msra.mxu0 0.0
      %3269 = vmatprep.subr.mxu0 0.0
      %3270 = vmatpush1.msra.mxu0 0.0
      %3271 = vmatprep.subr.mxu0 0.0
      %3272 = vmatpush1.msra.mxu0 0.0
      %3273 = vmatprep.subr.mxu0 0.0
      %3274 = vmatpush1.msra.mxu0 0.0
      %3275 = vmatprep.subr.mxu0 0.0
      %3276 = vmatpush1.msra.mxu0 0.0
      %3277 = vmatprep.subr.mxu0 0.0
      %3278 = vmatpush1.msra.mxu0 0.0
      %3279 = vmatprep.subr.mxu0 0.0
      %3280 = vmatpush1.msra.mxu0 0.0
      %3281 = vmatprep.subr.mxu0 0.0
      %3282 = vmatpush1.msra.mxu0 0.0
      %3283 = vmatprep.subr.mxu0 0.0
      %3284 = vmatpush1.msra.mxu0 0.0
      %3285 = vmatprep.subr.mxu0 0.0
      %3286 = vmatpush1.msra.mxu0 0.0
      %3287 = vmatprep.subr.mxu0 0.0
      %3288 = vmatpush1.msra.mxu0 0.0
      %3289 = vmatprep.subr.mxu0 0.0
      %3290 = vmatpush1.msra.mxu0 0.0
      %3291 = vmatprep.subr.mxu0 0.0
      %3292 = vmatpush1.msra.mxu0 0.0
      %3293 = vmatprep.subr.mxu0 0.0
      %3294 = vmatpush1.msra.mxu0 0.0
      %3295 = vmatprep.subr.mxu0 0.0
      %3296 = vmatpush1.msra.mxu0 0.0
      %3297 = vmatprep.subr.mxu0 0.0
      %3298 = vmatpush1.msra.mxu0 0.0
      %3299 = vmatprep.subr.mxu0 0.0
      %3300 = vmatpush1.msra.mxu0 0.0
      %3301 = vmatprep.subr.mxu0 0.0
      %3302 = vmatpush1.msra.mxu0 0.0
      %3303 = vmatprep.subr.mxu0 0.0
      %3304 = vmatpush1.msra.mxu0 0.0
      %3305 = vmatprep.mubr.f32.mxu0 0.0
      %3306 = vmatmul.mubr.f32.gmra.mrb[0].mxu0 %v688
      %v3307 = vpop.f32.mrb[0].mxu0
      %v3308 = vadd.f32 0.0, %v3307
      %v3309 = vpop.f32.mrb[0].mxu0
      %3310 = vmatprep.mubr.f32.mxu0 0.0
      %3311 = vmatmul.mubr.f32.gmra.mrb[0].mxu0 %v690
      %v3312 = vpop.f32.mrb[0].mxu0
      %v3313 = vadd.f32 0.0, %v3312
      %v3314 = vpop.f32.mrb[0].mxu0
      %3315 = vmatprep.mubr.f32.mxu0 0.0
      %3316 = vmatmul.mubr.f32.gmra.mrb[0].mxu0 %v692
      %v3317 = vpop.f32.mrb[0].mxu0
      %v3318 = vadd.f32 0.0, %v3317
      %v3319 = vpop.f32.mrb[0].mxu0
      %3320 = vmatprep.mubr.f32.mxu0 0.0
      %3321 = vmatmul.mubr.f32.gmra.mrb[0].mxu0 %v694
      %v3322 = vpop.f32.mrb[0].mxu0
      %v3323 = vadd.f32 0.0, %v3322
      %v3324 = vpop.f32.mrb[0].mxu0
      %3325 = vmatprep.mubr.f32.mxu0 0.0
      %3326 = vmatmul.mubr.f32.gmra.mrb[0].mxu0 %v696
      %v3327 = vpop.f32.mrb[0].mxu0
      %v3328 = vadd.f32 0.0, %v3327
      %v3329 = vpop.f32.mrb[0].mxu0
      %3330 = vmatprep.mubr.f32.mxu0 0.0
      %3331 = vmatmul.mubr.f32.gmra.mrb[0].mxu0 %v698
      %v3332 = vpop.f32.mrb[0].mxu0
      %v3333 = vadd.f32 0.0, %v3332
      %v3334 = vpop.f32.mrb[0].mxu0
      %3335 = vmatprep.mubr.f32.mxu0 0.0
      %3336 = vmatmul.mubr.f32.gmra.mrb[0].mxu0 %v700
      %v3337 = vpop.f32.mrb[0].mxu0
      %v3338 = vadd.f32 0.0, %v3337
      %v3339 = vpop.f32.mrb[0].mxu0
      %3340 = vmatprep.mubr.f32.mxu0 0.0
      %3341 = vmatmul.mubr.f32.gmra.mrb[0].mxu0 %v2968
      %v3342 = vpop.f32.mrb[0].mxu0
      %v3343 = vadd.f32 0.0, %v3342
      %v3344 = vpop.f32.mrb[0].mxu0
      %3345 = vmatprep.mubr.f32.mxu0 0.0
      %3346 = vmatmul.mubr.f32.gmra.mrb[0].mxu0 %v704
      %v3347 = vpop.f32.mrb[0].mxu0
      %v3348 = vadd.f32 0.0, %v3347
      %v3349 = vpop.f32.mrb[0].mxu0
      %3350 = vmatprep.mubr.f32.mxu0 0.0
      %3351 = vmatmul.mubr.f32.gmra.mrb[0].mxu0 %v706
      %v3352 = vpop.f32.mrb[0].mxu0
      %v3353 = vadd.f32 0.0, %v3352
      %v3354 = vpop.f32.mrb[0].mxu0
      %3355 = vmatprep.mubr.f32.mxu0 0.0
      %3356 = vmatmul.mubr.f32.gmra.mrb[0].mxu0 %v708
      %v3357 = vpop.f32.mrb[0].mxu0
      %v3358 = vadd.f32 0.0, %v3357
      %v3359 = vpop.f32.mrb[0].mxu0
      %3360 = vmatprep.mubr.f32.mxu0 0.0
      %3361 = vmatmul.mubr.f32.gmra.mrb[0].mxu0 %v710
      %v3362 = vpop.f32.mrb[0].mxu0
      %v3363 = vadd.f32 0.0, %v3362
      %v3364 = vpop.f32.mrb[0].mxu0
      %3365 = vmatprep.mubr.f32.mxu0 0.0
      %3366 = vmatmul.mubr.f32.gmra.mrb[0].mxu0 %v712
      %v3367 = vpop.f32.mrb[0].mxu0
      %v3368 = vadd.f32 0.0, %v3367
      %v3369 = vpop.f32.mrb[0].mxu0
      %3370 = vmatprep.mubr.f32.mxu0 0.0
      %3371 = vmatmul.mubr.f32.gmra.mrb[0].mxu0 %v714
      %v3372 = vpop.f32.mrb[0].mxu0
      %v3373 = vadd.f32 0.0, %v3372
      %v3374 = vpop.f32.mrb[0].mxu0
      %3375 = vmatprep.mubr.f32.mxu0 0.0
      %3376 = vmatmul.mubr.f32.gmra.mrb[0].mxu0 %v716
      %v3377 = vpop.f32.mrb[0].mxu0
      %v3378 = vadd.f32 0.0, %v3377
      %v3379 = vpop.f32.mrb[0].mxu0
      %3380 = vmatprep.mubr.f32.mxu0 0.0
      %3381 = vmatmul.mubr.f32.gmra.mrb[0].mxu0 %v2970
      %v3382 = vpop.f32.mrb[0].mxu0
      %v3383 = vadd.f32 0.0, %v3382
      %v3384 = vpop.f32.mrb[0].mxu0
      %3385 = vmatprep.mubr.f32.mxu0 0.0
      %3386 = vmatmul.mubr.f32.gmra.mrb[0].mxu0 %v720
      %v3387 = vpop.f32.mrb[0].mxu0
      %v3388 = vadd.f32 0.0, %v3387
      %v3389 = vpop.f32.mrb[0].mxu0
      %3390 = vmatprep.mubr.f32.mxu0 0.0
      %3391 = vmatmul.mubr.f32.gmra.mrb[0].mxu0 %v722
      %v3392 = vpop.f32.mrb[0].mxu0
      %v3393 = vadd.f32 0.0, %v3392
      %v3394 = vpop.f32.mrb[0].mxu0
      %3395 = vmatprep.mubr.f32.mxu0 0.0
      %3396 = vmatmul.mubr.f32.gmra.mrb[0].mxu0 %v724
      %v3397 = vpop.f32.mrb[0].mxu0
      %v3398 = vadd.f32 0.0, %v3397
      %v3399 = vpop.f32.mrb[0].mxu0
      %3400 = vmatprep.mubr.f32.mxu0 0.0
      %3401 = vmatmul.mubr.f32.gmra.mrb[0].mxu0 %v726
      %v3402 = vpop.f32.mrb[0].mxu0
      %v3403 = vadd.f32 0.0, %v3402
      %v3404 = vpop.f32.mrb[0].mxu0
      %3405 = vmatprep.mubr.f32.mxu0 0.0
      %3406 = vmatmul.mubr.f32.gmra.mrb[0].mxu0 %v728
      %v3407 = vpop.f32.mrb[0].mxu0
      %v3408 = vadd.f32 0.0, %v3407
      %v3409 = vpop.f32.mrb[0].mxu0
      %3410 = vmatprep.mubr.f32.mxu0 0.0
      %3411 = vmatmul.mubr.f32.gmra.mrb[0].mxu0 %v730
      %v3412 = vpop.f32.mrb[0].mxu0
      %v3413 = vadd.f32 0.0, %v3412
      %v3414 = vpop.f32.mrb[0].mxu0
      %3415 = vmatprep.mubr.f32.mxu0 0.0
      %3416 = vmatmul.mubr.f32.gmra.mrb[0].mxu0 %v732
      %v3417 = vpop.f32.mrb[0].mxu0
      %v3418 = vadd.f32 0.0, %v3417
      %v3419 = vpop.f32.mrb[0].mxu0
      %3420 = vmatprep.mubr.f32.mxu0 0.0
      %3421 = vmatmul.mubr.f32.gmra.mrb[0].mxu0 %v2972
      %v3422 = vpop.f32.mrb[0].mxu0
      %v3423 = vadd.f32 0.0, %v3422
      %v3424 = vpop.f32.mrb[0].mxu0
      %3425 = vmatprep.mubr.f32.mxu0 0.0
      %3426 = vmatmul.mubr.f32.gmra.mrb[0].mxu0 %v736
      %v3427 = vpop.f32.mrb[0].mxu0
      %v3428 = vadd.f32 0.0, %v3427
      %v3429 = vpop.f32.mrb[0].mxu0
      %3430 = vmatprep.mubr.f32.mxu0 0.0
      %3431 = vmatmul.mubr.f32.gmra.mrb[0].mxu0 %v738
      %v3432 = vpop.f32.mrb[0].mxu0
      %v3433 = vadd.f32 0.0, %v3432
      %v3434 = vpop.f32.mrb[0].mxu0
      %3435 = vmatprep.mubr.f32.mxu0 0.0
      %3436 = vmatmul.mubr.f32.gmra.mrb[0].mxu0 %v740
      %v3437 = vpop.f32.mrb[0].mxu0
      %v3438 = vadd.f32 0.0, %v3437
      %v3439 = vpop.f32.mrb[0].mxu0
      %3440 = vmatprep.mubr.f32.mxu0 0.0
      %3441 = vmatmul.mubr.f32.gmra.mrb[0].mxu0 %v742
      %v3442 = vpop.f32.mrb[0].mxu0
      %v3443 = vadd.f32 0.0, %v3442
      %v3444 = vpop.f32.mrb[0].mxu0
      %3445 = vmatprep.mubr.f32.mxu0 0.0
      %3446 = vmatmul.mubr.f32.gmra.mrb[0].mxu0 %v744
      %v3447 = vpop.f32.mrb[0].mxu0
      %v3448 = vadd.f32 0.0, %v3447
      %v3449 = vpop.f32.mrb[0].mxu0
      %3450 = vmatprep.mubr.f32.mxu0 0.0
      %3451 = vmatmul.mubr.f32.gmra.mrb[0].mxu0 %v746
      %v3452 = vpop.f32.mrb[0].mxu0
      %v3453 = vadd.f32 0.0, %v3452
      %v3454 = vpop.f32.mrb[0].mxu0
      %3455 = vmatprep.mubr.f32.mxu0 0.0
      %3456 = vmatmul.mubr.f32.gmra.mrb[0].mxu0 %v748
      %v3457 = vpop.f32.mrb[0].mxu0
      %v3458 = vadd.f32 0.0, %v3457
      %v3459 = vpop.f32.mrb[0].mxu0
      %3460 = vmatprep.mubr.f32.mxu0 0.0
      %3461 = vmatmul.mubr.f32.gmra.mrb[0].mxu0 %v2974
      %v3462 = vpop.f32.mrb[0].mxu0
      %v3463 = vadd.f32 0.0, %v3462
      %v3464 = vpop.f32.mrb[0].mxu0
      %3465 = vdwg.mxu0
      %v3466 = vadd.f32 %v2918, %v3308
      %v3467 = vadd.f32 %v2919, %v3313
      %v3468 = vadd.f32 %v2920, %v3318
      %v3469 = vadd.f32 %v2921, %v3323
      %v3470 = vadd.f32 %v2922, %v3328
      %v3471 = vadd.f32 %v2923, %v3333
      %v3472 = vadd.f32 %v2924, %v3338
      %v3473 = vadd.f32 %v2925, %v3343
      %v3474 = vadd.f32 %v2926, %v3348
      %v3475 = vadd.f32 %v2927, %v3353
      %v3476 = vadd.f32 %v2928, %v3358
      %v3477 = vadd.f32 %v2929, %v3363
      %v3478 = vadd.f32 %v2930, %v3368
      %v3479 = vadd.f32 %v2931, %v3373
      %v3480 = vadd.f32 %v2932, %v3378
      %v3481 = vadd.f32 %v2933, %v3383
      %v3482 = vadd.f32 %v2934, %v3388
      %v3483 = vadd.f32 %v2935, %v3393
      %v3484 = vadd.f32 %v2936, %v3398
      %v3485 = vadd.f32 %v2937, %v3403
      %v3486 = vadd.f32 %v2938, %v3408
      %v3487 = vadd.f32 %v2939, %v3413
      %v3488 = vadd.f32 %v2940, %v3418
      %v3489 = vadd.f32 %v2941, %v3423
      %v3490 = vadd.f32 %v2942, %v3428
      %v3491 = vadd.f32 %v2943, %v3433
      %v3492 = vadd.f32 %v2944, %v3438
      %v3493 = vadd.f32 %v2945, %v3443
      %v3494 = vadd.f32 %v2946, %v3448
      %v3495 = vadd.f32 %v2947, %v3453
      %v3496 = vadd.f32 %v2948, %v3458
      %v3497 = vadd.f32 %v2949, %v3463
      %v3498 = vrot.slane %v457, 2
      %v3499 = vrot.slane %v458, 2
      %v3500 = vsel %vm1729, %v3498, %v3499
      %v3501 = vrot.slane %v477, 2
      %v3502 = vrot.slane %v478, 2
      %v3503 = vsel %vm1729, %v3501, %v3502
      %v3504 = vrot.slane %v497, 2
      %v3505 = vrot.slane %v498, 2
      %v3506 = vsel %vm1729, %v3504, %v3505
      %v3507 = vrot.slane %v517, 2
      %v3508 = vrot.slane %v518, 2
      %v3509 = vsel %vm1729, %v3507, %v3508
      %s3510 = scalar_lea.vmem %s1, 20
      %v3511 = vld [vmem:[%s3510] sm:$0xf]
      %v3512 = vsel %vm276, %v3500, 0
      %v3514 = vsel %vm276, %v3503, 0
      %v3516 = vsel %vm276, %v3506, 0
      %v3518 = vsel %vm276, %v3509, 0
      %v3521 = vsel %vm750, %v3511, 0
      %3523 = vmatprep.subr.mxu0 0.0
      %3524 = vmatpush1.msra.mxu0 %v3521
      %3525 = vmatprep.subr.mxu0 0.0
      %3526 = vmatpush1.msra.mxu0 0.0
      %3527 = vmatprep.subr.mxu0 0.0
      %3528 = vmatpush1.msra.mxu0 0.0
      %3529 = vmatprep.subr.mxu0 0.0
      %3530 = vmatpush1.msra.mxu0 0.0
      %3531 = vmatprep.subr.mxu0 0.0
      %3532 = vmatpush1.msra.mxu0 0.0
      %3533 = vmatprep.subr.mxu0 0.0
      %3534 = vmatpush1.msra.mxu0 0.0
      %3535 = vmatprep.subr.mxu0 0.0
      %3536 = vmatpush1.msra.mxu0 0.0
      %3537 = vmatprep.subr.mxu0 0.0
      %3538 = vmatpush1.msra.mxu0 0.0
      %3539 = vmatprep.subr.mxu0 0.0
      %3540 = vmatpush1.msra.mxu0 0.0
      %3541 = vmatprep.subr.mxu0 0.0
      %3542 = vmatpush1.msra.mxu0 0.0
      %3543 = vmatprep.subr.mxu0 0.0
      %3544 = vmatpush1.msra.mxu0 0.0
      %3545 = vmatprep.subr.mxu0 0.0
      %3546 = vmatpush1.msra.mxu0 0.0
      %3547 = vmatprep.subr.mxu0 0.0
      %3548 = vmatpush1.msra.mxu0 0.0
      %3549 = vmatprep.subr.mxu0 0.0
      %3550 = vmatpush1.msra.mxu0 0.0
      %3551 = vmatprep.subr.mxu0 0.0
      %3552 = vmatpush1.msra.mxu0 0.0
      %3553 = vmatprep.subr.mxu0 0.0
      %3554 = vmatpush1.msra.mxu0 0.0
      %3555 = vmatprep.subr.mxu0 0.0
      %3556 = vmatpush1.msra.mxu0 0.0
      %3557 = vmatprep.subr.mxu0 0.0
      %3558 = vmatpush1.msra.mxu0 0.0
      %3559 = vmatprep.subr.mxu0 0.0
      %3560 = vmatpush1.msra.mxu0 0.0
      %3561 = vmatprep.subr.mxu0 0.0
      %3562 = vmatpush1.msra.mxu0 0.0
      %3563 = vmatprep.subr.mxu0 0.0
      %3564 = vmatpush1.msra.mxu0 0.0
      %3565 = vmatprep.subr.mxu0 0.0
      %3566 = vmatpush1.msra.mxu0 0.0
      %3567 = vmatprep.subr.mxu0 0.0
      %3568 = vmatpush1.msra.mxu0 0.0
      %3569 = vmatprep.subr.mxu0 0.0
      %3570 = vmatpush1.msra.mxu0 0.0
      %3571 = vmatprep.subr.mxu0 0.0
      %3572 = vmatpush1.msra.mxu0 0.0
      %3573 = vmatprep.subr.mxu0 0.0
      %3574 = vmatpush1.msra.mxu0 0.0
      %3575 = vmatprep.subr.mxu0 0.0
      %3576 = vmatpush1.msra.mxu0 0.0
      %3577 = vmatprep.subr.mxu0 0.0
      %3578 = vmatpush1.msra.mxu0 0.0
      %3579 = vmatprep.subr.mxu0 0.0
      %3580 = vmatpush1.msra.mxu0 0.0
      %3581 = vmatprep.subr.mxu0 0.0
      %3582 = vmatpush1.msra.mxu0 0.0
      %3583 = vmatprep.subr.mxu0 0.0
      %3584 = vmatpush1.msra.mxu0 0.0
      %3585 = vmatprep.subr.mxu0 0.0
      %3586 = vmatpush1.msra.mxu0 0.0
      %3587 = vmatprep.mubr.f32.mxu0 0.0
      %3588 = vmatmul.mubr.f32.gmra.mrb[0].mxu0 %v1830
      %v3589 = vpop.f32.mrb[0].mxu0
      %v3590 = vadd.f32 0.0, %v3589
      %v3591 = vpop.f32.mrb[0].mxu0
      %3592 = vmatprep.mubr.f32.mxu0 0.0
      %3593 = vmatmul.mubr.f32.gmra.mrb[0].mxu0 %v1832
      %v3594 = vpop.f32.mrb[0].mxu0
      %v3595 = vadd.f32 0.0, %v3594
      %v3596 = vpop.f32.mrb[0].mxu0
      %3597 = vmatprep.mubr.f32.mxu0 0.0
      %3598 = vmatmul.mubr.f32.gmra.mrb[0].mxu0 %v1834
      %v3599 = vpop.f32.mrb[0].mxu0
      %v3600 = vadd.f32 0.0, %v3599
      %v3601 = vpop.f32.mrb[0].mxu0
      %3602 = vmatprep.mubr.f32.mxu0 0.0
      %3603 = vmatmul.mubr.f32.gmra.mrb[0].mxu0 %v1836
      %v3604 = vpop.f32.mrb[0].mxu0
      %v3605 = vadd.f32 0.0, %v3604
      %v3606 = vpop.f32.mrb[0].mxu0
      %3607 = vmatprep.mubr.f32.mxu0 0.0
      %3608 = vmatmul.mubr.f32.gmra.mrb[0].mxu0 %v1838
      %v3609 = vpop.f32.mrb[0].mxu0
      %v3610 = vadd.f32 0.0, %v3609
      %v3611 = vpop.f32.mrb[0].mxu0
      %3612 = vmatprep.mubr.f32.mxu0 0.0
      %3613 = vmatmul.mubr.f32.gmra.mrb[0].mxu0 %v1840
      %v3614 = vpop.f32.mrb[0].mxu0
      %v3615 = vadd.f32 0.0, %v3614
      %v3616 = vpop.f32.mrb[0].mxu0
      %3617 = vmatprep.mubr.f32.mxu0 0.0
      %3618 = vmatmul.mubr.f32.gmra.mrb[0].mxu0 %v1842
      %v3619 = vpop.f32.mrb[0].mxu0
      %v3620 = vadd.f32 0.0, %v3619
      %v3621 = vpop.f32.mrb[0].mxu0
      %3622 = vmatprep.mubr.f32.mxu0 0.0
      %3623 = vmatmul.mubr.f32.gmra.mrb[0].mxu0 %v3512
      %v3624 = vpop.f32.mrb[0].mxu0
      %v3625 = vadd.f32 0.0, %v3624
      %v3626 = vpop.f32.mrb[0].mxu0
      %3627 = vmatprep.mubr.f32.mxu0 0.0
      %3628 = vmatmul.mubr.f32.gmra.mrb[0].mxu0 %v1846
      %v3629 = vpop.f32.mrb[0].mxu0
      %v3630 = vadd.f32 0.0, %v3629
      %v3631 = vpop.f32.mrb[0].mxu0
      %3632 = vmatprep.mubr.f32.mxu0 0.0
      %3633 = vmatmul.mubr.f32.gmra.mrb[0].mxu0 %v1848
      %v3634 = vpop.f32.mrb[0].mxu0
      %v3635 = vadd.f32 0.0, %v3634
      %v3636 = vpop.f32.mrb[0].mxu0
      %3637 = vmatprep.mubr.f32.mxu0 0.0
      %3638 = vmatmul.mubr.f32.gmra.mrb[0].mxu0 %v1850
      %v3639 = vpop.f32.mrb[0].mxu0
      %v3640 = vadd.f32 0.0, %v3639
      %v3641 = vpop.f32.mrb[0].mxu0
      %3642 = vmatprep.mubr.f32.mxu0 0.0
      %3643 = vmatmul.mubr.f32.gmra.mrb[0].mxu0 %v1852
      %v3644 = vpop.f32.mrb[0].mxu0
      %v3645 = vadd.f32 0.0, %v3644
      %v3646 = vpop.f32.mrb[0].mxu0
      %3647 = vmatprep.mubr.f32.mxu0 0.0
      %3648 = vmatmul.mubr.f32.gmra.mrb[0].mxu0 %v1854
      %v3649 = vpop.f32.mrb[0].mxu0
      %v3650 = vadd.f32 0.0, %v3649
      %v3651 = vpop.f32.mrb[0].mxu0
      %3652 = vmatprep.mubr.f32.mxu0 0.0
      %3653 = vmatmul.mubr.f32.gmra.mrb[0].mxu0 %v1856
      %v3654 = vpop.f32.mrb[0].mxu0
      %v3655 = vadd.f32 0.0, %v3654
      %v3656 = vpop.f32.mrb[0].mxu0
      %3657 = vmatprep.mubr.f32.mxu0 0.0
      %3658 = vmatmul.mubr.f32.gmra.mrb[0].mxu0 %v1858
      %v3659 = vpop.f32.mrb[0].mxu0
      %v3660 = vadd.f32 0.0, %v3659
      %v3661 = vpop.f32.mrb[0].mxu0
      %3662 = vmatprep.mubr.f32.mxu0 0.0
      %3663 = vmatmul.mubr.f32.gmra.mrb[0].mxu0 %v3514
      %v3664 = vpop.f32.mrb[0].mxu0
      %v3665 = vadd.f32 0.0, %v3664
      %v3666 = vpop.f32.mrb[0].mxu0
      %3667 = vmatprep.mubr.f32.mxu0 0.0
      %3668 = vmatmul.mubr.f32.gmra.mrb[0].mxu0 %v1862
      %v3669 = vpop.f32.mrb[0].mxu0
      %v3670 = vadd.f32 0.0, %v3669
      %v3671 = vpop.f32.mrb[0].mxu0
      %3672 = vmatprep.mubr.f32.mxu0 0.0
      %3673 = vmatmul.mubr.f32.gmra.mrb[0].mxu0 %v1864
      %v3674 = vpop.f32.mrb[0].mxu0
      %v3675 = vadd.f32 0.0, %v3674
      %v3676 = vpop.f32.mrb[0].mxu0
      %3677 = vmatprep.mubr.f32.mxu0 0.0
      %3678 = vmatmul.mubr.f32.gmra.mrb[0].mxu0 %v1866
      %v3679 = vpop.f32.mrb[0].mxu0
      %v3680 = vadd.f32 0.0, %v3679
      %v3681 = vpop.f32.mrb[0].mxu0
      %3682 = vmatprep.mubr.f32.mxu0 0.0
      %3683 = vmatmul.mubr.f32.gmra.mrb[0].mxu0 %v1868
      %v3684 = vpop.f32.mrb[0].mxu0
      %v3685 = vadd.f32 0.0, %v3684
      %v3686 = vpop.f32.mrb[0].mxu0
      %3687 = vmatprep.mubr.f32.mxu0 0.0
      %3688 = vmatmul.mubr.f32.gmra.mrb[0].mxu0 %v1870
      %v3689 = vpop.f32.mrb[0].mxu0
      %v3690 = vadd.f32 0.0, %v3689
      %v3691 = vpop.f32.mrb[0].mxu0
      %3692 = vmatprep.mubr.f32.mxu0 0.0
      %3693 = vmatmul.mubr.f32.gmra.mrb[0].mxu0 %v1872
      %v3694 = vpop.f32.mrb[0].mxu0
      %v3695 = vadd.f32 0.0, %v3694
      %v3696 = vpop.f32.mrb[0].mxu0
      %3697 = vmatprep.mubr.f32.mxu0 0.0
      %3698 = vmatmul.mubr.f32.gmra.mrb[0].mxu0 %v1874
      %v3699 = vpop.f32.mrb[0].mxu0
      %v3700 = vadd.f32 0.0, %v3699
      %v3701 = vpop.f32.mrb[0].mxu0
      %3702 = vmatprep.mubr.f32.mxu0 0.0
      %3703 = vmatmul.mubr.f32.gmra.mrb[0].mxu0 %v3516
      %v3704 = vpop.f32.mrb[0].mxu0
      %v3705 = vadd.f32 0.0, %v3704
      %v3706 = vpop.f32.mrb[0].mxu0
      %3707 = vmatprep.mubr.f32.mxu0 0.0
      %3708 = vmatmul.mubr.f32.gmra.mrb[0].mxu0 %v1878
      %v3709 = vpop.f32.mrb[0].mxu0
      %v3710 = vadd.f32 0.0, %v3709
      %v3711 = vpop.f32.mrb[0].mxu0
      %3712 = vmatprep.mubr.f32.mxu0 0.0
      %3713 = vmatmul.mubr.f32.gmra.mrb[0].mxu0 %v1880
      %v3714 = vpop.f32.mrb[0].mxu0
      %v3715 = vadd.f32 0.0, %v3714
      %v3716 = vpop.f32.mrb[0].mxu0
      %3717 = vmatprep.mubr.f32.mxu0 0.0
      %3718 = vmatmul.mubr.f32.gmra.mrb[0].mxu0 %v1882
      %v3719 = vpop.f32.mrb[0].mxu0
      %v3720 = vadd.f32 0.0, %v3719
      %v3721 = vpop.f32.mrb[0].mxu0
      %3722 = vmatprep.mubr.f32.mxu0 0.0
      %3723 = vmatmul.mubr.f32.gmra.mrb[0].mxu0 %v1884
      %v3724 = vpop.f32.mrb[0].mxu0
      %v3725 = vadd.f32 0.0, %v3724
      %v3726 = vpop.f32.mrb[0].mxu0
      %3727 = vmatprep.mubr.f32.mxu0 0.0
      %3728 = vmatmul.mubr.f32.gmra.mrb[0].mxu0 %v1886
      %v3729 = vpop.f32.mrb[0].mxu0
      %v3730 = vadd.f32 0.0, %v3729
      %v3731 = vpop.f32.mrb[0].mxu0
      %3732 = vmatprep.mubr.f32.mxu0 0.0
      %3733 = vmatmul.mubr.f32.gmra.mrb[0].mxu0 %v1888
      %v3734 = vpop.f32.mrb[0].mxu0
      %v3735 = vadd.f32 0.0, %v3734
      %v3736 = vpop.f32.mrb[0].mxu0
      %3737 = vmatprep.mubr.f32.mxu0 0.0
      %3738 = vmatmul.mubr.f32.gmra.mrb[0].mxu0 %v1890
      %v3739 = vpop.f32.mrb[0].mxu0
      %v3740 = vadd.f32 0.0, %v3739
      %v3741 = vpop.f32.mrb[0].mxu0
      %3742 = vmatprep.mubr.f32.mxu0 0.0
      %3743 = vmatmul.mubr.f32.gmra.mrb[0].mxu0 %v3518
      %v3744 = vpop.f32.mrb[0].mxu0
      %v3745 = vadd.f32 0.0, %v3744
      %v3746 = vpop.f32.mrb[0].mxu0
      %3747 = vdwg.mxu0
      %v3748 = vadd.f32 %v3204, %v3590
      %v3749 = vadd.f32 %v3205, %v3595
      %v3750 = vadd.f32 %v3206, %v3600
      %v3751 = vadd.f32 %v3207, %v3605
      %v3752 = vadd.f32 %v3208, %v3610
      %v3753 = vadd.f32 %v3209, %v3615
      %v3754 = vadd.f32 %v3210, %v3620
      %v3755 = vadd.f32 %v3211, %v3625
      %v3756 = vadd.f32 %v3212, %v3630
      %v3757 = vadd.f32 %v3213, %v3635
      %v3758 = vadd.f32 %v3214, %v3640
      %v3759 = vadd.f32 %v3215, %v3645
      %v3760 = vadd.f32 %v3216, %v3650
      %v3761 = vadd.f32 %v3217, %v3655
      %v3762 = vadd.f32 %v3218, %v3660
      %v3763 = vadd.f32 %v3219, %v3665
      %v3764 = vadd.f32 %v3220, %v3670
      %v3765 = vadd.f32 %v3221, %v3675
      %v3766 = vadd.f32 %v3222, %v3680
      %v3767 = vadd.f32 %v3223, %v3685
      %v3768 = vadd.f32 %v3224, %v3690
      %v3769 = vadd.f32 %v3225, %v3695
      %v3770 = vadd.f32 %v3226, %v3700
      %v3771 = vadd.f32 %v3227, %v3705
      %v3772 = vadd.f32 %v3228, %v3710
      %v3773 = vadd.f32 %v3229, %v3715
      %v3774 = vadd.f32 %v3230, %v3720
      %v3775 = vadd.f32 %v3231, %v3725
      %v3776 = vadd.f32 %v3232, %v3730
      %v3777 = vadd.f32 %v3233, %v3735
      %v3778 = vadd.f32 %v3234, %v3740
      %v3779 = vadd.f32 %v3235, %v3745
      %s3780 = scalar_lea.vmem %s2, 20
      %v3781 = vld [vmem:[%s3780] sm:$0xf]
      %v3783 = vsel %vm750, %v3781, 0
      %3785 = vmatprep.subr.mxu0 0.0
      %3786 = vmatpush1.msra.mxu0 %v3783
      %3787 = vmatprep.subr.mxu0 0.0
      %3788 = vmatpush1.msra.mxu0 0.0
      %3789 = vmatprep.subr.mxu0 0.0
      %3790 = vmatpush1.msra.mxu0 0.0
      %3791 = vmatprep.subr.mxu0 0.0
      %3792 = vmatpush1.msra.mxu0 0.0
      %3793 = vmatprep.subr.mxu0 0.0
      %3794 = vmatpush1.msra.mxu0 0.0
      %3795 = vmatprep.subr.mxu0 0.0
      %3796 = vmatpush1.msra.mxu0 0.0
      %3797 = vmatprep.subr.mxu0 0.0
      %3798 = vmatpush1.msra.mxu0 0.0
      %3799 = vmatprep.subr.mxu0 0.0
      %3800 = vmatpush1.msra.mxu0 0.0
      %3801 = vmatprep.subr.mxu0 0.0
      %3802 = vmatpush1.msra.mxu0 0.0
      %3803 = vmatprep.subr.mxu0 0.0
      %3804 = vmatpush1.msra.mxu0 0.0
      %3805 = vmatprep.subr.mxu0 0.0
      %3806 = vmatpush1.msra.mxu0 0.0
      %3807 = vmatprep.subr.mxu0 0.0
      %3808 = vmatpush1.msra.mxu0 0.0
      %3809 = vmatprep.subr.mxu0 0.0
      %3810 = vmatpush1.msra.mxu0 0.0
      %3811 = vmatprep.subr.mxu0 0.0
      %3812 = vmatpush1.msra.mxu0 0.0
      %3813 = vmatprep.subr.mxu0 0.0
      %3814 = vmatpush1.msra.mxu0 0.0
      %3815 = vmatprep.subr.mxu0 0.0
      %3816 = vmatpush1.msra.mxu0 0.0
      %3817 = vmatprep.subr.mxu0 0.0
      %3818 = vmatpush1.msra.mxu0 0.0
      %3819 = vmatprep.subr.mxu0 0.0
      %3820 = vmatpush1.msra.mxu0 0.0
      %3821 = vmatprep.subr.mxu0 0.0
      %3822 = vmatpush1.msra.mxu0 0.0
      %3823 = vmatprep.subr.mxu0 0.0
      %3824 = vmatpush1.msra.mxu0 0.0
      %3825 = vmatprep.subr.mxu0 0.0
      %3826 = vmatpush1.msra.mxu0 0.0
      %3827 = vmatprep.subr.mxu0 0.0
      %3828 = vmatpush1.msra.mxu0 0.0
      %3829 = vmatprep.subr.mxu0 0.0
      %3830 = vmatpush1.msra.mxu0 0.0
      %3831 = vmatprep.subr.mxu0 0.0
      %3832 = vmatpush1.msra.mxu0 0.0
      %3833 = vmatprep.subr.mxu0 0.0
      %3834 = vmatpush1.msra.mxu0 0.0
      %3835 = vmatprep.subr.mxu0 0.0
      %3836 = vmatpush1.msra.mxu0 0.0
      %3837 = vmatprep.subr.mxu0 0.0
      %3838 = vmatpush1.msra.mxu0 0.0
      %3839 = vmatprep.subr.mxu0 0.0
      %3840 = vmatpush1.msra.mxu0 0.0
      %3841 = vmatprep.subr.mxu0 0.0
      %3842 = vmatpush1.msra.mxu0 0.0
      %3843 = vmatprep.subr.mxu0 0.0
      %3844 = vmatpush1.msra.mxu0 0.0
      %3845 = vmatprep.subr.mxu0 0.0
      %3846 = vmatpush1.msra.mxu0 0.0
      %3847 = vmatprep.subr.mxu0 0.0
      %3848 = vmatpush1.msra.mxu0 0.0
      %3849 = vmatprep.mubr.f32.mxu0 0.0
      %3850 = vmatmul.mubr.f32.gmra.mrb[0].mxu0 %v1830
      %v3851 = vpop.f32.mrb[0].mxu0
      %v3852 = vadd.f32 0.0, %v3851
      %v3853 = vpop.f32.mrb[0].mxu0
      %3854 = vmatprep.mubr.f32.mxu0 0.0
      %3855 = vmatmul.mubr.f32.gmra.mrb[0].mxu0 %v1832
      %v3856 = vpop.f32.mrb[0].mxu0
      %v3857 = vadd.f32 0.0, %v3856
      %v3858 = vpop.f32.mrb[0].mxu0
      %3859 = vmatprep.mubr.f32.mxu0 0.0
      %3860 = vmatmul.mubr.f32.gmra.mrb[0].mxu0 %v1834
      %v3861 = vpop.f32.mrb[0].mxu0
      %v3862 = vadd.f32 0.0, %v3861
      %v3863 = vpop.f32.mrb[0].mxu0
      %3864 = vmatprep.mubr.f32.mxu0 0.0
      %3865 = vmatmul.mubr.f32.gmra.mrb[0].mxu0 %v1836
      %v3866 = vpop.f32.mrb[0].mxu0
      %v3867 = vadd.f32 0.0, %v3866
      %v3868 = vpop.f32.mrb[0].mxu0
      %3869 = vmatprep.mubr.f32.mxu0 0.0
      %3870 = vmatmul.mubr.f32.gmra.mrb[0].mxu0 %v1838
      %v3871 = vpop.f32.mrb[0].mxu0
      %v3872 = vadd.f32 0.0, %v3871
      %v3873 = vpop.f32.mrb[0].mxu0
      %3874 = vmatprep.mubr.f32.mxu0 0.0
      %3875 = vmatmul.mubr.f32.gmra.mrb[0].mxu0 %v1840
      %v3876 = vpop.f32.mrb[0].mxu0
      %v3877 = vadd.f32 0.0, %v3876
      %v3878 = vpop.f32.mrb[0].mxu0
      %3879 = vmatprep.mubr.f32.mxu0 0.0
      %3880 = vmatmul.mubr.f32.gmra.mrb[0].mxu0 %v1842
      %v3881 = vpop.f32.mrb[0].mxu0
      %v3882 = vadd.f32 0.0, %v3881
      %v3883 = vpop.f32.mrb[0].mxu0
      %3884 = vmatprep.mubr.f32.mxu0 0.0
      %3885 = vmatmul.mubr.f32.gmra.mrb[0].mxu0 %v3512
      %v3886 = vpop.f32.mrb[0].mxu0
      %v3887 = vadd.f32 0.0, %v3886
      %v3888 = vpop.f32.mrb[0].mxu0
      %3889 = vmatprep.mubr.f32.mxu0 0.0
      %3890 = vmatmul.mubr.f32.gmra.mrb[0].mxu0 %v1846
      %v3891 = vpop.f32.mrb[0].mxu0
      %v3892 = vadd.f32 0.0, %v3891
      %v3893 = vpop.f32.mrb[0].mxu0
      %3894 = vmatprep.mubr.f32.mxu0 0.0
      %3895 = vmatmul.mubr.f32.gmra.mrb[0].mxu0 %v1848
      %v3896 = vpop.f32.mrb[0].mxu0
      %v3897 = vadd.f32 0.0, %v3896
      %v3898 = vpop.f32.mrb[0].mxu0
      %3899 = vmatprep.mubr.f32.mxu0 0.0
      %3900 = vmatmul.mubr.f32.gmra.mrb[0].mxu0 %v1850
      %v3901 = vpop.f32.mrb[0].mxu0
      %v3902 = vadd.f32 0.0, %v3901
      %v3903 = vpop.f32.mrb[0].mxu0
      %3904 = vmatprep.mubr.f32.mxu0 0.0
      %3905 = vmatmul.mubr.f32.gmra.mrb[0].mxu0 %v1852
      %v3906 = vpop.f32.mrb[0].mxu0
      %v3907 = vadd.f32 0.0, %v3906
      %v3908 = vpop.f32.mrb[0].mxu0
      %3909 = vmatprep.mubr.f32.mxu0 0.0
      %3910 = vmatmul.mubr.f32.gmra.mrb[0].mxu0 %v1854
      %v3911 = vpop.f32.mrb[0].mxu0
      %v3912 = vadd.f32 0.0, %v3911
      %v3913 = vpop.f32.mrb[0].mxu0
      %3914 = vmatprep.mubr.f32.mxu0 0.0
      %3915 = vmatmul.mubr.f32.gmra.mrb[0].mxu0 %v1856
      %v3916 = vpop.f32.mrb[0].mxu0
      %v3917 = vadd.f32 0.0, %v3916
      %v3918 = vpop.f32.mrb[0].mxu0
      %3919 = vmatprep.mubr.f32.mxu0 0.0
      %3920 = vmatmul.mubr.f32.gmra.mrb[0].mxu0 %v1858
      %v3921 = vpop.f32.mrb[0].mxu0
      %v3922 = vadd.f32 0.0, %v3921
      %v3923 = vpop.f32.mrb[0].mxu0
      %3924 = vmatprep.mubr.f32.mxu0 0.0
      %3925 = vmatmul.mubr.f32.gmra.mrb[0].mxu0 %v3514
      %v3926 = vpop.f32.mrb[0].mxu0
      %v3927 = vadd.f32 0.0, %v3926
      %v3928 = vpop.f32.mrb[0].mxu0
      %3929 = vmatprep.mubr.f32.mxu0 0.0
      %3930 = vmatmul.mubr.f32.gmra.mrb[0].mxu0 %v1862
      %v3931 = vpop.f32.mrb[0].mxu0
      %v3932 = vadd.f32 0.0, %v3931
      %v3933 = vpop.f32.mrb[0].mxu0
      %3934 = vmatprep.mubr.f32.mxu0 0.0
      %3935 = vmatmul.mubr.f32.gmra.mrb[0].mxu0 %v1864
      %v3936 = vpop.f32.mrb[0].mxu0
      %v3937 = vadd.f32 0.0, %v3936
      %v3938 = vpop.f32.mrb[0].mxu0
      %3939 = vmatprep.mubr.f32.mxu0 0.0
      %3940 = vmatmul.mubr.f32.gmra.mrb[0].mxu0 %v1866
      %v3941 = vpop.f32.mrb[0].mxu0
      %v3942 = vadd.f32 0.0, %v3941
      %v3943 = vpop.f32.mrb[0].mxu0
      %3944 = vmatprep.mubr.f32.mxu0 0.0
      %3945 = vmatmul.mubr.f32.gmra.mrb[0].mxu0 %v1868
      %v3946 = vpop.f32.mrb[0].mxu0
      %v3947 = vadd.f32 0.0, %v3946
      %v3948 = vpop.f32.mrb[0].mxu0
      %3949 = vmatprep.mubr.f32.mxu0 0.0
      %3950 = vmatmul.mubr.f32.gmra.mrb[0].mxu0 %v1870
      %v3951 = vpop.f32.mrb[0].mxu0
      %v3952 = vadd.f32 0.0, %v3951
      %v3953 = vpop.f32.mrb[0].mxu0
      %3954 = vmatprep.mubr.f32.mxu0 0.0
      %3955 = vmatmul.mubr.f32.gmra.mrb[0].mxu0 %v1872
      %v3956 = vpop.f32.mrb[0].mxu0
      %v3957 = vadd.f32 0.0, %v3956
      %v3958 = vpop.f32.mrb[0].mxu0
      %3959 = vmatprep.mubr.f32.mxu0 0.0
      %3960 = vmatmul.mubr.f32.gmra.mrb[0].mxu0 %v1874
      %v3961 = vpop.f32.mrb[0].mxu0
      %v3962 = vadd.f32 0.0, %v3961
      %v3963 = vpop.f32.mrb[0].mxu0
      %3964 = vmatprep.mubr.f32.mxu0 0.0
      %3965 = vmatmul.mubr.f32.gmra.mrb[0].mxu0 %v3516
      %v3966 = vpop.f32.mrb[0].mxu0
      %v3967 = vadd.f32 0.0, %v3966
      %v3968 = vpop.f32.mrb[0].mxu0
      %3969 = vmatprep.mubr.f32.mxu0 0.0
      %3970 = vmatmul.mubr.f32.gmra.mrb[0].mxu0 %v1878
      %v3971 = vpop.f32.mrb[0].mxu0
      %v3972 = vadd.f32 0.0, %v3971
      %v3973 = vpop.f32.mrb[0].mxu0
      %3974 = vmatprep.mubr.f32.mxu0 0.0
      %3975 = vmatmul.mubr.f32.gmra.mrb[0].mxu0 %v1880
      %v3976 = vpop.f32.mrb[0].mxu0
      %v3977 = vadd.f32 0.0, %v3976
      %v3978 = vpop.f32.mrb[0].mxu0
      %3979 = vmatprep.mubr.f32.mxu0 0.0
      %3980 = vmatmul.mubr.f32.gmra.mrb[0].mxu0 %v1882
      %v3981 = vpop.f32.mrb[0].mxu0
      %v3982 = vadd.f32 0.0, %v3981
      %v3983 = vpop.f32.mrb[0].mxu0
      %3984 = vmatprep.mubr.f32.mxu0 0.0
      %3985 = vmatmul.mubr.f32.gmra.mrb[0].mxu0 %v1884
      %v3986 = vpop.f32.mrb[0].mxu0
      %v3987 = vadd.f32 0.0, %v3986
      %v3988 = vpop.f32.mrb[0].mxu0
      %3989 = vmatprep.mubr.f32.mxu0 0.0
      %3990 = vmatmul.mubr.f32.gmra.mrb[0].mxu0 %v1886
      %v3991 = vpop.f32.mrb[0].mxu0
      %v3992 = vadd.f32 0.0, %v3991
      %v3993 = vpop.f32.mrb[0].mxu0
      %3994 = vmatprep.mubr.f32.mxu0 0.0
      %3995 = vmatmul.mubr.f32.gmra.mrb[0].mxu0 %v1888
      %v3996 = vpop.f32.mrb[0].mxu0
      %v3997 = vadd.f32 0.0, %v3996
      %v3998 = vpop.f32.mrb[0].mxu0
      %3999 = vmatprep.mubr.f32.mxu0 0.0
      %4000 = vmatmul.mubr.f32.gmra.mrb[0].mxu0 %v1890
      %v4001 = vpop.f32.mrb[0].mxu0
      %v4002 = vadd.f32 0.0, %v4001
      %v4003 = vpop.f32.mrb[0].mxu0
      %4004 = vmatprep.mubr.f32.mxu0 0.0
      %4005 = vmatmul.mubr.f32.gmra.mrb[0].mxu0 %v3518
      %v4006 = vpop.f32.mrb[0].mxu0
      %v4007 = vadd.f32 0.0, %v4006
      %v4008 = vpop.f32.mrb[0].mxu0
      %4009 = vdwg.mxu0
      %v4010 = vadd.f32 %v3466, %v3852
      %v4011 = vadd.f32 %v3467, %v3857
      %v4012 = vadd.f32 %v3468, %v3862
      %v4013 = vadd.f32 %v3469, %v3867
      %v4014 = vadd.f32 %v3470, %v3872
      %v4015 = vadd.f32 %v3471, %v3877
      %v4016 = vadd.f32 %v3472, %v3882
      %v4017 = vadd.f32 %v3473, %v3887
      %v4018 = vadd.f32 %v3474, %v3892
      %v4019 = vadd.f32 %v3475, %v3897
      %v4020 = vadd.f32 %v3476, %v3902
      %v4021 = vadd.f32 %v3477, %v3907
      %v4022 = vadd.f32 %v3478, %v3912
      %v4023 = vadd.f32 %v3479, %v3917
      %v4024 = vadd.f32 %v3480, %v3922
      %v4025 = vadd.f32 %v3481, %v3927
      %v4026 = vadd.f32 %v3482, %v3932
      %v4027 = vadd.f32 %v3483, %v3937
      %v4028 = vadd.f32 %v3484, %v3942
      %v4029 = vadd.f32 %v3485, %v3947
      %v4030 = vadd.f32 %v3486, %v3952
      %v4031 = vadd.f32 %v3487, %v3957
      %v4032 = vadd.f32 %v3488, %v3962
      %v4033 = vadd.f32 %v3489, %v3967
      %v4034 = vadd.f32 %v3490, %v3972
      %v4035 = vadd.f32 %v3491, %v3977
      %v4036 = vadd.f32 %v3492, %v3982
      %v4037 = vadd.f32 %v3493, %v3987
      %v4038 = vadd.f32 %v3494, %v3992
      %v4039 = vadd.f32 %v3495, %v3997
      %v4040 = vadd.f32 %v3496, %v4002
      %v4041 = vadd.f32 %v3497, %v4007
      %s4042 = scalar_lea.vmem %s1, 24
      %v4043 = vld [vmem:[%s4042] sm:$0xf]
      %v4045 = vsel %vm276, %v459, 0
      %v4048 = vsel %vm276, %v479, 0
      %v4051 = vsel %vm276, %v499, 0
      %v4054 = vsel %vm276, %v519, 0
      %v4057 = vsel %vm750, %v4043, 0
      %4059 = vmatprep.subr.mxu0 0.0
      %4060 = vmatpush1.msra.mxu0 %v4057
      %4061 = vmatprep.subr.mxu0 0.0
      %4062 = vmatpush1.msra.mxu0 0.0
      %4063 = vmatprep.subr.mxu0 0.0
      %4064 = vmatpush1.msra.mxu0 0.0
      %4065 = vmatprep.subr.mxu0 0.0
      %4066 = vmatpush1.msra.mxu0 0.0
      %4067 = vmatprep.subr.mxu0 0.0
      %4068 = vmatpush1.msra.mxu0 0.0
      %4069 = vmatprep.subr.mxu0 0.0
      %4070 = vmatpush1.msra.mxu0 0.0
      %4071 = vmatprep.subr.mxu0 0.0
      %4072 = vmatpush1.msra.mxu0 0.0
      %4073 = vmatprep.subr.mxu0 0.0
      %4074 = vmatpush1.msra.mxu0 0.0
      %4075 = vmatprep.subr.mxu0 0.0
      %4076 = vmatpush1.msra.mxu0 0.0
      %4077 = vmatprep.subr.mxu0 0.0
      %4078 = vmatpush1.msra.mxu0 0.0
      %4079 = vmatprep.subr.mxu0 0.0
      %4080 = vmatpush1.msra.mxu0 0.0
      %4081 = vmatprep.subr.mxu0 0.0
      %4082 = vmatpush1.msra.mxu0 0.0
      %4083 = vmatprep.subr.mxu0 0.0
      %4084 = vmatpush1.msra.mxu0 0.0
      %4085 = vmatprep.subr.mxu0 0.0
      %4086 = vmatpush1.msra.mxu0 0.0
      %4087 = vmatprep.subr.mxu0 0.0
      %4088 = vmatpush1.msra.mxu0 0.0
      %4089 = vmatprep.subr.mxu0 0.0
      %4090 = vmatpush1.msra.mxu0 0.0
      %4091 = vmatprep.subr.mxu0 0.0
      %4092 = vmatpush1.msra.mxu0 0.0
      %4093 = vmatprep.subr.mxu0 0.0
      %4094 = vmatpush1.msra.mxu0 0.0
      %4095 = vmatprep.subr.mxu0 0.0
      %4096 = vmatpush1.msra.mxu0 0.0
      %4097 = vmatprep.subr.mxu0 0.0
      %4098 = vmatpush1.msra.mxu0 0.0
      %4099 = vmatprep.subr.mxu0 0.0
      %4100 = vmatpush1.msra.mxu0 0.0
      %4101 = vmatprep.subr.mxu0 0.0
      %4102 = vmatpush1.msra.mxu0 0.0
      %4103 = vmatprep.subr.mxu0 0.0
      %4104 = vmatpush1.msra.mxu0 0.0
      %4105 = vmatprep.subr.mxu0 0.0
      %4106 = vmatpush1.msra.mxu0 0.0
      %4107 = vmatprep.subr.mxu0 0.0
      %4108 = vmatpush1.msra.mxu0 0.0
      %4109 = vmatprep.subr.mxu0 0.0
      %4110 = vmatpush1.msra.mxu0 0.0
      %4111 = vmatprep.subr.mxu0 0.0
      %4112 = vmatpush1.msra.mxu0 0.0
      %4113 = vmatprep.subr.mxu0 0.0
      %4114 = vmatpush1.msra.mxu0 0.0
      %4115 = vmatprep.subr.mxu0 0.0
      %4116 = vmatpush1.msra.mxu0 0.0
      %4117 = vmatprep.subr.mxu0 0.0
      %4118 = vmatpush1.msra.mxu0 0.0
      %4119 = vmatprep.subr.mxu0 0.0
      %4120 = vmatpush1.msra.mxu0 0.0
      %4121 = vmatprep.subr.mxu0 0.0
      %4122 = vmatpush1.msra.mxu0 0.0
      %4123 = vmatprep.mubr.f32.mxu0 0.0
      %4124 = vmatmul.mubr.f32.gmra.mrb[0].mxu0 %v983
      %v4125 = vpop.f32.mrb[0].mxu0
      %v4126 = vadd.f32 0.0, %v4125
      %v4127 = vpop.f32.mrb[0].mxu0
      %4128 = vmatprep.mubr.f32.mxu0 0.0
      %4129 = vmatmul.mubr.f32.gmra.mrb[0].mxu0 %v985
      %v4130 = vpop.f32.mrb[0].mxu0
      %v4131 = vadd.f32 0.0, %v4130
      %v4132 = vpop.f32.mrb[0].mxu0
      %4133 = vmatprep.mubr.f32.mxu0 0.0
      %4134 = vmatmul.mubr.f32.gmra.mrb[0].mxu0 %v987
      %v4135 = vpop.f32.mrb[0].mxu0
      %v4136 = vadd.f32 0.0, %v4135
      %v4137 = vpop.f32.mrb[0].mxu0
      %4138 = vmatprep.mubr.f32.mxu0 0.0
      %4139 = vmatmul.mubr.f32.gmra.mrb[0].mxu0 %v989
      %v4140 = vpop.f32.mrb[0].mxu0
      %v4141 = vadd.f32 0.0, %v4140
      %v4142 = vpop.f32.mrb[0].mxu0
      %4143 = vmatprep.mubr.f32.mxu0 0.0
      %4144 = vmatmul.mubr.f32.gmra.mrb[0].mxu0 %v991
      %v4145 = vpop.f32.mrb[0].mxu0
      %v4146 = vadd.f32 0.0, %v4145
      %v4147 = vpop.f32.mrb[0].mxu0
      %4148 = vmatprep.mubr.f32.mxu0 0.0
      %4149 = vmatmul.mubr.f32.gmra.mrb[0].mxu0 %v993
      %v4150 = vpop.f32.mrb[0].mxu0
      %v4151 = vadd.f32 0.0, %v4150
      %v4152 = vpop.f32.mrb[0].mxu0
      %4153 = vmatprep.mubr.f32.mxu0 0.0
      %4154 = vmatmul.mubr.f32.gmra.mrb[0].mxu0 %v2417
      %v4155 = vpop.f32.mrb[0].mxu0
      %v4156 = vadd.f32 0.0, %v4155
      %v4157 = vpop.f32.mrb[0].mxu0
      %4158 = vmatprep.mubr.f32.mxu0 0.0
      %4159 = vmatmul.mubr.f32.gmra.mrb[0].mxu0 %v4045
      %v4160 = vpop.f32.mrb[0].mxu0
      %v4161 = vadd.f32 0.0, %v4160
      %v4162 = vpop.f32.mrb[0].mxu0
      %4163 = vmatprep.mubr.f32.mxu0 0.0
      %4164 = vmatmul.mubr.f32.gmra.mrb[0].mxu0 %v999
      %v4165 = vpop.f32.mrb[0].mxu0
      %v4166 = vadd.f32 0.0, %v4165
      %v4167 = vpop.f32.mrb[0].mxu0
      %4168 = vmatprep.mubr.f32.mxu0 0.0
      %4169 = vmatmul.mubr.f32.gmra.mrb[0].mxu0 %v1001
      %v4170 = vpop.f32.mrb[0].mxu0
      %v4171 = vadd.f32 0.0, %v4170
      %v4172 = vpop.f32.mrb[0].mxu0
      %4173 = vmatprep.mubr.f32.mxu0 0.0
      %4174 = vmatmul.mubr.f32.gmra.mrb[0].mxu0 %v1003
      %v4175 = vpop.f32.mrb[0].mxu0
      %v4176 = vadd.f32 0.0, %v4175
      %v4177 = vpop.f32.mrb[0].mxu0
      %4178 = vmatprep.mubr.f32.mxu0 0.0
      %4179 = vmatmul.mubr.f32.gmra.mrb[0].mxu0 %v1005
      %v4180 = vpop.f32.mrb[0].mxu0
      %v4181 = vadd.f32 0.0, %v4180
      %v4182 = vpop.f32.mrb[0].mxu0
      %4183 = vmatprep.mubr.f32.mxu0 0.0
      %4184 = vmatmul.mubr.f32.gmra.mrb[0].mxu0 %v1007
      %v4185 = vpop.f32.mrb[0].mxu0
      %v4186 = vadd.f32 0.0, %v4185
      %v4187 = vpop.f32.mrb[0].mxu0
      %4188 = vmatprep.mubr.f32.mxu0 0.0
      %4189 = vmatmul.mubr.f32.gmra.mrb[0].mxu0 %v1009
      %v4190 = vpop.f32.mrb[0].mxu0
      %v4191 = vadd.f32 0.0, %v4190
      %v4192 = vpop.f32.mrb[0].mxu0
      %4193 = vmatprep.mubr.f32.mxu0 0.0
      %4194 = vmatmul.mubr.f32.gmra.mrb[0].mxu0 %v2420
      %v4195 = vpop.f32.mrb[0].mxu0
      %v4196 = vadd.f32 0.0, %v4195
      %v4197 = vpop.f32.mrb[0].mxu0
      %4198 = vmatprep.mubr.f32.mxu0 0.0
      %4199 = vmatmul.mubr.f32.gmra.mrb[0].mxu0 %v4048
      %v4200 = vpop.f32.mrb[0].mxu0
      %v4201 = vadd.f32 0.0, %v4200
      %v4202 = vpop.f32.mrb[0].mxu0
      %4203 = vmatprep.mubr.f32.mxu0 0.0
      %4204 = vmatmul.mubr.f32.gmra.mrb[0].mxu0 %v1015
      %v4205 = vpop.f32.mrb[0].mxu0
      %v4206 = vadd.f32 0.0, %v4205
      %v4207 = vpop.f32.mrb[0].mxu0
      %4208 = vmatprep.mubr.f32.mxu0 0.0
      %4209 = vmatmul.mubr.f32.gmra.mrb[0].mxu0 %v1017
      %v4210 = vpop.f32.mrb[0].mxu0
      %v4211 = vadd.f32 0.0, %v4210
      %v4212 = vpop.f32.mrb[0].mxu0
      %4213 = vmatprep.mubr.f32.mxu0 0.0
      %4214 = vmatmul.mubr.f32.gmra.mrb[0].mxu0 %v1019
      %v4215 = vpop.f32.mrb[0].mxu0
      %v4216 = vadd.f32 0.0, %v4215
      %v4217 = vpop.f32.mrb[0].mxu0
      %4218 = vmatprep.mubr.f32.mxu0 0.0
      %4219 = vmatmul.mubr.f32.gmra.mrb[0].mxu0 %v1021
      %v4220 = vpop.f32.mrb[0].mxu0
      %v4221 = vadd.f32 0.0, %v4220
      %v4222 = vpop.f32.mrb[0].mxu0
      %4223 = vmatprep.mubr.f32.mxu0 0.0
      %4224 = vmatmul.mubr.f32.gmra.mrb[0].mxu0 %v1023
      %v4225 = vpop.f32.mrb[0].mxu0
      %v4226 = vadd.f32 0.0, %v4225
      %v4227 = vpop.f32.mrb[0].mxu0
      %4228 = vmatprep.mubr.f32.mxu0 0.0
      %4229 = vmatmul.mubr.f32.gmra.mrb[0].mxu0 %v1025
      %v4230 = vpop.f32.mrb[0].mxu0
      %v4231 = vadd.f32 0.0, %v4230
      %v4232 = vpop.f32.mrb[0].mxu0
      %4233 = vmatprep.mubr.f32.mxu0 0.0
      %4234 = vmatmul.mubr.f32.gmra.mrb[0].mxu0 %v2423
      %v4235 = vpop.f32.mrb[0].mxu0
      %v4236 = vadd.f32 0.0, %v4235
      %v4237 = vpop.f32.mrb[0].mxu0
      %4238 = vmatprep.mubr.f32.mxu0 0.0
      %4239 = vmatmul.mubr.f32.gmra.mrb[0].mxu0 %v4051
      %v4240 = vpop.f32.mrb[0].mxu0
      %v4241 = vadd.f32 0.0, %v4240
      %v4242 = vpop.f32.mrb[0].mxu0
      %4243 = vmatprep.mubr.f32.mxu0 0.0
      %4244 = vmatmul.mubr.f32.gmra.mrb[0].mxu0 %v1031
      %v4245 = vpop.f32.mrb[0].mxu0
      %v4246 = vadd.f32 0.0, %v4245
      %v4247 = vpop.f32.mrb[0].mxu0
      %4248 = vmatprep.mubr.f32.mxu0 0.0
      %4249 = vmatmul.mubr.f32.gmra.mrb[0].mxu0 %v1033
      %v4250 = vpop.f32.mrb[0].mxu0
      %v4251 = vadd.f32 0.0, %v4250
      %v4252 = vpop.f32.mrb[0].mxu0
      %4253 = vmatprep.mubr.f32.mxu0 0.0
      %4254 = vmatmul.mubr.f32.gmra.mrb[0].mxu0 %v1035
      %v4255 = vpop.f32.mrb[0].mxu0
      %v4256 = vadd.f32 0.0, %v4255
      %v4257 = vpop.f32.mrb[0].mxu0
      %4258 = vmatprep.mubr.f32.mxu0 0.0
      %4259 = vmatmul.mubr.f32.gmra.mrb[0].mxu0 %v1037
      %v4260 = vpop.f32.mrb[0].mxu0
      %v4261 = vadd.f32 0.0, %v4260
      %v4262 = vpop.f32.mrb[0].mxu0
      %4263 = vmatprep.mubr.f32.mxu0 0.0
      %4264 = vmatmul.mubr.f32.gmra.mrb[0].mxu0 %v1039
      %v4265 = vpop.f32.mrb[0].mxu0
      %v4266 = vadd.f32 0.0, %v4265
      %v4267 = vpop.f32.mrb[0].mxu0
      %4268 = vmatprep.mubr.f32.mxu0 0.0
      %4269 = vmatmul.mubr.f32.gmra.mrb[0].mxu0 %v1041
      %v4270 = vpop.f32.mrb[0].mxu0
      %v4271 = vadd.f32 0.0, %v4270
      %v4272 = vpop.f32.mrb[0].mxu0
      %4273 = vmatprep.mubr.f32.mxu0 0.0
      %4274 = vmatmul.mubr.f32.gmra.mrb[0].mxu0 %v2426
      %v4275 = vpop.f32.mrb[0].mxu0
      %v4276 = vadd.f32 0.0, %v4275
      %v4277 = vpop.f32.mrb[0].mxu0
      %4278 = vmatprep.mubr.f32.mxu0 0.0
      %4279 = vmatmul.mubr.f32.gmra.mrb[0].mxu0 %v4054
      %v4280 = vpop.f32.mrb[0].mxu0
      %v4281 = vadd.f32 0.0, %v4280
      %v4282 = vpop.f32.mrb[0].mxu0
      %4283 = vdwg.mxu0
      %v4284 = vadd.f32 %v3748, %v4126
      %v4285 = vadd.f32 %v3749, %v4131
      %v4286 = vadd.f32 %v3750, %v4136
      %v4287 = vadd.f32 %v3751, %v4141
      %v4288 = vadd.f32 %v3752, %v4146
      %v4289 = vadd.f32 %v3753, %v4151
      %v4290 = vadd.f32 %v3754, %v4156
      %v4291 = vadd.f32 %v3755, %v4161
      %v4292 = vadd.f32 %v3756, %v4166
      %v4293 = vadd.f32 %v3757, %v4171
      %v4294 = vadd.f32 %v3758, %v4176
      %v4295 = vadd.f32 %v3759, %v4181
      %v4296 = vadd.f32 %v3760, %v4186
      %v4297 = vadd.f32 %v3761, %v4191
      %v4298 = vadd.f32 %v3762, %v4196
      %v4299 = vadd.f32 %v3763, %v4201
      %v4300 = vadd.f32 %v3764, %v4206
      %v4301 = vadd.f32 %v3765, %v4211
      %v4302 = vadd.f32 %v3766, %v4216
      %v4303 = vadd.f32 %v3767, %v4221
      %v4304 = vadd.f32 %v3768, %v4226
      %v4305 = vadd.f32 %v3769, %v4231
      %v4306 = vadd.f32 %v3770, %v4236
      %v4307 = vadd.f32 %v3771, %v4241
      %v4308 = vadd.f32 %v3772, %v4246
      %v4309 = vadd.f32 %v3773, %v4251
      %v4310 = vadd.f32 %v3774, %v4256
      %v4311 = vadd.f32 %v3775, %v4261
      %v4312 = vadd.f32 %v3776, %v4266
      %v4313 = vadd.f32 %v3777, %v4271
      %v4314 = vadd.f32 %v3778, %v4276
      %v4315 = vadd.f32 %v3779, %v4281
      %s4316 = scalar_lea.vmem %s2, 24
      %v4317 = vld [vmem:[%s4316] sm:$0xf]
      %v4319 = vsel %vm750, %v4317, 0
      %4321 = vmatprep.subr.mxu0 0.0
      %4322 = vmatpush1.msra.mxu0 %v4319
      %4323 = vmatprep.subr.mxu0 0.0
      %4324 = vmatpush1.msra.mxu0 0.0
      %4325 = vmatprep.subr.mxu0 0.0
      %4326 = vmatpush1.msra.mxu0 0.0
      %4327 = vmatprep.subr.mxu0 0.0
      %4328 = vmatpush1.msra.mxu0 0.0
      %4329 = vmatprep.subr.mxu0 0.0
      %4330 = vmatpush1.msra.mxu0 0.0
      %4331 = vmatprep.subr.mxu0 0.0
      %4332 = vmatpush1.msra.mxu0 0.0
      %4333 = vmatprep.subr.mxu0 0.0
      %4334 = vmatpush1.msra.mxu0 0.0
      %4335 = vmatprep.subr.mxu0 0.0
      %4336 = vmatpush1.msra.mxu0 0.0
      %4337 = vmatprep.subr.mxu0 0.0
      %4338 = vmatpush1.msra.mxu0 0.0
      %4339 = vmatprep.subr.mxu0 0.0
      %4340 = vmatpush1.msra.mxu0 0.0
      %4341 = vmatprep.subr.mxu0 0.0
      %4342 = vmatpush1.msra.mxu0 0.0
      %4343 = vmatprep.subr.mxu0 0.0
      %4344 = vmatpush1.msra.mxu0 0.0
      %4345 = vmatprep.subr.mxu0 0.0
      %4346 = vmatpush1.msra.mxu0 0.0
      %4347 = vmatprep.subr.mxu0 0.0
      %4348 = vmatpush1.msra.mxu0 0.0
      %4349 = vmatprep.subr.mxu0 0.0
      %4350 = vmatpush1.msra.mxu0 0.0
      %4351 = vmatprep.subr.mxu0 0.0
      %4352 = vmatpush1.msra.mxu0 0.0
      %4353 = vmatprep.subr.mxu0 0.0
      %4354 = vmatpush1.msra.mxu0 0.0
      %4355 = vmatprep.subr.mxu0 0.0
      %4356 = vmatpush1.msra.mxu0 0.0
      %4357 = vmatprep.subr.mxu0 0.0
      %4358 = vmatpush1.msra.mxu0 0.0
      %4359 = vmatprep.subr.mxu0 0.0
      %4360 = vmatpush1.msra.mxu0 0.0
      %4361 = vmatprep.subr.mxu0 0.0
      %4362 = vmatpush1.msra.mxu0 0.0
      %4363 = vmatprep.subr.mxu0 0.0
      %4364 = vmatpush1.msra.mxu0 0.0
      %4365 = vmatprep.subr.mxu0 0.0
      %4366 = vmatpush1.msra.mxu0 0.0
      %4367 = vmatprep.subr.mxu0 0.0
      %4368 = vmatpush1.msra.mxu0 0.0
      %4369 = vmatprep.subr.mxu0 0.0
      %4370 = vmatpush1.msra.mxu0 0.0
      %4371 = vmatprep.subr.mxu0 0.0
      %4372 = vmatpush1.msra.mxu0 0.0
      %4373 = vmatprep.subr.mxu0 0.0
      %4374 = vmatpush1.msra.mxu0 0.0
      %4375 = vmatprep.subr.mxu0 0.0
      %4376 = vmatpush1.msra.mxu0 0.0
      %4377 = vmatprep.subr.mxu0 0.0
      %4378 = vmatpush1.msra.mxu0 0.0
      %4379 = vmatprep.subr.mxu0 0.0
      %4380 = vmatpush1.msra.mxu0 0.0
      %4381 = vmatprep.subr.mxu0 0.0
      %4382 = vmatpush1.msra.mxu0 0.0
      %4383 = vmatprep.subr.mxu0 0.0
      %4384 = vmatpush1.msra.mxu0 0.0
      %4385 = vmatprep.mubr.f32.mxu0 0.0
      %4386 = vmatmul.mubr.f32.gmra.mrb[0].mxu0 %v983
      %v4387 = vpop.f32.mrb[0].mxu0
      %v4388 = vadd.f32 0.0, %v4387
      %v4389 = vpop.f32.mrb[0].mxu0
      %4390 = vmatprep.mubr.f32.mxu0 0.0
      %4391 = vmatmul.mubr.f32.gmra.mrb[0].mxu0 %v985
      %v4392 = vpop.f32.mrb[0].mxu0
      %v4393 = vadd.f32 0.0, %v4392
      %v4394 = vpop.f32.mrb[0].mxu0
      %4395 = vmatprep.mubr.f32.mxu0 0.0
      %4396 = vmatmul.mubr.f32.gmra.mrb[0].mxu0 %v987
      %v4397 = vpop.f32.mrb[0].mxu0
      %v4398 = vadd.f32 0.0, %v4397
      %v4399 = vpop.f32.mrb[0].mxu0
      %4400 = vmatprep.mubr.f32.mxu0 0.0
      %4401 = vmatmul.mubr.f32.gmra.mrb[0].mxu0 %v989
      %v4402 = vpop.f32.mrb[0].mxu0
      %v4403 = vadd.f32 0.0, %v4402
      %v4404 = vpop.f32.mrb[0].mxu0
      %4405 = vmatprep.mubr.f32.mxu0 0.0
      %4406 = vmatmul.mubr.f32.gmra.mrb[0].mxu0 %v991
      %v4407 = vpop.f32.mrb[0].mxu0
      %v4408 = vadd.f32 0.0, %v4407
      %v4409 = vpop.f32.mrb[0].mxu0
      %4410 = vmatprep.mubr.f32.mxu0 0.0
      %4411 = vmatmul.mubr.f32.gmra.mrb[0].mxu0 %v993
      %v4412 = vpop.f32.mrb[0].mxu0
      %v4413 = vadd.f32 0.0, %v4412
      %v4414 = vpop.f32.mrb[0].mxu0
      %4415 = vmatprep.mubr.f32.mxu0 0.0
      %4416 = vmatmul.mubr.f32.gmra.mrb[0].mxu0 %v2417
      %v4417 = vpop.f32.mrb[0].mxu0
      %v4418 = vadd.f32 0.0, %v4417
      %v4419 = vpop.f32.mrb[0].mxu0
      %4420 = vmatprep.mubr.f32.mxu0 0.0
      %4421 = vmatmul.mubr.f32.gmra.mrb[0].mxu0 %v4045
      %v4422 = vpop.f32.mrb[0].mxu0
      %v4423 = vadd.f32 0.0, %v4422
      %v4424 = vpop.f32.mrb[0].mxu0
      %4425 = vmatprep.mubr.f32.mxu0 0.0
      %4426 = vmatmul.mubr.f32.gmra.mrb[0].mxu0 %v999
      %v4427 = vpop.f32.mrb[0].mxu0
      %v4428 = vadd.f32 0.0, %v4427
      %v4429 = vpop.f32.mrb[0].mxu0
      %4430 = vmatprep.mubr.f32.mxu0 0.0
      %4431 = vmatmul.mubr.f32.gmra.mrb[0].mxu0 %v1001
      %v4432 = vpop.f32.mrb[0].mxu0
      %v4433 = vadd.f32 0.0, %v4432
      %v4434 = vpop.f32.mrb[0].mxu0
      %4435 = vmatprep.mubr.f32.mxu0 0.0
      %4436 = vmatmul.mubr.f32.gmra.mrb[0].mxu0 %v1003
      %v4437 = vpop.f32.mrb[0].mxu0
      %v4438 = vadd.f32 0.0, %v4437
      %v4439 = vpop.f32.mrb[0].mxu0
      %4440 = vmatprep.mubr.f32.mxu0 0.0
      %4441 = vmatmul.mubr.f32.gmra.mrb[0].mxu0 %v1005
      %v4442 = vpop.f32.mrb[0].mxu0
      %v4443 = vadd.f32 0.0, %v4442
      %v4444 = vpop.f32.mrb[0].mxu0
      %4445 = vmatprep.mubr.f32.mxu0 0.0
      %4446 = vmatmul.mubr.f32.gmra.mrb[0].mxu0 %v1007
      %v4447 = vpop.f32.mrb[0].mxu0
      %v4448 = vadd.f32 0.0, %v4447
      %v4449 = vpop.f32.mrb[0].mxu0
      %4450 = vmatprep.mubr.f32.mxu0 0.0
      %4451 = vmatmul.mubr.f32.gmra.mrb[0].mxu0 %v1009
      %v4452 = vpop.f32.mrb[0].mxu0
      %v4453 = vadd.f32 0.0, %v4452
      %v4454 = vpop.f32.mrb[0].mxu0
      %4455 = vmatprep.mubr.f32.mxu0 0.0
      %4456 = vmatmul.mubr.f32.gmra.mrb[0].mxu0 %v2420
      %v4457 = vpop.f32.mrb[0].mxu0
      %v4458 = vadd.f32 0.0, %v4457
      %v4459 = vpop.f32.mrb[0].mxu0
      %4460 = vmatprep.mubr.f32.mxu0 0.0
      %4461 = vmatmul.mubr.f32.gmra.mrb[0].mxu0 %v4048
      %v4462 = vpop.f32.mrb[0].mxu0
      %v4463 = vadd.f32 0.0, %v4462
      %v4464 = vpop.f32.mrb[0].mxu0
      %4465 = vmatprep.mubr.f32.mxu0 0.0
      %4466 = vmatmul.mubr.f32.gmra.mrb[0].mxu0 %v1015
      %v4467 = vpop.f32.mrb[0].mxu0
      %v4468 = vadd.f32 0.0, %v4467
      %v4469 = vpop.f32.mrb[0].mxu0
      %4470 = vmatprep.mubr.f32.mxu0 0.0
      %4471 = vmatmul.mubr.f32.gmra.mrb[0].mxu0 %v1017
      %v4472 = vpop.f32.mrb[0].mxu0
      %v4473 = vadd.f32 0.0, %v4472
      %v4474 = vpop.f32.mrb[0].mxu0
      %4475 = vmatprep.mubr.f32.mxu0 0.0
      %4476 = vmatmul.mubr.f32.gmra.mrb[0].mxu0 %v1019
      %v4477 = vpop.f32.mrb[0].mxu0
      %v4478 = vadd.f32 0.0, %v4477
      %v4479 = vpop.f32.mrb[0].mxu0
      %4480 = vmatprep.mubr.f32.mxu0 0.0
      %4481 = vmatmul.mubr.f32.gmra.mrb[0].mxu0 %v1021
      %v4482 = vpop.f32.mrb[0].mxu0
      %v4483 = vadd.f32 0.0, %v4482
      %v4484 = vpop.f32.mrb[0].mxu0
      %4485 = vmatprep.mubr.f32.mxu0 0.0
      %4486 = vmatmul.mubr.f32.gmra.mrb[0].mxu0 %v1023
      %v4487 = vpop.f32.mrb[0].mxu0
      %v4488 = vadd.f32 0.0, %v4487
      %v4489 = vpop.f32.mrb[0].mxu0
      %4490 = vmatprep.mubr.f32.mxu0 0.0
      %4491 = vmatmul.mubr.f32.gmra.mrb[0].mxu0 %v1025
      %v4492 = vpop.f32.mrb[0].mxu0
      %v4493 = vadd.f32 0.0, %v4492
      %v4494 = vpop.f32.mrb[0].mxu0
      %4495 = vmatprep.mubr.f32.mxu0 0.0
      %4496 = vmatmul.mubr.f32.gmra.mrb[0].mxu0 %v2423
      %v4497 = vpop.f32.mrb[0].mxu0
      %v4498 = vadd.f32 0.0, %v4497
      %v4499 = vpop.f32.mrb[0].mxu0
      %4500 = vmatprep.mubr.f32.mxu0 0.0
      %4501 = vmatmul.mubr.f32.gmra.mrb[0].mxu0 %v4051
      %v4502 = vpop.f32.mrb[0].mxu0
      %v4503 = vadd.f32 0.0, %v4502
      %v4504 = vpop.f32.mrb[0].mxu0
      %4505 = vmatprep.mubr.f32.mxu0 0.0
      %4506 = vmatmul.mubr.f32.gmra.mrb[0].mxu0 %v1031
      %v4507 = vpop.f32.mrb[0].mxu0
      %v4508 = vadd.f32 0.0, %v4507
      %v4509 = vpop.f32.mrb[0].mxu0
      %4510 = vmatprep.mubr.f32.mxu0 0.0
      %4511 = vmatmul.mubr.f32.gmra.mrb[0].mxu0 %v1033
      %v4512 = vpop.f32.mrb[0].mxu0
      %v4513 = vadd.f32 0.0, %v4512
      %v4514 = vpop.f32.mrb[0].mxu0
      %4515 = vmatprep.mubr.f32.mxu0 0.0
      %4516 = vmatmul.mubr.f32.gmra.mrb[0].mxu0 %v1035
      %v4517 = vpop.f32.mrb[0].mxu0
      %v4518 = vadd.f32 0.0, %v4517
      %v4519 = vpop.f32.mrb[0].mxu0
      %4520 = vmatprep.mubr.f32.mxu0 0.0
      %4521 = vmatmul.mubr.f32.gmra.mrb[0].mxu0 %v1037
      %v4522 = vpop.f32.mrb[0].mxu0
      %v4523 = vadd.f32 0.0, %v4522
      %v4524 = vpop.f32.mrb[0].mxu0
      %4525 = vmatprep.mubr.f32.mxu0 0.0
      %4526 = vmatmul.mubr.f32.gmra.mrb[0].mxu0 %v1039
      %v4527 = vpop.f32.mrb[0].mxu0
      %v4528 = vadd.f32 0.0, %v4527
      %v4529 = vpop.f32.mrb[0].mxu0
      %4530 = vmatprep.mubr.f32.mxu0 0.0
      %4531 = vmatmul.mubr.f32.gmra.mrb[0].mxu0 %v1041
      %v4532 = vpop.f32.mrb[0].mxu0
      %v4533 = vadd.f32 0.0, %v4532
      %v4534 = vpop.f32.mrb[0].mxu0
      %4535 = vmatprep.mubr.f32.mxu0 0.0
      %4536 = vmatmul.mubr.f32.gmra.mrb[0].mxu0 %v2426
      %v4537 = vpop.f32.mrb[0].mxu0
      %v4538 = vadd.f32 0.0, %v4537
      %v4539 = vpop.f32.mrb[0].mxu0
      %4540 = vmatprep.mubr.f32.mxu0 0.0
      %4541 = vmatmul.mubr.f32.gmra.mrb[0].mxu0 %v4054
      %v4542 = vpop.f32.mrb[0].mxu0
      %v4543 = vadd.f32 0.0, %v4542
      %v4544 = vpop.f32.mrb[0].mxu0
      %4545 = vdwg.mxu0
      %v4546 = vadd.f32 %v4010, %v4388
      %v4547 = vadd.f32 %v4011, %v4393
      %v4548 = vadd.f32 %v4012, %v4398
      %v4549 = vadd.f32 %v4013, %v4403
      %v4550 = vadd.f32 %v4014, %v4408
      %v4551 = vadd.f32 %v4015, %v4413
      %v4552 = vadd.f32 %v4016, %v4418
      %v4553 = vadd.f32 %v4017, %v4423
      %v4554 = vadd.f32 %v4018, %v4428
      %v4555 = vadd.f32 %v4019, %v4433
      %v4556 = vadd.f32 %v4020, %v4438
      %v4557 = vadd.f32 %v4021, %v4443
      %v4558 = vadd.f32 %v4022, %v4448
      %v4559 = vadd.f32 %v4023, %v4453
      %v4560 = vadd.f32 %v4024, %v4458
      %v4561 = vadd.f32 %v4025, %v4463
      %v4562 = vadd.f32 %v4026, %v4468
      %v4563 = vadd.f32 %v4027, %v4473
      %v4564 = vadd.f32 %v4028, %v4478
      %v4565 = vadd.f32 %v4029, %v4483
      %v4566 = vadd.f32 %v4030, %v4488
      %v4567 = vadd.f32 %v4031, %v4493
      %v4568 = vadd.f32 %v4032, %v4498
      %v4569 = vadd.f32 %v4033, %v4503
      %v4570 = vadd.f32 %v4034, %v4508
      %v4571 = vadd.f32 %v4035, %v4513
      %v4572 = vadd.f32 %v4036, %v4518
      %v4573 = vadd.f32 %v4037, %v4523
      %v4574 = vadd.f32 %v4038, %v4528
      %v4575 = vadd.f32 %v4039, %v4533
      %v4576 = vadd.f32 %v4040, %v4538
      %v4577 = vadd.f32 %v4041, %v4543
      %v4582 = vrot.slane %v459, 1
      %v4583 = vrot.slane %v460, 1
      %v4584 = vsel %vm587, %v4582, %v4583
      %v4585 = vrot.slane %v479, 1
      %v4586 = vrot.slane %v480, 1
      %v4587 = vsel %vm587, %v4585, %v4586
      %v4588 = vrot.slane %v499, 1
      %v4589 = vrot.slane %v500, 1
      %v4590 = vsel %vm587, %v4588, %v4589
      %v4591 = vrot.slane %v519, 1
      %v4592 = vrot.slane %v520, 1
      %v4593 = vsel %vm587, %v4591, %v4592
      %s4594 = scalar_lea.vmem %s1, 28
      %v4595 = vld [vmem:[%s4594] sm:$0xf]
      %v4596 = vsel %vm276, %v4584, 0
      %v4598 = vsel %vm276, %v4587, 0
      %v4600 = vsel %vm276, %v4590, 0
      %v4602 = vsel %vm276, %v4593, 0
      %v4605 = vsel %vm750, %v4595, 0
      %4607 = vmatprep.subr.mxu0 0.0
      %4608 = vmatpush1.msra.mxu0 %v4605
      %4609 = vmatprep.subr.mxu0 0.0
      %4610 = vmatpush1.msra.mxu0 0.0
      %4611 = vmatprep.subr.mxu0 0.0
      %4612 = vmatpush1.msra.mxu0 0.0
      %4613 = vmatprep.subr.mxu0 0.0
      %4614 = vmatpush1.msra.mxu0 0.0
      %4615 = vmatprep.subr.mxu0 0.0
      %4616 = vmatpush1.msra.mxu0 0.0
      %4617 = vmatprep.subr.mxu0 0.0
      %4618 = vmatpush1.msra.mxu0 0.0
      %4619 = vmatprep.subr.mxu0 0.0
      %4620 = vmatpush1.msra.mxu0 0.0
      %4621 = vmatprep.subr.mxu0 0.0
      %4622 = vmatpush1.msra.mxu0 0.0
      %4623 = vmatprep.subr.mxu0 0.0
      %4624 = vmatpush1.msra.mxu0 0.0
      %4625 = vmatprep.subr.mxu0 0.0
      %4626 = vmatpush1.msra.mxu0 0.0
      %4627 = vmatprep.subr.mxu0 0.0
      %4628 = vmatpush1.msra.mxu0 0.0
      %4629 = vmatprep.subr.mxu0 0.0
      %4630 = vmatpush1.msra.mxu0 0.0
      %4631 = vmatprep.subr.mxu0 0.0
      %4632 = vmatpush1.msra.mxu0 0.0
      %4633 = vmatprep.subr.mxu0 0.0
      %4634 = vmatpush1.msra.mxu0 0.0
      %4635 = vmatprep.subr.mxu0 0.0
      %4636 = vmatpush1.msra.mxu0 0.0
      %4637 = vmatprep.subr.mxu0 0.0
      %4638 = vmatpush1.msra.mxu0 0.0
      %4639 = vmatprep.subr.mxu0 0.0
      %4640 = vmatpush1.msra.mxu0 0.0
      %4641 = vmatprep.subr.mxu0 0.0
      %4642 = vmatpush1.msra.mxu0 0.0
      %4643 = vmatprep.subr.mxu0 0.0
      %4644 = vmatpush1.msra.mxu0 0.0
      %4645 = vmatprep.subr.mxu0 0.0
      %4646 = vmatpush1.msra.mxu0 0.0
      %4647 = vmatprep.subr.mxu0 0.0
      %4648 = vmatpush1.msra.mxu0 0.0
      %4649 = vmatprep.subr.mxu0 0.0
      %4650 = vmatpush1.msra.mxu0 0.0
      %4651 = vmatprep.subr.mxu0 0.0
      %4652 = vmatpush1.msra.mxu0 0.0
      %4653 = vmatprep.subr.mxu0 0.0
      %4654 = vmatpush1.msra.mxu0 0.0
      %4655 = vmatprep.subr.mxu0 0.0
      %4656 = vmatpush1.msra.mxu0 0.0
      %4657 = vmatprep.subr.mxu0 0.0
      %4658 = vmatpush1.msra.mxu0 0.0
      %4659 = vmatprep.subr.mxu0 0.0
      %4660 = vmatpush1.msra.mxu0 0.0
      %4661 = vmatprep.subr.mxu0 0.0
      %4662 = vmatpush1.msra.mxu0 0.0
      %4663 = vmatprep.subr.mxu0 0.0
      %4664 = vmatpush1.msra.mxu0 0.0
      %4665 = vmatprep.subr.mxu0 0.0
      %4666 = vmatpush1.msra.mxu0 0.0
      %4667 = vmatprep.subr.mxu0 0.0
      %4668 = vmatpush1.msra.mxu0 0.0
      %4669 = vmatprep.subr.mxu0 0.0
      %4670 = vmatpush1.msra.mxu0 0.0
      %4671 = vmatprep.mubr.f32.mxu0 0.0
      %4672 = vmatmul.mubr.f32.gmra.mrb[0].mxu0 %v690
      %v4673 = vpop.f32.mrb[0].mxu0
      %v4674 = vadd.f32 0.0, %v4673
      %v4675 = vpop.f32.mrb[0].mxu0
      %4676 = vmatprep.mubr.f32.mxu0 0.0
      %4677 = vmatmul.mubr.f32.gmra.mrb[0].mxu0 %v692
      %v4678 = vpop.f32.mrb[0].mxu0
      %v4679 = vadd.f32 0.0, %v4678
      %v4680 = vpop.f32.mrb[0].mxu0
      %4681 = vmatprep.mubr.f32.mxu0 0.0
      %4682 = vmatmul.mubr.f32.gmra.mrb[0].mxu0 %v694
      %v4683 = vpop.f32.mrb[0].mxu0
      %v4684 = vadd.f32 0.0, %v4683
      %v4685 = vpop.f32.mrb[0].mxu0
      %4686 = vmatprep.mubr.f32.mxu0 0.0
      %4687 = vmatmul.mubr.f32.gmra.mrb[0].mxu0 %v696
      %v4688 = vpop.f32.mrb[0].mxu0
      %v4689 = vadd.f32 0.0, %v4688
      %v4690 = vpop.f32.mrb[0].mxu0
      %4691 = vmatprep.mubr.f32.mxu0 0.0
      %4692 = vmatmul.mubr.f32.gmra.mrb[0].mxu0 %v698
      %v4693 = vpop.f32.mrb[0].mxu0
      %v4694 = vadd.f32 0.0, %v4693
      %v4695 = vpop.f32.mrb[0].mxu0
      %4696 = vmatprep.mubr.f32.mxu0 0.0
      %4697 = vmatmul.mubr.f32.gmra.mrb[0].mxu0 %v700
      %v4698 = vpop.f32.mrb[0].mxu0
      %v4699 = vadd.f32 0.0, %v4698
      %v4700 = vpop.f32.mrb[0].mxu0
      %4701 = vmatprep.mubr.f32.mxu0 0.0
      %4702 = vmatmul.mubr.f32.gmra.mrb[0].mxu0 %v2968
      %v4703 = vpop.f32.mrb[0].mxu0
      %v4704 = vadd.f32 0.0, %v4703
      %v4705 = vpop.f32.mrb[0].mxu0
      %4706 = vmatprep.mubr.f32.mxu0 0.0
      %4707 = vmatmul.mubr.f32.gmra.mrb[0].mxu0 %v4596
      %v4708 = vpop.f32.mrb[0].mxu0
      %v4709 = vadd.f32 0.0, %v4708
      %v4710 = vpop.f32.mrb[0].mxu0
      %4711 = vmatprep.mubr.f32.mxu0 0.0
      %4712 = vmatmul.mubr.f32.gmra.mrb[0].mxu0 %v706
      %v4713 = vpop.f32.mrb[0].mxu0
      %v4714 = vadd.f32 0.0, %v4713
      %v4715 = vpop.f32.mrb[0].mxu0
      %4716 = vmatprep.mubr.f32.mxu0 0.0
      %4717 = vmatmul.mubr.f32.gmra.mrb[0].mxu0 %v708
      %v4718 = vpop.f32.mrb[0].mxu0
      %v4719 = vadd.f32 0.0, %v4718
      %v4720 = vpop.f32.mrb[0].mxu0
      %4721 = vmatprep.mubr.f32.mxu0 0.0
      %4722 = vmatmul.mubr.f32.gmra.mrb[0].mxu0 %v710
      %v4723 = vpop.f32.mrb[0].mxu0
      %v4724 = vadd.f32 0.0, %v4723
      %v4725 = vpop.f32.mrb[0].mxu0
      %4726 = vmatprep.mubr.f32.mxu0 0.0
      %4727 = vmatmul.mubr.f32.gmra.mrb[0].mxu0 %v712
      %v4728 = vpop.f32.mrb[0].mxu0
      %v4729 = vadd.f32 0.0, %v4728
      %v4730 = vpop.f32.mrb[0].mxu0
      %4731 = vmatprep.mubr.f32.mxu0 0.0
      %4732 = vmatmul.mubr.f32.gmra.mrb[0].mxu0 %v714
      %v4733 = vpop.f32.mrb[0].mxu0
      %v4734 = vadd.f32 0.0, %v4733
      %v4735 = vpop.f32.mrb[0].mxu0
      %4736 = vmatprep.mubr.f32.mxu0 0.0
      %4737 = vmatmul.mubr.f32.gmra.mrb[0].mxu0 %v716
      %v4738 = vpop.f32.mrb[0].mxu0
      %v4739 = vadd.f32 0.0, %v4738
      %v4740 = vpop.f32.mrb[0].mxu0
      %4741 = vmatprep.mubr.f32.mxu0 0.0
      %4742 = vmatmul.mubr.f32.gmra.mrb[0].mxu0 %v2970
      %v4743 = vpop.f32.mrb[0].mxu0
      %v4744 = vadd.f32 0.0, %v4743
      %v4745 = vpop.f32.mrb[0].mxu0
      %4746 = vmatprep.mubr.f32.mxu0 0.0
      %4747 = vmatmul.mubr.f32.gmra.mrb[0].mxu0 %v4598
      %v4748 = vpop.f32.mrb[0].mxu0
      %v4749 = vadd.f32 0.0, %v4748
      %v4750 = vpop.f32.mrb[0].mxu0
      %4751 = vmatprep.mubr.f32.mxu0 0.0
      %4752 = vmatmul.mubr.f32.gmra.mrb[0].mxu0 %v722
      %v4753 = vpop.f32.mrb[0].mxu0
      %v4754 = vadd.f32 0.0, %v4753
      %v4755 = vpop.f32.mrb[0].mxu0
      %4756 = vmatprep.mubr.f32.mxu0 0.0
      %4757 = vmatmul.mubr.f32.gmra.mrb[0].mxu0 %v724
      %v4758 = vpop.f32.mrb[0].mxu0
      %v4759 = vadd.f32 0.0, %v4758
      %v4760 = vpop.f32.mrb[0].mxu0
      %4761 = vmatprep.mubr.f32.mxu0 0.0
      %4762 = vmatmul.mubr.f32.gmra.mrb[0].mxu0 %v726
      %v4763 = vpop.f32.mrb[0].mxu0
      %v4764 = vadd.f32 0.0, %v4763
      %v4765 = vpop.f32.mrb[0].mxu0
      %4766 = vmatprep.mubr.f32.mxu0 0.0
      %4767 = vmatmul.mubr.f32.gmra.mrb[0].mxu0 %v728
      %v4768 = vpop.f32.mrb[0].mxu0
      %v4769 = vadd.f32 0.0, %v4768
      %v4770 = vpop.f32.mrb[0].mxu0
      %4771 = vmatprep.mubr.f32.mxu0 0.0
      %4772 = vmatmul.mubr.f32.gmra.mrb[0].mxu0 %v730
      %v4773 = vpop.f32.mrb[0].mxu0
      %v4774 = vadd.f32 0.0, %v4773
      %v4775 = vpop.f32.mrb[0].mxu0
      %4776 = vmatprep.mubr.f32.mxu0 0.0
      %4777 = vmatmul.mubr.f32.gmra.mrb[0].mxu0 %v732
      %v4778 = vpop.f32.mrb[0].mxu0
      %v4779 = vadd.f32 0.0, %v4778
      %v4780 = vpop.f32.mrb[0].mxu0
      %4781 = vmatprep.mubr.f32.mxu0 0.0
      %4782 = vmatmul.mubr.f32.gmra.mrb[0].mxu0 %v2972
      %v4783 = vpop.f32.mrb[0].mxu0
      %v4784 = vadd.f32 0.0, %v4783
      %v4785 = vpop.f32.mrb[0].mxu0
      %4786 = vmatprep.mubr.f32.mxu0 0.0
      %4787 = vmatmul.mubr.f32.gmra.mrb[0].mxu0 %v4600
      %v4788 = vpop.f32.mrb[0].mxu0
      %v4789 = vadd.f32 0.0, %v4788
      %v4790 = vpop.f32.mrb[0].mxu0
      %4791 = vmatprep.mubr.f32.mxu0 0.0
      %4792 = vmatmul.mubr.f32.gmra.mrb[0].mxu0 %v738
      %v4793 = vpop.f32.mrb[0].mxu0
      %v4794 = vadd.f32 0.0, %v4793
      %v4795 = vpop.f32.mrb[0].mxu0
      %4796 = vmatprep.mubr.f32.mxu0 0.0
      %4797 = vmatmul.mubr.f32.gmra.mrb[0].mxu0 %v740
      %v4798 = vpop.f32.mrb[0].mxu0
      %v4799 = vadd.f32 0.0, %v4798
      %v4800 = vpop.f32.mrb[0].mxu0
      %4801 = vmatprep.mubr.f32.mxu0 0.0
      %4802 = vmatmul.mubr.f32.gmra.mrb[0].mxu0 %v742
      %v4803 = vpop.f32.mrb[0].mxu0
      %v4804 = vadd.f32 0.0, %v4803
      %v4805 = vpop.f32.mrb[0].mxu0
      %4806 = vmatprep.mubr.f32.mxu0 0.0
      %4807 = vmatmul.mubr.f32.gmra.mrb[0].mxu0 %v744
      %v4808 = vpop.f32.mrb[0].mxu0
      %v4809 = vadd.f32 0.0, %v4808
      %v4810 = vpop.f32.mrb[0].mxu0
      %4811 = vmatprep.mubr.f32.mxu0 0.0
      %4812 = vmatmul.mubr.f32.gmra.mrb[0].mxu0 %v746
      %v4813 = vpop.f32.mrb[0].mxu0
      %v4814 = vadd.f32 0.0, %v4813
      %v4815 = vpop.f32.mrb[0].mxu0
      %4816 = vmatprep.mubr.f32.mxu0 0.0
      %4817 = vmatmul.mubr.f32.gmra.mrb[0].mxu0 %v748
      %v4818 = vpop.f32.mrb[0].mxu0
      %v4819 = vadd.f32 0.0, %v4818
      %v4820 = vpop.f32.mrb[0].mxu0
      %4821 = vmatprep.mubr.f32.mxu0 0.0
      %4822 = vmatmul.mubr.f32.gmra.mrb[0].mxu0 %v2974
      %v4823 = vpop.f32.mrb[0].mxu0
      %v4824 = vadd.f32 0.0, %v4823
      %v4825 = vpop.f32.mrb[0].mxu0
      %4826 = vmatprep.mubr.f32.mxu0 0.0
      %4827 = vmatmul.mubr.f32.gmra.mrb[0].mxu0 %v4602
      %v4828 = vpop.f32.mrb[0].mxu0
      %v4829 = vadd.f32 0.0, %v4828
      %v4830 = vpop.f32.mrb[0].mxu0
      %4831 = vdwg.mxu0
      %v4832 = vadd.f32 %v4284, %v4674
      %v4833 = vadd.f32 %v4285, %v4679
      %v4834 = vadd.f32 %v4286, %v4684
      %v4835 = vadd.f32 %v4287, %v4689
      %v4836 = vadd.f32 %v4288, %v4694
      %v4837 = vadd.f32 %v4289, %v4699
      %v4838 = vadd.f32 %v4290, %v4704
      %v4839 = vadd.f32 %v4291, %v4709
      %v4840 = vadd.f32 %v4292, %v4714
      %v4841 = vadd.f32 %v4293, %v4719
      %v4842 = vadd.f32 %v4294, %v4724
      %v4843 = vadd.f32 %v4295, %v4729
      %v4844 = vadd.f32 %v4296, %v4734
      %v4845 = vadd.f32 %v4297, %v4739
      %v4846 = vadd.f32 %v4298, %v4744
      %v4847 = vadd.f32 %v4299, %v4749
      %v4848 = vadd.f32 %v4300, %v4754
      %v4849 = vadd.f32 %v4301, %v4759
      %v4850 = vadd.f32 %v4302, %v4764
      %v4851 = vadd.f32 %v4303, %v4769
      %v4852 = vadd.f32 %v4304, %v4774
      %v4853 = vadd.f32 %v4305, %v4779
      %v4854 = vadd.f32 %v4306, %v4784
      %v4855 = vadd.f32 %v4307, %v4789
      %v4856 = vadd.f32 %v4308, %v4794
      %v4857 = vadd.f32 %v4309, %v4799
      %v4858 = vadd.f32 %v4310, %v4804
      %v4859 = vadd.f32 %v4311, %v4809
      %v4860 = vadd.f32 %v4312, %v4814
      %v4861 = vadd.f32 %v4313, %v4819
      %v4862 = vadd.f32 %v4314, %v4824
      %v4863 = vadd.f32 %v4315, %v4829
      %s4864 = scalar_lea.vmem %s2, 28
      %v4865 = vld [vmem:[%s4864] sm:$0xf]
      %v4867 = vsel %vm750, %v4865, 0
      %4869 = vmatprep.subr.mxu0 0.0
      %4870 = vmatpush1.msra.mxu0 %v4867
      %4871 = vmatprep.subr.mxu0 0.0
      %4872 = vmatpush1.msra.mxu0 0.0
      %4873 = vmatprep.subr.mxu0 0.0
      %4874 = vmatpush1.msra.mxu0 0.0
      %4875 = vmatprep.subr.mxu0 0.0
      %4876 = vmatpush1.msra.mxu0 0.0
      %4877 = vmatprep.subr.mxu0 0.0
      %4878 = vmatpush1.msra.mxu0 0.0
      %4879 = vmatprep.subr.mxu0 0.0
      %4880 = vmatpush1.msra.mxu0 0.0
      %4881 = vmatprep.subr.mxu0 0.0
      %4882 = vmatpush1.msra.mxu0 0.0
      %4883 = vmatprep.subr.mxu0 0.0
      %4884 = vmatpush1.msra.mxu0 0.0
      %4885 = vmatprep.subr.mxu0 0.0
      %4886 = vmatpush1.msra.mxu0 0.0
      %4887 = vmatprep.subr.mxu0 0.0
      %4888 = vmatpush1.msra.mxu0 0.0
      %4889 = vmatprep.subr.mxu0 0.0
      %4890 = vmatpush1.msra.mxu0 0.0
      %4891 = vmatprep.subr.mxu0 0.0
      %4892 = vmatpush1.msra.mxu0 0.0
      %4893 = vmatprep.subr.mxu0 0.0
      %4894 = vmatpush1.msra.mxu0 0.0
      %4895 = vmatprep.subr.mxu0 0.0
      %4896 = vmatpush1.msra.mxu0 0.0
      %4897 = vmatprep.subr.mxu0 0.0
      %4898 = vmatpush1.msra.mxu0 0.0
      %4899 = vmatprep.subr.mxu0 0.0
      %4900 = vmatpush1.msra.mxu0 0.0
      %4901 = vmatprep.subr.mxu0 0.0
      %4902 = vmatpush1.msra.mxu0 0.0
      %4903 = vmatprep.subr.mxu0 0.0
      %4904 = vmatpush1.msra.mxu0 0.0
      %4905 = vmatprep.subr.mxu0 0.0
      %4906 = vmatpush1.msra.mxu0 0.0
      %4907 = vmatprep.subr.mxu0 0.0
      %4908 = vmatpush1.msra.mxu0 0.0
      %4909 = vmatprep.subr.mxu0 0.0
      %4910 = vmatpush1.msra.mxu0 0.0
      %4911 = vmatprep.subr.mxu0 0.0
      %4912 = vmatpush1.msra.mxu0 0.0
      %4913 = vmatprep.subr.mxu0 0.0
      %4914 = vmatpush1.msra.mxu0 0.0
      %4915 = vmatprep.subr.mxu0 0.0
      %4916 = vmatpush1.msra.mxu0 0.0
      %4917 = vmatprep.subr.mxu0 0.0
      %4918 = vmatpush1.msra.mxu0 0.0
      %4919 = vmatprep.subr.mxu0 0.0
      %4920 = vmatpush1.msra.mxu0 0.0
      %4921 = vmatprep.subr.mxu0 0.0
      %4922 = vmatpush1.msra.mxu0 0.0
      %4923 = vmatprep.subr.mxu0 0.0
      %4924 = vmatpush1.msra.mxu0 0.0
      %4925 = vmatprep.subr.mxu0 0.0
      %4926 = vmatpush1.msra.mxu0 0.0
      %4927 = vmatprep.subr.mxu0 0.0
      %4928 = vmatpush1.msra.mxu0 0.0
      %4929 = vmatprep.subr.mxu0 0.0
      %4930 = vmatpush1.msra.mxu0 0.0
      %4931 = vmatprep.subr.mxu0 0.0
      %4932 = vmatpush1.msra.mxu0 0.0
      %4933 = vmatprep.mubr.f32.mxu0 0.0
      %4934 = vmatmul.mubr.f32.gmra.mrb[0].mxu0 %v690
      %v4935 = vpop.f32.mrb[0].mxu0
      %v4936 = vadd.f32 0.0, %v4935
      %v4937 = vpop.f32.mrb[0].mxu0
      %4938 = vmatprep.mubr.f32.mxu0 0.0
      %4939 = vmatmul.mubr.f32.gmra.mrb[0].mxu0 %v692
      %v4940 = vpop.f32.mrb[0].mxu0
      %v4941 = vadd.f32 0.0, %v4940
      %v4942 = vpop.f32.mrb[0].mxu0
      %4943 = vmatprep.mubr.f32.mxu0 0.0
      %4944 = vmatmul.mubr.f32.gmra.mrb[0].mxu0 %v694
      %v4945 = vpop.f32.mrb[0].mxu0
      %v4946 = vadd.f32 0.0, %v4945
      %v4947 = vpop.f32.mrb[0].mxu0
      %4948 = vmatprep.mubr.f32.mxu0 0.0
      %4949 = vmatmul.mubr.f32.gmra.mrb[0].mxu0 %v696
      %v4950 = vpop.f32.mrb[0].mxu0
      %v4951 = vadd.f32 0.0, %v4950
      %v4952 = vpop.f32.mrb[0].mxu0
      %4953 = vmatprep.mubr.f32.mxu0 0.0
      %4954 = vmatmul.mubr.f32.gmra.mrb[0].mxu0 %v698
      %v4955 = vpop.f32.mrb[0].mxu0
      %v4956 = vadd.f32 0.0, %v4955
      %v4957 = vpop.f32.mrb[0].mxu0
      %4958 = vmatprep.mubr.f32.mxu0 0.0
      %4959 = vmatmul.mubr.f32.gmra.mrb[0].mxu0 %v700
      %v4960 = vpop.f32.mrb[0].mxu0
      %v4961 = vadd.f32 0.0, %v4960
      %v4962 = vpop.f32.mrb[0].mxu0
      %4963 = vmatprep.mubr.f32.mxu0 0.0
      %4964 = vmatmul.mubr.f32.gmra.mrb[0].mxu0 %v2968
      %v4965 = vpop.f32.mrb[0].mxu0
      %v4966 = vadd.f32 0.0, %v4965
      %v4967 = vpop.f32.mrb[0].mxu0
      %4968 = vmatprep.mubr.f32.mxu0 0.0
      %4969 = vmatmul.mubr.f32.gmra.mrb[0].mxu0 %v4596
      %v4970 = vpop.f32.mrb[0].mxu0
      %v4971 = vadd.f32 0.0, %v4970
      %v4972 = vpop.f32.mrb[0].mxu0
      %4973 = vmatprep.mubr.f32.mxu0 0.0
      %4974 = vmatmul.mubr.f32.gmra.mrb[0].mxu0 %v706
      %v4975 = vpop.f32.mrb[0].mxu0
      %v4976 = vadd.f32 0.0, %v4975
      %v4977 = vpop.f32.mrb[0].mxu0
      %4978 = vmatprep.mubr.f32.mxu0 0.0
      %4979 = vmatmul.mubr.f32.gmra.mrb[0].mxu0 %v708
      %v4980 = vpop.f32.mrb[0].mxu0
      %v4981 = vadd.f32 0.0, %v4980
      %v4982 = vpop.f32.mrb[0].mxu0
      %4983 = vmatprep.mubr.f32.mxu0 0.0
      %4984 = vmatmul.mubr.f32.gmra.mrb[0].mxu0 %v710
      %v4985 = vpop.f32.mrb[0].mxu0
      %v4986 = vadd.f32 0.0, %v4985
      %v4987 = vpop.f32.mrb[0].mxu0
      %4988 = vmatprep.mubr.f32.mxu0 0.0
      %4989 = vmatmul.mubr.f32.gmra.mrb[0].mxu0 %v712
      %v4990 = vpop.f32.mrb[0].mxu0
      %v4991 = vadd.f32 0.0, %v4990
      %v4992 = vpop.f32.mrb[0].mxu0
      %4993 = vmatprep.mubr.f32.mxu0 0.0
      %4994 = vmatmul.mubr.f32.gmra.mrb[0].mxu0 %v714
      %v4995 = vpop.f32.mrb[0].mxu0
      %v4996 = vadd.f32 0.0, %v4995
      %v4997 = vpop.f32.mrb[0].mxu0
      %4998 = vmatprep.mubr.f32.mxu0 0.0
      %4999 = vmatmul.mubr.f32.gmra.mrb[0].mxu0 %v716
      %v5000 = vpop.f32.mrb[0].mxu0
      %v5001 = vadd.f32 0.0, %v5000
      %v5002 = vpop.f32.mrb[0].mxu0
      %5003 = vmatprep.mubr.f32.mxu0 0.0
      %5004 = vmatmul.mubr.f32.gmra.mrb[0].mxu0 %v2970
      %v5005 = vpop.f32.mrb[0].mxu0
      %v5006 = vadd.f32 0.0, %v5005
      %v5007 = vpop.f32.mrb[0].mxu0
      %5008 = vmatprep.mubr.f32.mxu0 0.0
      %5009 = vmatmul.mubr.f32.gmra.mrb[0].mxu0 %v4598
      %v5010 = vpop.f32.mrb[0].mxu0
      %v5011 = vadd.f32 0.0, %v5010
      %v5012 = vpop.f32.mrb[0].mxu0
      %5013 = vmatprep.mubr.f32.mxu0 0.0
      %5014 = vmatmul.mubr.f32.gmra.mrb[0].mxu0 %v722
      %v5015 = vpop.f32.mrb[0].mxu0
      %v5016 = vadd.f32 0.0, %v5015
      %v5017 = vpop.f32.mrb[0].mxu0
      %5018 = vmatprep.mubr.f32.mxu0 0.0
      %5019 = vmatmul.mubr.f32.gmra.mrb[0].mxu0 %v724
      %v5020 = vpop.f32.mrb[0].mxu0
      %v5021 = vadd.f32 0.0, %v5020
      %v5022 = vpop.f32.mrb[0].mxu0
      %5023 = vmatprep.mubr.f32.mxu0 0.0
      %5024 = vmatmul.mubr.f32.gmra.mrb[0].mxu0 %v726
      %v5025 = vpop.f32.mrb[0].mxu0
      %v5026 = vadd.f32 0.0, %v5025
      %v5027 = vpop.f32.mrb[0].mxu0
      %5028 = vmatprep.mubr.f32.mxu0 0.0
      %5029 = vmatmul.mubr.f32.gmra.mrb[0].mxu0 %v728
      %v5030 = vpop.f32.mrb[0].mxu0
      %v5031 = vadd.f32 0.0, %v5030
      %v5032 = vpop.f32.mrb[0].mxu0
      %5033 = vmatprep.mubr.f32.mxu0 0.0
      %5034 = vmatmul.mubr.f32.gmra.mrb[0].mxu0 %v730
      %v5035 = vpop.f32.mrb[0].mxu0
      %v5036 = vadd.f32 0.0, %v5035
      %v5037 = vpop.f32.mrb[0].mxu0
      %5038 = vmatprep.mubr.f32.mxu0 0.0
      %5039 = vmatmul.mubr.f32.gmra.mrb[0].mxu0 %v732
      %v5040 = vpop.f32.mrb[0].mxu0
      %v5041 = vadd.f32 0.0, %v5040
      %v5042 = vpop.f32.mrb[0].mxu0
      %5043 = vmatprep.mubr.f32.mxu0 0.0
      %5044 = vmatmul.mubr.f32.gmra.mrb[0].mxu0 %v2972
      %v5045 = vpop.f32.mrb[0].mxu0
      %v5046 = vadd.f32 0.0, %v5045
      %v5047 = vpop.f32.mrb[0].mxu0
      %5048 = vmatprep.mubr.f32.mxu0 0.0
      %5049 = vmatmul.mubr.f32.gmra.mrb[0].mxu0 %v4600
      %v5050 = vpop.f32.mrb[0].mxu0
      %v5051 = vadd.f32 0.0, %v5050
      %v5052 = vpop.f32.mrb[0].mxu0
      %5053 = vmatprep.mubr.f32.mxu0 0.0
      %5054 = vmatmul.mubr.f32.gmra.mrb[0].mxu0 %v738
      %v5055 = vpop.f32.mrb[0].mxu0
      %v5056 = vadd.f32 0.0, %v5055
      %v5057 = vpop.f32.mrb[0].mxu0
      %5058 = vmatprep.mubr.f32.mxu0 0.0
      %5059 = vmatmul.mubr.f32.gmra.mrb[0].mxu0 %v740
      %v5060 = vpop.f32.mrb[0].mxu0
      %v5061 = vadd.f32 0.0, %v5060
      %v5062 = vpop.f32.mrb[0].mxu0
      %5063 = vmatprep.mubr.f32.mxu0 0.0
      %5064 = vmatmul.mubr.f32.gmra.mrb[0].mxu0 %v742
      %v5065 = vpop.f32.mrb[0].mxu0
      %v5066 = vadd.f32 0.0, %v5065
      %v5067 = vpop.f32.mrb[0].mxu0
      %5068 = vmatprep.mubr.f32.mxu0 0.0
      %5069 = vmatmul.mubr.f32.gmra.mrb[0].mxu0 %v744
      %v5070 = vpop.f32.mrb[0].mxu0
      %v5071 = vadd.f32 0.0, %v5070
      %v5072 = vpop.f32.mrb[0].mxu0
      %5073 = vmatprep.mubr.f32.mxu0 0.0
      %5074 = vmatmul.mubr.f32.gmra.mrb[0].mxu0 %v746
      %v5075 = vpop.f32.mrb[0].mxu0
      %v5076 = vadd.f32 0.0, %v5075
      %v5077 = vpop.f32.mrb[0].mxu0
      %5078 = vmatprep.mubr.f32.mxu0 0.0
      %5079 = vmatmul.mubr.f32.gmra.mrb[0].mxu0 %v748
      %v5080 = vpop.f32.mrb[0].mxu0
      %v5081 = vadd.f32 0.0, %v5080
      %v5082 = vpop.f32.mrb[0].mxu0
      %5083 = vmatprep.mubr.f32.mxu0 0.0
      %5084 = vmatmul.mubr.f32.gmra.mrb[0].mxu0 %v2974
      %v5085 = vpop.f32.mrb[0].mxu0
      %v5086 = vadd.f32 0.0, %v5085
      %v5087 = vpop.f32.mrb[0].mxu0
      %5088 = vmatprep.mubr.f32.mxu0 0.0
      %5089 = vmatmul.mubr.f32.gmra.mrb[0].mxu0 %v4602
      %v5090 = vpop.f32.mrb[0].mxu0
      %v5091 = vadd.f32 0.0, %v5090
      %v5092 = vpop.f32.mrb[0].mxu0
      %5093 = vdwg.mxu0
      %v5094 = vadd.f32 %v4546, %v4936
      %v5095 = vadd.f32 %v4547, %v4941
      %v5096 = vadd.f32 %v4548, %v4946
      %v5097 = vadd.f32 %v4549, %v4951
      %v5098 = vadd.f32 %v4550, %v4956
      %v5099 = vadd.f32 %v4551, %v4961
      %v5100 = vadd.f32 %v4552, %v4966
      %v5101 = vadd.f32 %v4553, %v4971
      %v5102 = vadd.f32 %v4554, %v4976
      %v5103 = vadd.f32 %v4555, %v4981
      %v5104 = vadd.f32 %v4556, %v4986
      %v5105 = vadd.f32 %v4557, %v4991
      %v5106 = vadd.f32 %v4558, %v4996
      %v5107 = vadd.f32 %v4559, %v5001
      %v5108 = vadd.f32 %v4560, %v5006
      %v5109 = vadd.f32 %v4561, %v5011
      %v5110 = vadd.f32 %v4562, %v5016
      %v5111 = vadd.f32 %v4563, %v5021
      %v5112 = vadd.f32 %v4564, %v5026
      %v5113 = vadd.f32 %v4565, %v5031
      %v5114 = vadd.f32 %v4566, %v5036
      %v5115 = vadd.f32 %v4567, %v5041
      %v5116 = vadd.f32 %v4568, %v5046
      %v5117 = vadd.f32 %v4569, %v5051
      %v5118 = vadd.f32 %v4570, %v5056
      %v5119 = vadd.f32 %v4571, %v5061
      %v5120 = vadd.f32 %v4572, %v5066
      %v5121 = vadd.f32 %v4573, %v5071
      %v5122 = vadd.f32 %v4574, %v5076
      %v5123 = vadd.f32 %v4575, %v5081
      %v5124 = vadd.f32 %v4576, %v5086
      %v5125 = vadd.f32 %v4577, %v5091
      %v5126 = vrot.slane %v459, 2
      %v5127 = vrot.slane %v460, 2
      %v5128 = vsel %vm1729, %v5126, %v5127
      %v5129 = vrot.slane %v479, 2
      %v5130 = vrot.slane %v480, 2
      %v5131 = vsel %vm1729, %v5129, %v5130
      %v5132 = vrot.slane %v499, 2
      %v5133 = vrot.slane %v500, 2
      %v5134 = vsel %vm1729, %v5132, %v5133
      %v5135 = vrot.slane %v519, 2
      %v5136 = vrot.slane %v520, 2
      %v5137 = vsel %vm1729, %v5135, %v5136
      %s5138 = scalar_lea.vmem %s1, 32
      %v5139 = vld [vmem:[%s5138] sm:$0xf]
      %v5140 = vsel %vm276, %v5128, 0
      %v5142 = vsel %vm276, %v5131, 0
      %v5144 = vsel %vm276, %v5134, 0
      %v5146 = vsel %vm276, %v5137, 0
      %v5149 = vsel %vm750, %v5139, 0
      %5151 = vmatprep.subr.mxu0 0.0
      %5152 = vmatpush1.msra.mxu0 %v5149
      %5153 = vmatprep.subr.mxu0 0.0
      %5154 = vmatpush1.msra.mxu0 0.0
      %5155 = vmatprep.subr.mxu0 0.0
      %5156 = vmatpush1.msra.mxu0 0.0
      %5157 = vmatprep.subr.mxu0 0.0
      %5158 = vmatpush1.msra.mxu0 0.0
      %5159 = vmatprep.subr.mxu0 0.0
      %5160 = vmatpush1.msra.mxu0 0.0
      %5161 = vmatprep.subr.mxu0 0.0
      %5162 = vmatpush1.msra.mxu0 0.0
      %5163 = vmatprep.subr.mxu0 0.0
      %5164 = vmatpush1.msra.mxu0 0.0
      %5165 = vmatprep.subr.mxu0 0.0
      %5166 = vmatpush1.msra.mxu0 0.0
      %5167 = vmatprep.subr.mxu0 0.0
      %5168 = vmatpush1.msra.mxu0 0.0
      %5169 = vmatprep.subr.mxu0 0.0
      %5170 = vmatpush1.msra.mxu0 0.0
      %5171 = vmatprep.subr.mxu0 0.0
      %5172 = vmatpush1.msra.mxu0 0.0
      %5173 = vmatprep.subr.mxu0 0.0
      %5174 = vmatpush1.msra.mxu0 0.0
      %5175 = vmatprep.subr.mxu0 0.0
      %5176 = vmatpush1.msra.mxu0 0.0
      %5177 = vmatprep.subr.mxu0 0.0
      %5178 = vmatpush1.msra.mxu0 0.0
      %5179 = vmatprep.subr.mxu0 0.0
      %5180 = vmatpush1.msra.mxu0 0.0
      %5181 = vmatprep.subr.mxu0 0.0
      %5182 = vmatpush1.msra.mxu0 0.0
      %5183 = vmatprep.subr.mxu0 0.0
      %5184 = vmatpush1.msra.mxu0 0.0
      %5185 = vmatprep.subr.mxu0 0.0
      %5186 = vmatpush1.msra.mxu0 0.0
      %5187 = vmatprep.subr.mxu0 0.0
      %5188 = vmatpush1.msra.mxu0 0.0
      %5189 = vmatprep.subr.mxu0 0.0
      %5190 = vmatpush1.msra.mxu0 0.0
      %5191 = vmatprep.subr.mxu0 0.0
      %5192 = vmatpush1.msra.mxu0 0.0
      %5193 = vmatprep.subr.mxu0 0.0
      %5194 = vmatpush1.msra.mxu0 0.0
      %5195 = vmatprep.subr.mxu0 0.0
      %5196 = vmatpush1.msra.mxu0 0.0
      %5197 = vmatprep.subr.mxu0 0.0
      %5198 = vmatpush1.msra.mxu0 0.0
      %5199 = vmatprep.subr.mxu0 0.0
      %5200 = vmatpush1.msra.mxu0 0.0
      %5201 = vmatprep.subr.mxu0 0.0
      %5202 = vmatpush1.msra.mxu0 0.0
      %5203 = vmatprep.subr.mxu0 0.0
      %5204 = vmatpush1.msra.mxu0 0.0
      %5205 = vmatprep.subr.mxu0 0.0
      %5206 = vmatpush1.msra.mxu0 0.0
      %5207 = vmatprep.subr.mxu0 0.0
      %5208 = vmatpush1.msra.mxu0 0.0
      %5209 = vmatprep.subr.mxu0 0.0
      %5210 = vmatpush1.msra.mxu0 0.0
      %5211 = vmatprep.subr.mxu0 0.0
      %5212 = vmatpush1.msra.mxu0 0.0
      %5213 = vmatprep.subr.mxu0 0.0
      %5214 = vmatpush1.msra.mxu0 0.0
      %5215 = vmatprep.mubr.f32.mxu0 0.0
      %5216 = vmatmul.mubr.f32.gmra.mrb[0].mxu0 %v1832
      %v5217 = vpop.f32.mrb[0].mxu0
      %v5218 = vadd.f32 0.0, %v5217
      %v5219 = vpop.f32.mrb[0].mxu0
      %5220 = vmatprep.mubr.f32.mxu0 0.0
      %5221 = vmatmul.mubr.f32.gmra.mrb[0].mxu0 %v1834
      %v5222 = vpop.f32.mrb[0].mxu0
      %v5223 = vadd.f32 0.0, %v5222
      %v5224 = vpop.f32.mrb[0].mxu0
      %5225 = vmatprep.mubr.f32.mxu0 0.0
      %5226 = vmatmul.mubr.f32.gmra.mrb[0].mxu0 %v1836
      %v5227 = vpop.f32.mrb[0].mxu0
      %v5228 = vadd.f32 0.0, %v5227
      %v5229 = vpop.f32.mrb[0].mxu0
      %5230 = vmatprep.mubr.f32.mxu0 0.0
      %5231 = vmatmul.mubr.f32.gmra.mrb[0].mxu0 %v1838
      %v5232 = vpop.f32.mrb[0].mxu0
      %v5233 = vadd.f32 0.0, %v5232
      %v5234 = vpop.f32.mrb[0].mxu0
      %5235 = vmatprep.mubr.f32.mxu0 0.0
      %5236 = vmatmul.mubr.f32.gmra.mrb[0].mxu0 %v1840
      %v5237 = vpop.f32.mrb[0].mxu0
      %v5238 = vadd.f32 0.0, %v5237
      %v5239 = vpop.f32.mrb[0].mxu0
      %5240 = vmatprep.mubr.f32.mxu0 0.0
      %5241 = vmatmul.mubr.f32.gmra.mrb[0].mxu0 %v1842
      %v5242 = vpop.f32.mrb[0].mxu0
      %v5243 = vadd.f32 0.0, %v5242
      %v5244 = vpop.f32.mrb[0].mxu0
      %5245 = vmatprep.mubr.f32.mxu0 0.0
      %5246 = vmatmul.mubr.f32.gmra.mrb[0].mxu0 %v3512
      %v5247 = vpop.f32.mrb[0].mxu0
      %v5248 = vadd.f32 0.0, %v5247
      %v5249 = vpop.f32.mrb[0].mxu0
      %5250 = vmatprep.mubr.f32.mxu0 0.0
      %5251 = vmatmul.mubr.f32.gmra.mrb[0].mxu0 %v5140
      %v5252 = vpop.f32.mrb[0].mxu0
      %v5253 = vadd.f32 0.0, %v5252
      %v5254 = vpop.f32.mrb[0].mxu0
      %5255 = vmatprep.mubr.f32.mxu0 0.0
      %5256 = vmatmul.mubr.f32.gmra.mrb[0].mxu0 %v1848
      %v5257 = vpop.f32.mrb[0].mxu0
      %v5258 = vadd.f32 0.0, %v5257
      %v5259 = vpop.f32.mrb[0].mxu0
      %5260 = vmatprep.mubr.f32.mxu0 0.0
      %5261 = vmatmul.mubr.f32.gmra.mrb[0].mxu0 %v1850
      %v5262 = vpop.f32.mrb[0].mxu0
      %v5263 = vadd.f32 0.0, %v5262
      %v5264 = vpop.f32.mrb[0].mxu0
      %5265 = vmatprep.mubr.f32.mxu0 0.0
      %5266 = vmatmul.mubr.f32.gmra.mrb[0].mxu0 %v1852
      %v5267 = vpop.f32.mrb[0].mxu0
      %v5268 = vadd.f32 0.0, %v5267
      %v5269 = vpop.f32.mrb[0].mxu0
      %5270 = vmatprep.mubr.f32.mxu0 0.0
      %5271 = vmatmul.mubr.f32.gmra.mrb[0].mxu0 %v1854
      %v5272 = vpop.f32.mrb[0].mxu0
      %v5273 = vadd.f32 0.0, %v5272
      %v5274 = vpop.f32.mrb[0].mxu0
      %5275 = vmatprep.mubr.f32.mxu0 0.0
      %5276 = vmatmul.mubr.f32.gmra.mrb[0].mxu0 %v1856
      %v5277 = vpop.f32.mrb[0].mxu0
      %v5278 = vadd.f32 0.0, %v5277
      %v5279 = vpop.f32.mrb[0].mxu0
      %5280 = vmatprep.mubr.f32.mxu0 0.0
      %5281 = vmatmul.mubr.f32.gmra.mrb[0].mxu0 %v1858
      %v5282 = vpop.f32.mrb[0].mxu0
      %v5283 = vadd.f32 0.0, %v5282
      %v5284 = vpop.f32.mrb[0].mxu0
      %5285 = vmatprep.mubr.f32.mxu0 0.0
      %5286 = vmatmul.mubr.f32.gmra.mrb[0].mxu0 %v3514
      %v5287 = vpop.f32.mrb[0].mxu0
      %v5288 = vadd.f32 0.0, %v5287
      %v5289 = vpop.f32.mrb[0].mxu0
      %5290 = vmatprep.mubr.f32.mxu0 0.0
      %5291 = vmatmul.mubr.f32.gmra.mrb[0].mxu0 %v5142
      %v5292 = vpop.f32.mrb[0].mxu0
      %v5293 = vadd.f32 0.0, %v5292
      %v5294 = vpop.f32.mrb[0].mxu0
      %5295 = vmatprep.mubr.f32.mxu0 0.0
      %5296 = vmatmul.mubr.f32.gmra.mrb[0].mxu0 %v1864
      %v5297 = vpop.f32.mrb[0].mxu0
      %v5298 = vadd.f32 0.0, %v5297
      %v5299 = vpop.f32.mrb[0].mxu0
      %5300 = vmatprep.mubr.f32.mxu0 0.0
      %5301 = vmatmul.mubr.f32.gmra.mrb[0].mxu0 %v1866
      %v5302 = vpop.f32.mrb[0].mxu0
      %v5303 = vadd.f32 0.0, %v5302
      %v5304 = vpop.f32.mrb[0].mxu0
      %5305 = vmatprep.mubr.f32.mxu0 0.0
      %5306 = vmatmul.mubr.f32.gmra.mrb[0].mxu0 %v1868
      %v5307 = vpop.f32.mrb[0].mxu0
      %v5308 = vadd.f32 0.0, %v5307
      %v5309 = vpop.f32.mrb[0].mxu0
      %5310 = vmatprep.mubr.f32.mxu0 0.0
      %5311 = vmatmul.mubr.f32.gmra.mrb[0].mxu0 %v1870
      %v5312 = vpop.f32.mrb[0].mxu0
      %v5313 = vadd.f32 0.0, %v5312
      %v5314 = vpop.f32.mrb[0].mxu0
      %5315 = vmatprep.mubr.f32.mxu0 0.0
      %5316 = vmatmul.mubr.f32.gmra.mrb[0].mxu0 %v1872
      %v5317 = vpop.f32.mrb[0].mxu0
      %v5318 = vadd.f32 0.0, %v5317
      %v5319 = vpop.f32.mrb[0].mxu0
      %5320 = vmatprep.mubr.f32.mxu0 0.0
      %5321 = vmatmul.mubr.f32.gmra.mrb[0].mxu0 %v1874
      %v5322 = vpop.f32.mrb[0].mxu0
      %v5323 = vadd.f32 0.0, %v5322
      %v5324 = vpop.f32.mrb[0].mxu0
      %5325 = vmatprep.mubr.f32.mxu0 0.0
      %5326 = vmatmul.mubr.f32.gmra.mrb[0].mxu0 %v3516
      %v5327 = vpop.f32.mrb[0].mxu0
      %v5328 = vadd.f32 0.0, %v5327
      %v5329 = vpop.f32.mrb[0].mxu0
      %5330 = vmatprep.mubr.f32.mxu0 0.0
      %5331 = vmatmul.mubr.f32.gmra.mrb[0].mxu0 %v5144
      %v5332 = vpop.f32.mrb[0].mxu0
      %v5333 = vadd.f32 0.0, %v5332
      %v5334 = vpop.f32.mrb[0].mxu0
      %5335 = vmatprep.mubr.f32.mxu0 0.0
      %5336 = vmatmul.mubr.f32.gmra.mrb[0].mxu0 %v1880
      %v5337 = vpop.f32.mrb[0].mxu0
      %v5338 = vadd.f32 0.0, %v5337
      %v5339 = vpop.f32.mrb[0].mxu0
      %5340 = vmatprep.mubr.f32.mxu0 0.0
      %5341 = vmatmul.mubr.f32.gmra.mrb[0].mxu0 %v1882
      %v5342 = vpop.f32.mrb[0].mxu0
      %v5343 = vadd.f32 0.0, %v5342
      %v5344 = vpop.f32.mrb[0].mxu0
      %5345 = vmatprep.mubr.f32.mxu0 0.0
      %5346 = vmatmul.mubr.f32.gmra.mrb[0].mxu0 %v1884
      %v5347 = vpop.f32.mrb[0].mxu0
      %v5348 = vadd.f32 0.0, %v5347
      %v5349 = vpop.f32.mrb[0].mxu0
      %5350 = vmatprep.mubr.f32.mxu0 0.0
      %5351 = vmatmul.mubr.f32.gmra.mrb[0].mxu0 %v1886
      %v5352 = vpop.f32.mrb[0].mxu0
      %v5353 = vadd.f32 0.0, %v5352
      %v5354 = vpop.f32.mrb[0].mxu0
      %5355 = vmatprep.mubr.f32.mxu0 0.0
      %5356 = vmatmul.mubr.f32.gmra.mrb[0].mxu0 %v1888
      %v5357 = vpop.f32.mrb[0].mxu0
      %v5358 = vadd.f32 0.0, %v5357
      %v5359 = vpop.f32.mrb[0].mxu0
      %5360 = vmatprep.mubr.f32.mxu0 0.0
      %5361 = vmatmul.mubr.f32.gmra.mrb[0].mxu0 %v1890
      %v5362 = vpop.f32.mrb[0].mxu0
      %v5363 = vadd.f32 0.0, %v5362
      %v5364 = vpop.f32.mrb[0].mxu0
      %5365 = vmatprep.mubr.f32.mxu0 0.0
      %5366 = vmatmul.mubr.f32.gmra.mrb[0].mxu0 %v3518
      %v5367 = vpop.f32.mrb[0].mxu0
      %v5368 = vadd.f32 0.0, %v5367
      %v5369 = vpop.f32.mrb[0].mxu0
      %5370 = vmatprep.mubr.f32.mxu0 0.0
      %5371 = vmatmul.mubr.f32.gmra.mrb[0].mxu0 %v5146
      %v5372 = vpop.f32.mrb[0].mxu0
      %v5373 = vadd.f32 0.0, %v5372
      %v5374 = vpop.f32.mrb[0].mxu0
      %5375 = vdwg.mxu0
      %v5376 = vadd.f32 %v4832, %v5218
      %v5377 = vadd.f32 %v4833, %v5223
      %v5378 = vadd.f32 %v4834, %v5228
      %v5379 = vadd.f32 %v4835, %v5233
      %v5380 = vadd.f32 %v4836, %v5238
      %v5381 = vadd.f32 %v4837, %v5243
      %v5382 = vadd.f32 %v4838, %v5248
      %v5383 = vadd.f32 %v4839, %v5253
      %v5384 = vadd.f32 %v4840, %v5258
      %v5385 = vadd.f32 %v4841, %v5263
      %v5386 = vadd.f32 %v4842, %v5268
      %v5387 = vadd.f32 %v4843, %v5273
      %v5388 = vadd.f32 %v4844, %v5278
      %v5389 = vadd.f32 %v4845, %v5283
      %v5390 = vadd.f32 %v4846, %v5288
      %v5391 = vadd.f32 %v4847, %v5293
      %v5392 = vadd.f32 %v4848, %v5298
      %v5393 = vadd.f32 %v4849, %v5303
      %v5394 = vadd.f32 %v4850, %v5308
      %v5395 = vadd.f32 %v4851, %v5313
      %v5396 = vadd.f32 %v4852, %v5318
      %v5397 = vadd.f32 %v4853, %v5323
      %v5398 = vadd.f32 %v4854, %v5328
      %v5399 = vadd.f32 %v4855, %v5333
      %v5400 = vadd.f32 %v4856, %v5338
      %v5401 = vadd.f32 %v4857, %v5343
      %v5402 = vadd.f32 %v4858, %v5348
      %v5403 = vadd.f32 %v4859, %v5353
      %v5404 = vadd.f32 %v4860, %v5358
      %v5405 = vadd.f32 %v4861, %v5363
      %v5406 = vadd.f32 %v4862, %v5368
      %v5407 = vadd.f32 %v4863, %v5373
      %s5408 = scalar_lea.vmem %s2, 32
      %v5409 = vld [vmem:[%s5408] sm:$0xf]
      %v5411 = vsel %vm750, %v5409, 0
      %5413 = vmatprep.subr.mxu0 0.0
      %5414 = vmatpush1.msra.mxu0 %v5411
      %5415 = vmatprep.subr.mxu0 0.0
      %5416 = vmatpush1.msra.mxu0 0.0
      %5417 = vmatprep.subr.mxu0 0.0
      %5418 = vmatpush1.msra.mxu0 0.0
      %5419 = vmatprep.subr.mxu0 0.0
      %5420 = vmatpush1.msra.mxu0 0.0
      %5421 = vmatprep.subr.mxu0 0.0
      %5422 = vmatpush1.msra.mxu0 0.0
      %5423 = vmatprep.subr.mxu0 0.0
      %5424 = vmatpush1.msra.mxu0 0.0
      %5425 = vmatprep.subr.mxu0 0.0
      %5426 = vmatpush1.msra.mxu0 0.0
      %5427 = vmatprep.subr.mxu0 0.0
      %5428 = vmatpush1.msra.mxu0 0.0
      %5429 = vmatprep.subr.mxu0 0.0
      %5430 = vmatpush1.msra.mxu0 0.0
      %5431 = vmatprep.subr.mxu0 0.0
      %5432 = vmatpush1.msra.mxu0 0.0
      %5433 = vmatprep.subr.mxu0 0.0
      %5434 = vmatpush1.msra.mxu0 0.0
      %5435 = vmatprep.subr.mxu0 0.0
      %5436 = vmatpush1.msra.mxu0 0.0
      %5437 = vmatprep.subr.mxu0 0.0
      %5438 = vmatpush1.msra.mxu0 0.0
      %5439 = vmatprep.subr.mxu0 0.0
      %5440 = vmatpush1.msra.mxu0 0.0
      %5441 = vmatprep.subr.mxu0 0.0
      %5442 = vmatpush1.msra.mxu0 0.0
      %5443 = vmatprep.subr.mxu0 0.0
      %5444 = vmatpush1.msra.mxu0 0.0
      %5445 = vmatprep.subr.mxu0 0.0
      %5446 = vmatpush1.msra.mxu0 0.0
      %5447 = vmatprep.subr.mxu0 0.0
      %5448 = vmatpush1.msra.mxu0 0.0
      %5449 = vmatprep.subr.mxu0 0.0
      %5450 = vmatpush1.msra.mxu0 0.0
      %5451 = vmatprep.subr.mxu0 0.0
      %5452 = vmatpush1.msra.mxu0 0.0
      %5453 = vmatprep.subr.mxu0 0.0
      %5454 = vmatpush1.msra.mxu0 0.0
      %5455 = vmatprep.subr.mxu0 0.0
      %5456 = vmatpush1.msra.mxu0 0.0
      %5457 = vmatprep.subr.mxu0 0.0
      %5458 = vmatpush1.msra.mxu0 0.0
      %5459 = vmatprep.subr.mxu0 0.0
      %5460 = vmatpush1.msra.mxu0 0.0
      %5461 = vmatprep.subr.mxu0 0.0
      %5462 = vmatpush1.msra.mxu0 0.0
      %5463 = vmatprep.subr.mxu0 0.0
      %5464 = vmatpush1.msra.mxu0 0.0
      %5465 = vmatprep.subr.mxu0 0.0
      %5466 = vmatpush1.msra.mxu0 0.0
      %5467 = vmatprep.subr.mxu0 0.0
      %5468 = vmatpush1.msra.mxu0 0.0
      %5469 = vmatprep.subr.mxu0 0.0
      %5470 = vmatpush1.msra.mxu0 0.0
      %5471 = vmatprep.subr.mxu0 0.0
      %5472 = vmatpush1.msra.mxu0 0.0
      %5473 = vmatprep.subr.mxu0 0.0
      %5474 = vmatpush1.msra.mxu0 0.0
      %5475 = vmatprep.subr.mxu0 0.0
      %5476 = vmatpush1.msra.mxu0 0.0
      %5477 = vmatprep.mubr.f32.mxu0 0.0
      %5478 = vmatmul.mubr.f32.gmra.mrb[0].mxu0 %v1832
      %v5479 = vpop.f32.mrb[0].mxu0
      %v5480 = vadd.f32 0.0, %v5479
      %v5481 = vpop.f32.mrb[0].mxu0
      %5482 = vmatprep.mubr.f32.mxu0 0.0
      %5483 = vmatmul.mubr.f32.gmra.mrb[0].mxu0 %v1834
      %v5484 = vpop.f32.mrb[0].mxu0
      %v5485 = vadd.f32 0.0, %v5484
      %v5486 = vpop.f32.mrb[0].mxu0
      %5487 = vmatprep.mubr.f32.mxu0 0.0
      %5488 = vmatmul.mubr.f32.gmra.mrb[0].mxu0 %v1836
      %v5489 = vpop.f32.mrb[0].mxu0
      %v5490 = vadd.f32 0.0, %v5489
      %v5491 = vpop.f32.mrb[0].mxu0
      %5492 = vmatprep.mubr.f32.mxu0 0.0
      %5493 = vmatmul.mubr.f32.gmra.mrb[0].mxu0 %v1838
      %v5494 = vpop.f32.mrb[0].mxu0
      %v5495 = vadd.f32 0.0, %v5494
      %v5496 = vpop.f32.mrb[0].mxu0
      %5497 = vmatprep.mubr.f32.mxu0 0.0
      %5498 = vmatmul.mubr.f32.gmra.mrb[0].mxu0 %v1840
      %v5499 = vpop.f32.mrb[0].mxu0
      %v5500 = vadd.f32 0.0, %v5499
      %v5501 = vpop.f32.mrb[0].mxu0
      %5502 = vmatprep.mubr.f32.mxu0 0.0
      %5503 = vmatmul.mubr.f32.gmra.mrb[0].mxu0 %v1842
      %v5504 = vpop.f32.mrb[0].mxu0
      %v5505 = vadd.f32 0.0, %v5504
      %v5506 = vpop.f32.mrb[0].mxu0
      %5507 = vmatprep.mubr.f32.mxu0 0.0
      %5508 = vmatmul.mubr.f32.gmra.mrb[0].mxu0 %v3512
      %v5509 = vpop.f32.mrb[0].mxu0
      %v5510 = vadd.f32 0.0, %v5509
      %v5511 = vpop.f32.mrb[0].mxu0
      %5512 = vmatprep.mubr.f32.mxu0 0.0
      %5513 = vmatmul.mubr.f32.gmra.mrb[0].mxu0 %v5140
      %v5514 = vpop.f32.mrb[0].mxu0
      %v5515 = vadd.f32 0.0, %v5514
      %v5516 = vpop.f32.mrb[0].mxu0
      %5517 = vmatprep.mubr.f32.mxu0 0.0
      %5518 = vmatmul.mubr.f32.gmra.mrb[0].mxu0 %v1848
      %v5519 = vpop.f32.mrb[0].mxu0
      %v5520 = vadd.f32 0.0, %v5519
      %v5521 = vpop.f32.mrb[0].mxu0
      %5522 = vmatprep.mubr.f32.mxu0 0.0
      %5523 = vmatmul.mubr.f32.gmra.mrb[0].mxu0 %v1850
      %v5524 = vpop.f32.mrb[0].mxu0
      %v5525 = vadd.f32 0.0, %v5524
      %v5526 = vpop.f32.mrb[0].mxu0
      %5527 = vmatprep.mubr.f32.mxu0 0.0
      %5528 = vmatmul.mubr.f32.gmra.mrb[0].mxu0 %v1852
      %v5529 = vpop.f32.mrb[0].mxu0
      %v5530 = vadd.f32 0.0, %v5529
      %v5531 = vpop.f32.mrb[0].mxu0
      %5532 = vmatprep.mubr.f32.mxu0 0.0
      %5533 = vmatmul.mubr.f32.gmra.mrb[0].mxu0 %v1854
      %v5534 = vpop.f32.mrb[0].mxu0
      %v5535 = vadd.f32 0.0, %v5534
      %v5536 = vpop.f32.mrb[0].mxu0
      %5537 = vmatprep.mubr.f32.mxu0 0.0
      %5538 = vmatmul.mubr.f32.gmra.mrb[0].mxu0 %v1856
      %v5539 = vpop.f32.mrb[0].mxu0
      %v5540 = vadd.f32 0.0, %v5539
      %v5541 = vpop.f32.mrb[0].mxu0
      %5542 = vmatprep.mubr.f32.mxu0 0.0
      %5543 = vmatmul.mubr.f32.gmra.mrb[0].mxu0 %v1858
      %v5544 = vpop.f32.mrb[0].mxu0
      %v5545 = vadd.f32 0.0, %v5544
      %v5546 = vpop.f32.mrb[0].mxu0
      %5547 = vmatprep.mubr.f32.mxu0 0.0
      %5548 = vmatmul.mubr.f32.gmra.mrb[0].mxu0 %v3514
      %v5549 = vpop.f32.mrb[0].mxu0
      %v5550 = vadd.f32 0.0, %v5549
      %v5551 = vpop.f32.mrb[0].mxu0
      %5552 = vmatprep.mubr.f32.mxu0 0.0
      %5553 = vmatmul.mubr.f32.gmra.mrb[0].mxu0 %v5142
      %v5554 = vpop.f32.mrb[0].mxu0
      %v5555 = vadd.f32 0.0, %v5554
      %v5556 = vpop.f32.mrb[0].mxu0
      %5557 = vmatprep.mubr.f32.mxu0 0.0
      %5558 = vmatmul.mubr.f32.gmra.mrb[0].mxu0 %v1864
      %v5559 = vpop.f32.mrb[0].mxu0
      %v5560 = vadd.f32 0.0, %v5559
      %v5561 = vpop.f32.mrb[0].mxu0
      %5562 = vmatprep.mubr.f32.mxu0 0.0
      %5563 = vmatmul.mubr.f32.gmra.mrb[0].mxu0 %v1866
      %v5564 = vpop.f32.mrb[0].mxu0
      %v5565 = vadd.f32 0.0, %v5564
      %v5566 = vpop.f32.mrb[0].mxu0
      %5567 = vmatprep.mubr.f32.mxu0 0.0
      %5568 = vmatmul.mubr.f32.gmra.mrb[0].mxu0 %v1868
      %v5569 = vpop.f32.mrb[0].mxu0
      %v5570 = vadd.f32 0.0, %v5569
      %v5571 = vpop.f32.mrb[0].mxu0
      %5572 = vmatprep.mubr.f32.mxu0 0.0
      %5573 = vmatmul.mubr.f32.gmra.mrb[0].mxu0 %v1870
      %v5574 = vpop.f32.mrb[0].mxu0
      %v5575 = vadd.f32 0.0, %v5574
      %v5576 = vpop.f32.mrb[0].mxu0
      %5577 = vmatprep.mubr.f32.mxu0 0.0
      %5578 = vmatmul.mubr.f32.gmra.mrb[0].mxu0 %v1872
      %v5579 = vpop.f32.mrb[0].mxu0
      %v5580 = vadd.f32 0.0, %v5579
      %v5581 = vpop.f32.mrb[0].mxu0
      %5582 = vmatprep.mubr.f32.mxu0 0.0
      %5583 = vmatmul.mubr.f32.gmra.mrb[0].mxu0 %v1874
      %v5584 = vpop.f32.mrb[0].mxu0
      %v5585 = vadd.f32 0.0, %v5584
      %v5586 = vpop.f32.mrb[0].mxu0
      %5587 = vmatprep.mubr.f32.mxu0 0.0
      %5588 = vmatmul.mubr.f32.gmra.mrb[0].mxu0 %v3516
      %v5589 = vpop.f32.mrb[0].mxu0
      %v5590 = vadd.f32 0.0, %v5589
      %v5591 = vpop.f32.mrb[0].mxu0
      %5592 = vmatprep.mubr.f32.mxu0 0.0
      %5593 = vmatmul.mubr.f32.gmra.mrb[0].mxu0 %v5144
      %v5594 = vpop.f32.mrb[0].mxu0
      %v5595 = vadd.f32 0.0, %v5594
      %v5596 = vpop.f32.mrb[0].mxu0
      %5597 = vmatprep.mubr.f32.mxu0 0.0
      %5598 = vmatmul.mubr.f32.gmra.mrb[0].mxu0 %v1880
      %v5599 = vpop.f32.mrb[0].mxu0
      %v5600 = vadd.f32 0.0, %v5599
      %v5601 = vpop.f32.mrb[0].mxu0
      %5602 = vmatprep.mubr.f32.mxu0 0.0
      %5603 = vmatmul.mubr.f32.gmra.mrb[0].mxu0 %v1882
      %v5604 = vpop.f32.mrb[0].mxu0
      %v5605 = vadd.f32 0.0, %v5604
      %v5606 = vpop.f32.mrb[0].mxu0
      %5607 = vmatprep.mubr.f32.mxu0 0.0
      %5608 = vmatmul.mubr.f32.gmra.mrb[0].mxu0 %v1884
      %v5609 = vpop.f32.mrb[0].mxu0
      %v5610 = vadd.f32 0.0, %v5609
      %v5611 = vpop.f32.mrb[0].mxu0
      %5612 = vmatprep.mubr.f32.mxu0 0.0
      %5613 = vmatmul.mubr.f32.gmra.mrb[0].mxu0 %v1886
      %v5614 = vpop.f32.mrb[0].mxu0
      %v5615 = vadd.f32 0.0, %v5614
      %v5616 = vpop.f32.mrb[0].mxu0
      %5617 = vmatprep.mubr.f32.mxu0 0.0
      %5618 = vmatmul.mubr.f32.gmra.mrb[0].mxu0 %v1888
      %v5619 = vpop.f32.mrb[0].mxu0
      %v5620 = vadd.f32 0.0, %v5619
      %v5621 = vpop.f32.mrb[0].mxu0
      %5622 = vmatprep.mubr.f32.mxu0 0.0
      %5623 = vmatmul.mubr.f32.gmra.mrb[0].mxu0 %v1890
      %v5624 = vpop.f32.mrb[0].mxu0
      %v5625 = vadd.f32 0.0, %v5624
      %v5626 = vpop.f32.mrb[0].mxu0
      %5627 = vmatprep.mubr.f32.mxu0 0.0
      %5628 = vmatmul.mubr.f32.gmra.mrb[0].mxu0 %v3518
      %v5629 = vpop.f32.mrb[0].mxu0
      %v5630 = vadd.f32 0.0, %v5629
      %v5631 = vpop.f32.mrb[0].mxu0
      %5632 = vmatprep.mubr.f32.mxu0 0.0
      %5633 = vmatmul.mubr.f32.gmra.mrb[0].mxu0 %v5146
      %v5634 = vpop.f32.mrb[0].mxu0
      %v5635 = vadd.f32 0.0, %v5634
      %v5636 = vpop.f32.mrb[0].mxu0
      %5637 = vdwg.mxu0
      %v5638 = vadd.f32 %v5094, %v5480
      %v5639 = vadd.f32 %v5095, %v5485
      %v5640 = vadd.f32 %v5096, %v5490
      %v5641 = vadd.f32 %v5097, %v5495
      %v5642 = vadd.f32 %v5098, %v5500
      %v5643 = vadd.f32 %v5099, %v5505
      %v5644 = vadd.f32 %v5100, %v5510
      %v5645 = vadd.f32 %v5101, %v5515
      %v5646 = vadd.f32 %v5102, %v5520
      %v5647 = vadd.f32 %v5103, %v5525
      %v5648 = vadd.f32 %v5104, %v5530
      %v5649 = vadd.f32 %v5105, %v5535
      %v5650 = vadd.f32 %v5106, %v5540
      %v5651 = vadd.f32 %v5107, %v5545
      %v5652 = vadd.f32 %v5108, %v5550
      %v5653 = vadd.f32 %v5109, %v5555
      %v5654 = vadd.f32 %v5110, %v5560
      %v5655 = vadd.f32 %v5111, %v5565
      %v5656 = vadd.f32 %v5112, %v5570
      %v5657 = vadd.f32 %v5113, %v5575
      %v5658 = vadd.f32 %v5114, %v5580
      %v5659 = vadd.f32 %v5115, %v5585
      %v5660 = vadd.f32 %v5116, %v5590
      %v5661 = vadd.f32 %v5117, %v5595
      %v5662 = vadd.f32 %v5118, %v5600
      %v5663 = vadd.f32 %v5119, %v5605
      %v5664 = vadd.f32 %v5120, %v5610
      %v5665 = vadd.f32 %v5121, %v5615
      %v5666 = vadd.f32 %v5122, %v5620
      %v5667 = vadd.f32 %v5123, %v5625
      %v5668 = vadd.f32 %v5124, %v5630
      %v5669 = vadd.f32 %v5125, %v5635
      %v5670 = vld [vmem:[%s3] sm:$0x1]
      %v5672 = vlaneseq
      %v5673 = vshrl.u32 %v5672, 7
      %v5674 = vsub.s32 0, %v5673
      %v5675 = vrot.slane %v5670, %v5674
      %v5677 = vadd.f32 %v5376, %v5675
      %v5678 = vadd.f32 %v5377, %v5675
      %v5679 = vadd.f32 %v5378, %v5675
      %v5680 = vadd.f32 %v5379, %v5675
      %v5681 = vadd.f32 %v5380, %v5675
      %v5682 = vadd.f32 %v5381, %v5675
      %v5683 = vadd.f32 %v5382, %v5675
      %v5684 = vadd.f32 %v5383, %v5675
      %v5685 = vadd.f32 %v5384, %v5675
      %v5686 = vadd.f32 %v5385, %v5675
      %v5687 = vadd.f32 %v5386, %v5675
      %v5688 = vadd.f32 %v5387, %v5675
      %v5689 = vadd.f32 %v5388, %v5675
      %v5690 = vadd.f32 %v5389, %v5675
      %v5691 = vadd.f32 %v5390, %v5675
      %v5692 = vadd.f32 %v5391, %v5675
      %v5693 = vadd.f32 %v5392, %v5675
      %v5694 = vadd.f32 %v5393, %v5675
      %v5695 = vadd.f32 %v5394, %v5675
      %v5696 = vadd.f32 %v5395, %v5675
      %v5697 = vadd.f32 %v5396, %v5675
      %v5698 = vadd.f32 %v5397, %v5675
      %v5699 = vadd.f32 %v5398, %v5675
      %v5700 = vadd.f32 %v5399, %v5675
      %v5701 = vadd.f32 %v5400, %v5675
      %v5702 = vadd.f32 %v5401, %v5675
      %v5703 = vadd.f32 %v5402, %v5675
      %v5704 = vadd.f32 %v5403, %v5675
      %v5705 = vadd.f32 %v5404, %v5675
      %v5706 = vadd.f32 %v5405, %v5675
      %v5707 = vadd.f32 %v5406, %v5675
      %v5708 = vadd.f32 %v5407, %v5675
      %5709 = vst.msk [vmem:[%s267] sm:$0xff] %vm276, %v5677
      %5710 = vst.msk [vmem:[%s267 + $0x8] sm:$0xff] %vm276, %v5678
      %5711 = vst.msk [vmem:[%s267 + $0x10] sm:$0xff] %vm276, %v5679
      %5712 = vst.msk [vmem:[%s267 + $0x18] sm:$0xff] %vm276, %v5680
      %5713 = vst.msk [vmem:[%s267 + $0x20] sm:$0xff] %vm276, %v5681
      %5714 = vst.msk [vmem:[%s267 + $0x28] sm:$0xff] %vm276, %v5682
      %5715 = vst.msk [vmem:[%s267 + $0x30] sm:$0xff] %vm276, %v5683
      %5716 = vst.msk [vmem:[%s267 + $0x38] sm:$0xff] %vm276, %v5684
      %5717 = vst.msk [vmem:[%s267 + $0x40] sm:$0xff] %vm276, %v5685
      %5718 = vst.msk [vmem:[%s267 + $0x48] sm:$0xff] %vm276, %v5686
      %5719 = vst.msk [vmem:[%s267 + $0x50] sm:$0xff] %vm276, %v5687
      %5720 = vst.msk [vmem:[%s267 + $0x58] sm:$0xff] %vm276, %v5688
      %5721 = vst.msk [vmem:[%s267 + $0x60] sm:$0xff] %vm276, %v5689
      %5722 = vst.msk [vmem:[%s267 + $0x68] sm:$0xff] %vm276, %v5690
      %5723 = vst.msk [vmem:[%s267 + $0x70] sm:$0xff] %vm276, %v5691
      %5724 = vst.msk [vmem:[%s267 + $0x78] sm:$0xff] %vm276, %v5692
      %5725 = vst.msk [vmem:[%s267 + $0x80] sm:$0xff] %vm276, %v5693
      %5726 = vst.msk [vmem:[%s267 + $0x88] sm:$0xff] %vm276, %v5694
      %5727 = vst.msk [vmem:[%s267 + $0x90] sm:$0xff] %vm276, %v5695
      %5728 = vst.msk [vmem:[%s267 + $0x98] sm:$0xff] %vm276, %v5696
      %5729 = vst.msk [vmem:[%s267 + $0xa0] sm:$0xff] %vm276, %v5697
      %5730 = vst.msk [vmem:[%s267 + $0xa8] sm:$0xff] %vm276, %v5698
      %5731 = vst.msk [vmem:[%s267 + $0xb0] sm:$0xff] %vm276, %v5699
      %5732 = vst.msk [vmem:[%s267 + $0xb8] sm:$0xff] %vm276, %v5700
      %5733 = vst.msk [vmem:[%s267 + $0xc0] sm:$0xff] %vm276, %v5701
      %5734 = vst.msk [vmem:[%s267 + $0xc8] sm:$0xff] %vm276, %v5702
      %5735 = vst.msk [vmem:[%s267 + $0xd0] sm:$0xff] %vm276, %v5703
      %5736 = vst.msk [vmem:[%s267 + $0xd8] sm:$0xff] %vm276, %v5704
      %5737 = vst.msk [vmem:[%s267 + $0xe0] sm:$0xff] %vm276, %v5705
      %5738 = vst.msk [vmem:[%s267 + $0xe8] sm:$0xff] %vm276, %v5706
      %5739 = vst.msk [vmem:[%s267 + $0xf0] sm:$0xff] %vm276, %v5707
      %5740 = vst.msk [vmem:[%s267 + $0xf8] sm:$0xff] %vm276, %v5708
      %v5741 = vld [vmem:[%s4] sm:$0x1]
      %v5743 = vlaneseq
      %v5744 = vshrl.u32 %v5743, 7
      %v5745 = vsub.s32 0, %v5744
      %v5746 = vrot.slane %v5741, %v5745
      %v5748 = vadd.f32 %v5638, %v5746
      %v5749 = vadd.f32 %v5639, %v5746
      %v5750 = vadd.f32 %v5640, %v5746
      %v5751 = vadd.f32 %v5641, %v5746
      %v5752 = vadd.f32 %v5642, %v5746
      %v5753 = vadd.f32 %v5643, %v5746
      %v5754 = vadd.f32 %v5644, %v5746
      %v5755 = vadd.f32 %v5645, %v5746
      %v5756 = vadd.f32 %v5646, %v5746
      %v5757 = vadd.f32 %v5647, %v5746
      %v5758 = vadd.f32 %v5648, %v5746
      %v5759 = vadd.f32 %v5649, %v5746
      %v5760 = vadd.f32 %v5650, %v5746
      %v5761 = vadd.f32 %v5651, %v5746
      %v5762 = vadd.f32 %v5652, %v5746
      %v5763 = vadd.f32 %v5653, %v5746
      %v5764 = vadd.f32 %v5654, %v5746
      %v5765 = vadd.f32 %v5655, %v5746
      %v5766 = vadd.f32 %v5656, %v5746
      %v5767 = vadd.f32 %v5657, %v5746
      %v5768 = vadd.f32 %v5658, %v5746
      %v5769 = vadd.f32 %v5659, %v5746
      %v5770 = vadd.f32 %v5660, %v5746
      %v5771 = vadd.f32 %v5661, %v5746
      %v5772 = vadd.f32 %v5662, %v5746
      %v5773 = vadd.f32 %v5663, %v5746
      %v5774 = vadd.f32 %v5664, %v5746
      %v5775 = vadd.f32 %v5665, %v5746
      %v5776 = vadd.f32 %v5666, %v5746
      %v5777 = vadd.f32 %v5667, %v5746
      %v5778 = vadd.f32 %v5668, %v5746
      %v5779 = vadd.f32 %v5669, %v5746
      %5780 = vst.msk [vmem:[%s274] sm:$0xff] %vm276, %v5748
      %5781 = vst.msk [vmem:[%s274 + $0x8] sm:$0xff] %vm276, %v5749
      %5782 = vst.msk [vmem:[%s274 + $0x10] sm:$0xff] %vm276, %v5750
      %5783 = vst.msk [vmem:[%s274 + $0x18] sm:$0xff] %vm276, %v5751
      %5784 = vst.msk [vmem:[%s274 + $0x20] sm:$0xff] %vm276, %v5752
      %5785 = vst.msk [vmem:[%s274 + $0x28] sm:$0xff] %vm276, %v5753
      %5786 = vst.msk [vmem:[%s274 + $0x30] sm:$0xff] %vm276, %v5754
      %5787 = vst.msk [vmem:[%s274 + $0x38] sm:$0xff] %vm276, %v5755
      %5788 = vst.msk [vmem:[%s274 + $0x40] sm:$0xff] %vm276, %v5756
      %5789 = vst.msk [vmem:[%s274 + $0x48] sm:$0xff] %vm276, %v5757
      %5790 = vst.msk [vmem:[%s274 + $0x50] sm:$0xff] %vm276, %v5758
      %5791 = vst.msk [vmem:[%s274 + $0x58] sm:$0xff] %vm276, %v5759
      %5792 = vst.msk [vmem:[%s274 + $0x60] sm:$0xff] %vm276, %v5760
      %5793 = vst.msk [vmem:[%s274 + $0x68] sm:$0xff] %vm276, %v5761
      %5794 = vst.msk [vmem:[%s274 + $0x70] sm:$0xff] %vm276, %v5762
      %5795 = vst.msk [vmem:[%s274 + $0x78] sm:$0xff] %vm276, %v5763
      %5796 = vst.msk [vmem:[%s274 + $0x80] sm:$0xff] %vm276, %v5764
      %5797 = vst.msk [vmem:[%s274 + $0x88] sm:$0xff] %vm276, %v5765
      %5798 = vst.msk [vmem:[%s274 + $0x90] sm:$0xff] %vm276, %v5766
      %5799 = vst.msk [vmem:[%s274 + $0x98] sm:$0xff] %vm276, %v5767
      %5800 = vst.msk [vmem:[%s274 + $0xa0] sm:$0xff] %vm276, %v5768
      %5801 = vst.msk [vmem:[%s274 + $0xa8] sm:$0xff] %vm276, %v5769
      %5802 = vst.msk [vmem:[%s274 + $0xb0] sm:$0xff] %vm276, %v5770
      %5803 = vst.msk [vmem:[%s274 + $0xb8] sm:$0xff] %vm276, %v5771
      %5804 = vst.msk [vmem:[%s274 + $0xc0] sm:$0xff] %vm276, %v5772
      %5805 = vst.msk [vmem:[%s274 + $0xc8] sm:$0xff] %vm276, %v5773
      %5806 = vst.msk [vmem:[%s274 + $0xd0] sm:$0xff] %vm276, %v5774
      %5807 = vst.msk [vmem:[%s274 + $0xd8] sm:$0xff] %vm276, %v5775
      %5808 = vst.msk [vmem:[%s274 + $0xe0] sm:$0xff] %vm276, %v5776
      %5809 = vst.msk [vmem:[%s274 + $0xe8] sm:$0xff] %vm276, %v5777
      %5810 = vst.msk [vmem:[%s274 + $0xf0] sm:$0xff] %vm276, %v5778
      %5811 = vst.msk [vmem:[%s274 + $0xf8] sm:$0xff] %vm276, %v5779
      %s5812 = smul.u32 4, %s18
      %p5813 = scmp.lt.s32.totalorder %s5812, 7
      %s5814 = scalar_select %p5813, %s5812, 7
      %s5815 = smul.addr %s5814, 8
      %s5816 = smul.addr %s5815, 8
      %s5817 = scalar_lea.vmem %s5, %s5816
      %s5818 = smul.u32 4, %s18
      %p5819 = scmp.lt.s32.totalorder %s5818, 7
      %s5820 = scalar_select %p5819, %s5818, 7
      %s5821 = smul.addr %s5820, 8
      %s5822 = smul.addr %s5821, 8
      %s5823 = scalar_lea.vmem %s6, %s5822
      // Predicated region
      $region41: #{tpu_custom_call.1} parent=39 // pred_check
        %p5824 = pneg %p146
      $region42: #{tpu_custom_call.1} parent=39 // pred_check_branch
        %5826 = sbr.rel (%p5824) target = $region44
      $region43: #{tpu_custom_call.1} parent=39 // pred_region
        %s5827 = smul.u32 4, %s18
      $region44: #{tpu_custom_call.1} parent=39 // pred_fallthru
        _
      // Predicated region
      $region45: #{tpu_custom_call.1} parent=39 // pred_check
        %p5828 = pneg %p172
      $region46: #{tpu_custom_call.1} parent=39 // pred_check_branch
        %5830 = sbr.rel (%p5828) target = $region48
      $region47: #{tpu_custom_call.1} parent=39 // pred_region
        %s5831 = smul.u32 4, %s18
      $region48: #{tpu_custom_call.1} parent=39 // pred_fallthru
        _
    $region40: #{tpu_custom_call.1} parent=5 // pred_fallthru
      _
    %p5832 = scmp.le.s32.totalorder 2, %s13
    // Predicated region
    $region49: #{tpu_custom_call.1} parent=5 // pred_check
      %p5833 = pneg %p5832
    $region50: #{tpu_custom_call.1} parent=5 // pred_check_branch
      %5835 = sbr.rel (%p5833) target = $region52
    $region51: #{tpu_custom_call.1} parent=5 // pred_region
      %s5836 = ssub.s32 %s13, 2
      // Predicated region
      $region53: #{tpu_custom_call.1} parent=51 // pred_check
        %p5837 = pneg %p152
      $region54: #{tpu_custom_call.1} parent=51 // pred_check_branch
        %5839 = sbr.rel (%p5837) target = $region56
      $region55: #{tpu_custom_call.1} parent=51 // pred_region
        %s5840 = smul.u32 4, %s19
        %p5841 = scmp.lt.s32.totalorder %s5840, 7
        %s5842 = scalar_select %p5841, %s5840, 7
        %s5843 = smul.addr %s5842, 8
        %s5844 = smul.addr %s5843, 8
        %s5845 = scalar_lea.vmem %s5, %s5844
      $region56: #{tpu_custom_call.1} parent=51 // pred_fallthru
        _
      // Predicated region
      $region57: #{tpu_custom_call.1} parent=51 // pred_check
        %p5846 = pneg %p178
      $region58: #{tpu_custom_call.1} parent=51 // pred_check_branch
        %5848 = sbr.rel (%p5846) target = $region60
      $region59: #{tpu_custom_call.1} parent=51 // pred_region
        %s5849 = smul.u32 4, %s19
        %p5850 = scmp.lt.s32.totalorder %s5849, 7
        %s5851 = scalar_select %p5850, %s5849, 7
        %s5852 = smul.addr %s5851, 8
        %s5853 = smul.addr %s5852, 8
        %s5854 = scalar_lea.vmem %s6, %s5853
      $region60: #{tpu_custom_call.1} parent=51 // pred_fallthru
        _
    $region52: #{tpu_custom_call.1} parent=5 // pred_fallthru
      _
  $region6: #{tpu_custom_call.1} parent=0 // loop_footer
    %s17 = sadd.s32 1, %s13
  $region7: #{tpu_custom_call.1} parent=0 // loop_footer_branch
    %12 = sbr.rel target = $region3
  $region8: #{tpu_custom_call.1} parent=0 // loop_exit
    _

</llo_original>
